<compile_context>
chip_gen: v6e
topology: v6e:2x2x1
jax: 0.10.0
libtpu: 0.0.40
codegen_flags: <defaults>
</compile_context>

<pallas_src>
import functools

import numpy as np
import jax
import jax.numpy as jnp
from jax.experimental import pallas as pl
from jax.experimental.pallas import tpu as pltpu


OUT_LANES = 128   # merged output row: lane0=exp_x/img, lane1=exp_y/img, lane2=exit logit
_TAPS = tuple((dy, dx) for dy in (-1, 0, 1) for dx in (-1, 0, 1))


def _tap_masks(B, H, W):
    """(9, 1, B*H*W) f32 validity masks: zero-padding borders + batch seams."""
    HW = H * W
    pos = np.arange(B * HW) % HW
    yy, xx = pos // W, pos % W
    masks = []
    for dy, dx in _TAPS:
        ok = np.ones(B * HW, dtype=bool)
        if dy == -1:
            ok &= yy >= 1
        elif dy == 1:
            ok &= yy <= H - 2
        if dx == -1:
            ok &= xx >= 1
        elif dx == 1:
            ok &= xx <= W - 2
        masks.append(ok)
    return jnp.asarray(np.stack(masks)[:, None, :].astype(np.float32))


# ----------------------------------------------------------------------------
# Fused kernel: both corner towers + softmax / soft-argmax + exit MLP, one step
# ----------------------------------------------------------------------------
def fused_corner_exit(x, conv_w, conv_scale, conv_shift, w5, b5, cx_all, cy_all,
                      ew1, eb1, ew2, eb2, ew3, eb3, *, feat_sz, img_sz):
    """x: (B, Cin, HW) channels-first.  conv_w[l]: (2, 9, cout, cin) bf16 per-tap
    weights (tower 0 = tl, 1 = br).  conv_scale/shift[l]: (2, cout, 1) folded BN.
    w5: (2, C4, 1), b5: (2, 1, 1).  cx_all/cy_all: (2, B, HW) delta-coord grids.
    Exit MLP (shared by both towers): ew1 (HW,F), eb1 (1,F), ew2 (F,F), eb2 (1,F),
    ew3 (F,1), eb3 (1,1)."""
    B, Cin, HW = x.shape
    H = W = feat_sz
    BHW = B * HW
    n_towers = conv_w[0].shape[0]
    inv_img = 1.0 / float(img_sz)
    masks = _tap_masks(B, H, W)                       # (9, 1, BHW) f32, trace-time constant

    def kernel(x_ref, mask_ref,
               cw1_ref, cs1_ref, ch1_ref,
               cw2_ref, cs2_ref, ch2_ref,
               cw3_ref, cs3_ref, ch3_ref,
               cw4_ref, cs4_ref, ch4_ref,
               w5_ref, b5_ref, cx_ref, cy_ref,
               ew1_ref, eb1_ref, ew2_ref, eb2_ref, ew3_ref, eb3_ref,
               out_ref):
        # ---- channels-major input: (Cin, B*HW) with B*HW on the 128-lane axis
        xv = x_ref[...]                                                # (B, Cin, HW)
        x_cm = jnp.concatenate([xv[b] for b in range(B)], axis=-1)     # (Cin, BHW)

        layer_refs = ((cw1_ref, cs1_ref, ch1_ref), (cw2_ref, cs2_ref, ch2_ref),
                      (cw3_ref, cs3_ref, ch3_ref), (cw4_ref, cs4_ref, ch4_ref))

        for t in range(n_towers):                      # tl / br, unrolled in-body
            cur = x_cm                                 # f32 (cin, BHW) register value
            # ---- 4 x (3x3 conv + folded BN + ReLU): 9 accumulating MXU dots each
            for w_ref, sc_ref, sh_ref in layer_refs:
                cout = w_ref.shape[2]
                acc = jnp.zeros((cout, BHW), jnp.float32)
                for k, (dy, dx) in enumerate(_TAPS):
                    off = dy * W + dx
                    if off == 0:
                        tap = cur
                    else:
                        tap = pltpu.roll(cur, shift=(-off) % BHW, axis=1) * mask_ref[k]
                    acc = acc + jnp.dot(w_ref[t, k], tap.astype(jnp.bfloat16),
                                        preferred_element_type=jnp.float32)
                cur = jnp.maximum(acc * sc_ref[t] + sh_ref[t], 0.0)    # (cout, BHW) f32

            # ---- conv5 (1x1) on the VPU -> raw score map (1, BHW)
            score_flat = jnp.sum(cur * w5_ref[t], axis=0, keepdims=True) + b5_ref[t]
            # per-batch rows (B, HW): lane slices at multiples of HW + sublane stack
            score_vec = jnp.concatenate(
                [score_flat[:, b * HW:(b + 1) * HW] for b in range(B)], axis=0)

            # ---- numerically stable softmax + soft-argmax with the delta grid
            m = jnp.max(score_vec, axis=-1, keepdims=True)
            e = jnp.exp(score_vec - m)
            prob = e / jnp.sum(e, axis=-1, keepdims=True)
            exp_x = jnp.sum(cx_ref[t] * prob, axis=-1, keepdims=True)  # (B, 1)
            exp_y = jnp.sum(cy_ref[t] * prob, axis=-1, keepdims=True)
            coord = jnp.concatenate([exp_x, exp_y], axis=-1) * inv_img  # (B, 2)

            # ---- exit MLP on the RAW score vector (Dropout = identity in eval)
            h1 = jnp.maximum(jnp.dot(score_vec, ew1_ref[...],
                                     preferred_element_type=jnp.float32)
                             + eb1_ref[...], 0.0)                       # (B, F)
            h2 = jnp.maximum(jnp.dot(h1, ew2_ref[...],
                                     preferred_element_type=jnp.float32)
                             + eb2_ref[...], 0.0)                       # (B, F)
            exit_logit = (jnp.dot(h2, ew3_ref[...],
                                  preferred_element_type=jnp.float32)
                          + eb3_ref[...])                               # (B, 1)

            # ---- one lane-dense (B, OUT_LANES) store per tower
            pad = jnp.zeros((B, OUT_LANES - 3), jnp.float32)
            out_ref[t] = jnp.concatenate([coord, exit_logit, pad], axis=-1)

    vmem = pl.BlockSpec(memory_space=pltpu.MemorySpace.VMEM)
    n_inputs = 24
    out = pl.pallas_call(
        kernel,
        out_shape=jax.ShapeDtypeStruct((n_towers, B, OUT_LANES), jnp.float32),
        in_specs=[vmem] * n_inputs,
        out_specs=vmem,
    )(x, masks,
      conv_w[0], conv_scale[0], conv_shift[0],
      conv_w[1], conv_scale[1], conv_shift[1],
      conv_w[2], conv_scale[2], conv_shift[2],
      conv_w[3], conv_scale[3], conv_shift[3],
      w5, b5, cx_all, cy_all, ew1, eb1, ew2, eb2, ew3, eb3)
    return out


# ----------------------------------------------------------------------------
# Parameter construction (deterministic, synthetic, inference-mode BN folded)
# ----------------------------------------------------------------------------
def init_params(key, inplanes, channel, feat_sz):
    eps = 1e-5
    HW = feat_sz * feat_sz
    F = feat_sz
    chans = [inplanes, channel, channel // 2, channel // 4, channel // 8]
    keys = list(jax.random.split(key, 32))
    ki = iter(keys)

    def conv_bn_folded(k, cin, cout):
        kw, kb, kg, kbe, km, kv = jax.random.split(k, 6)
        w = jax.random.normal(kw, (3, 3, cin, cout), jnp.float32) / jnp.sqrt(9.0 * cin)
        b = 0.01 * jax.random.normal(kb, (cout,), jnp.float32)
        gamma = 1.0 + 0.1 * jax.random.normal(kg, (cout,), jnp.float32)
        beta = 0.01 * jax.random.normal(kbe, (cout,), jnp.float32)
        mean = 0.01 * jax.random.normal(km, (cout,), jnp.float32)
        var = 1.0 + 0.1 * jax.random.uniform(kv, (cout,), jnp.float32)
        scale = gamma / jnp.sqrt(var + eps)
        shift = (b - mean) * scale + beta
        # per-tap weight, tap index t = (dy+1)*3 + (dx+1), laid out (9, cout, cin)
        w_tap = jnp.transpose(w.reshape(9, cin, cout), (0, 2, 1))
        return w_tap, scale, shift

    conv_w, conv_scale, conv_shift = [], [], []
    for l in range(4):
        cin, cout = chans[l], chans[l + 1]
        w_tl, s_tl, h_tl = conv_bn_folded(next(ki), cin, cout)
        w_br, s_br, h_br = conv_bn_folded(next(ki), cin, cout)
        conv_w.append(jnp.stack([w_tl, w_br], axis=0).astype(jnp.bfloat16))   # (2,9,cout,cin)
        conv_scale.append(jnp.stack([s_tl, s_br], axis=0).reshape(2, cout, 1))
        conv_shift.append(jnp.stack([h_tl, h_br], axis=0).reshape(2, cout, 1))

    c8 = channel // 8
    w5_tl = 0.1 * jax.random.normal(next(ki), (c8,), jnp.float32)
    w5_br = 0.1 * jax.random.normal(next(ki), (c8,), jnp.float32)
    b5_tl = 0.01 * jax.random.normal(next(ki), (), jnp.float32)
    b5_br = 0.01 * jax.random.normal(next(ki), (), jnp.float32)

    params = {
        "conv_w": conv_w, "conv_scale": conv_scale, "conv_shift": conv_shift,
        "w5": jnp.stack([w5_tl, w5_br], axis=0).reshape(2, c8, 1),
        "b5": jnp.stack([b5_tl, b5_br], axis=0).reshape(2, 1, 1),
        # exit MLP (shared by both towers)
        "ew1": jax.random.normal(next(ki), (HW, F), jnp.float32) / jnp.sqrt(HW),
        "eb1": 0.01 * jax.random.normal(next(ki), (1, F), jnp.float32),
        "ew2": jax.random.normal(next(ki), (F, F), jnp.float32) / jnp.sqrt(F),
        "eb2": 0.01 * jax.random.normal(next(ki), (1, F), jnp.float32),
        "ew3": jax.random.normal(next(ki), (F, 1), jnp.float32) / jnp.sqrt(F),
        "eb3": 0.01 * jax.random.normal(next(ki), (1, 1), jnp.float32),
    }
    return params


# ----------------------------------------------------------------------------
# Forward pass (return_dist=False path, 4-D input x)
# ----------------------------------------------------------------------------
@functools.partial(jax.jit, static_argnames=("feat_sz", "stride"))
def corner_exit_predictor_forward(params, x_nchw, template_anno, *, feat_sz, stride):
    B, Cin = x_nchw.shape[0], x_nchw.shape[1]
    HW = feat_sz * feat_sz
    img_sz = feat_sz * stride
    # channels-first straight in; only a free NCHW -> (B, Cin, HW) reshape
    x = x_nchw.astype(jnp.float32).reshape(B, Cin, HW)

    # --- make_delta_coord (matches torch: round-half-to-even, coord_x fastest)
    index = jnp.round(template_anno[0] * feat_sz * stride).astype(jnp.int32)
    index = index.astype(jnp.float32)                                        # (B, 4)
    base_x = jnp.tile(jnp.arange(feat_sz, dtype=jnp.float32) * stride, feat_sz)    # (HW,)
    base_y = jnp.repeat(jnp.arange(feat_sz, dtype=jnp.float32) * stride, feat_sz)  # (HW,)
    tl_cx = base_x[None, :] - index[:, 0:1]
    tl_cy = base_y[None, :] - index[:, 1:2]
    br_cx = base_x[None, :] - index[:, 2:3]
    br_cy = base_y[None, :] - index[:, 3:4]
    cx_all = jnp.stack([tl_cx, br_cx], axis=0)      # (2, B, HW)
    cy_all = jnp.stack([tl_cy, br_cy], axis=0)

    out = fused_corner_exit(
        x, params["conv_w"], params["conv_scale"], params["conv_shift"],
        params["w5"], params["b5"], cx_all, cy_all,
        params["ew1"], params["eb1"], params["ew2"], params["eb2"],
        params["ew3"], params["eb3"], feat_sz=feat_sz, img_sz=img_sz)

    # torch.stack((coorx_tl, coory_tl, coorx_br, coory_br), dim=1) / img_sz
    coords = jnp.concatenate([out[0, :, 0:2], out[1, :, 0:2]], axis=-1)      # (B, 4)
    exit_t = out[0, :, 2:3]                                                  # (B, 1)
    exit_b = out[1, :, 2:3]
    return coords, (exit_t, exit_b)


# ----------------------------------------------------------------------------
if __name__ == "__main__":
    # Small shapes consistent with the module: inplanes=8, channel=32, feat_sz=8
    B, inplanes, channel, feat_sz, stride = 2, 8, 32, 8, 16

    key = jax.random.PRNGKey(0)
    kp, kx, kt = jax.random.split(key, 3)

    params = init_params(kp, inplanes, channel, feat_sz)
    x = jax.random.normal(kx, (B, inplanes, feat_sz, feat_sz), jnp.float32)   # NCHW
    template_anno = jax.random.uniform(kt, (1, B, 4), jnp.float32)            # (tn, tb, 4)

    coords, (exit_t, exit_b) = corner_exit_predictor_forward(
        params, x, template_anno, feat_sz=feat_sz, stride=stride)

    jax.block_until_ready(coords)
    jax.block_until_ready(exit_t)
    jax.block_until_ready(exit_b)

    assert coords.shape == (B, 4)
    assert exit_t.shape == (B, 1) and exit_b.shape == (B, 1)
    print("KERNEL_OK")
</pallas_src>

<mosaic_0001>
module attributes {stable_mosaic.version = 11 : i64} {
  func.func @kernel(%arg0: memref<2x8x64xf32, #tpu.memory_space<vmem>>, %arg1: memref<9x1x128xf32, #tpu.memory_space<vmem>>, %arg2: memref<2x9x32x8xbf16, #tpu.memory_space<vmem>>, %arg3: memref<2x32x1xf32, #tpu.memory_space<vmem>>, %arg4: memref<2x32x1xf32, #tpu.memory_space<vmem>>, %arg5: memref<2x9x16x32xbf16, #tpu.memory_space<vmem>>, %arg6: memref<2x16x1xf32, #tpu.memory_space<vmem>>, %arg7: memref<2x16x1xf32, #tpu.memory_space<vmem>>, %arg8: memref<2x9x8x16xbf16, #tpu.memory_space<vmem>>, %arg9: memref<2x8x1xf32, #tpu.memory_space<vmem>>, %arg10: memref<2x8x1xf32, #tpu.memory_space<vmem>>, %arg11: memref<2x9x4x8xbf16, #tpu.memory_space<vmem>>, %arg12: memref<2x4x1xf32, #tpu.memory_space<vmem>>, %arg13: memref<2x4x1xf32, #tpu.memory_space<vmem>>, %arg14: memref<2x4x1xf32, #tpu.memory_space<vmem>>, %arg15: memref<2x1x1xf32, #tpu.memory_space<vmem>>, %arg16: memref<2x2x64xf32, #tpu.memory_space<vmem>>, %arg17: memref<2x2x64xf32, #tpu.memory_space<vmem>>, %arg18: memref<64x8xf32, #tpu.memory_space<vmem>>, %arg19: memref<1x8xf32, #tpu.memory_space<vmem>>, %arg20: memref<8x8xf32, #tpu.memory_space<vmem>>, %arg21: memref<1x8xf32, #tpu.memory_space<vmem>>, %arg22: memref<8x1xf32, #tpu.memory_space<vmem>>, %arg23: memref<1x1xf32, #tpu.memory_space<vmem>>, %arg24: memref<2x2x128xf32, #tpu.memory_space<vmem>>) attributes {dimension_semantics = [], scalar_prefetch = 0 : i64, scratch_operands = 0 : i64, tpu.core_type = #tpu.core_type<tc>} {
    %c0 = arith.constant 0 : index
    %c0_0 = arith.constant 0 : index
    %c0_1 = arith.constant 0 : index
    %0 = vector.load %arg0[%c0, %c0_0, %c0_1] : memref<2x8x64xf32, #tpu.memory_space<vmem>>, vector<2x8x64xf32>
    %1 = vector.extract_strided_slice %0 {offsets = [0, 0, 0], sizes = [1, 8, 64], strides = [1, 1, 1]} : vector<2x8x64xf32> to vector<1x8x64xf32>
    %2 = vector.shape_cast %1 : vector<1x8x64xf32> to vector<8x64xf32>
    %3 = vector.extract_strided_slice %0 {offsets = [1, 0, 0], sizes = [1, 8, 64], strides = [1, 1, 1]} : vector<2x8x64xf32> to vector<1x8x64xf32>
    %4 = vector.shape_cast %3 : vector<1x8x64xf32> to vector<8x64xf32>
    %5 = tpu.concatenate %2, %4 in 1 : vector<8x64xf32>, vector<8x64xf32> -> vector<8x128xf32>
    %cst = arith.constant 0.000000e+00 : f32
    %6 = vector.broadcast %cst : f32 to vector<32x128xf32>
    %c9_i32 = arith.constant 9 : i32
    %7 = tpu.dynamic_rotate %5 by %c9_i32 dim 1 : vector<8x128xf32>, i32 -> vector<8x128xf32>
    %c0_2 = arith.constant 0 : index
    %c0_3 = arith.constant 0 : index
    %c0_4 = arith.constant 0 : index
    %8 = vector.load %arg1[%c0_2, %c0_3, %c0_4] : memref<9x1x128xf32, #tpu.memory_space<vmem>>, vector<1x1x128xf32>
    %9 = vector.shape_cast %8 : vector<1x1x128xf32> to vector<1x128xf32>
    %10 = vector.broadcast %9 : vector<1x128xf32> to vector<8x128xf32>
    %11 = arith.mulf %7, %10 : vector<8x128xf32>
    %c0_5 = arith.constant 0 : index
    %c0_6 = arith.constant 0 : index
    %c0_7 = arith.constant 0 : index
    %c0_8 = arith.constant 0 : index
    %12 = vector.load %arg2[%c0_5, %c0_6, %c0_7, %c0_8] : memref<2x9x32x8xbf16, #tpu.memory_space<vmem>>, vector<1x1x32x8xbf16>
    %13 = vector.shape_cast %12 : vector<1x1x32x8xbf16> to vector<32x8xbf16>
    %14 = arith.truncf %11 : vector<8x128xf32> to vector<8x128xbf16>
    %cst_9 = arith.constant dense<0.000000e+00> : vector<32x128xf32>
    %15 = tpu.matmul %13, %14, %cst_9 {dimension_numbers = #tpu.dot_dimension_numbers<[1], [0], [0], [1], [0, 0, 1, 1], [], []>} : vector<32x8xbf16>, vector<8x128xbf16>, vector<32x128xf32> -> vector<32x128xf32>
    %16 = arith.addf %6, %15 : vector<32x128xf32>
    %c8_i32 = arith.constant 8 : i32
    %17 = tpu.dynamic_rotate %5 by %c8_i32 dim 1 : vector<8x128xf32>, i32 -> vector<8x128xf32>
    %c1 = arith.constant 1 : index
    %c0_10 = arith.constant 0 : index
    %c0_11 = arith.constant 0 : index
    %18 = vector.load %arg1[%c1, %c0_10, %c0_11] : memref<9x1x128xf32, #tpu.memory_space<vmem>>, vector<1x1x128xf32>
    %19 = vector.shape_cast %18 : vector<1x1x128xf32> to vector<1x128xf32>
    %20 = vector.broadcast %19 : vector<1x128xf32> to vector<8x128xf32>
    %21 = arith.mulf %17, %20 : vector<8x128xf32>
    %c0_12 = arith.constant 0 : index
    %c1_13 = arith.constant 1 : index
    %c0_14 = arith.constant 0 : index
    %c0_15 = arith.constant 0 : index
    %22 = vector.load %arg2[%c0_12, %c1_13, %c0_14, %c0_15] : memref<2x9x32x8xbf16, #tpu.memory_space<vmem>>, vector<1x1x32x8xbf16>
    %23 = vector.shape_cast %22 : vector<1x1x32x8xbf16> to vector<32x8xbf16>
    %24 = arith.truncf %21 : vector<8x128xf32> to vector<8x128xbf16>
    %cst_16 = arith.constant dense<0.000000e+00> : vector<32x128xf32>
    %25 = tpu.matmul %23, %24, %cst_16 {dimension_numbers = #tpu.dot_dimension_numbers<[1], [0], [0], [1], [0, 0, 1, 1], [], []>} : vector<32x8xbf16>, vector<8x128xbf16>, vector<32x128xf32> -> vector<32x128xf32>
    %26 = arith.addf %16, %25 : vector<32x128xf32>
    %c7_i32 = arith.constant 7 : i32
    %27 = tpu.dynamic_rotate %5 by %c7_i32 dim 1 : vector<8x128xf32>, i32 -> vector<8x128xf32>
    %c2 = arith.constant 2 : index
    %c0_17 = arith.constant 0 : index
    %c0_18 = arith.constant 0 : index
    %28 = vector.load %arg1[%c2, %c0_17, %c0_18] : memref<9x1x128xf32, #tpu.memory_space<vmem>>, vector<1x1x128xf32>
    %29 = vector.shape_cast %28 : vector<1x1x128xf32> to vector<1x128xf32>
    %30 = vector.broadcast %29 : vector<1x128xf32> to vector<8x128xf32>
    %31 = arith.mulf %27, %30 : vector<8x128xf32>
    %c0_19 = arith.constant 0 : index
    %c2_20 = arith.constant 2 : index
    %c0_21 = arith.constant 0 : index
    %c0_22 = arith.constant 0 : index
    %32 = vector.load %arg2[%c0_19, %c2_20, %c0_21, %c0_22] : memref<2x9x32x8xbf16, #tpu.memory_space<vmem>>, vector<1x1x32x8xbf16>
    %33 = vector.shape_cast %32 : vector<1x1x32x8xbf16> to vector<32x8xbf16>
    %34 = arith.truncf %31 : vector<8x128xf32> to vector<8x128xbf16>
    %cst_23 = arith.constant dense<0.000000e+00> : vector<32x128xf32>
    %35 = tpu.matmul %33, %34, %cst_23 {dimension_numbers = #tpu.dot_dimension_numbers<[1], [0], [0], [1], [0, 0, 1, 1], [], []>} : vector<32x8xbf16>, vector<8x128xbf16>, vector<32x128xf32> -> vector<32x128xf32>
    %36 = arith.addf %26, %35 : vector<32x128xf32>
    %c1_i32 = arith.constant 1 : i32
    %37 = tpu.dynamic_rotate %5 by %c1_i32 dim 1 : vector<8x128xf32>, i32 -> vector<8x128xf32>
    %c3 = arith.constant 3 : index
    %c0_24 = arith.constant 0 : index
    %c0_25 = arith.constant 0 : index
    %38 = vector.load %arg1[%c3, %c0_24, %c0_25] : memref<9x1x128xf32, #tpu.memory_space<vmem>>, vector<1x1x128xf32>
    %39 = vector.shape_cast %38 : vector<1x1x128xf32> to vector<1x128xf32>
    %40 = vector.broadcast %39 : vector<1x128xf32> to vector<8x128xf32>
    %41 = arith.mulf %37, %40 : vector<8x128xf32>
    %c0_26 = arith.constant 0 : index
    %c3_27 = arith.constant 3 : index
    %c0_28 = arith.constant 0 : index
    %c0_29 = arith.constant 0 : index
    %42 = vector.load %arg2[%c0_26, %c3_27, %c0_28, %c0_29] : memref<2x9x32x8xbf16, #tpu.memory_space<vmem>>, vector<1x1x32x8xbf16>
    %43 = vector.shape_cast %42 : vector<1x1x32x8xbf16> to vector<32x8xbf16>
    %44 = arith.truncf %41 : vector<8x128xf32> to vector<8x128xbf16>
    %cst_30 = arith.constant dense<0.000000e+00> : vector<32x128xf32>
    %45 = tpu.matmul %43, %44, %cst_30 {dimension_numbers = #tpu.dot_dimension_numbers<[1], [0], [0], [1], [0, 0, 1, 1], [], []>} : vector<32x8xbf16>, vector<8x128xbf16>, vector<32x128xf32> -> vector<32x128xf32>
    %46 = arith.addf %36, %45 : vector<32x128xf32>
    %c0_31 = arith.constant 0 : index
    %c4 = arith.constant 4 : index
    %c0_32 = arith.constant 0 : index
    %c0_33 = arith.constant 0 : index
    %47 = vector.load %arg2[%c0_31, %c4, %c0_32, %c0_33] : memref<2x9x32x8xbf16, #tpu.memory_space<vmem>>, vector<1x1x32x8xbf16>
    %48 = vector.shape_cast %47 : vector<1x1x32x8xbf16> to vector<32x8xbf16>
    %49 = arith.truncf %5 : vector<8x128xf32> to vector<8x128xbf16>
    %cst_34 = arith.constant dense<0.000000e+00> : vector<32x128xf32>
    %50 = tpu.matmul %48, %49, %cst_34 {dimension_numbers = #tpu.dot_dimension_numbers<[1], [0], [0], [1], [0, 0, 1, 1], [], []>} : vector<32x8xbf16>, vector<8x128xbf16>, vector<32x128xf32> -> vector<32x128xf32>
    %51 = arith.addf %46, %50 : vector<32x128xf32>
    %c127_i32 = arith.constant 127 : i32
    %52 = tpu.dynamic_rotate %5 by %c127_i32 dim 1 : vector<8x128xf32>, i32 -> vector<8x128xf32>
    %c5 = arith.constant 5 : index
    %c0_35 = arith.constant 0 : index
    %c0_36 = arith.constant 0 : index
    %53 = vector.load %arg1[%c5, %c0_35, %c0_36] : memref<9x1x128xf32, #tpu.memory_space<vmem>>, vector<1x1x128xf32>
    %54 = vector.shape_cast %53 : vector<1x1x128xf32> to vector<1x128xf32>
    %55 = vector.broadcast %54 : vector<1x128xf32> to vector<8x128xf32>
    %56 = arith.mulf %52, %55 : vector<8x128xf32>
    %c0_37 = arith.constant 0 : index
    %c5_38 = arith.constant 5 : index
    %c0_39 = arith.constant 0 : index
    %c0_40 = arith.constant 0 : index
    %57 = vector.load %arg2[%c0_37, %c5_38, %c0_39, %c0_40] : memref<2x9x32x8xbf16, #tpu.memory_space<vmem>>, vector<1x1x32x8xbf16>
    %58 = vector.shape_cast %57 : vector<1x1x32x8xbf16> to vector<32x8xbf16>
    %59 = arith.truncf %56 : vector<8x128xf32> to vector<8x128xbf16>
    %cst_41 = arith.constant dense<0.000000e+00> : vector<32x128xf32>
    %60 = tpu.matmul %58, %59, %cst_41 {dimension_numbers = #tpu.dot_dimension_numbers<[1], [0], [0], [1], [0, 0, 1, 1], [], []>} : vector<32x8xbf16>, vector<8x128xbf16>, vector<32x128xf32> -> vector<32x128xf32>
    %61 = arith.addf %51, %60 : vector<32x128xf32>
    %c121_i32 = arith.constant 121 : i32
    %62 = tpu.dynamic_rotate %5 by %c121_i32 dim 1 : vector<8x128xf32>, i32 -> vector<8x128xf32>
    %c6 = arith.constant 6 : index
    %c0_42 = arith.constant 0 : index
    %c0_43 = arith.constant 0 : index
    %63 = vector.load %arg1[%c6, %c0_42, %c0_43] : memref<9x1x128xf32, #tpu.memory_space<vmem>>, vector<1x1x128xf32>
    %64 = vector.shape_cast %63 : vector<1x1x128xf32> to vector<1x128xf32>
    %65 = vector.broadcast %64 : vector<1x128xf32> to vector<8x128xf32>
    %66 = arith.mulf %62, %65 : vector<8x128xf32>
    %c0_44 = arith.constant 0 : index
    %c6_45 = arith.constant 6 : index
    %c0_46 = arith.constant 0 : index
    %c0_47 = arith.constant 0 : index
    %67 = vector.load %arg2[%c0_44, %c6_45, %c0_46, %c0_47] : memref<2x9x32x8xbf16, #tpu.memory_space<vmem>>, vector<1x1x32x8xbf16>
    %68 = vector.shape_cast %67 : vector<1x1x32x8xbf16> to vector<32x8xbf16>
    %69 = arith.truncf %66 : vector<8x128xf32> to vector<8x128xbf16>
    %cst_48 = arith.constant dense<0.000000e+00> : vector<32x128xf32>
    %70 = tpu.matmul %68, %69, %cst_48 {dimension_numbers = #tpu.dot_dimension_numbers<[1], [0], [0], [1], [0, 0, 1, 1], [], []>} : vector<32x8xbf16>, vector<8x128xbf16>, vector<32x128xf32> -> vector<32x128xf32>
    %71 = arith.addf %61, %70 : vector<32x128xf32>
    %c120_i32 = arith.constant 120 : i32
    %72 = tpu.dynamic_rotate %5 by %c120_i32 dim 1 : vector<8x128xf32>, i32 -> vector<8x128xf32>
    %c7 = arith.constant 7 : index
    %c0_49 = arith.constant 0 : index
    %c0_50 = arith.constant 0 : index
    %73 = vector.load %arg1[%c7, %c0_49, %c0_50] : memref<9x1x128xf32, #tpu.memory_space<vmem>>, vector<1x1x128xf32>
    %74 = vector.shape_cast %73 : vector<1x1x128xf32> to vector<1x128xf32>
    %75 = vector.broadcast %74 : vector<1x128xf32> to vector<8x128xf32>
    %76 = arith.mulf %72, %75 : vector<8x128xf32>
    %c0_51 = arith.constant 0 : index
    %c7_52 = arith.constant 7 : index
    %c0_53 = arith.constant 0 : index
    %c0_54 = arith.constant 0 : index
    %77 = vector.load %arg2[%c0_51, %c7_52, %c0_53, %c0_54] : memref<2x9x32x8xbf16, #tpu.memory_space<vmem>>, vector<1x1x32x8xbf16>
    %78 = vector.shape_cast %77 : vector<1x1x32x8xbf16> to vector<32x8xbf16>
    %79 = arith.truncf %76 : vector<8x128xf32> to vector<8x128xbf16>
    %cst_55 = arith.constant dense<0.000000e+00> : vector<32x128xf32>
    %80 = tpu.matmul %78, %79, %cst_55 {dimension_numbers = #tpu.dot_dimension_numbers<[1], [0], [0], [1], [0, 0, 1, 1], [], []>} : vector<32x8xbf16>, vector<8x128xbf16>, vector<32x128xf32> -> vector<32x128xf32>
    %81 = arith.addf %71, %80 : vector<32x128xf32>
    %c119_i32 = arith.constant 119 : i32
    %82 = tpu.dynamic_rotate %5 by %c119_i32 dim 1 : vector<8x128xf32>, i32 -> vector<8x128xf32>
    %c8 = arith.constant 8 : index
    %c0_56 = arith.constant 0 : index
    %c0_57 = arith.constant 0 : index
    %83 = vector.load %arg1[%c8, %c0_56, %c0_57] : memref<9x1x128xf32, #tpu.memory_space<vmem>>, vector<1x1x128xf32>
    %84 = vector.shape_cast %83 : vector<1x1x128xf32> to vector<1x128xf32>
    %85 = vector.broadcast %84 : vector<1x128xf32> to vector<8x128xf32>
    %86 = arith.mulf %82, %85 : vector<8x128xf32>
    %c0_58 = arith.constant 0 : index
    %c8_59 = arith.constant 8 : index
    %c0_60 = arith.constant 0 : index
    %c0_61 = arith.constant 0 : index
    %87 = vector.load %arg2[%c0_58, %c8_59, %c0_60, %c0_61] : memref<2x9x32x8xbf16, #tpu.memory_space<vmem>>, vector<1x1x32x8xbf16>
    %88 = vector.shape_cast %87 : vector<1x1x32x8xbf16> to vector<32x8xbf16>
    %89 = arith.truncf %86 : vector<8x128xf32> to vector<8x128xbf16>
    %cst_62 = arith.constant dense<0.000000e+00> : vector<32x128xf32>
    %90 = tpu.matmul %88, %89, %cst_62 {dimension_numbers = #tpu.dot_dimension_numbers<[1], [0], [0], [1], [0, 0, 1, 1], [], []>} : vector<32x8xbf16>, vector<8x128xbf16>, vector<32x128xf32> -> vector<32x128xf32>
    %91 = arith.addf %81, %90 : vector<32x128xf32>
    %c0_63 = arith.constant 0 : index
    %c0_64 = arith.constant 0 : index
    %c0_65 = arith.constant 0 : index
    %92 = vector.load %arg3[%c0_63, %c0_64, %c0_65] : memref<2x32x1xf32, #tpu.memory_space<vmem>>, vector<1x32x1xf32>
    %93 = vector.shape_cast %92 : vector<1x32x1xf32> to vector<32x1xf32>
    %94 = vector.broadcast %93 : vector<32x1xf32> to vector<32x128xf32>
    %95 = arith.mulf %91, %94 : vector<32x128xf32>
    %c0_66 = arith.constant 0 : index
    %c0_67 = arith.constant 0 : index
    %c0_68 = arith.constant 0 : index
    %96 = vector.load %arg4[%c0_66, %c0_67, %c0_68] : memref<2x32x1xf32, #tpu.memory_space<vmem>>, vector<1x32x1xf32>
    %97 = vector.shape_cast %96 : vector<1x32x1xf32> to vector<32x1xf32>
    %98 = vector.broadcast %97 : vector<32x1xf32> to vector<32x128xf32>
    %99 = arith.addf %95, %98 : vector<32x128xf32>
    %cst_69 = arith.constant 0.000000e+00 : f32
    %100 = vector.broadcast %cst_69 : f32 to vector<32x128xf32>
    %101 = arith.maximumf %99, %100 : vector<32x128xf32>
    %cst_70 = arith.constant 0.000000e+00 : f32
    %102 = vector.broadcast %cst_70 : f32 to vector<16x128xf32>
    %c9_i32_71 = arith.constant 9 : i32
    %103 = tpu.dynamic_rotate %101 by %c9_i32_71 dim 1 : vector<32x128xf32>, i32 -> vector<32x128xf32>
    %c0_72 = arith.constant 0 : index
    %c0_73 = arith.constant 0 : index
    %c0_74 = arith.constant 0 : index
    %104 = vector.load %arg1[%c0_72, %c0_73, %c0_74] : memref<9x1x128xf32, #tpu.memory_space<vmem>>, vector<1x1x128xf32>
    %105 = vector.shape_cast %104 : vector<1x1x128xf32> to vector<1x128xf32>
    %106 = vector.broadcast %105 : vector<1x128xf32> to vector<32x128xf32>
    %107 = arith.mulf %103, %106 : vector<32x128xf32>
    %c0_75 = arith.constant 0 : index
    %c0_76 = arith.constant 0 : index
    %c0_77 = arith.constant 0 : index
    %c0_78 = arith.constant 0 : index
    %108 = vector.load %arg5[%c0_75, %c0_76, %c0_77, %c0_78] : memref<2x9x16x32xbf16, #tpu.memory_space<vmem>>, vector<1x1x16x32xbf16>
    %109 = vector.shape_cast %108 : vector<1x1x16x32xbf16> to vector<16x32xbf16>
    %110 = arith.truncf %107 : vector<32x128xf32> to vector<32x128xbf16>
    %cst_79 = arith.constant dense<0.000000e+00> : vector<16x128xf32>
    %111 = tpu.matmul %109, %110, %cst_79 {dimension_numbers = #tpu.dot_dimension_numbers<[1], [0], [0], [1], [0, 0, 1, 1], [], []>} : vector<16x32xbf16>, vector<32x128xbf16>, vector<16x128xf32> -> vector<16x128xf32>
    %112 = arith.addf %102, %111 : vector<16x128xf32>
    %c8_i32_80 = arith.constant 8 : i32
    %113 = tpu.dynamic_rotate %101 by %c8_i32_80 dim 1 : vector<32x128xf32>, i32 -> vector<32x128xf32>
    %c1_81 = arith.constant 1 : index
    %c0_82 = arith.constant 0 : index
    %c0_83 = arith.constant 0 : index
    %114 = vector.load %arg1[%c1_81, %c0_82, %c0_83] : memref<9x1x128xf32, #tpu.memory_space<vmem>>, vector<1x1x128xf32>
    %115 = vector.shape_cast %114 : vector<1x1x128xf32> to vector<1x128xf32>
    %116 = vector.broadcast %115 : vector<1x128xf32> to vector<32x128xf32>
    %117 = arith.mulf %113, %116 : vector<32x128xf32>
    %c0_84 = arith.constant 0 : index
    %c1_85 = arith.constant 1 : index
    %c0_86 = arith.constant 0 : index
    %c0_87 = arith.constant 0 : index
    %118 = vector.load %arg5[%c0_84, %c1_85, %c0_86, %c0_87] : memref<2x9x16x32xbf16, #tpu.memory_space<vmem>>, vector<1x1x16x32xbf16>
    %119 = vector.shape_cast %118 : vector<1x1x16x32xbf16> to vector<16x32xbf16>
    %120 = arith.truncf %117 : vector<32x128xf32> to vector<32x128xbf16>
    %cst_88 = arith.constant dense<0.000000e+00> : vector<16x128xf32>
    %121 = tpu.matmul %119, %120, %cst_88 {dimension_numbers = #tpu.dot_dimension_numbers<[1], [0], [0], [1], [0, 0, 1, 1], [], []>} : vector<16x32xbf16>, vector<32x128xbf16>, vector<16x128xf32> -> vector<16x128xf32>
    %122 = arith.addf %112, %121 : vector<16x128xf32>
    %c7_i32_89 = arith.constant 7 : i32
    %123 = tpu.dynamic_rotate %101 by %c7_i32_89 dim 1 : vector<32x128xf32>, i32 -> vector<32x128xf32>
    %c2_90 = arith.constant 2 : index
    %c0_91 = arith.constant 0 : index
    %c0_92 = arith.constant 0 : index
    %124 = vector.load %arg1[%c2_90, %c0_91, %c0_92] : memref<9x1x128xf32, #tpu.memory_space<vmem>>, vector<1x1x128xf32>
    %125 = vector.shape_cast %124 : vector<1x1x128xf32> to vector<1x128xf32>
    %126 = vector.broadcast %125 : vector<1x128xf32> to vector<32x128xf32>
    %127 = arith.mulf %123, %126 : vector<32x128xf32>
    %c0_93 = arith.constant 0 : index
    %c2_94 = arith.constant 2 : index
    %c0_95 = arith.constant 0 : index
    %c0_96 = arith.constant 0 : index
    %128 = vector.load %arg5[%c0_93, %c2_94, %c0_95, %c0_96] : memref<2x9x16x32xbf16, #tpu.memory_space<vmem>>, vector<1x1x16x32xbf16>
    %129 = vector.shape_cast %128 : vector<1x1x16x32xbf16> to vector<16x32xbf16>
    %130 = arith.truncf %127 : vector<32x128xf32> to vector<32x128xbf16>
    %cst_97 = arith.constant dense<0.000000e+00> : vector<16x128xf32>
    %131 = tpu.matmul %129, %130, %cst_97 {dimension_numbers = #tpu.dot_dimension_numbers<[1], [0], [0], [1], [0, 0, 1, 1], [], []>} : vector<16x32xbf16>, vector<32x128xbf16>, vector<16x128xf32> -> vector<16x128xf32>
    %132 = arith.addf %122, %131 : vector<16x128xf32>
    %c1_i32_98 = arith.constant 1 : i32
    %133 = tpu.dynamic_rotate %101 by %c1_i32_98 dim 1 : vector<32x128xf32>, i32 -> vector<32x128xf32>
    %c3_99 = arith.constant 3 : index
    %c0_100 = arith.constant 0 : index
    %c0_101 = arith.constant 0 : index
    %134 = vector.load %arg1[%c3_99, %c0_100, %c0_101] : memref<9x1x128xf32, #tpu.memory_space<vmem>>, vector<1x1x128xf32>
    %135 = vector.shape_cast %134 : vector<1x1x128xf32> to vector<1x128xf32>
    %136 = vector.broadcast %135 : vector<1x128xf32> to vector<32x128xf32>
    %137 = arith.mulf %133, %136 : vector<32x128xf32>
    %c0_102 = arith.constant 0 : index
    %c3_103 = arith.constant 3 : index
    %c0_104 = arith.constant 0 : index
    %c0_105 = arith.constant 0 : index
    %138 = vector.load %arg5[%c0_102, %c3_103, %c0_104, %c0_105] : memref<2x9x16x32xbf16, #tpu.memory_space<vmem>>, vector<1x1x16x32xbf16>
    %139 = vector.shape_cast %138 : vector<1x1x16x32xbf16> to vector<16x32xbf16>
    %140 = arith.truncf %137 : vector<32x128xf32> to vector<32x128xbf16>
    %cst_106 = arith.constant dense<0.000000e+00> : vector<16x128xf32>
    %141 = tpu.matmul %139, %140, %cst_106 {dimension_numbers = #tpu.dot_dimension_numbers<[1], [0], [0], [1], [0, 0, 1, 1], [], []>} : vector<16x32xbf16>, vector<32x128xbf16>, vector<16x128xf32> -> vector<16x128xf32>
    %142 = arith.addf %132, %141 : vector<16x128xf32>
    %c0_107 = arith.constant 0 : index
    %c4_108 = arith.constant 4 : index
    %c0_109 = arith.constant 0 : index
    %c0_110 = arith.constant 0 : index
    %143 = vector.load %arg5[%c0_107, %c4_108, %c0_109, %c0_110] : memref<2x9x16x32xbf16, #tpu.memory_space<vmem>>, vector<1x1x16x32xbf16>
    %144 = vector.shape_cast %143 : vector<1x1x16x32xbf16> to vector<16x32xbf16>
    %145 = arith.truncf %101 : vector<32x128xf32> to vector<32x128xbf16>
    %cst_111 = arith.constant dense<0.000000e+00> : vector<16x128xf32>
    %146 = tpu.matmul %144, %145, %cst_111 {dimension_numbers = #tpu.dot_dimension_numbers<[1], [0], [0], [1], [0, 0, 1, 1], [], []>} : vector<16x32xbf16>, vector<32x128xbf16>, vector<16x128xf32> -> vector<16x128xf32>
    %147 = arith.addf %142, %146 : vector<16x128xf32>
    %c127_i32_112 = arith.constant 127 : i32
    %148 = tpu.dynamic_rotate %101 by %c127_i32_112 dim 1 : vector<32x128xf32>, i32 -> vector<32x128xf32>
    %c5_113 = arith.constant 5 : index
    %c0_114 = arith.constant 0 : index
    %c0_115 = arith.constant 0 : index
    %149 = vector.load %arg1[%c5_113, %c0_114, %c0_115] : memref<9x1x128xf32, #tpu.memory_space<vmem>>, vector<1x1x128xf32>
    %150 = vector.shape_cast %149 : vector<1x1x128xf32> to vector<1x128xf32>
    %151 = vector.broadcast %150 : vector<1x128xf32> to vector<32x128xf32>
    %152 = arith.mulf %148, %151 : vector<32x128xf32>
    %c0_116 = arith.constant 0 : index
    %c5_117 = arith.constant 5 : index
    %c0_118 = arith.constant 0 : index
    %c0_119 = arith.constant 0 : index
    %153 = vector.load %arg5[%c0_116, %c5_117, %c0_118, %c0_119] : memref<2x9x16x32xbf16, #tpu.memory_space<vmem>>, vector<1x1x16x32xbf16>
    %154 = vector.shape_cast %153 : vector<1x1x16x32xbf16> to vector<16x32xbf16>
    %155 = arith.truncf %152 : vector<32x128xf32> to vector<32x128xbf16>
    %cst_120 = arith.constant dense<0.000000e+00> : vector<16x128xf32>
    %156 = tpu.matmul %154, %155, %cst_120 {dimension_numbers = #tpu.dot_dimension_numbers<[1], [0], [0], [1], [0, 0, 1, 1], [], []>} : vector<16x32xbf16>, vector<32x128xbf16>, vector<16x128xf32> -> vector<16x128xf32>
    %157 = arith.addf %147, %156 : vector<16x128xf32>
    %c121_i32_121 = arith.constant 121 : i32
    %158 = tpu.dynamic_rotate %101 by %c121_i32_121 dim 1 : vector<32x128xf32>, i32 -> vector<32x128xf32>
    %c6_122 = arith.constant 6 : index
    %c0_123 = arith.constant 0 : index
    %c0_124 = arith.constant 0 : index
    %159 = vector.load %arg1[%c6_122, %c0_123, %c0_124] : memref<9x1x128xf32, #tpu.memory_space<vmem>>, vector<1x1x128xf32>
    %160 = vector.shape_cast %159 : vector<1x1x128xf32> to vector<1x128xf32>
    %161 = vector.broadcast %160 : vector<1x128xf32> to vector<32x128xf32>
    %162 = arith.mulf %158, %161 : vector<32x128xf32>
    %c0_125 = arith.constant 0 : index
    %c6_126 = arith.constant 6 : index
    %c0_127 = arith.constant 0 : index
    %c0_128 = arith.constant 0 : index
    %163 = vector.load %arg5[%c0_125, %c6_126, %c0_127, %c0_128] : memref<2x9x16x32xbf16, #tpu.memory_space<vmem>>, vector<1x1x16x32xbf16>
    %164 = vector.shape_cast %163 : vector<1x1x16x32xbf16> to vector<16x32xbf16>
    %165 = arith.truncf %162 : vector<32x128xf32> to vector<32x128xbf16>
    %cst_129 = arith.constant dense<0.000000e+00> : vector<16x128xf32>
    %166 = tpu.matmul %164, %165, %cst_129 {dimension_numbers = #tpu.dot_dimension_numbers<[1], [0], [0], [1], [0, 0, 1, 1], [], []>} : vector<16x32xbf16>, vector<32x128xbf16>, vector<16x128xf32> -> vector<16x128xf32>
    %167 = arith.addf %157, %166 : vector<16x128xf32>
    %c120_i32_130 = arith.constant 120 : i32
    %168 = tpu.dynamic_rotate %101 by %c120_i32_130 dim 1 : vector<32x128xf32>, i32 -> vector<32x128xf32>
    %c7_131 = arith.constant 7 : index
    %c0_132 = arith.constant 0 : index
    %c0_133 = arith.constant 0 : index
    %169 = vector.load %arg1[%c7_131, %c0_132, %c0_133] : memref<9x1x128xf32, #tpu.memory_space<vmem>>, vector<1x1x128xf32>
    %170 = vector.shape_cast %169 : vector<1x1x128xf32> to vector<1x128xf32>
    %171 = vector.broadcast %170 : vector<1x128xf32> to vector<32x128xf32>
    %172 = arith.mulf %168, %171 : vector<32x128xf32>
    %c0_134 = arith.constant 0 : index
    %c7_135 = arith.constant 7 : index
    %c0_136 = arith.constant 0 : index
    %c0_137 = arith.constant 0 : index
    %173 = vector.load %arg5[%c0_134, %c7_135, %c0_136, %c0_137] : memref<2x9x16x32xbf16, #tpu.memory_space<vmem>>, vector<1x1x16x32xbf16>
    %174 = vector.shape_cast %173 : vector<1x1x16x32xbf16> to vector<16x32xbf16>
    %175 = arith.truncf %172 : vector<32x128xf32> to vector<32x128xbf16>
    %cst_138 = arith.constant dense<0.000000e+00> : vector<16x128xf32>
    %176 = tpu.matmul %174, %175, %cst_138 {dimension_numbers = #tpu.dot_dimension_numbers<[1], [0], [0], [1], [0, 0, 1, 1], [], []>} : vector<16x32xbf16>, vector<32x128xbf16>, vector<16x128xf32> -> vector<16x128xf32>
    %177 = arith.addf %167, %176 : vector<16x128xf32>
    %c119_i32_139 = arith.constant 119 : i32
    %178 = tpu.dynamic_rotate %101 by %c119_i32_139 dim 1 : vector<32x128xf32>, i32 -> vector<32x128xf32>
    %c8_140 = arith.constant 8 : index
    %c0_141 = arith.constant 0 : index
    %c0_142 = arith.constant 0 : index
    %179 = vector.load %arg1[%c8_140, %c0_141, %c0_142] : memref<9x1x128xf32, #tpu.memory_space<vmem>>, vector<1x1x128xf32>
    %180 = vector.shape_cast %179 : vector<1x1x128xf32> to vector<1x128xf32>
    %181 = vector.broadcast %180 : vector<1x128xf32> to vector<32x128xf32>
    %182 = arith.mulf %178, %181 : vector<32x128xf32>
    %c0_143 = arith.constant 0 : index
    %c8_144 = arith.constant 8 : index
    %c0_145 = arith.constant 0 : index
    %c0_146 = arith.constant 0 : index
    %183 = vector.load %arg5[%c0_143, %c8_144, %c0_145, %c0_146] : memref<2x9x16x32xbf16, #tpu.memory_space<vmem>>, vector<1x1x16x32xbf16>
    %184 = vector.shape_cast %183 : vector<1x1x16x32xbf16> to vector<16x32xbf16>
    %185 = arith.truncf %182 : vector<32x128xf32> to vector<32x128xbf16>
    %cst_147 = arith.constant dense<0.000000e+00> : vector<16x128xf32>
    %186 = tpu.matmul %184, %185, %cst_147 {dimension_numbers = #tpu.dot_dimension_numbers<[1], [0], [0], [1], [0, 0, 1, 1], [], []>} : vector<16x32xbf16>, vector<32x128xbf16>, vector<16x128xf32> -> vector<16x128xf32>
    %187 = arith.addf %177, %186 : vector<16x128xf32>
    %c0_148 = arith.constant 0 : index
    %c0_149 = arith.constant 0 : index
    %c0_150 = arith.constant 0 : index
    %188 = vector.load %arg6[%c0_148, %c0_149, %c0_150] : memref<2x16x1xf32, #tpu.memory_space<vmem>>, vector<1x16x1xf32>
    %189 = vector.shape_cast %188 : vector<1x16x1xf32> to vector<16x1xf32>
    %190 = vector.broadcast %189 : vector<16x1xf32> to vector<16x128xf32>
    %191 = arith.mulf %187, %190 : vector<16x128xf32>
    %c0_151 = arith.constant 0 : index
    %c0_152 = arith.constant 0 : index
    %c0_153 = arith.constant 0 : index
    %192 = vector.load %arg7[%c0_151, %c0_152, %c0_153] : memref<2x16x1xf32, #tpu.memory_space<vmem>>, vector<1x16x1xf32>
    %193 = vector.shape_cast %192 : vector<1x16x1xf32> to vector<16x1xf32>
    %194 = vector.broadcast %193 : vector<16x1xf32> to vector<16x128xf32>
    %195 = arith.addf %191, %194 : vector<16x128xf32>
    %cst_154 = arith.constant 0.000000e+00 : f32
    %196 = vector.broadcast %cst_154 : f32 to vector<16x128xf32>
    %197 = arith.maximumf %195, %196 : vector<16x128xf32>
    %cst_155 = arith.constant 0.000000e+00 : f32
    %198 = vector.broadcast %cst_155 : f32 to vector<8x128xf32>
    %c9_i32_156 = arith.constant 9 : i32
    %199 = tpu.dynamic_rotate %197 by %c9_i32_156 dim 1 : vector<16x128xf32>, i32 -> vector<16x128xf32>
    %c0_157 = arith.constant 0 : index
    %c0_158 = arith.constant 0 : index
    %c0_159 = arith.constant 0 : index
    %200 = vector.load %arg1[%c0_157, %c0_158, %c0_159] : memref<9x1x128xf32, #tpu.memory_space<vmem>>, vector<1x1x128xf32>
    %201 = vector.shape_cast %200 : vector<1x1x128xf32> to vector<1x128xf32>
    %202 = vector.broadcast %201 : vector<1x128xf32> to vector<16x128xf32>
    %203 = arith.mulf %199, %202 : vector<16x128xf32>
    %c0_160 = arith.constant 0 : index
    %c0_161 = arith.constant 0 : index
    %c0_162 = arith.constant 0 : index
    %c0_163 = arith.constant 0 : index
    %204 = vector.load %arg8[%c0_160, %c0_161, %c0_162, %c0_163] : memref<2x9x8x16xbf16, #tpu.memory_space<vmem>>, vector<1x1x8x16xbf16>
    %205 = vector.shape_cast %204 : vector<1x1x8x16xbf16> to vector<8x16xbf16>
    %206 = arith.truncf %203 : vector<16x128xf32> to vector<16x128xbf16>
    %cst_164 = arith.constant dense<0.000000e+00> : vector<8x128xf32>
    %207 = tpu.matmul %205, %206, %cst_164 {dimension_numbers = #tpu.dot_dimension_numbers<[1], [0], [0], [1], [0, 0, 1, 1], [], []>} : vector<8x16xbf16>, vector<16x128xbf16>, vector<8x128xf32> -> vector<8x128xf32>
    %208 = arith.addf %198, %207 : vector<8x128xf32>
    %c8_i32_165 = arith.constant 8 : i32
    %209 = tpu.dynamic_rotate %197 by %c8_i32_165 dim 1 : vector<16x128xf32>, i32 -> vector<16x128xf32>
    %c1_166 = arith.constant 1 : index
    %c0_167 = arith.constant 0 : index
    %c0_168 = arith.constant 0 : index
    %210 = vector.load %arg1[%c1_166, %c0_167, %c0_168] : memref<9x1x128xf32, #tpu.memory_space<vmem>>, vector<1x1x128xf32>
    %211 = vector.shape_cast %210 : vector<1x1x128xf32> to vector<1x128xf32>
    %212 = vector.broadcast %211 : vector<1x128xf32> to vector<16x128xf32>
    %213 = arith.mulf %209, %212 : vector<16x128xf32>
    %c0_169 = arith.constant 0 : index
    %c1_170 = arith.constant 1 : index
    %c0_171 = arith.constant 0 : index
    %c0_172 = arith.constant 0 : index
    %214 = vector.load %arg8[%c0_169, %c1_170, %c0_171, %c0_172] : memref<2x9x8x16xbf16, #tpu.memory_space<vmem>>, vector<1x1x8x16xbf16>
    %215 = vector.shape_cast %214 : vector<1x1x8x16xbf16> to vector<8x16xbf16>
    %216 = arith.truncf %213 : vector<16x128xf32> to vector<16x128xbf16>
    %cst_173 = arith.constant dense<0.000000e+00> : vector<8x128xf32>
    %217 = tpu.matmul %215, %216, %cst_173 {dimension_numbers = #tpu.dot_dimension_numbers<[1], [0], [0], [1], [0, 0, 1, 1], [], []>} : vector<8x16xbf16>, vector<16x128xbf16>, vector<8x128xf32> -> vector<8x128xf32>
    %218 = arith.addf %208, %217 : vector<8x128xf32>
    %c7_i32_174 = arith.constant 7 : i32
    %219 = tpu.dynamic_rotate %197 by %c7_i32_174 dim 1 : vector<16x128xf32>, i32 -> vector<16x128xf32>
    %c2_175 = arith.constant 2 : index
    %c0_176 = arith.constant 0 : index
    %c0_177 = arith.constant 0 : index
    %220 = vector.load %arg1[%c2_175, %c0_176, %c0_177] : memref<9x1x128xf32, #tpu.memory_space<vmem>>, vector<1x1x128xf32>
    %221 = vector.shape_cast %220 : vector<1x1x128xf32> to vector<1x128xf32>
    %222 = vector.broadcast %221 : vector<1x128xf32> to vector<16x128xf32>
    %223 = arith.mulf %219, %222 : vector<16x128xf32>
    %c0_178 = arith.constant 0 : index
    %c2_179 = arith.constant 2 : index
    %c0_180 = arith.constant 0 : index
    %c0_181 = arith.constant 0 : index
    %224 = vector.load %arg8[%c0_178, %c2_179, %c0_180, %c0_181] : memref<2x9x8x16xbf16, #tpu.memory_space<vmem>>, vector<1x1x8x16xbf16>
    %225 = vector.shape_cast %224 : vector<1x1x8x16xbf16> to vector<8x16xbf16>
    %226 = arith.truncf %223 : vector<16x128xf32> to vector<16x128xbf16>
    %cst_182 = arith.constant dense<0.000000e+00> : vector<8x128xf32>
    %227 = tpu.matmul %225, %226, %cst_182 {dimension_numbers = #tpu.dot_dimension_numbers<[1], [0], [0], [1], [0, 0, 1, 1], [], []>} : vector<8x16xbf16>, vector<16x128xbf16>, vector<8x128xf32> -> vector<8x128xf32>
    %228 = arith.addf %218, %227 : vector<8x128xf32>
    %c1_i32_183 = arith.constant 1 : i32
    %229 = tpu.dynamic_rotate %197 by %c1_i32_183 dim 1 : vector<16x128xf32>, i32 -> vector<16x128xf32>
    %c3_184 = arith.constant 3 : index
    %c0_185 = arith.constant 0 : index
    %c0_186 = arith.constant 0 : index
    %230 = vector.load %arg1[%c3_184, %c0_185, %c0_186] : memref<9x1x128xf32, #tpu.memory_space<vmem>>, vector<1x1x128xf32>
    %231 = vector.shape_cast %230 : vector<1x1x128xf32> to vector<1x128xf32>
    %232 = vector.broadcast %231 : vector<1x128xf32> to vector<16x128xf32>
    %233 = arith.mulf %229, %232 : vector<16x128xf32>
    %c0_187 = arith.constant 0 : index
    %c3_188 = arith.constant 3 : index
    %c0_189 = arith.constant 0 : index
    %c0_190 = arith.constant 0 : index
    %234 = vector.load %arg8[%c0_187, %c3_188, %c0_189, %c0_190] : memref<2x9x8x16xbf16, #tpu.memory_space<vmem>>, vector<1x1x8x16xbf16>
    %235 = vector.shape_cast %234 : vector<1x1x8x16xbf16> to vector<8x16xbf16>
    %236 = arith.truncf %233 : vector<16x128xf32> to vector<16x128xbf16>
    %cst_191 = arith.constant dense<0.000000e+00> : vector<8x128xf32>
    %237 = tpu.matmul %235, %236, %cst_191 {dimension_numbers = #tpu.dot_dimension_numbers<[1], [0], [0], [1], [0, 0, 1, 1], [], []>} : vector<8x16xbf16>, vector<16x128xbf16>, vector<8x128xf32> -> vector<8x128xf32>
    %238 = arith.addf %228, %237 : vector<8x128xf32>
    %c0_192 = arith.constant 0 : index
    %c4_193 = arith.constant 4 : index
    %c0_194 = arith.constant 0 : index
    %c0_195 = arith.constant 0 : index
    %239 = vector.load %arg8[%c0_192, %c4_193, %c0_194, %c0_195] : memref<2x9x8x16xbf16, #tpu.memory_space<vmem>>, vector<1x1x8x16xbf16>
    %240 = vector.shape_cast %239 : vector<1x1x8x16xbf16> to vector<8x16xbf16>
    %241 = arith.truncf %197 : vector<16x128xf32> to vector<16x128xbf16>
    %cst_196 = arith.constant dense<0.000000e+00> : vector<8x128xf32>
    %242 = tpu.matmul %240, %241, %cst_196 {dimension_numbers = #tpu.dot_dimension_numbers<[1], [0], [0], [1], [0, 0, 1, 1], [], []>} : vector<8x16xbf16>, vector<16x128xbf16>, vector<8x128xf32> -> vector<8x128xf32>
    %243 = arith.addf %238, %242 : vector<8x128xf32>
    %c127_i32_197 = arith.constant 127 : i32
    %244 = tpu.dynamic_rotate %197 by %c127_i32_197 dim 1 : vector<16x128xf32>, i32 -> vector<16x128xf32>
    %c5_198 = arith.constant 5 : index
    %c0_199 = arith.constant 0 : index
    %c0_200 = arith.constant 0 : index
    %245 = vector.load %arg1[%c5_198, %c0_199, %c0_200] : memref<9x1x128xf32, #tpu.memory_space<vmem>>, vector<1x1x128xf32>
    %246 = vector.shape_cast %245 : vector<1x1x128xf32> to vector<1x128xf32>
    %247 = vector.broadcast %246 : vector<1x128xf32> to vector<16x128xf32>
    %248 = arith.mulf %244, %247 : vector<16x128xf32>
    %c0_201 = arith.constant 0 : index
    %c5_202 = arith.constant 5 : index
    %c0_203 = arith.constant 0 : index
    %c0_204 = arith.constant 0 : index
    %249 = vector.load %arg8[%c0_201, %c5_202, %c0_203, %c0_204] : memref<2x9x8x16xbf16, #tpu.memory_space<vmem>>, vector<1x1x8x16xbf16>
    %250 = vector.shape_cast %249 : vector<1x1x8x16xbf16> to vector<8x16xbf16>
    %251 = arith.truncf %248 : vector<16x128xf32> to vector<16x128xbf16>
    %cst_205 = arith.constant dense<0.000000e+00> : vector<8x128xf32>
    %252 = tpu.matmul %250, %251, %cst_205 {dimension_numbers = #tpu.dot_dimension_numbers<[1], [0], [0], [1], [0, 0, 1, 1], [], []>} : vector<8x16xbf16>, vector<16x128xbf16>, vector<8x128xf32> -> vector<8x128xf32>
    %253 = arith.addf %243, %252 : vector<8x128xf32>
    %c121_i32_206 = arith.constant 121 : i32
    %254 = tpu.dynamic_rotate %197 by %c121_i32_206 dim 1 : vector<16x128xf32>, i32 -> vector<16x128xf32>
    %c6_207 = arith.constant 6 : index
    %c0_208 = arith.constant 0 : index
    %c0_209 = arith.constant 0 : index
    %255 = vector.load %arg1[%c6_207, %c0_208, %c0_209] : memref<9x1x128xf32, #tpu.memory_space<vmem>>, vector<1x1x128xf32>
    %256 = vector.shape_cast %255 : vector<1x1x128xf32> to vector<1x128xf32>
    %257 = vector.broadcast %256 : vector<1x128xf32> to vector<16x128xf32>
    %258 = arith.mulf %254, %257 : vector<16x128xf32>
    %c0_210 = arith.constant 0 : index
    %c6_211 = arith.constant 6 : index
    %c0_212 = arith.constant 0 : index
    %c0_213 = arith.constant 0 : index
    %259 = vector.load %arg8[%c0_210, %c6_211, %c0_212, %c0_213] : memref<2x9x8x16xbf16, #tpu.memory_space<vmem>>, vector<1x1x8x16xbf16>
    %260 = vector.shape_cast %259 : vector<1x1x8x16xbf16> to vector<8x16xbf16>
    %261 = arith.truncf %258 : vector<16x128xf32> to vector<16x128xbf16>
    %cst_214 = arith.constant dense<0.000000e+00> : vector<8x128xf32>
    %262 = tpu.matmul %260, %261, %cst_214 {dimension_numbers = #tpu.dot_dimension_numbers<[1], [0], [0], [1], [0, 0, 1, 1], [], []>} : vector<8x16xbf16>, vector<16x128xbf16>, vector<8x128xf32> -> vector<8x128xf32>
    %263 = arith.addf %253, %262 : vector<8x128xf32>
    %c120_i32_215 = arith.constant 120 : i32
    %264 = tpu.dynamic_rotate %197 by %c120_i32_215 dim 1 : vector<16x128xf32>, i32 -> vector<16x128xf32>
    %c7_216 = arith.constant 7 : index
    %c0_217 = arith.constant 0 : index
    %c0_218 = arith.constant 0 : index
    %265 = vector.load %arg1[%c7_216, %c0_217, %c0_218] : memref<9x1x128xf32, #tpu.memory_space<vmem>>, vector<1x1x128xf32>
    %266 = vector.shape_cast %265 : vector<1x1x128xf32> to vector<1x128xf32>
    %267 = vector.broadcast %266 : vector<1x128xf32> to vector<16x128xf32>
    %268 = arith.mulf %264, %267 : vector<16x128xf32>
    %c0_219 = arith.constant 0 : index
    %c7_220 = arith.constant 7 : index
    %c0_221 = arith.constant 0 : index
    %c0_222 = arith.constant 0 : index
    %269 = vector.load %arg8[%c0_219, %c7_220, %c0_221, %c0_222] : memref<2x9x8x16xbf16, #tpu.memory_space<vmem>>, vector<1x1x8x16xbf16>
    %270 = vector.shape_cast %269 : vector<1x1x8x16xbf16> to vector<8x16xbf16>
    %271 = arith.truncf %268 : vector<16x128xf32> to vector<16x128xbf16>
    %cst_223 = arith.constant dense<0.000000e+00> : vector<8x128xf32>
    %272 = tpu.matmul %270, %271, %cst_223 {dimension_numbers = #tpu.dot_dimension_numbers<[1], [0], [0], [1], [0, 0, 1, 1], [], []>} : vector<8x16xbf16>, vector<16x128xbf16>, vector<8x128xf32> -> vector<8x128xf32>
    %273 = arith.addf %263, %272 : vector<8x128xf32>
    %c119_i32_224 = arith.constant 119 : i32
    %274 = tpu.dynamic_rotate %197 by %c119_i32_224 dim 1 : vector<16x128xf32>, i32 -> vector<16x128xf32>
    %c8_225 = arith.constant 8 : index
    %c0_226 = arith.constant 0 : index
    %c0_227 = arith.constant 0 : index
    %275 = vector.load %arg1[%c8_225, %c0_226, %c0_227] : memref<9x1x128xf32, #tpu.memory_space<vmem>>, vector<1x1x128xf32>
    %276 = vector.shape_cast %275 : vector<1x1x128xf32> to vector<1x128xf32>
    %277 = vector.broadcast %276 : vector<1x128xf32> to vector<16x128xf32>
    %278 = arith.mulf %274, %277 : vector<16x128xf32>
    %c0_228 = arith.constant 0 : index
    %c8_229 = arith.constant 8 : index
    %c0_230 = arith.constant 0 : index
    %c0_231 = arith.constant 0 : index
    %279 = vector.load %arg8[%c0_228, %c8_229, %c0_230, %c0_231] : memref<2x9x8x16xbf16, #tpu.memory_space<vmem>>, vector<1x1x8x16xbf16>
    %280 = vector.shape_cast %279 : vector<1x1x8x16xbf16> to vector<8x16xbf16>
    %281 = arith.truncf %278 : vector<16x128xf32> to vector<16x128xbf16>
    %cst_232 = arith.constant dense<0.000000e+00> : vector<8x128xf32>
    %282 = tpu.matmul %280, %281, %cst_232 {dimension_numbers = #tpu.dot_dimension_numbers<[1], [0], [0], [1], [0, 0, 1, 1], [], []>} : vector<8x16xbf16>, vector<16x128xbf16>, vector<8x128xf32> -> vector<8x128xf32>
    %283 = arith.addf %273, %282 : vector<8x128xf32>
    %c0_233 = arith.constant 0 : index
    %c0_234 = arith.constant 0 : index
    %c0_235 = arith.constant 0 : index
    %284 = vector.load %arg9[%c0_233, %c0_234, %c0_235] : memref<2x8x1xf32, #tpu.memory_space<vmem>>, vector<1x8x1xf32>
    %285 = vector.shape_cast %284 : vector<1x8x1xf32> to vector<8x1xf32>
    %286 = vector.broadcast %285 : vector<8x1xf32> to vector<8x128xf32>
    %287 = arith.mulf %283, %286 : vector<8x128xf32>
    %c0_236 = arith.constant 0 : index
    %c0_237 = arith.constant 0 : index
    %c0_238 = arith.constant 0 : index
    %288 = vector.load %arg10[%c0_236, %c0_237, %c0_238] : memref<2x8x1xf32, #tpu.memory_space<vmem>>, vector<1x8x1xf32>
    %289 = vector.shape_cast %288 : vector<1x8x1xf32> to vector<8x1xf32>
    %290 = vector.broadcast %289 : vector<8x1xf32> to vector<8x128xf32>
    %291 = arith.addf %287, %290 : vector<8x128xf32>
    %cst_239 = arith.constant 0.000000e+00 : f32
    %292 = vector.broadcast %cst_239 : f32 to vector<8x128xf32>
    %293 = arith.maximumf %291, %292 : vector<8x128xf32>
    %cst_240 = arith.constant 0.000000e+00 : f32
    %294 = vector.broadcast %cst_240 : f32 to vector<4x128xf32>
    %c9_i32_241 = arith.constant 9 : i32
    %295 = tpu.dynamic_rotate %293 by %c9_i32_241 dim 1 : vector<8x128xf32>, i32 -> vector<8x128xf32>
    %c0_242 = arith.constant 0 : index
    %c0_243 = arith.constant 0 : index
    %c0_244 = arith.constant 0 : index
    %296 = vector.load %arg1[%c0_242, %c0_243, %c0_244] : memref<9x1x128xf32, #tpu.memory_space<vmem>>, vector<1x1x128xf32>
    %297 = vector.shape_cast %296 : vector<1x1x128xf32> to vector<1x128xf32>
    %298 = vector.broadcast %297 : vector<1x128xf32> to vector<8x128xf32>
    %299 = arith.mulf %295, %298 : vector<8x128xf32>
    %c0_245 = arith.constant 0 : index
    %c0_246 = arith.constant 0 : index
    %c0_247 = arith.constant 0 : index
    %c0_248 = arith.constant 0 : index
    %300 = vector.load %arg11[%c0_245, %c0_246, %c0_247, %c0_248] : memref<2x9x4x8xbf16, #tpu.memory_space<vmem>>, vector<1x1x4x8xbf16>
    %301 = vector.shape_cast %300 : vector<1x1x4x8xbf16> to vector<4x8xbf16>
    %302 = arith.truncf %299 : vector<8x128xf32> to vector<8x128xbf16>
    %cst_249 = arith.constant dense<0.000000e+00> : vector<4x128xf32>
    %303 = tpu.matmul %301, %302, %cst_249 {dimension_numbers = #tpu.dot_dimension_numbers<[1], [0], [0], [1], [0, 0, 1, 1], [], []>} : vector<4x8xbf16>, vector<8x128xbf16>, vector<4x128xf32> -> vector<4x128xf32>
    %304 = arith.addf %294, %303 : vector<4x128xf32>
    %c8_i32_250 = arith.constant 8 : i32
    %305 = tpu.dynamic_rotate %293 by %c8_i32_250 dim 1 : vector<8x128xf32>, i32 -> vector<8x128xf32>
    %c1_251 = arith.constant 1 : index
    %c0_252 = arith.constant 0 : index
    %c0_253 = arith.constant 0 : index
    %306 = vector.load %arg1[%c1_251, %c0_252, %c0_253] : memref<9x1x128xf32, #tpu.memory_space<vmem>>, vector<1x1x128xf32>
    %307 = vector.shape_cast %306 : vector<1x1x128xf32> to vector<1x128xf32>
    %308 = vector.broadcast %307 : vector<1x128xf32> to vector<8x128xf32>
    %309 = arith.mulf %305, %308 : vector<8x128xf32>
    %c0_254 = arith.constant 0 : index
    %c1_255 = arith.constant 1 : index
    %c0_256 = arith.constant 0 : index
    %c0_257 = arith.constant 0 : index
    %310 = vector.load %arg11[%c0_254, %c1_255, %c0_256, %c0_257] : memref<2x9x4x8xbf16, #tpu.memory_space<vmem>>, vector<1x1x4x8xbf16>
    %311 = vector.shape_cast %310 : vector<1x1x4x8xbf16> to vector<4x8xbf16>
    %312 = arith.truncf %309 : vector<8x128xf32> to vector<8x128xbf16>
    %cst_258 = arith.constant dense<0.000000e+00> : vector<4x128xf32>
    %313 = tpu.matmul %311, %312, %cst_258 {dimension_numbers = #tpu.dot_dimension_numbers<[1], [0], [0], [1], [0, 0, 1, 1], [], []>} : vector<4x8xbf16>, vector<8x128xbf16>, vector<4x128xf32> -> vector<4x128xf32>
    %314 = arith.addf %304, %313 : vector<4x128xf32>
    %c7_i32_259 = arith.constant 7 : i32
    %315 = tpu.dynamic_rotate %293 by %c7_i32_259 dim 1 : vector<8x128xf32>, i32 -> vector<8x128xf32>
    %c2_260 = arith.constant 2 : index
    %c0_261 = arith.constant 0 : index
    %c0_262 = arith.constant 0 : index
    %316 = vector.load %arg1[%c2_260, %c0_261, %c0_262] : memref<9x1x128xf32, #tpu.memory_space<vmem>>, vector<1x1x128xf32>
    %317 = vector.shape_cast %316 : vector<1x1x128xf32> to vector<1x128xf32>
    %318 = vector.broadcast %317 : vector<1x128xf32> to vector<8x128xf32>
    %319 = arith.mulf %315, %318 : vector<8x128xf32>
    %c0_263 = arith.constant 0 : index
    %c2_264 = arith.constant 2 : index
    %c0_265 = arith.constant 0 : index
    %c0_266 = arith.constant 0 : index
    %320 = vector.load %arg11[%c0_263, %c2_264, %c0_265, %c0_266] : memref<2x9x4x8xbf16, #tpu.memory_space<vmem>>, vector<1x1x4x8xbf16>
    %321 = vector.shape_cast %320 : vector<1x1x4x8xbf16> to vector<4x8xbf16>
    %322 = arith.truncf %319 : vector<8x128xf32> to vector<8x128xbf16>
    %cst_267 = arith.constant dense<0.000000e+00> : vector<4x128xf32>
    %323 = tpu.matmul %321, %322, %cst_267 {dimension_numbers = #tpu.dot_dimension_numbers<[1], [0], [0], [1], [0, 0, 1, 1], [], []>} : vector<4x8xbf16>, vector<8x128xbf16>, vector<4x128xf32> -> vector<4x128xf32>
    %324 = arith.addf %314, %323 : vector<4x128xf32>
    %c1_i32_268 = arith.constant 1 : i32
    %325 = tpu.dynamic_rotate %293 by %c1_i32_268 dim 1 : vector<8x128xf32>, i32 -> vector<8x128xf32>
    %c3_269 = arith.constant 3 : index
    %c0_270 = arith.constant 0 : index
    %c0_271 = arith.constant 0 : index
    %326 = vector.load %arg1[%c3_269, %c0_270, %c0_271] : memref<9x1x128xf32, #tpu.memory_space<vmem>>, vector<1x1x128xf32>
    %327 = vector.shape_cast %326 : vector<1x1x128xf32> to vector<1x128xf32>
    %328 = vector.broadcast %327 : vector<1x128xf32> to vector<8x128xf32>
    %329 = arith.mulf %325, %328 : vector<8x128xf32>
    %c0_272 = arith.constant 0 : index
    %c3_273 = arith.constant 3 : index
    %c0_274 = arith.constant 0 : index
    %c0_275 = arith.constant 0 : index
    %330 = vector.load %arg11[%c0_272, %c3_273, %c0_274, %c0_275] : memref<2x9x4x8xbf16, #tpu.memory_space<vmem>>, vector<1x1x4x8xbf16>
    %331 = vector.shape_cast %330 : vector<1x1x4x8xbf16> to vector<4x8xbf16>
    %332 = arith.truncf %329 : vector<8x128xf32> to vector<8x128xbf16>
    %cst_276 = arith.constant dense<0.000000e+00> : vector<4x128xf32>
    %333 = tpu.matmul %331, %332, %cst_276 {dimension_numbers = #tpu.dot_dimension_numbers<[1], [0], [0], [1], [0, 0, 1, 1], [], []>} : vector<4x8xbf16>, vector<8x128xbf16>, vector<4x128xf32> -> vector<4x128xf32>
    %334 = arith.addf %324, %333 : vector<4x128xf32>
    %c0_277 = arith.constant 0 : index
    %c4_278 = arith.constant 4 : index
    %c0_279 = arith.constant 0 : index
    %c0_280 = arith.constant 0 : index
    %335 = vector.load %arg11[%c0_277, %c4_278, %c0_279, %c0_280] : memref<2x9x4x8xbf16, #tpu.memory_space<vmem>>, vector<1x1x4x8xbf16>
    %336 = vector.shape_cast %335 : vector<1x1x4x8xbf16> to vector<4x8xbf16>
    %337 = arith.truncf %293 : vector<8x128xf32> to vector<8x128xbf16>
    %cst_281 = arith.constant dense<0.000000e+00> : vector<4x128xf32>
    %338 = tpu.matmul %336, %337, %cst_281 {dimension_numbers = #tpu.dot_dimension_numbers<[1], [0], [0], [1], [0, 0, 1, 1], [], []>} : vector<4x8xbf16>, vector<8x128xbf16>, vector<4x128xf32> -> vector<4x128xf32>
    %339 = arith.addf %334, %338 : vector<4x128xf32>
    %c127_i32_282 = arith.constant 127 : i32
    %340 = tpu.dynamic_rotate %293 by %c127_i32_282 dim 1 : vector<8x128xf32>, i32 -> vector<8x128xf32>
    %c5_283 = arith.constant 5 : index
    %c0_284 = arith.constant 0 : index
    %c0_285 = arith.constant 0 : index
    %341 = vector.load %arg1[%c5_283, %c0_284, %c0_285] : memref<9x1x128xf32, #tpu.memory_space<vmem>>, vector<1x1x128xf32>
    %342 = vector.shape_cast %341 : vector<1x1x128xf32> to vector<1x128xf32>
    %343 = vector.broadcast %342 : vector<1x128xf32> to vector<8x128xf32>
    %344 = arith.mulf %340, %343 : vector<8x128xf32>
    %c0_286 = arith.constant 0 : index
    %c5_287 = arith.constant 5 : index
    %c0_288 = arith.constant 0 : index
    %c0_289 = arith.constant 0 : index
    %345 = vector.load %arg11[%c0_286, %c5_287, %c0_288, %c0_289] : memref<2x9x4x8xbf16, #tpu.memory_space<vmem>>, vector<1x1x4x8xbf16>
    %346 = vector.shape_cast %345 : vector<1x1x4x8xbf16> to vector<4x8xbf16>
    %347 = arith.truncf %344 : vector<8x128xf32> to vector<8x128xbf16>
    %cst_290 = arith.constant dense<0.000000e+00> : vector<4x128xf32>
    %348 = tpu.matmul %346, %347, %cst_290 {dimension_numbers = #tpu.dot_dimension_numbers<[1], [0], [0], [1], [0, 0, 1, 1], [], []>} : vector<4x8xbf16>, vector<8x128xbf16>, vector<4x128xf32> -> vector<4x128xf32>
    %349 = arith.addf %339, %348 : vector<4x128xf32>
    %c121_i32_291 = arith.constant 121 : i32
    %350 = tpu.dynamic_rotate %293 by %c121_i32_291 dim 1 : vector<8x128xf32>, i32 -> vector<8x128xf32>
    %c6_292 = arith.constant 6 : index
    %c0_293 = arith.constant 0 : index
    %c0_294 = arith.constant 0 : index
    %351 = vector.load %arg1[%c6_292, %c0_293, %c0_294] : memref<9x1x128xf32, #tpu.memory_space<vmem>>, vector<1x1x128xf32>
    %352 = vector.shape_cast %351 : vector<1x1x128xf32> to vector<1x128xf32>
    %353 = vector.broadcast %352 : vector<1x128xf32> to vector<8x128xf32>
    %354 = arith.mulf %350, %353 : vector<8x128xf32>
    %c0_295 = arith.constant 0 : index
    %c6_296 = arith.constant 6 : index
    %c0_297 = arith.constant 0 : index
    %c0_298 = arith.constant 0 : index
    %355 = vector.load %arg11[%c0_295, %c6_296, %c0_297, %c0_298] : memref<2x9x4x8xbf16, #tpu.memory_space<vmem>>, vector<1x1x4x8xbf16>
    %356 = vector.shape_cast %355 : vector<1x1x4x8xbf16> to vector<4x8xbf16>
    %357 = arith.truncf %354 : vector<8x128xf32> to vector<8x128xbf16>
    %cst_299 = arith.constant dense<0.000000e+00> : vector<4x128xf32>
    %358 = tpu.matmul %356, %357, %cst_299 {dimension_numbers = #tpu.dot_dimension_numbers<[1], [0], [0], [1], [0, 0, 1, 1], [], []>} : vector<4x8xbf16>, vector<8x128xbf16>, vector<4x128xf32> -> vector<4x128xf32>
    %359 = arith.addf %349, %358 : vector<4x128xf32>
    %c120_i32_300 = arith.constant 120 : i32
    %360 = tpu.dynamic_rotate %293 by %c120_i32_300 dim 1 : vector<8x128xf32>, i32 -> vector<8x128xf32>
    %c7_301 = arith.constant 7 : index
    %c0_302 = arith.constant 0 : index
    %c0_303 = arith.constant 0 : index
    %361 = vector.load %arg1[%c7_301, %c0_302, %c0_303] : memref<9x1x128xf32, #tpu.memory_space<vmem>>, vector<1x1x128xf32>
    %362 = vector.shape_cast %361 : vector<1x1x128xf32> to vector<1x128xf32>
    %363 = vector.broadcast %362 : vector<1x128xf32> to vector<8x128xf32>
    %364 = arith.mulf %360, %363 : vector<8x128xf32>
    %c0_304 = arith.constant 0 : index
    %c7_305 = arith.constant 7 : index
    %c0_306 = arith.constant 0 : index
    %c0_307 = arith.constant 0 : index
    %365 = vector.load %arg11[%c0_304, %c7_305, %c0_306, %c0_307] : memref<2x9x4x8xbf16, #tpu.memory_space<vmem>>, vector<1x1x4x8xbf16>
    %366 = vector.shape_cast %365 : vector<1x1x4x8xbf16> to vector<4x8xbf16>
    %367 = arith.truncf %364 : vector<8x128xf32> to vector<8x128xbf16>
    %cst_308 = arith.constant dense<0.000000e+00> : vector<4x128xf32>
    %368 = tpu.matmul %366, %367, %cst_308 {dimension_numbers = #tpu.dot_dimension_numbers<[1], [0], [0], [1], [0, 0, 1, 1], [], []>} : vector<4x8xbf16>, vector<8x128xbf16>, vector<4x128xf32> -> vector<4x128xf32>
    %369 = arith.addf %359, %368 : vector<4x128xf32>
    %c119_i32_309 = arith.constant 119 : i32
    %370 = tpu.dynamic_rotate %293 by %c119_i32_309 dim 1 : vector<8x128xf32>, i32 -> vector<8x128xf32>
    %c8_310 = arith.constant 8 : index
    %c0_311 = arith.constant 0 : index
    %c0_312 = arith.constant 0 : index
    %371 = vector.load %arg1[%c8_310, %c0_311, %c0_312] : memref<9x1x128xf32, #tpu.memory_space<vmem>>, vector<1x1x128xf32>
    %372 = vector.shape_cast %371 : vector<1x1x128xf32> to vector<1x128xf32>
    %373 = vector.broadcast %372 : vector<1x128xf32> to vector<8x128xf32>
    %374 = arith.mulf %370, %373 : vector<8x128xf32>
    %c0_313 = arith.constant 0 : index
    %c8_314 = arith.constant 8 : index
    %c0_315 = arith.constant 0 : index
    %c0_316 = arith.constant 0 : index
    %375 = vector.load %arg11[%c0_313, %c8_314, %c0_315, %c0_316] : memref<2x9x4x8xbf16, #tpu.memory_space<vmem>>, vector<1x1x4x8xbf16>
    %376 = vector.shape_cast %375 : vector<1x1x4x8xbf16> to vector<4x8xbf16>
    %377 = arith.truncf %374 : vector<8x128xf32> to vector<8x128xbf16>
    %cst_317 = arith.constant dense<0.000000e+00> : vector<4x128xf32>
    %378 = tpu.matmul %376, %377, %cst_317 {dimension_numbers = #tpu.dot_dimension_numbers<[1], [0], [0], [1], [0, 0, 1, 1], [], []>} : vector<4x8xbf16>, vector<8x128xbf16>, vector<4x128xf32> -> vector<4x128xf32>
    %379 = arith.addf %369, %378 : vector<4x128xf32>
    %c0_318 = arith.constant 0 : index
    %c0_319 = arith.constant 0 : index
    %c0_320 = arith.constant 0 : index
    %380 = vector.load %arg12[%c0_318, %c0_319, %c0_320] : memref<2x4x1xf32, #tpu.memory_space<vmem>>, vector<1x4x1xf32>
    %381 = vector.shape_cast %380 : vector<1x4x1xf32> to vector<4x1xf32>
    %382 = vector.broadcast %381 : vector<4x1xf32> to vector<4x128xf32>
    %383 = arith.mulf %379, %382 : vector<4x128xf32>
    %c0_321 = arith.constant 0 : index
    %c0_322 = arith.constant 0 : index
    %c0_323 = arith.constant 0 : index
    %384 = vector.load %arg13[%c0_321, %c0_322, %c0_323] : memref<2x4x1xf32, #tpu.memory_space<vmem>>, vector<1x4x1xf32>
    %385 = vector.shape_cast %384 : vector<1x4x1xf32> to vector<4x1xf32>
    %386 = vector.broadcast %385 : vector<4x1xf32> to vector<4x128xf32>
    %387 = arith.addf %383, %386 : vector<4x128xf32>
    %cst_324 = arith.constant 0.000000e+00 : f32
    %388 = vector.broadcast %cst_324 : f32 to vector<4x128xf32>
    %389 = arith.maximumf %387, %388 : vector<4x128xf32>
    %c0_325 = arith.constant 0 : index
    %c0_326 = arith.constant 0 : index
    %c0_327 = arith.constant 0 : index
    %390 = vector.load %arg14[%c0_325, %c0_326, %c0_327] : memref<2x4x1xf32, #tpu.memory_space<vmem>>, vector<1x4x1xf32>
    %391 = vector.shape_cast %390 : vector<1x4x1xf32> to vector<4x1xf32>
    %392 = vector.broadcast %391 : vector<4x1xf32> to vector<4x128xf32>
    %393 = arith.mulf %389, %392 : vector<4x128xf32>
    %cst_328 = arith.constant dense<0.000000e+00> : vector<128xf32>
    %394 = vector.multi_reduction <add>, %393, %cst_328 [0] : vector<4x128xf32> to vector<128xf32>
    %395 = vector.shape_cast %394 : vector<128xf32> to vector<1x128xf32>
    %c0_329 = arith.constant 0 : index
    %c0_330 = arith.constant 0 : index
    %c0_331 = arith.constant 0 : index
    %396 = vector.load %arg15[%c0_329, %c0_330, %c0_331] : memref<2x1x1xf32, #tpu.memory_space<vmem>>, vector<1x1x1xf32>
    %397 = vector.shape_cast %396 : vector<1x1x1xf32> to vector<1x1xf32>
    %398 = vector.broadcast %397 : vector<1x1xf32> to vector<1x128xf32>
    %399 = arith.addf %395, %398 : vector<1x128xf32>
    %400 = vector.extract_strided_slice %399 {offsets = [0, 0], sizes = [1, 64], strides = [1, 1]} : vector<1x128xf32> to vector<1x64xf32>
    %401 = vector.extract_strided_slice %399 {offsets = [0, 64], sizes = [1, 64], strides = [1, 1]} : vector<1x128xf32> to vector<1x64xf32>
    %402 = tpu.concatenate %400, %401 in 0 : vector<1x64xf32>, vector<1x64xf32> -> vector<2x64xf32>
    %cst_332 = arith.constant dense<0xFF800000> : vector<2xf32>
    %403 = vector.multi_reduction <maximumf>, %402, %cst_332 [1] : vector<2x64xf32> to vector<2xf32>
    %404 = vector.shape_cast %403 : vector<2xf32> to vector<2x1xf32>
    %405 = vector.broadcast %404 : vector<2x1xf32> to vector<2x64xf32>
    %406 = arith.subf %402, %405 : vector<2x64xf32>
    %407 = math.exp %406 : vector<2x64xf32>
    %cst_333 = arith.constant dense<0.000000e+00> : vector<2xf32>
    %408 = vector.multi_reduction <add>, %407, %cst_333 [1] : vector<2x64xf32> to vector<2xf32>
    %409 = vector.shape_cast %408 : vector<2xf32> to vector<2x1xf32>
    %410 = vector.broadcast %409 : vector<2x1xf32> to vector<2x64xf32>
    %411 = arith.divf %407, %410 : vector<2x64xf32>
    %c0_334 = arith.constant 0 : index
    %c0_335 = arith.constant 0 : index
    %c0_336 = arith.constant 0 : index
    %412 = vector.load %arg16[%c0_334, %c0_335, %c0_336] : memref<2x2x64xf32, #tpu.memory_space<vmem>>, vector<1x2x64xf32>
    %413 = vector.shape_cast %412 : vector<1x2x64xf32> to vector<2x64xf32>
    %414 = arith.mulf %413, %411 : vector<2x64xf32>
    %cst_337 = arith.constant dense<0.000000e+00> : vector<2xf32>
    %415 = vector.multi_reduction <add>, %414, %cst_337 [1] : vector<2x64xf32> to vector<2xf32>
    %416 = vector.shape_cast %415 : vector<2xf32> to vector<2x1xf32>
    %c0_338 = arith.constant 0 : index
    %c0_339 = arith.constant 0 : index
    %c0_340 = arith.constant 0 : index
    %417 = vector.load %arg17[%c0_338, %c0_339, %c0_340] : memref<2x2x64xf32, #tpu.memory_space<vmem>>, vector<1x2x64xf32>
    %418 = vector.shape_cast %417 : vector<1x2x64xf32> to vector<2x64xf32>
    %419 = arith.mulf %418, %411 : vector<2x64xf32>
    %cst_341 = arith.constant dense<0.000000e+00> : vector<2xf32>
    %420 = vector.multi_reduction <add>, %419, %cst_341 [1] : vector<2x64xf32> to vector<2xf32>
    %421 = vector.shape_cast %420 : vector<2xf32> to vector<2x1xf32>
    %422 = tpu.concatenate %416, %421 in 1 : vector<2x1xf32>, vector<2x1xf32> -> vector<2x2xf32>
    %cst_342 = arith.constant 7.812500e-03 : f32
    %423 = vector.broadcast %cst_342 : f32 to vector<2x2xf32>
    %424 = arith.mulf %422, %423 : vector<2x2xf32>
    %c0_343 = arith.constant 0 : index
    %c0_344 = arith.constant 0 : index
    %425 = vector.load %arg18[%c0_343, %c0_344] : memref<64x8xf32, #tpu.memory_space<vmem>>, vector<64x8xf32>
    %cst_345 = arith.constant dense<0.000000e+00> : vector<2x8xf32>
    %426 = tpu.matmul %402, %425, %cst_345 {dimension_numbers = #tpu.dot_dimension_numbers<[1], [0], [0], [1], [0, 0, 1, 1], [], []>} : vector<2x64xf32>, vector<64x8xf32>, vector<2x8xf32> -> vector<2x8xf32>
    %c0_346 = arith.constant 0 : index
    %c0_347 = arith.constant 0 : index
    %427 = vector.load %arg19[%c0_346, %c0_347] : memref<1x8xf32, #tpu.memory_space<vmem>>, vector<1x8xf32>
    %428 = vector.broadcast %427 : vector<1x8xf32> to vector<2x8xf32>
    %429 = arith.addf %426, %428 : vector<2x8xf32>
    %cst_348 = arith.constant 0.000000e+00 : f32
    %430 = vector.broadcast %cst_348 : f32 to vector<2x8xf32>
    %431 = arith.maximumf %429, %430 : vector<2x8xf32>
    %c0_349 = arith.constant 0 : index
    %c0_350 = arith.constant 0 : index
    %432 = vector.load %arg20[%c0_349, %c0_350] : memref<8x8xf32, #tpu.memory_space<vmem>>, vector<8x8xf32>
    %cst_351 = arith.constant dense<0.000000e+00> : vector<2x8xf32>
    %433 = tpu.matmul %431, %432, %cst_351 {dimension_numbers = #tpu.dot_dimension_numbers<[1], [0], [0], [1], [0, 0, 1, 1], [], []>} : vector<2x8xf32>, vector<8x8xf32>, vector<2x8xf32> -> vector<2x8xf32>
    %c0_352 = arith.constant 0 : index
    %c0_353 = arith.constant 0 : index
    %434 = vector.load %arg21[%c0_352, %c0_353] : memref<1x8xf32, #tpu.memory_space<vmem>>, vector<1x8xf32>
    %435 = vector.broadcast %434 : vector<1x8xf32> to vector<2x8xf32>
    %436 = arith.addf %433, %435 : vector<2x8xf32>
    %cst_354 = arith.constant 0.000000e+00 : f32
    %437 = vector.broadcast %cst_354 : f32 to vector<2x8xf32>
    %438 = arith.maximumf %436, %437 : vector<2x8xf32>
    %c0_355 = arith.constant 0 : index
    %c0_356 = arith.constant 0 : index
    %439 = vector.load %arg22[%c0_355, %c0_356] : memref<8x1xf32, #tpu.memory_space<vmem>>, vector<8x1xf32>
    %cst_357 = arith.constant dense<0.000000e+00> : vector<2x1xf32>
    %440 = tpu.matmul %438, %439, %cst_357 {dimension_numbers = #tpu.dot_dimension_numbers<[1], [0], [0], [1], [0, 0, 1, 1], [], []>} : vector<2x8xf32>, vector<8x1xf32>, vector<2x1xf32> -> vector<2x1xf32>
    %c0_358 = arith.constant 0 : index
    %c0_359 = arith.constant 0 : index
    %441 = vector.load %arg23[%c0_358, %c0_359] : memref<1x1xf32, #tpu.memory_space<vmem>>, vector<1x1xf32>
    %442 = vector.broadcast %441 : vector<1x1xf32> to vector<2x1xf32>
    %443 = arith.addf %440, %442 : vector<2x1xf32>
    %cst_360 = arith.constant 0.000000e+00 : f32
    %444 = vector.broadcast %cst_360 : f32 to vector<2x125xf32>
    %445 = tpu.concatenate %424, %443, %444 in 1 : vector<2x2xf32>, vector<2x1xf32>, vector<2x125xf32> -> vector<2x128xf32>
    %c0_361 = arith.constant 0 : index
    %c0_362 = arith.constant 0 : index
    %c0_363 = arith.constant 0 : index
    %446 = vector.load %arg24[%c0_361, %c0_362, %c0_363] : memref<2x2x128xf32, #tpu.memory_space<vmem>>, vector<1x2x128xf32>
    %447 = vector.shape_cast %446 : vector<1x2x128xf32> to vector<2x128xf32>
    %448 = vector.shape_cast %445 : vector<2x128xf32> to vector<1x2x128xf32>
    tpu.vector_store %arg24[%c0_361, %c0_362, %c0_363], %448 {strides = array<i32>} : memref<2x2x128xf32, #tpu.memory_space<vmem>>, vector<1x2x128xf32>,
    %cst_364 = arith.constant 0.000000e+00 : f32
    %449 = vector.broadcast %cst_364 : f32 to vector<32x128xf32>
    %c9_i32_365 = arith.constant 9 : i32
    %450 = tpu.dynamic_rotate %5 by %c9_i32_365 dim 1 : vector<8x128xf32>, i32 -> vector<8x128xf32>
    %c0_366 = arith.constant 0 : index
    %c0_367 = arith.constant 0 : index
    %c0_368 = arith.constant 0 : index
    %451 = vector.load %arg1[%c0_366, %c0_367, %c0_368] : memref<9x1x128xf32, #tpu.memory_space<vmem>>, vector<1x1x128xf32>
    %452 = vector.shape_cast %451 : vector<1x1x128xf32> to vector<1x128xf32>
    %453 = vector.broadcast %452 : vector<1x128xf32> to vector<8x128xf32>
    %454 = arith.mulf %450, %453 : vector<8x128xf32>
    %c1_369 = arith.constant 1 : index
    %c0_370 = arith.constant 0 : index
    %c0_371 = arith.constant 0 : index
    %c0_372 = arith.constant 0 : index
    %455 = vector.load %arg2[%c1_369, %c0_370, %c0_371, %c0_372] : memref<2x9x32x8xbf16, #tpu.memory_space<vmem>>, vector<1x1x32x8xbf16>
    %456 = vector.shape_cast %455 : vector<1x1x32x8xbf16> to vector<32x8xbf16>
    %457 = arith.truncf %454 : vector<8x128xf32> to vector<8x128xbf16>
    %cst_373 = arith.constant dense<0.000000e+00> : vector<32x128xf32>
    %458 = tpu.matmul %456, %457, %cst_373 {dimension_numbers = #tpu.dot_dimension_numbers<[1], [0], [0], [1], [0, 0, 1, 1], [], []>} : vector<32x8xbf16>, vector<8x128xbf16>, vector<32x128xf32> -> vector<32x128xf32>
    %459 = arith.addf %449, %458 : vector<32x128xf32>
    %c8_i32_374 = arith.constant 8 : i32
    %460 = tpu.dynamic_rotate %5 by %c8_i32_374 dim 1 : vector<8x128xf32>, i32 -> vector<8x128xf32>
    %c1_375 = arith.constant 1 : index
    %c0_376 = arith.constant 0 : index
    %c0_377 = arith.constant 0 : index
    %461 = vector.load %arg1[%c1_375, %c0_376, %c0_377] : memref<9x1x128xf32, #tpu.memory_space<vmem>>, vector<1x1x128xf32>
    %462 = vector.shape_cast %461 : vector<1x1x128xf32> to vector<1x128xf32>
    %463 = vector.broadcast %462 : vector<1x128xf32> to vector<8x128xf32>
    %464 = arith.mulf %460, %463 : vector<8x128xf32>
    %c1_378 = arith.constant 1 : index
    %c1_379 = arith.constant 1 : index
    %c0_380 = arith.constant 0 : index
    %c0_381 = arith.constant 0 : index
    %465 = vector.load %arg2[%c1_378, %c1_379, %c0_380, %c0_381] : memref<2x9x32x8xbf16, #tpu.memory_space<vmem>>, vector<1x1x32x8xbf16>
    %466 = vector.shape_cast %465 : vector<1x1x32x8xbf16> to vector<32x8xbf16>
    %467 = arith.truncf %464 : vector<8x128xf32> to vector<8x128xbf16>
    %cst_382 = arith.constant dense<0.000000e+00> : vector<32x128xf32>
    %468 = tpu.matmul %466, %467, %cst_382 {dimension_numbers = #tpu.dot_dimension_numbers<[1], [0], [0], [1], [0, 0, 1, 1], [], []>} : vector<32x8xbf16>, vector<8x128xbf16>, vector<32x128xf32> -> vector<32x128xf32>
    %469 = arith.addf %459, %468 : vector<32x128xf32>
    %c7_i32_383 = arith.constant 7 : i32
    %470 = tpu.dynamic_rotate %5 by %c7_i32_383 dim 1 : vector<8x128xf32>, i32 -> vector<8x128xf32>
    %c2_384 = arith.constant 2 : index
    %c0_385 = arith.constant 0 : index
    %c0_386 = arith.constant 0 : index
    %471 = vector.load %arg1[%c2_384, %c0_385, %c0_386] : memref<9x1x128xf32, #tpu.memory_space<vmem>>, vector<1x1x128xf32>
    %472 = vector.shape_cast %471 : vector<1x1x128xf32> to vector<1x128xf32>
    %473 = vector.broadcast %472 : vector<1x128xf32> to vector<8x128xf32>
    %474 = arith.mulf %470, %473 : vector<8x128xf32>
    %c1_387 = arith.constant 1 : index
    %c2_388 = arith.constant 2 : index
    %c0_389 = arith.constant 0 : index
    %c0_390 = arith.constant 0 : index
    %475 = vector.load %arg2[%c1_387, %c2_388, %c0_389, %c0_390] : memref<2x9x32x8xbf16, #tpu.memory_space<vmem>>, vector<1x1x32x8xbf16>
    %476 = vector.shape_cast %475 : vector<1x1x32x8xbf16> to vector<32x8xbf16>
    %477 = arith.truncf %474 : vector<8x128xf32> to vector<8x128xbf16>
    %cst_391 = arith.constant dense<0.000000e+00> : vector<32x128xf32>
    %478 = tpu.matmul %476, %477, %cst_391 {dimension_numbers = #tpu.dot_dimension_numbers<[1], [0], [0], [1], [0, 0, 1, 1], [], []>} : vector<32x8xbf16>, vector<8x128xbf16>, vector<32x128xf32> -> vector<32x128xf32>
    %479 = arith.addf %469, %478 : vector<32x128xf32>
    %c1_i32_392 = arith.constant 1 : i32
    %480 = tpu.dynamic_rotate %5 by %c1_i32_392 dim 1 : vector<8x128xf32>, i32 -> vector<8x128xf32>
    %c3_393 = arith.constant 3 : index
    %c0_394 = arith.constant 0 : index
    %c0_395 = arith.constant 0 : index
    %481 = vector.load %arg1[%c3_393, %c0_394, %c0_395] : memref<9x1x128xf32, #tpu.memory_space<vmem>>, vector<1x1x128xf32>
    %482 = vector.shape_cast %481 : vector<1x1x128xf32> to vector<1x128xf32>
    %483 = vector.broadcast %482 : vector<1x128xf32> to vector<8x128xf32>
    %484 = arith.mulf %480, %483 : vector<8x128xf32>
    %c1_396 = arith.constant 1 : index
    %c3_397 = arith.constant 3 : index
    %c0_398 = arith.constant 0 : index
    %c0_399 = arith.constant 0 : index
    %485 = vector.load %arg2[%c1_396, %c3_397, %c0_398, %c0_399] : memref<2x9x32x8xbf16, #tpu.memory_space<vmem>>, vector<1x1x32x8xbf16>
    %486 = vector.shape_cast %485 : vector<1x1x32x8xbf16> to vector<32x8xbf16>
    %487 = arith.truncf %484 : vector<8x128xf32> to vector<8x128xbf16>
    %cst_400 = arith.constant dense<0.000000e+00> : vector<32x128xf32>
    %488 = tpu.matmul %486, %487, %cst_400 {dimension_numbers = #tpu.dot_dimension_numbers<[1], [0], [0], [1], [0, 0, 1, 1], [], []>} : vector<32x8xbf16>, vector<8x128xbf16>, vector<32x128xf32> -> vector<32x128xf32>
    %489 = arith.addf %479, %488 : vector<32x128xf32>
    %c1_401 = arith.constant 1 : index
    %c4_402 = arith.constant 4 : index
    %c0_403 = arith.constant 0 : index
    %c0_404 = arith.constant 0 : index
    %490 = vector.load %arg2[%c1_401, %c4_402, %c0_403, %c0_404] : memref<2x9x32x8xbf16, #tpu.memory_space<vmem>>, vector<1x1x32x8xbf16>
    %491 = vector.shape_cast %490 : vector<1x1x32x8xbf16> to vector<32x8xbf16>
    %492 = arith.truncf %5 : vector<8x128xf32> to vector<8x128xbf16>
    %cst_405 = arith.constant dense<0.000000e+00> : vector<32x128xf32>
    %493 = tpu.matmul %491, %492, %cst_405 {dimension_numbers = #tpu.dot_dimension_numbers<[1], [0], [0], [1], [0, 0, 1, 1], [], []>} : vector<32x8xbf16>, vector<8x128xbf16>, vector<32x128xf32> -> vector<32x128xf32>
    %494 = arith.addf %489, %493 : vector<32x128xf32>
    %c127_i32_406 = arith.constant 127 : i32
    %495 = tpu.dynamic_rotate %5 by %c127_i32_406 dim 1 : vector<8x128xf32>, i32 -> vector<8x128xf32>
    %c5_407 = arith.constant 5 : index
    %c0_408 = arith.constant 0 : index
    %c0_409 = arith.constant 0 : index
    %496 = vector.load %arg1[%c5_407, %c0_408, %c0_409] : memref<9x1x128xf32, #tpu.memory_space<vmem>>, vector<1x1x128xf32>
    %497 = vector.shape_cast %496 : vector<1x1x128xf32> to vector<1x128xf32>
    %498 = vector.broadcast %497 : vector<1x128xf32> to vector<8x128xf32>
    %499 = arith.mulf %495, %498 : vector<8x128xf32>
    %c1_410 = arith.constant 1 : index
    %c5_411 = arith.constant 5 : index
    %c0_412 = arith.constant 0 : index
    %c0_413 = arith.constant 0 : index
    %500 = vector.load %arg2[%c1_410, %c5_411, %c0_412, %c0_413] : memref<2x9x32x8xbf16, #tpu.memory_space<vmem>>, vector<1x1x32x8xbf16>
    %501 = vector.shape_cast %500 : vector<1x1x32x8xbf16> to vector<32x8xbf16>
    %502 = arith.truncf %499 : vector<8x128xf32> to vector<8x128xbf16>
    %cst_414 = arith.constant dense<0.000000e+00> : vector<32x128xf32>
    %503 = tpu.matmul %501, %502, %cst_414 {dimension_numbers = #tpu.dot_dimension_numbers<[1], [0], [0], [1], [0, 0, 1, 1], [], []>} : vector<32x8xbf16>, vector<8x128xbf16>, vector<32x128xf32> -> vector<32x128xf32>
    %504 = arith.addf %494, %503 : vector<32x128xf32>
    %c121_i32_415 = arith.constant 121 : i32
    %505 = tpu.dynamic_rotate %5 by %c121_i32_415 dim 1 : vector<8x128xf32>, i32 -> vector<8x128xf32>
    %c6_416 = arith.constant 6 : index
    %c0_417 = arith.constant 0 : index
    %c0_418 = arith.constant 0 : index
    %506 = vector.load %arg1[%c6_416, %c0_417, %c0_418] : memref<9x1x128xf32, #tpu.memory_space<vmem>>, vector<1x1x128xf32>
    %507 = vector.shape_cast %506 : vector<1x1x128xf32> to vector<1x128xf32>
    %508 = vector.broadcast %507 : vector<1x128xf32> to vector<8x128xf32>
    %509 = arith.mulf %505, %508 : vector<8x128xf32>
    %c1_419 = arith.constant 1 : index
    %c6_420 = arith.constant 6 : index
    %c0_421 = arith.constant 0 : index
    %c0_422 = arith.constant 0 : index
    %510 = vector.load %arg2[%c1_419, %c6_420, %c0_421, %c0_422] : memref<2x9x32x8xbf16, #tpu.memory_space<vmem>>, vector<1x1x32x8xbf16>
    %511 = vector.shape_cast %510 : vector<1x1x32x8xbf16> to vector<32x8xbf16>
    %512 = arith.truncf %509 : vector<8x128xf32> to vector<8x128xbf16>
    %cst_423 = arith.constant dense<0.000000e+00> : vector<32x128xf32>
    %513 = tpu.matmul %511, %512, %cst_423 {dimension_numbers = #tpu.dot_dimension_numbers<[1], [0], [0], [1], [0, 0, 1, 1], [], []>} : vector<32x8xbf16>, vector<8x128xbf16>, vector<32x128xf32> -> vector<32x128xf32>
    %514 = arith.addf %504, %513 : vector<32x128xf32>
    %c120_i32_424 = arith.constant 120 : i32
    %515 = tpu.dynamic_rotate %5 by %c120_i32_424 dim 1 : vector<8x128xf32>, i32 -> vector<8x128xf32>
    %c7_425 = arith.constant 7 : index
    %c0_426 = arith.constant 0 : index
    %c0_427 = arith.constant 0 : index
    %516 = vector.load %arg1[%c7_425, %c0_426, %c0_427] : memref<9x1x128xf32, #tpu.memory_space<vmem>>, vector<1x1x128xf32>
    %517 = vector.shape_cast %516 : vector<1x1x128xf32> to vector<1x128xf32>
    %518 = vector.broadcast %517 : vector<1x128xf32> to vector<8x128xf32>
    %519 = arith.mulf %515, %518 : vector<8x128xf32>
    %c1_428 = arith.constant 1 : index
    %c7_429 = arith.constant 7 : index
    %c0_430 = arith.constant 0 : index
    %c0_431 = arith.constant 0 : index
    %520 = vector.load %arg2[%c1_428, %c7_429, %c0_430, %c0_431] : memref<2x9x32x8xbf16, #tpu.memory_space<vmem>>, vector<1x1x32x8xbf16>
    %521 = vector.shape_cast %520 : vector<1x1x32x8xbf16> to vector<32x8xbf16>
    %522 = arith.truncf %519 : vector<8x128xf32> to vector<8x128xbf16>
    %cst_432 = arith.constant dense<0.000000e+00> : vector<32x128xf32>
    %523 = tpu.matmul %521, %522, %cst_432 {dimension_numbers = #tpu.dot_dimension_numbers<[1], [0], [0], [1], [0, 0, 1, 1], [], []>} : vector<32x8xbf16>, vector<8x128xbf16>, vector<32x128xf32> -> vector<32x128xf32>
    %524 = arith.addf %514, %523 : vector<32x128xf32>
    %c119_i32_433 = arith.constant 119 : i32
    %525 = tpu.dynamic_rotate %5 by %c119_i32_433 dim 1 : vector<8x128xf32>, i32 -> vector<8x128xf32>
    %c8_434 = arith.constant 8 : index
    %c0_435 = arith.constant 0 : index
    %c0_436 = arith.constant 0 : index
    %526 = vector.load %arg1[%c8_434, %c0_435, %c0_436] : memref<9x1x128xf32, #tpu.memory_space<vmem>>, vector<1x1x128xf32>
    %527 = vector.shape_cast %526 : vector<1x1x128xf32> to vector<1x128xf32>
    %528 = vector.broadcast %527 : vector<1x128xf32> to vector<8x128xf32>
    %529 = arith.mulf %525, %528 : vector<8x128xf32>
    %c1_437 = arith.constant 1 : index
    %c8_438 = arith.constant 8 : index
    %c0_439 = arith.constant 0 : index
    %c0_440 = arith.constant 0 : index
    %530 = vector.load %arg2[%c1_437, %c8_438, %c0_439, %c0_440] : memref<2x9x32x8xbf16, #tpu.memory_space<vmem>>, vector<1x1x32x8xbf16>
    %531 = vector.shape_cast %530 : vector<1x1x32x8xbf16> to vector<32x8xbf16>
    %532 = arith.truncf %529 : vector<8x128xf32> to vector<8x128xbf16>
    %cst_441 = arith.constant dense<0.000000e+00> : vector<32x128xf32>
    %533 = tpu.matmul %531, %532, %cst_441 {dimension_numbers = #tpu.dot_dimension_numbers<[1], [0], [0], [1], [0, 0, 1, 1], [], []>} : vector<32x8xbf16>, vector<8x128xbf16>, vector<32x128xf32> -> vector<32x128xf32>
    %534 = arith.addf %524, %533 : vector<32x128xf32>
    %c1_442 = arith.constant 1 : index
    %c0_443 = arith.constant 0 : index
    %c0_444 = arith.constant 0 : index
    %535 = vector.load %arg3[%c1_442, %c0_443, %c0_444] : memref<2x32x1xf32, #tpu.memory_space<vmem>>, vector<1x32x1xf32>
    %536 = vector.shape_cast %535 : vector<1x32x1xf32> to vector<32x1xf32>
    %537 = vector.broadcast %536 : vector<32x1xf32> to vector<32x128xf32>
    %538 = arith.mulf %534, %537 : vector<32x128xf32>
    %c1_445 = arith.constant 1 : index
    %c0_446 = arith.constant 0 : index
    %c0_447 = arith.constant 0 : index
    %539 = vector.load %arg4[%c1_445, %c0_446, %c0_447] : memref<2x32x1xf32, #tpu.memory_space<vmem>>, vector<1x32x1xf32>
    %540 = vector.shape_cast %539 : vector<1x32x1xf32> to vector<32x1xf32>
    %541 = vector.broadcast %540 : vector<32x1xf32> to vector<32x128xf32>
    %542 = arith.addf %538, %541 : vector<32x128xf32>
    %cst_448 = arith.constant 0.000000e+00 : f32
    %543 = vector.broadcast %cst_448 : f32 to vector<32x128xf32>
    %544 = arith.maximumf %542, %543 : vector<32x128xf32>
    %cst_449 = arith.constant 0.000000e+00 : f32
    %545 = vector.broadcast %cst_449 : f32 to vector<16x128xf32>
    %c9_i32_450 = arith.constant 9 : i32
    %546 = tpu.dynamic_rotate %544 by %c9_i32_450 dim 1 : vector<32x128xf32>, i32 -> vector<32x128xf32>
    %c0_451 = arith.constant 0 : index
    %c0_452 = arith.constant 0 : index
    %c0_453 = arith.constant 0 : index
    %547 = vector.load %arg1[%c0_451, %c0_452, %c0_453] : memref<9x1x128xf32, #tpu.memory_space<vmem>>, vector<1x1x128xf32>
    %548 = vector.shape_cast %547 : vector<1x1x128xf32> to vector<1x128xf32>
    %549 = vector.broadcast %548 : vector<1x128xf32> to vector<32x128xf32>
    %550 = arith.mulf %546, %549 : vector<32x128xf32>
    %c1_454 = arith.constant 1 : index
    %c0_455 = arith.constant 0 : index
    %c0_456 = arith.constant 0 : index
    %c0_457 = arith.constant 0 : index
    %551 = vector.load %arg5[%c1_454, %c0_455, %c0_456, %c0_457] : memref<2x9x16x32xbf16, #tpu.memory_space<vmem>>, vector<1x1x16x32xbf16>
    %552 = vector.shape_cast %551 : vector<1x1x16x32xbf16> to vector<16x32xbf16>
    %553 = arith.truncf %550 : vector<32x128xf32> to vector<32x128xbf16>
    %cst_458 = arith.constant dense<0.000000e+00> : vector<16x128xf32>
    %554 = tpu.matmul %552, %553, %cst_458 {dimension_numbers = #tpu.dot_dimension_numbers<[1], [0], [0], [1], [0, 0, 1, 1], [], []>} : vector<16x32xbf16>, vector<32x128xbf16>, vector<16x128xf32> -> vector<16x128xf32>
    %555 = arith.addf %545, %554 : vector<16x128xf32>
    %c8_i32_459 = arith.constant 8 : i32
    %556 = tpu.dynamic_rotate %544 by %c8_i32_459 dim 1 : vector<32x128xf32>, i32 -> vector<32x128xf32>
    %c1_460 = arith.constant 1 : index
    %c0_461 = arith.constant 0 : index
    %c0_462 = arith.constant 0 : index
    %557 = vector.load %arg1[%c1_460, %c0_461, %c0_462] : memref<9x1x128xf32, #tpu.memory_space<vmem>>, vector<1x1x128xf32>
    %558 = vector.shape_cast %557 : vector<1x1x128xf32> to vector<1x128xf32>
    %559 = vector.broadcast %558 : vector<1x128xf32> to vector<32x128xf32>
    %560 = arith.mulf %556, %559 : vector<32x128xf32>
    %c1_463 = arith.constant 1 : index
    %c1_464 = arith.constant 1 : index
    %c0_465 = arith.constant 0 : index
    %c0_466 = arith.constant 0 : index
    %561 = vector.load %arg5[%c1_463, %c1_464, %c0_465, %c0_466] : memref<2x9x16x32xbf16, #tpu.memory_space<vmem>>, vector<1x1x16x32xbf16>
    %562 = vector.shape_cast %561 : vector<1x1x16x32xbf16> to vector<16x32xbf16>
    %563 = arith.truncf %560 : vector<32x128xf32> to vector<32x128xbf16>
    %cst_467 = arith.constant dense<0.000000e+00> : vector<16x128xf32>
    %564 = tpu.matmul %562, %563, %cst_467 {dimension_numbers = #tpu.dot_dimension_numbers<[1], [0], [0], [1], [0, 0, 1, 1], [], []>} : vector<16x32xbf16>, vector<32x128xbf16>, vector<16x128xf32> -> vector<16x128xf32>
    %565 = arith.addf %555, %564 : vector<16x128xf32>
    %c7_i32_468 = arith.constant 7 : i32
    %566 = tpu.dynamic_rotate %544 by %c7_i32_468 dim 1 : vector<32x128xf32>, i32 -> vector<32x128xf32>
    %c2_469 = arith.constant 2 : index
    %c0_470 = arith.constant 0 : index
    %c0_471 = arith.constant 0 : index
    %567 = vector.load %arg1[%c2_469, %c0_470, %c0_471] : memref<9x1x128xf32, #tpu.memory_space<vmem>>, vector<1x1x128xf32>
    %568 = vector.shape_cast %567 : vector<1x1x128xf32> to vector<1x128xf32>
    %569 = vector.broadcast %568 : vector<1x128xf32> to vector<32x128xf32>
    %570 = arith.mulf %566, %569 : vector<32x128xf32>
    %c1_472 = arith.constant 1 : index
    %c2_473 = arith.constant 2 : index
    %c0_474 = arith.constant 0 : index
    %c0_475 = arith.constant 0 : index
    %571 = vector.load %arg5[%c1_472, %c2_473, %c0_474, %c0_475] : memref<2x9x16x32xbf16, #tpu.memory_space<vmem>>, vector<1x1x16x32xbf16>
    %572 = vector.shape_cast %571 : vector<1x1x16x32xbf16> to vector<16x32xbf16>
    %573 = arith.truncf %570 : vector<32x128xf32> to vector<32x128xbf16>
    %cst_476 = arith.constant dense<0.000000e+00> : vector<16x128xf32>
    %574 = tpu.matmul %572, %573, %cst_476 {dimension_numbers = #tpu.dot_dimension_numbers<[1], [0], [0], [1], [0, 0, 1, 1], [], []>} : vector<16x32xbf16>, vector<32x128xbf16>, vector<16x128xf32> -> vector<16x128xf32>
    %575 = arith.addf %565, %574 : vector<16x128xf32>
    %c1_i32_477 = arith.constant 1 : i32
    %576 = tpu.dynamic_rotate %544 by %c1_i32_477 dim 1 : vector<32x128xf32>, i32 -> vector<32x128xf32>
    %c3_478 = arith.constant 3 : index
    %c0_479 = arith.constant 0 : index
    %c0_480 = arith.constant 0 : index
    %577 = vector.load %arg1[%c3_478, %c0_479, %c0_480] : memref<9x1x128xf32, #tpu.memory_space<vmem>>, vector<1x1x128xf32>
    %578 = vector.shape_cast %577 : vector<1x1x128xf32> to vector<1x128xf32>
    %579 = vector.broadcast %578 : vector<1x128xf32> to vector<32x128xf32>
    %580 = arith.mulf %576, %579 : vector<32x128xf32>
    %c1_481 = arith.constant 1 : index
    %c3_482 = arith.constant 3 : index
    %c0_483 = arith.constant 0 : index
    %c0_484 = arith.constant 0 : index
    %581 = vector.load %arg5[%c1_481, %c3_482, %c0_483, %c0_484] : memref<2x9x16x32xbf16, #tpu.memory_space<vmem>>, vector<1x1x16x32xbf16>
    %582 = vector.shape_cast %581 : vector<1x1x16x32xbf16> to vector<16x32xbf16>
    %583 = arith.truncf %580 : vector<32x128xf32> to vector<32x128xbf16>
    %cst_485 = arith.constant dense<0.000000e+00> : vector<16x128xf32>
    %584 = tpu.matmul %582, %583, %cst_485 {dimension_numbers = #tpu.dot_dimension_numbers<[1], [0], [0], [1], [0, 0, 1, 1], [], []>} : vector<16x32xbf16>, vector<32x128xbf16>, vector<16x128xf32> -> vector<16x128xf32>
    %585 = arith.addf %575, %584 : vector<16x128xf32>
    %c1_486 = arith.constant 1 : index
    %c4_487 = arith.constant 4 : index
    %c0_488 = arith.constant 0 : index
    %c0_489 = arith.constant 0 : index
    %586 = vector.load %arg5[%c1_486, %c4_487, %c0_488, %c0_489] : memref<2x9x16x32xbf16, #tpu.memory_space<vmem>>, vector<1x1x16x32xbf16>
    %587 = vector.shape_cast %586 : vector<1x1x16x32xbf16> to vector<16x32xbf16>
    %588 = arith.truncf %544 : vector<32x128xf32> to vector<32x128xbf16>
    %cst_490 = arith.constant dense<0.000000e+00> : vector<16x128xf32>
    %589 = tpu.matmul %587, %588, %cst_490 {dimension_numbers = #tpu.dot_dimension_numbers<[1], [0], [0], [1], [0, 0, 1, 1], [], []>} : vector<16x32xbf16>, vector<32x128xbf16>, vector<16x128xf32> -> vector<16x128xf32>
    %590 = arith.addf %585, %589 : vector<16x128xf32>
    %c127_i32_491 = arith.constant 127 : i32
    %591 = tpu.dynamic_rotate %544 by %c127_i32_491 dim 1 : vector<32x128xf32>, i32 -> vector<32x128xf32>
    %c5_492 = arith.constant 5 : index
    %c0_493 = arith.constant 0 : index
    %c0_494 = arith.constant 0 : index
    %592 = vector.load %arg1[%c5_492, %c0_493, %c0_494] : memref<9x1x128xf32, #tpu.memory_space<vmem>>, vector<1x1x128xf32>
    %593 = vector.shape_cast %592 : vector<1x1x128xf32> to vector<1x128xf32>
    %594 = vector.broadcast %593 : vector<1x128xf32> to vector<32x128xf32>
    %595 = arith.mulf %591, %594 : vector<32x128xf32>
    %c1_495 = arith.constant 1 : index
    %c5_496 = arith.constant 5 : index
    %c0_497 = arith.constant 0 : index
    %c0_498 = arith.constant 0 : index
    %596 = vector.load %arg5[%c1_495, %c5_496, %c0_497, %c0_498] : memref<2x9x16x32xbf16, #tpu.memory_space<vmem>>, vector<1x1x16x32xbf16>
    %597 = vector.shape_cast %596 : vector<1x1x16x32xbf16> to vector<16x32xbf16>
    %598 = arith.truncf %595 : vector<32x128xf32> to vector<32x128xbf16>
    %cst_499 = arith.constant dense<0.000000e+00> : vector<16x128xf32>
    %599 = tpu.matmul %597, %598, %cst_499 {dimension_numbers = #tpu.dot_dimension_numbers<[1], [0], [0], [1], [0, 0, 1, 1], [], []>} : vector<16x32xbf16>, vector<32x128xbf16>, vector<16x128xf32> -> vector<16x128xf32>
    %600 = arith.addf %590, %599 : vector<16x128xf32>
    %c121_i32_500 = arith.constant 121 : i32
    %601 = tpu.dynamic_rotate %544 by %c121_i32_500 dim 1 : vector<32x128xf32>, i32 -> vector<32x128xf32>
    %c6_501 = arith.constant 6 : index
    %c0_502 = arith.constant 0 : index
    %c0_503 = arith.constant 0 : index
    %602 = vector.load %arg1[%c6_501, %c0_502, %c0_503] : memref<9x1x128xf32, #tpu.memory_space<vmem>>, vector<1x1x128xf32>
    %603 = vector.shape_cast %602 : vector<1x1x128xf32> to vector<1x128xf32>
    %604 = vector.broadcast %603 : vector<1x128xf32> to vector<32x128xf32>
    %605 = arith.mulf %601, %604 : vector<32x128xf32>
    %c1_504 = arith.constant 1 : index
    %c6_505 = arith.constant 6 : index
    %c0_506 = arith.constant 0 : index
    %c0_507 = arith.constant 0 : index
    %606 = vector.load %arg5[%c1_504, %c6_505, %c0_506, %c0_507] : memref<2x9x16x32xbf16, #tpu.memory_space<vmem>>, vector<1x1x16x32xbf16>
    %607 = vector.shape_cast %606 : vector<1x1x16x32xbf16> to vector<16x32xbf16>
    %608 = arith.truncf %605 : vector<32x128xf32> to vector<32x128xbf16>
    %cst_508 = arith.constant dense<0.000000e+00> : vector<16x128xf32>
    %609 = tpu.matmul %607, %608, %cst_508 {dimension_numbers = #tpu.dot_dimension_numbers<[1], [0], [0], [1], [0, 0, 1, 1], [], []>} : vector<16x32xbf16>, vector<32x128xbf16>, vector<16x128xf32> -> vector<16x128xf32>
    %610 = arith.addf %600, %609 : vector<16x128xf32>
    %c120_i32_509 = arith.constant 120 : i32
    %611 = tpu.dynamic_rotate %544 by %c120_i32_509 dim 1 : vector<32x128xf32>, i32 -> vector<32x128xf32>
    %c7_510 = arith.constant 7 : index
    %c0_511 = arith.constant 0 : index
    %c0_512 = arith.constant 0 : index
    %612 = vector.load %arg1[%c7_510, %c0_511, %c0_512] : memref<9x1x128xf32, #tpu.memory_space<vmem>>, vector<1x1x128xf32>
    %613 = vector.shape_cast %612 : vector<1x1x128xf32> to vector<1x128xf32>
    %614 = vector.broadcast %613 : vector<1x128xf32> to vector<32x128xf32>
    %615 = arith.mulf %611, %614 : vector<32x128xf32>
    %c1_513 = arith.constant 1 : index
    %c7_514 = arith.constant 7 : index
    %c0_515 = arith.constant 0 : index
    %c0_516 = arith.constant 0 : index
    %616 = vector.load %arg5[%c1_513, %c7_514, %c0_515, %c0_516] : memref<2x9x16x32xbf16, #tpu.memory_space<vmem>>, vector<1x1x16x32xbf16>
    %617 = vector.shape_cast %616 : vector<1x1x16x32xbf16> to vector<16x32xbf16>
    %618 = arith.truncf %615 : vector<32x128xf32> to vector<32x128xbf16>
    %cst_517 = arith.constant dense<0.000000e+00> : vector<16x128xf32>
    %619 = tpu.matmul %617, %618, %cst_517 {dimension_numbers = #tpu.dot_dimension_numbers<[1], [0], [0], [1], [0, 0, 1, 1], [], []>} : vector<16x32xbf16>, vector<32x128xbf16>, vector<16x128xf32> -> vector<16x128xf32>
    %620 = arith.addf %610, %619 : vector<16x128xf32>
    %c119_i32_518 = arith.constant 119 : i32
    %621 = tpu.dynamic_rotate %544 by %c119_i32_518 dim 1 : vector<32x128xf32>, i32 -> vector<32x128xf32>
    %c8_519 = arith.constant 8 : index
    %c0_520 = arith.constant 0 : index
    %c0_521 = arith.constant 0 : index
    %622 = vector.load %arg1[%c8_519, %c0_520, %c0_521] : memref<9x1x128xf32, #tpu.memory_space<vmem>>, vector<1x1x128xf32>
    %623 = vector.shape_cast %622 : vector<1x1x128xf32> to vector<1x128xf32>
    %624 = vector.broadcast %623 : vector<1x128xf32> to vector<32x128xf32>
    %625 = arith.mulf %621, %624 : vector<32x128xf32>
    %c1_522 = arith.constant 1 : index
    %c8_523 = arith.constant 8 : index
    %c0_524 = arith.constant 0 : index
    %c0_525 = arith.constant 0 : index
    %626 = vector.load %arg5[%c1_522, %c8_523, %c0_524, %c0_525] : memref<2x9x16x32xbf16, #tpu.memory_space<vmem>>, vector<1x1x16x32xbf16>
    %627 = vector.shape_cast %626 : vector<1x1x16x32xbf16> to vector<16x32xbf16>
    %628 = arith.truncf %625 : vector<32x128xf32> to vector<32x128xbf16>
    %cst_526 = arith.constant dense<0.000000e+00> : vector<16x128xf32>
    %629 = tpu.matmul %627, %628, %cst_526 {dimension_numbers = #tpu.dot_dimension_numbers<[1], [0], [0], [1], [0, 0, 1, 1], [], []>} : vector<16x32xbf16>, vector<32x128xbf16>, vector<16x128xf32> -> vector<16x128xf32>
    %630 = arith.addf %620, %629 : vector<16x128xf32>
    %c1_527 = arith.constant 1 : index
    %c0_528 = arith.constant 0 : index
    %c0_529 = arith.constant 0 : index
    %631 = vector.load %arg6[%c1_527, %c0_528, %c0_529] : memref<2x16x1xf32, #tpu.memory_space<vmem>>, vector<1x16x1xf32>
    %632 = vector.shape_cast %631 : vector<1x16x1xf32> to vector<16x1xf32>
    %633 = vector.broadcast %632 : vector<16x1xf32> to vector<16x128xf32>
    %634 = arith.mulf %630, %633 : vector<16x128xf32>
    %c1_530 = arith.constant 1 : index
    %c0_531 = arith.constant 0 : index
    %c0_532 = arith.constant 0 : index
    %635 = vector.load %arg7[%c1_530, %c0_531, %c0_532] : memref<2x16x1xf32, #tpu.memory_space<vmem>>, vector<1x16x1xf32>
    %636 = vector.shape_cast %635 : vector<1x16x1xf32> to vector<16x1xf32>
    %637 = vector.broadcast %636 : vector<16x1xf32> to vector<16x128xf32>
    %638 = arith.addf %634, %637 : vector<16x128xf32>
    %cst_533 = arith.constant 0.000000e+00 : f32
    %639 = vector.broadcast %cst_533 : f32 to vector<16x128xf32>
    %640 = arith.maximumf %638, %639 : vector<16x128xf32>
    %cst_534 = arith.constant 0.000000e+00 : f32
    %641 = vector.broadcast %cst_534 : f32 to vector<8x128xf32>
    %c9_i32_535 = arith.constant 9 : i32
    %642 = tpu.dynamic_rotate %640 by %c9_i32_535 dim 1 : vector<16x128xf32>, i32 -> vector<16x128xf32>
    %c0_536 = arith.constant 0 : index
    %c0_537 = arith.constant 0 : index
    %c0_538 = arith.constant 0 : index
    %643 = vector.load %arg1[%c0_536, %c0_537, %c0_538] : memref<9x1x128xf32, #tpu.memory_space<vmem>>, vector<1x1x128xf32>
    %644 = vector.shape_cast %643 : vector<1x1x128xf32> to vector<1x128xf32>
    %645 = vector.broadcast %644 : vector<1x128xf32> to vector<16x128xf32>
    %646 = arith.mulf %642, %645 : vector<16x128xf32>
    %c1_539 = arith.constant 1 : index
    %c0_540 = arith.constant 0 : index
    %c0_541 = arith.constant 0 : index
    %c0_542 = arith.constant 0 : index
    %647 = vector.load %arg8[%c1_539, %c0_540, %c0_541, %c0_542] : memref<2x9x8x16xbf16, #tpu.memory_space<vmem>>, vector<1x1x8x16xbf16>
    %648 = vector.shape_cast %647 : vector<1x1x8x16xbf16> to vector<8x16xbf16>
    %649 = arith.truncf %646 : vector<16x128xf32> to vector<16x128xbf16>
    %cst_543 = arith.constant dense<0.000000e+00> : vector<8x128xf32>
    %650 = tpu.matmul %648, %649, %cst_543 {dimension_numbers = #tpu.dot_dimension_numbers<[1], [0], [0], [1], [0, 0, 1, 1], [], []>} : vector<8x16xbf16>, vector<16x128xbf16>, vector<8x128xf32> -> vector<8x128xf32>
    %651 = arith.addf %641, %650 : vector<8x128xf32>
    %c8_i32_544 = arith.constant 8 : i32
    %652 = tpu.dynamic_rotate %640 by %c8_i32_544 dim 1 : vector<16x128xf32>, i32 -> vector<16x128xf32>
    %c1_545 = arith.constant 1 : index
    %c0_546 = arith.constant 0 : index
    %c0_547 = arith.constant 0 : index
    %653 = vector.load %arg1[%c1_545, %c0_546, %c0_547] : memref<9x1x128xf32, #tpu.memory_space<vmem>>, vector<1x1x128xf32>
    %654 = vector.shape_cast %653 : vector<1x1x128xf32> to vector<1x128xf32>
    %655 = vector.broadcast %654 : vector<1x128xf32> to vector<16x128xf32>
    %656 = arith.mulf %652, %655 : vector<16x128xf32>
    %c1_548 = arith.constant 1 : index
    %c1_549 = arith.constant 1 : index
    %c0_550 = arith.constant 0 : index
    %c0_551 = arith.constant 0 : index
    %657 = vector.load %arg8[%c1_548, %c1_549, %c0_550, %c0_551] : memref<2x9x8x16xbf16, #tpu.memory_space<vmem>>, vector<1x1x8x16xbf16>
    %658 = vector.shape_cast %657 : vector<1x1x8x16xbf16> to vector<8x16xbf16>
    %659 = arith.truncf %656 : vector<16x128xf32> to vector<16x128xbf16>
    %cst_552 = arith.constant dense<0.000000e+00> : vector<8x128xf32>
    %660 = tpu.matmul %658, %659, %cst_552 {dimension_numbers = #tpu.dot_dimension_numbers<[1], [0], [0], [1], [0, 0, 1, 1], [], []>} : vector<8x16xbf16>, vector<16x128xbf16>, vector<8x128xf32> -> vector<8x128xf32>
    %661 = arith.addf %651, %660 : vector<8x128xf32>
    %c7_i32_553 = arith.constant 7 : i32
    %662 = tpu.dynamic_rotate %640 by %c7_i32_553 dim 1 : vector<16x128xf32>, i32 -> vector<16x128xf32>
    %c2_554 = arith.constant 2 : index
    %c0_555 = arith.constant 0 : index
    %c0_556 = arith.constant 0 : index
    %663 = vector.load %arg1[%c2_554, %c0_555, %c0_556] : memref<9x1x128xf32, #tpu.memory_space<vmem>>, vector<1x1x128xf32>
    %664 = vector.shape_cast %663 : vector<1x1x128xf32> to vector<1x128xf32>
    %665 = vector.broadcast %664 : vector<1x128xf32> to vector<16x128xf32>
    %666 = arith.mulf %662, %665 : vector<16x128xf32>
    %c1_557 = arith.constant 1 : index
    %c2_558 = arith.constant 2 : index
    %c0_559 = arith.constant 0 : index
    %c0_560 = arith.constant 0 : index
    %667 = vector.load %arg8[%c1_557, %c2_558, %c0_559, %c0_560] : memref<2x9x8x16xbf16, #tpu.memory_space<vmem>>, vector<1x1x8x16xbf16>
    %668 = vector.shape_cast %667 : vector<1x1x8x16xbf16> to vector<8x16xbf16>
    %669 = arith.truncf %666 : vector<16x128xf32> to vector<16x128xbf16>
    %cst_561 = arith.constant dense<0.000000e+00> : vector<8x128xf32>
    %670 = tpu.matmul %668, %669, %cst_561 {dimension_numbers = #tpu.dot_dimension_numbers<[1], [0], [0], [1], [0, 0, 1, 1], [], []>} : vector<8x16xbf16>, vector<16x128xbf16>, vector<8x128xf32> -> vector<8x128xf32>
    %671 = arith.addf %661, %670 : vector<8x128xf32>
    %c1_i32_562 = arith.constant 1 : i32
    %672 = tpu.dynamic_rotate %640 by %c1_i32_562 dim 1 : vector<16x128xf32>, i32 -> vector<16x128xf32>
    %c3_563 = arith.constant 3 : index
    %c0_564 = arith.constant 0 : index
    %c0_565 = arith.constant 0 : index
    %673 = vector.load %arg1[%c3_563, %c0_564, %c0_565] : memref<9x1x128xf32, #tpu.memory_space<vmem>>, vector<1x1x128xf32>
    %674 = vector.shape_cast %673 : vector<1x1x128xf32> to vector<1x128xf32>
    %675 = vector.broadcast %674 : vector<1x128xf32> to vector<16x128xf32>
    %676 = arith.mulf %672, %675 : vector<16x128xf32>
    %c1_566 = arith.constant 1 : index
    %c3_567 = arith.constant 3 : index
    %c0_568 = arith.constant 0 : index
    %c0_569 = arith.constant 0 : index
    %677 = vector.load %arg8[%c1_566, %c3_567, %c0_568, %c0_569] : memref<2x9x8x16xbf16, #tpu.memory_space<vmem>>, vector<1x1x8x16xbf16>
    %678 = vector.shape_cast %677 : vector<1x1x8x16xbf16> to vector<8x16xbf16>
    %679 = arith.truncf %676 : vector<16x128xf32> to vector<16x128xbf16>
    %cst_570 = arith.constant dense<0.000000e+00> : vector<8x128xf32>
    %680 = tpu.matmul %678, %679, %cst_570 {dimension_numbers = #tpu.dot_dimension_numbers<[1], [0], [0], [1], [0, 0, 1, 1], [], []>} : vector<8x16xbf16>, vector<16x128xbf16>, vector<8x128xf32> -> vector<8x128xf32>
    %681 = arith.addf %671, %680 : vector<8x128xf32>
    %c1_571 = arith.constant 1 : index
    %c4_572 = arith.constant 4 : index
    %c0_573 = arith.constant 0 : index
    %c0_574 = arith.constant 0 : index
    %682 = vector.load %arg8[%c1_571, %c4_572, %c0_573, %c0_574] : memref<2x9x8x16xbf16, #tpu.memory_space<vmem>>, vector<1x1x8x16xbf16>
    %683 = vector.shape_cast %682 : vector<1x1x8x16xbf16> to vector<8x16xbf16>
    %684 = arith.truncf %640 : vector<16x128xf32> to vector<16x128xbf16>
    %cst_575 = arith.constant dense<0.000000e+00> : vector<8x128xf32>
    %685 = tpu.matmul %683, %684, %cst_575 {dimension_numbers = #tpu.dot_dimension_numbers<[1], [0], [0], [1], [0, 0, 1, 1], [], []>} : vector<8x16xbf16>, vector<16x128xbf16>, vector<8x128xf32> -> vector<8x128xf32>
    %686 = arith.addf %681, %685 : vector<8x128xf32>
    %c127_i32_576 = arith.constant 127 : i32
    %687 = tpu.dynamic_rotate %640 by %c127_i32_576 dim 1 : vector<16x128xf32>, i32 -> vector<16x128xf32>
    %c5_577 = arith.constant 5 : index
    %c0_578 = arith.constant 0 : index
    %c0_579 = arith.constant 0 : index
    %688 = vector.load %arg1[%c5_577, %c0_578, %c0_579] : memref<9x1x128xf32, #tpu.memory_space<vmem>>, vector<1x1x128xf32>
    %689 = vector.shape_cast %688 : vector<1x1x128xf32> to vector<1x128xf32>
    %690 = vector.broadcast %689 : vector<1x128xf32> to vector<16x128xf32>
    %691 = arith.mulf %687, %690 : vector<16x128xf32>
    %c1_580 = arith.constant 1 : index
    %c5_581 = arith.constant 5 : index
    %c0_582 = arith.constant 0 : index
    %c0_583 = arith.constant 0 : index
    %692 = vector.load %arg8[%c1_580, %c5_581, %c0_582, %c0_583] : memref<2x9x8x16xbf16, #tpu.memory_space<vmem>>, vector<1x1x8x16xbf16>
    %693 = vector.shape_cast %692 : vector<1x1x8x16xbf16> to vector<8x16xbf16>
    %694 = arith.truncf %691 : vector<16x128xf32> to vector<16x128xbf16>
    %cst_584 = arith.constant dense<0.000000e+00> : vector<8x128xf32>
    %695 = tpu.matmul %693, %694, %cst_584 {dimension_numbers = #tpu.dot_dimension_numbers<[1], [0], [0], [1], [0, 0, 1, 1], [], []>} : vector<8x16xbf16>, vector<16x128xbf16>, vector<8x128xf32> -> vector<8x128xf32>
    %696 = arith.addf %686, %695 : vector<8x128xf32>
    %c121_i32_585 = arith.constant 121 : i32
    %697 = tpu.dynamic_rotate %640 by %c121_i32_585 dim 1 : vector<16x128xf32>, i32 -> vector<16x128xf32>
    %c6_586 = arith.constant 6 : index
    %c0_587 = arith.constant 0 : index
    %c0_588 = arith.constant 0 : index
    %698 = vector.load %arg1[%c6_586, %c0_587, %c0_588] : memref<9x1x128xf32, #tpu.memory_space<vmem>>, vector<1x1x128xf32>
    %699 = vector.shape_cast %698 : vector<1x1x128xf32> to vector<1x128xf32>
    %700 = vector.broadcast %699 : vector<1x128xf32> to vector<16x128xf32>
    %701 = arith.mulf %697, %700 : vector<16x128xf32>
    %c1_589 = arith.constant 1 : index
    %c6_590 = arith.constant 6 : index
    %c0_591 = arith.constant 0 : index
    %c0_592 = arith.constant 0 : index
    %702 = vector.load %arg8[%c1_589, %c6_590, %c0_591, %c0_592] : memref<2x9x8x16xbf16, #tpu.memory_space<vmem>>, vector<1x1x8x16xbf16>
    %703 = vector.shape_cast %702 : vector<1x1x8x16xbf16> to vector<8x16xbf16>
    %704 = arith.truncf %701 : vector<16x128xf32> to vector<16x128xbf16>
    %cst_593 = arith.constant dense<0.000000e+00> : vector<8x128xf32>
    %705 = tpu.matmul %703, %704, %cst_593 {dimension_numbers = #tpu.dot_dimension_numbers<[1], [0], [0], [1], [0, 0, 1, 1], [], []>} : vector<8x16xbf16>, vector<16x128xbf16>, vector<8x128xf32> -> vector<8x128xf32>
    %706 = arith.addf %696, %705 : vector<8x128xf32>
    %c120_i32_594 = arith.constant 120 : i32
    %707 = tpu.dynamic_rotate %640 by %c120_i32_594 dim 1 : vector<16x128xf32>, i32 -> vector<16x128xf32>
    %c7_595 = arith.constant 7 : index
    %c0_596 = arith.constant 0 : index
    %c0_597 = arith.constant 0 : index
    %708 = vector.load %arg1[%c7_595, %c0_596, %c0_597] : memref<9x1x128xf32, #tpu.memory_space<vmem>>, vector<1x1x128xf32>
    %709 = vector.shape_cast %708 : vector<1x1x128xf32> to vector<1x128xf32>
    %710 = vector.broadcast %709 : vector<1x128xf32> to vector<16x128xf32>
    %711 = arith.mulf %707, %710 : vector<16x128xf32>
    %c1_598 = arith.constant 1 : index
    %c7_599 = arith.constant 7 : index
    %c0_600 = arith.constant 0 : index
    %c0_601 = arith.constant 0 : index
    %712 = vector.load %arg8[%c1_598, %c7_599, %c0_600, %c0_601] : memref<2x9x8x16xbf16, #tpu.memory_space<vmem>>, vector<1x1x8x16xbf16>
    %713 = vector.shape_cast %712 : vector<1x1x8x16xbf16> to vector<8x16xbf16>
    %714 = arith.truncf %711 : vector<16x128xf32> to vector<16x128xbf16>
    %cst_602 = arith.constant dense<0.000000e+00> : vector<8x128xf32>
    %715 = tpu.matmul %713, %714, %cst_602 {dimension_numbers = #tpu.dot_dimension_numbers<[1], [0], [0], [1], [0, 0, 1, 1], [], []>} : vector<8x16xbf16>, vector<16x128xbf16>, vector<8x128xf32> -> vector<8x128xf32>
    %716 = arith.addf %706, %715 : vector<8x128xf32>
    %c119_i32_603 = arith.constant 119 : i32
    %717 = tpu.dynamic_rotate %640 by %c119_i32_603 dim 1 : vector<16x128xf32>, i32 -> vector<16x128xf32>
    %c8_604 = arith.constant 8 : index
    %c0_605 = arith.constant 0 : index
    %c0_606 = arith.constant 0 : index
    %718 = vector.load %arg1[%c8_604, %c0_605, %c0_606] : memref<9x1x128xf32, #tpu.memory_space<vmem>>, vector<1x1x128xf32>
    %719 = vector.shape_cast %718 : vector<1x1x128xf32> to vector<1x128xf32>
    %720 = vector.broadcast %719 : vector<1x128xf32> to vector<16x128xf32>
    %721 = arith.mulf %717, %720 : vector<16x128xf32>
    %c1_607 = arith.constant 1 : index
    %c8_608 = arith.constant 8 : index
    %c0_609 = arith.constant 0 : index
    %c0_610 = arith.constant 0 : index
    %722 = vector.load %arg8[%c1_607, %c8_608, %c0_609, %c0_610] : memref<2x9x8x16xbf16, #tpu.memory_space<vmem>>, vector<1x1x8x16xbf16>
    %723 = vector.shape_cast %722 : vector<1x1x8x16xbf16> to vector<8x16xbf16>
    %724 = arith.truncf %721 : vector<16x128xf32> to vector<16x128xbf16>
    %cst_611 = arith.constant dense<0.000000e+00> : vector<8x128xf32>
    %725 = tpu.matmul %723, %724, %cst_611 {dimension_numbers = #tpu.dot_dimension_numbers<[1], [0], [0], [1], [0, 0, 1, 1], [], []>} : vector<8x16xbf16>, vector<16x128xbf16>, vector<8x128xf32> -> vector<8x128xf32>
    %726 = arith.addf %716, %725 : vector<8x128xf32>
    %c1_612 = arith.constant 1 : index
    %c0_613 = arith.constant 0 : index
    %c0_614 = arith.constant 0 : index
    %727 = vector.load %arg9[%c1_612, %c0_613, %c0_614] : memref<2x8x1xf32, #tpu.memory_space<vmem>>, vector<1x8x1xf32>
    %728 = vector.shape_cast %727 : vector<1x8x1xf32> to vector<8x1xf32>
    %729 = vector.broadcast %728 : vector<8x1xf32> to vector<8x128xf32>
    %730 = arith.mulf %726, %729 : vector<8x128xf32>
    %c1_615 = arith.constant 1 : index
    %c0_616 = arith.constant 0 : index
    %c0_617 = arith.constant 0 : index
    %731 = vector.load %arg10[%c1_615, %c0_616, %c0_617] : memref<2x8x1xf32, #tpu.memory_space<vmem>>, vector<1x8x1xf32>
    %732 = vector.shape_cast %731 : vector<1x8x1xf32> to vector<8x1xf32>
    %733 = vector.broadcast %732 : vector<8x1xf32> to vector<8x128xf32>
    %734 = arith.addf %730, %733 : vector<8x128xf32>
    %cst_618 = arith.constant 0.000000e+00 : f32
    %735 = vector.broadcast %cst_618 : f32 to vector<8x128xf32>
    %736 = arith.maximumf %734, %735 : vector<8x128xf32>
    %cst_619 = arith.constant 0.000000e+00 : f32
    %737 = vector.broadcast %cst_619 : f32 to vector<4x128xf32>
    %c9_i32_620 = arith.constant 9 : i32
    %738 = tpu.dynamic_rotate %736 by %c9_i32_620 dim 1 : vector<8x128xf32>, i32 -> vector<8x128xf32>
    %c0_621 = arith.constant 0 : index
    %c0_622 = arith.constant 0 : index
    %c0_623 = arith.constant 0 : index
    %739 = vector.load %arg1[%c0_621, %c0_622, %c0_623] : memref<9x1x128xf32, #tpu.memory_space<vmem>>, vector<1x1x128xf32>
    %740 = vector.shape_cast %739 : vector<1x1x128xf32> to vector<1x128xf32>
    %741 = vector.broadcast %740 : vector<1x128xf32> to vector<8x128xf32>
    %742 = arith.mulf %738, %741 : vector<8x128xf32>
    %c1_624 = arith.constant 1 : index
    %c0_625 = arith.constant 0 : index
    %c0_626 = arith.constant 0 : index
    %c0_627 = arith.constant 0 : index
    %743 = vector.load %arg11[%c1_624, %c0_625, %c0_626, %c0_627] : memref<2x9x4x8xbf16, #tpu.memory_space<vmem>>, vector<1x1x4x8xbf16>
    %744 = vector.shape_cast %743 : vector<1x1x4x8xbf16> to vector<4x8xbf16>
    %745 = arith.truncf %742 : vector<8x128xf32> to vector<8x128xbf16>
    %cst_628 = arith.constant dense<0.000000e+00> : vector<4x128xf32>
    %746 = tpu.matmul %744, %745, %cst_628 {dimension_numbers = #tpu.dot_dimension_numbers<[1], [0], [0], [1], [0, 0, 1, 1], [], []>} : vector<4x8xbf16>, vector<8x128xbf16>, vector<4x128xf32> -> vector<4x128xf32>
    %747 = arith.addf %737, %746 : vector<4x128xf32>
    %c8_i32_629 = arith.constant 8 : i32
    %748 = tpu.dynamic_rotate %736 by %c8_i32_629 dim 1 : vector<8x128xf32>, i32 -> vector<8x128xf32>
    %c1_630 = arith.constant 1 : index
    %c0_631 = arith.constant 0 : index
    %c0_632 = arith.constant 0 : index
    %749 = vector.load %arg1[%c1_630, %c0_631, %c0_632] : memref<9x1x128xf32, #tpu.memory_space<vmem>>, vector<1x1x128xf32>
    %750 = vector.shape_cast %749 : vector<1x1x128xf32> to vector<1x128xf32>
    %751 = vector.broadcast %750 : vector<1x128xf32> to vector<8x128xf32>
    %752 = arith.mulf %748, %751 : vector<8x128xf32>
    %c1_633 = arith.constant 1 : index
    %c1_634 = arith.constant 1 : index
    %c0_635 = arith.constant 0 : index
    %c0_636 = arith.constant 0 : index
    %753 = vector.load %arg11[%c1_633, %c1_634, %c0_635, %c0_636] : memref<2x9x4x8xbf16, #tpu.memory_space<vmem>>, vector<1x1x4x8xbf16>
    %754 = vector.shape_cast %753 : vector<1x1x4x8xbf16> to vector<4x8xbf16>
    %755 = arith.truncf %752 : vector<8x128xf32> to vector<8x128xbf16>
    %cst_637 = arith.constant dense<0.000000e+00> : vector<4x128xf32>
    %756 = tpu.matmul %754, %755, %cst_637 {dimension_numbers = #tpu.dot_dimension_numbers<[1], [0], [0], [1], [0, 0, 1, 1], [], []>} : vector<4x8xbf16>, vector<8x128xbf16>, vector<4x128xf32> -> vector<4x128xf32>
    %757 = arith.addf %747, %756 : vector<4x128xf32>
    %c7_i32_638 = arith.constant 7 : i32
    %758 = tpu.dynamic_rotate %736 by %c7_i32_638 dim 1 : vector<8x128xf32>, i32 -> vector<8x128xf32>
    %c2_639 = arith.constant 2 : index
    %c0_640 = arith.constant 0 : index
    %c0_641 = arith.constant 0 : index
    %759 = vector.load %arg1[%c2_639, %c0_640, %c0_641] : memref<9x1x128xf32, #tpu.memory_space<vmem>>, vector<1x1x128xf32>
    %760 = vector.shape_cast %759 : vector<1x1x128xf32> to vector<1x128xf32>
    %761 = vector.broadcast %760 : vector<1x128xf32> to vector<8x128xf32>
    %762 = arith.mulf %758, %761 : vector<8x128xf32>
    %c1_642 = arith.constant 1 : index
    %c2_643 = arith.constant 2 : index
    %c0_644 = arith.constant 0 : index
    %c0_645 = arith.constant 0 : index
    %763 = vector.load %arg11[%c1_642, %c2_643, %c0_644, %c0_645] : memref<2x9x4x8xbf16, #tpu.memory_space<vmem>>, vector<1x1x4x8xbf16>
    %764 = vector.shape_cast %763 : vector<1x1x4x8xbf16> to vector<4x8xbf16>
    %765 = arith.truncf %762 : vector<8x128xf32> to vector<8x128xbf16>
    %cst_646 = arith.constant dense<0.000000e+00> : vector<4x128xf32>
    %766 = tpu.matmul %764, %765, %cst_646 {dimension_numbers = #tpu.dot_dimension_numbers<[1], [0], [0], [1], [0, 0, 1, 1], [], []>} : vector<4x8xbf16>, vector<8x128xbf16>, vector<4x128xf32> -> vector<4x128xf32>
    %767 = arith.addf %757, %766 : vector<4x128xf32>
    %c1_i32_647 = arith.constant 1 : i32
    %768 = tpu.dynamic_rotate %736 by %c1_i32_647 dim 1 : vector<8x128xf32>, i32 -> vector<8x128xf32>
    %c3_648 = arith.constant 3 : index
    %c0_649 = arith.constant 0 : index
    %c0_650 = arith.constant 0 : index
    %769 = vector.load %arg1[%c3_648, %c0_649, %c0_650] : memref<9x1x128xf32, #tpu.memory_space<vmem>>, vector<1x1x128xf32>
    %770 = vector.shape_cast %769 : vector<1x1x128xf32> to vector<1x128xf32>
    %771 = vector.broadcast %770 : vector<1x128xf32> to vector<8x128xf32>
    %772 = arith.mulf %768, %771 : vector<8x128xf32>
    %c1_651 = arith.constant 1 : index
    %c3_652 = arith.constant 3 : index
    %c0_653 = arith.constant 0 : index
    %c0_654 = arith.constant 0 : index
    %773 = vector.load %arg11[%c1_651, %c3_652, %c0_653, %c0_654] : memref<2x9x4x8xbf16, #tpu.memory_space<vmem>>, vector<1x1x4x8xbf16>
    %774 = vector.shape_cast %773 : vector<1x1x4x8xbf16> to vector<4x8xbf16>
    %775 = arith.truncf %772 : vector<8x128xf32> to vector<8x128xbf16>
    %cst_655 = arith.constant dense<0.000000e+00> : vector<4x128xf32>
    %776 = tpu.matmul %774, %775, %cst_655 {dimension_numbers = #tpu.dot_dimension_numbers<[1], [0], [0], [1], [0, 0, 1, 1], [], []>} : vector<4x8xbf16>, vector<8x128xbf16>, vector<4x128xf32> -> vector<4x128xf32>
    %777 = arith.addf %767, %776 : vector<4x128xf32>
    %c1_656 = arith.constant 1 : index
    %c4_657 = arith.constant 4 : index
    %c0_658 = arith.constant 0 : index
    %c0_659 = arith.constant 0 : index
    %778 = vector.load %arg11[%c1_656, %c4_657, %c0_658, %c0_659] : memref<2x9x4x8xbf16, #tpu.memory_space<vmem>>, vector<1x1x4x8xbf16>
    %779 = vector.shape_cast %778 : vector<1x1x4x8xbf16> to vector<4x8xbf16>
    %780 = arith.truncf %736 : vector<8x128xf32> to vector<8x128xbf16>
    %cst_660 = arith.constant dense<0.000000e+00> : vector<4x128xf32>
    %781 = tpu.matmul %779, %780, %cst_660 {dimension_numbers = #tpu.dot_dimension_numbers<[1], [0], [0], [1], [0, 0, 1, 1], [], []>} : vector<4x8xbf16>, vector<8x128xbf16>, vector<4x128xf32> -> vector<4x128xf32>
    %782 = arith.addf %777, %781 : vector<4x128xf32>
    %c127_i32_661 = arith.constant 127 : i32
    %783 = tpu.dynamic_rotate %736 by %c127_i32_661 dim 1 : vector<8x128xf32>, i32 -> vector<8x128xf32>
    %c5_662 = arith.constant 5 : index
    %c0_663 = arith.constant 0 : index
    %c0_664 = arith.constant 0 : index
    %784 = vector.load %arg1[%c5_662, %c0_663, %c0_664] : memref<9x1x128xf32, #tpu.memory_space<vmem>>, vector<1x1x128xf32>
    %785 = vector.shape_cast %784 : vector<1x1x128xf32> to vector<1x128xf32>
    %786 = vector.broadcast %785 : vector<1x128xf32> to vector<8x128xf32>
    %787 = arith.mulf %783, %786 : vector<8x128xf32>
    %c1_665 = arith.constant 1 : index
    %c5_666 = arith.constant 5 : index
    %c0_667 = arith.constant 0 : index
    %c0_668 = arith.constant 0 : index
    %788 = vector.load %arg11[%c1_665, %c5_666, %c0_667, %c0_668] : memref<2x9x4x8xbf16, #tpu.memory_space<vmem>>, vector<1x1x4x8xbf16>
    %789 = vector.shape_cast %788 : vector<1x1x4x8xbf16> to vector<4x8xbf16>
    %790 = arith.truncf %787 : vector<8x128xf32> to vector<8x128xbf16>
    %cst_669 = arith.constant dense<0.000000e+00> : vector<4x128xf32>
    %791 = tpu.matmul %789, %790, %cst_669 {dimension_numbers = #tpu.dot_dimension_numbers<[1], [0], [0], [1], [0, 0, 1, 1], [], []>} : vector<4x8xbf16>, vector<8x128xbf16>, vector<4x128xf32> -> vector<4x128xf32>
    %792 = arith.addf %782, %791 : vector<4x128xf32>
    %c121_i32_670 = arith.constant 121 : i32
    %793 = tpu.dynamic_rotate %736 by %c121_i32_670 dim 1 : vector<8x128xf32>, i32 -> vector<8x128xf32>
    %c6_671 = arith.constant 6 : index
    %c0_672 = arith.constant 0 : index
    %c0_673 = arith.constant 0 : index
    %794 = vector.load %arg1[%c6_671, %c0_672, %c0_673] : memref<9x1x128xf32, #tpu.memory_space<vmem>>, vector<1x1x128xf32>
    %795 = vector.shape_cast %794 : vector<1x1x128xf32> to vector<1x128xf32>
    %796 = vector.broadcast %795 : vector<1x128xf32> to vector<8x128xf32>
    %797 = arith.mulf %793, %796 : vector<8x128xf32>
    %c1_674 = arith.constant 1 : index
    %c6_675 = arith.constant 6 : index
    %c0_676 = arith.constant 0 : index
    %c0_677 = arith.constant 0 : index
    %798 = vector.load %arg11[%c1_674, %c6_675, %c0_676, %c0_677] : memref<2x9x4x8xbf16, #tpu.memory_space<vmem>>, vector<1x1x4x8xbf16>
    %799 = vector.shape_cast %798 : vector<1x1x4x8xbf16> to vector<4x8xbf16>
    %800 = arith.truncf %797 : vector<8x128xf32> to vector<8x128xbf16>
    %cst_678 = arith.constant dense<0.000000e+00> : vector<4x128xf32>
    %801 = tpu.matmul %799, %800, %cst_678 {dimension_numbers = #tpu.dot_dimension_numbers<[1], [0], [0], [1], [0, 0, 1, 1], [], []>} : vector<4x8xbf16>, vector<8x128xbf16>, vector<4x128xf32> -> vector<4x128xf32>
    %802 = arith.addf %792, %801 : vector<4x128xf32>
    %c120_i32_679 = arith.constant 120 : i32
    %803 = tpu.dynamic_rotate %736 by %c120_i32_679 dim 1 : vector<8x128xf32>, i32 -> vector<8x128xf32>
    %c7_680 = arith.constant 7 : index
    %c0_681 = arith.constant 0 : index
    %c0_682 = arith.constant 0 : index
    %804 = vector.load %arg1[%c7_680, %c0_681, %c0_682] : memref<9x1x128xf32, #tpu.memory_space<vmem>>, vector<1x1x128xf32>
    %805 = vector.shape_cast %804 : vector<1x1x128xf32> to vector<1x128xf32>
    %806 = vector.broadcast %805 : vector<1x128xf32> to vector<8x128xf32>
    %807 = arith.mulf %803, %806 : vector<8x128xf32>
    %c1_683 = arith.constant 1 : index
    %c7_684 = arith.constant 7 : index
    %c0_685 = arith.constant 0 : index
    %c0_686 = arith.constant 0 : index
    %808 = vector.load %arg11[%c1_683, %c7_684, %c0_685, %c0_686] : memref<2x9x4x8xbf16, #tpu.memory_space<vmem>>, vector<1x1x4x8xbf16>
    %809 = vector.shape_cast %808 : vector<1x1x4x8xbf16> to vector<4x8xbf16>
    %810 = arith.truncf %807 : vector<8x128xf32> to vector<8x128xbf16>
    %cst_687 = arith.constant dense<0.000000e+00> : vector<4x128xf32>
    %811 = tpu.matmul %809, %810, %cst_687 {dimension_numbers = #tpu.dot_dimension_numbers<[1], [0], [0], [1], [0, 0, 1, 1], [], []>} : vector<4x8xbf16>, vector<8x128xbf16>, vector<4x128xf32> -> vector<4x128xf32>
    %812 = arith.addf %802, %811 : vector<4x128xf32>
    %c119_i32_688 = arith.constant 119 : i32
    %813 = tpu.dynamic_rotate %736 by %c119_i32_688 dim 1 : vector<8x128xf32>, i32 -> vector<8x128xf32>
    %c8_689 = arith.constant 8 : index
    %c0_690 = arith.constant 0 : index
    %c0_691 = arith.constant 0 : index
    %814 = vector.load %arg1[%c8_689, %c0_690, %c0_691] : memref<9x1x128xf32, #tpu.memory_space<vmem>>, vector<1x1x128xf32>
    %815 = vector.shape_cast %814 : vector<1x1x128xf32> to vector<1x128xf32>
    %816 = vector.broadcast %815 : vector<1x128xf32> to vector<8x128xf32>
    %817 = arith.mulf %813, %816 : vector<8x128xf32>
    %c1_692 = arith.constant 1 : index
    %c8_693 = arith.constant 8 : index
    %c0_694 = arith.constant 0 : index
    %c0_695 = arith.constant 0 : index
    %818 = vector.load %arg11[%c1_692, %c8_693, %c0_694, %c0_695] : memref<2x9x4x8xbf16, #tpu.memory_space<vmem>>, vector<1x1x4x8xbf16>
    %819 = vector.shape_cast %818 : vector<1x1x4x8xbf16> to vector<4x8xbf16>
    %820 = arith.truncf %817 : vector<8x128xf32> to vector<8x128xbf16>
    %cst_696 = arith.constant dense<0.000000e+00> : vector<4x128xf32>
    %821 = tpu.matmul %819, %820, %cst_696 {dimension_numbers = #tpu.dot_dimension_numbers<[1], [0], [0], [1], [0, 0, 1, 1], [], []>} : vector<4x8xbf16>, vector<8x128xbf16>, vector<4x128xf32> -> vector<4x128xf32>
    %822 = arith.addf %812, %821 : vector<4x128xf32>
    %c1_697 = arith.constant 1 : index
    %c0_698 = arith.constant 0 : index
    %c0_699 = arith.constant 0 : index
    %823 = vector.load %arg12[%c1_697, %c0_698, %c0_699] : memref<2x4x1xf32, #tpu.memory_space<vmem>>, vector<1x4x1xf32>
    %824 = vector.shape_cast %823 : vector<1x4x1xf32> to vector<4x1xf32>
    %825 = vector.broadcast %824 : vector<4x1xf32> to vector<4x128xf32>
    %826 = arith.mulf %822, %825 : vector<4x128xf32>
    %c1_700 = arith.constant 1 : index
    %c0_701 = arith.constant 0 : index
    %c0_702 = arith.constant 0 : index
    %827 = vector.load %arg13[%c1_700, %c0_701, %c0_702] : memref<2x4x1xf32, #tpu.memory_space<vmem>>, vector<1x4x1xf32>
    %828 = vector.shape_cast %827 : vector<1x4x1xf32> to vector<4x1xf32>
    %829 = vector.broadcast %828 : vector<4x1xf32> to vector<4x128xf32>
    %830 = arith.addf %826, %829 : vector<4x128xf32>
    %cst_703 = arith.constant 0.000000e+00 : f32
    %831 = vector.broadcast %cst_703 : f32 to vector<4x128xf32>
    %832 = arith.maximumf %830, %831 : vector<4x128xf32>
    %c1_704 = arith.constant 1 : index
    %c0_705 = arith.constant 0 : index
    %c0_706 = arith.constant 0 : index
    %833 = vector.load %arg14[%c1_704, %c0_705, %c0_706] : memref<2x4x1xf32, #tpu.memory_space<vmem>>, vector<1x4x1xf32>
    %834 = vector.shape_cast %833 : vector<1x4x1xf32> to vector<4x1xf32>
    %835 = vector.broadcast %834 : vector<4x1xf32> to vector<4x128xf32>
    %836 = arith.mulf %832, %835 : vector<4x128xf32>
    %cst_707 = arith.constant dense<0.000000e+00> : vector<128xf32>
    %837 = vector.multi_reduction <add>, %836, %cst_707 [0] : vector<4x128xf32> to vector<128xf32>
    %838 = vector.shape_cast %837 : vector<128xf32> to vector<1x128xf32>
    %c1_708 = arith.constant 1 : index
    %c0_709 = arith.constant 0 : index
    %c0_710 = arith.constant 0 : index
    %839 = vector.load %arg15[%c1_708, %c0_709, %c0_710] : memref<2x1x1xf32, #tpu.memory_space<vmem>>, vector<1x1x1xf32>
    %840 = vector.shape_cast %839 : vector<1x1x1xf32> to vector<1x1xf32>
    %841 = vector.broadcast %840 : vector<1x1xf32> to vector<1x128xf32>
    %842 = arith.addf %838, %841 : vector<1x128xf32>
    %843 = vector.extract_strided_slice %842 {offsets = [0, 0], sizes = [1, 64], strides = [1, 1]} : vector<1x128xf32> to vector<1x64xf32>
    %844 = vector.extract_strided_slice %842 {offsets = [0, 64], sizes = [1, 64], strides = [1, 1]} : vector<1x128xf32> to vector<1x64xf32>
    %845 = tpu.concatenate %843, %844 in 0 : vector<1x64xf32>, vector<1x64xf32> -> vector<2x64xf32>
    %cst_711 = arith.constant dense<0xFF800000> : vector<2xf32>
    %846 = vector.multi_reduction <maximumf>, %845, %cst_711 [1] : vector<2x64xf32> to vector<2xf32>
    %847 = vector.shape_cast %846 : vector<2xf32> to vector<2x1xf32>
    %848 = vector.broadcast %847 : vector<2x1xf32> to vector<2x64xf32>
    %849 = arith.subf %845, %848 : vector<2x64xf32>
    %850 = math.exp %849 : vector<2x64xf32>
    %cst_712 = arith.constant dense<0.000000e+00> : vector<2xf32>
    %851 = vector.multi_reduction <add>, %850, %cst_712 [1] : vector<2x64xf32> to vector<2xf32>
    %852 = vector.shape_cast %851 : vector<2xf32> to vector<2x1xf32>
    %853 = vector.broadcast %852 : vector<2x1xf32> to vector<2x64xf32>
    %854 = arith.divf %850, %853 : vector<2x64xf32>
    %c1_713 = arith.constant 1 : index
    %c0_714 = arith.constant 0 : index
    %c0_715 = arith.constant 0 : index
    %855 = vector.load %arg16[%c1_713, %c0_714, %c0_715] : memref<2x2x64xf32, #tpu.memory_space<vmem>>, vector<1x2x64xf32>
    %856 = vector.shape_cast %855 : vector<1x2x64xf32> to vector<2x64xf32>
    %857 = arith.mulf %856, %854 : vector<2x64xf32>
    %cst_716 = arith.constant dense<0.000000e+00> : vector<2xf32>
    %858 = vector.multi_reduction <add>, %857, %cst_716 [1] : vector<2x64xf32> to vector<2xf32>
    %859 = vector.shape_cast %858 : vector<2xf32> to vector<2x1xf32>
    %c1_717 = arith.constant 1 : index
    %c0_718 = arith.constant 0 : index
    %c0_719 = arith.constant 0 : index
    %860 = vector.load %arg17[%c1_717, %c0_718, %c0_719] : memref<2x2x64xf32, #tpu.memory_space<vmem>>, vector<1x2x64xf32>
    %861 = vector.shape_cast %860 : vector<1x2x64xf32> to vector<2x64xf32>
    %862 = arith.mulf %861, %854 : vector<2x64xf32>
    %cst_720 = arith.constant dense<0.000000e+00> : vector<2xf32>
    %863 = vector.multi_reduction <add>, %862, %cst_720 [1] : vector<2x64xf32> to vector<2xf32>
    %864 = vector.shape_cast %863 : vector<2xf32> to vector<2x1xf32>
    %865 = tpu.concatenate %859, %864 in 1 : vector<2x1xf32>, vector<2x1xf32> -> vector<2x2xf32>
    %cst_721 = arith.constant 7.812500e-03 : f32
    %866 = vector.broadcast %cst_721 : f32 to vector<2x2xf32>
    %867 = arith.mulf %865, %866 : vector<2x2xf32>
    %c0_722 = arith.constant 0 : index
    %c0_723 = arith.constant 0 : index
    %868 = vector.load %arg18[%c0_722, %c0_723] : memref<64x8xf32, #tpu.memory_space<vmem>>, vector<64x8xf32>
    %cst_724 = arith.constant dense<0.000000e+00> : vector<2x8xf32>
    %869 = tpu.matmul %845, %868, %cst_724 {dimension_numbers = #tpu.dot_dimension_numbers<[1], [0], [0], [1], [0, 0, 1, 1], [], []>} : vector<2x64xf32>, vector<64x8xf32>, vector<2x8xf32> -> vector<2x8xf32>
    %c0_725 = arith.constant 0 : index
    %c0_726 = arith.constant 0 : index
    %870 = vector.load %arg19[%c0_725, %c0_726] : memref<1x8xf32, #tpu.memory_space<vmem>>, vector<1x8xf32>
    %871 = vector.broadcast %870 : vector<1x8xf32> to vector<2x8xf32>
    %872 = arith.addf %869, %871 : vector<2x8xf32>
    %cst_727 = arith.constant 0.000000e+00 : f32
    %873 = vector.broadcast %cst_727 : f32 to vector<2x8xf32>
    %874 = arith.maximumf %872, %873 : vector<2x8xf32>
    %c0_728 = arith.constant 0 : index
    %c0_729 = arith.constant 0 : index
    %875 = vector.load %arg20[%c0_728, %c0_729] : memref<8x8xf32, #tpu.memory_space<vmem>>, vector<8x8xf32>
    %cst_730 = arith.constant dense<0.000000e+00> : vector<2x8xf32>
    %876 = tpu.matmul %874, %875, %cst_730 {dimension_numbers = #tpu.dot_dimension_numbers<[1], [0], [0], [1], [0, 0, 1, 1], [], []>} : vector<2x8xf32>, vector<8x8xf32>, vector<2x8xf32> -> vector<2x8xf32>
    %c0_731 = arith.constant 0 : index
    %c0_732 = arith.constant 0 : index
    %877 = vector.load %arg21[%c0_731, %c0_732] : memref<1x8xf32, #tpu.memory_space<vmem>>, vector<1x8xf32>
    %878 = vector.broadcast %877 : vector<1x8xf32> to vector<2x8xf32>
    %879 = arith.addf %876, %878 : vector<2x8xf32>
    %cst_733 = arith.constant 0.000000e+00 : f32
    %880 = vector.broadcast %cst_733 : f32 to vector<2x8xf32>
    %881 = arith.maximumf %879, %880 : vector<2x8xf32>
    %c0_734 = arith.constant 0 : index
    %c0_735 = arith.constant 0 : index
    %882 = vector.load %arg22[%c0_734, %c0_735] : memref<8x1xf32, #tpu.memory_space<vmem>>, vector<8x1xf32>
    %cst_736 = arith.constant dense<0.000000e+00> : vector<2x1xf32>
    %883 = tpu.matmul %881, %882, %cst_736 {dimension_numbers = #tpu.dot_dimension_numbers<[1], [0], [0], [1], [0, 0, 1, 1], [], []>} : vector<2x8xf32>, vector<8x1xf32>, vector<2x1xf32> -> vector<2x1xf32>
    %c0_737 = arith.constant 0 : index
    %c0_738 = arith.constant 0 : index
    %884 = vector.load %arg23[%c0_737, %c0_738] : memref<1x1xf32, #tpu.memory_space<vmem>>, vector<1x1xf32>
    %885 = vector.broadcast %884 : vector<1x1xf32> to vector<2x1xf32>
    %886 = arith.addf %883, %885 : vector<2x1xf32>
    %cst_739 = arith.constant 0.000000e+00 : f32
    %887 = vector.broadcast %cst_739 : f32 to vector<2x125xf32>
    %888 = tpu.concatenate %867, %886, %887 in 1 : vector<2x2xf32>, vector<2x1xf32>, vector<2x125xf32> -> vector<2x128xf32>
    %c1_740 = arith.constant 1 : index
    %c0_741 = arith.constant 0 : index
    %c0_742 = arith.constant 0 : index
    %889 = vector.load %arg24[%c1_740, %c0_741, %c0_742] : memref<2x2x128xf32, #tpu.memory_space<vmem>>, vector<1x2x128xf32>
    %890 = vector.shape_cast %889 : vector<1x2x128xf32> to vector<2x128xf32>
    %891 = vector.shape_cast %888 : vector<2x128xf32> to vector<1x2x128xf32>
    tpu.vector_store %arg24[%c1_740, %c0_741, %c0_742], %891 {strides = array<i32>} : memref<2x2x128xf32, #tpu.memory_space<vmem>>, vector<1x2x128xf32>,
    return
  }
}

</mosaic_0001>

<llo_original>
// kernel: tile.9
$region0: #{tile.9}
  #allocation0 [shape = 's32[1]{0}', space=sflag, size = 0x4, scoped, tag = 'scoped memory for tile.9']
  %s0 = inlined_call_operand.vmem [shape: f32[8], index: 0, kind: input, shape index: {}]
  %s1 = inlined_call_operand.vmem [shape: f32[8,8], index: 1, kind: output, shape index: {}]
  // Predicated region
  $region2: #{tile.9} parent=0 // pred_check
    _
  $region3: #{tile.9} parent=0 // pred_check_branch
    %3 = sbr.rel (0) target = $region5
  $region4: #{tile.9} parent=0 // pred_region
    _
  $region5: #{tile.9} parent=0 // pred_fallthru
    _
  %v4 = vld [vmem:[%s0] ss:$0 sm:$0xff]
  %5 = vst [vmem:[%s1] sm:$0xff] %v4

// kernel: corner_exit_predictor_forward.1
$region0: #{corner_exit_predictor_forward.1}
  #allocation0 [shape = 'u32[]', space=smem, size = 0x4, offset = 0x4, fixed_abs, tag = 'smem constant byte address 0x4 - core index']
  #allocation1 [shape = 'u32[144,128]{1,0:T(1,128)}', space=vmem, size = 0x12000, scoped, tag = 'internal scratch']
  #allocation2 [shape = 'f32[1,1]{1,0:T(1,128)S(1)}', space=vmem, size = 0x200, scoped, tag = 'scoped memory for corner_exit_predictor_forward.1']
  %s0 = inlined_call_operand.vmem [shape: f32[2,8,64], index: 0, kind: input, shape index: {}]
  %s1 = inlined_call_operand.vmem [shape: f32[9,1,128], index: 1, kind: input, shape index: {}]
  %s2 = inlined_call_operand.vmem [shape: bf16[2,9,32,8], index: 2, kind: input, shape index: {}]
  %s3 = inlined_call_operand.vmem [shape: f32[2,32,1], index: 3, kind: input, shape index: {}]
  %s4 = inlined_call_operand.vmem [shape: f32[2,32,1], index: 4, kind: input, shape index: {}]
  %s5 = inlined_call_operand.vmem [shape: bf16[2,9,16,32], index: 5, kind: input, shape index: {}]
  %s6 = inlined_call_operand.vmem [shape: f32[2,16,1], index: 6, kind: input, shape index: {}]
  %s7 = inlined_call_operand.vmem [shape: f32[2,16,1], index: 7, kind: input, shape index: {}]
  %s8 = inlined_call_operand.vmem [shape: bf16[2,9,8,16], index: 8, kind: input, shape index: {}]
  %s9 = inlined_call_operand.vmem [shape: f32[2,8,1], index: 9, kind: input, shape index: {}]
  %s10 = inlined_call_operand.vmem [shape: f32[2,8,1], index: 10, kind: input, shape index: {}]
  %s11 = inlined_call_operand.vmem [shape: bf16[2,9,4,8], index: 11, kind: input, shape index: {}]
  %s12 = inlined_call_operand.vmem [shape: f32[2,4,1], index: 12, kind: input, shape index: {}]
  %s13 = inlined_call_operand.vmem [shape: f32[2,4,1], index: 13, kind: input, shape index: {}]
  %s14 = inlined_call_operand.vmem [shape: f32[2,4,1], index: 14, kind: input, shape index: {}]
  %s15 = inlined_call_operand.vmem [shape: f32[2,1,1], index: 15, kind: input, shape index: {}]
  %s16 = inlined_call_operand.vmem [shape: f32[2,2,64], index: 16, kind: input, shape index: {}]
  %s17 = inlined_call_operand.vmem [shape: f32[2,2,64], index: 17, kind: input, shape index: {}]
  %s18 = inlined_call_operand.vmem [shape: f32[64,8], index: 18, kind: input, shape index: {}]
  %s19 = inlined_call_operand.vmem [shape: f32[1,8], index: 19, kind: input, shape index: {}]
  %s20 = inlined_call_operand.vmem [shape: f32[8,8], index: 20, kind: input, shape index: {}]
  %s21 = inlined_call_operand.vmem [shape: f32[1,8], index: 21, kind: input, shape index: {}]
  %s22 = inlined_call_operand.vmem [shape: f32[8,1], index: 22, kind: input, shape index: {}]
  %s23 = inlined_call_operand.<no memory space> [shape: f32[1,1], index: 23, kind: input, shape index: {}]
  %s24 = inlined_call_operand.vmem [shape: f32[2,2,128], index: 24, kind: output, shape index: {}]
  %s25 = sld [smem:[#allocation0]]
  $region106: #{corner_exit_predictor_forward.1} parent=0
    _
  %s27 = ssub.s32 1, %s25
  %s28 = scalar_select 0, %s27, %s25
  %v29 = vstv %s23
  %30 = vst [vmem:[#allocation2] sm:$0x1] %v29
  // Predicated region
  $region2: #{corner_exit_predictor_forward.1} parent=0 // pred_check
    _
  $region3: #{corner_exit_predictor_forward.1} parent=0 // pred_check_branch
    %32 = sbr.rel (0) target = $region5
  $region4: #{corner_exit_predictor_forward.1} parent=0 // pred_region
    _
  $region5: #{corner_exit_predictor_forward.1} parent=0 // pred_fallthru
    _
  // Predicated region
  $region6: #{corner_exit_predictor_forward.1} parent=0 // pred_check
    _
  $region7: #{corner_exit_predictor_forward.1} parent=0 // pred_check_branch
    %34 = sbr.rel (0) target = $region9
  $region8: #{corner_exit_predictor_forward.1} parent=0 // pred_region
    _
  $region9: #{corner_exit_predictor_forward.1} parent=0 // pred_fallthru
    _
  // Predicated region
  $region10: #{corner_exit_predictor_forward.1} parent=0 // pred_check
    _
  $region11: #{corner_exit_predictor_forward.1} parent=0 // pred_check_branch
    %36 = sbr.rel (0) target = $region13
  $region12: #{corner_exit_predictor_forward.1} parent=0 // pred_region
    _
  $region13: #{corner_exit_predictor_forward.1} parent=0 // pred_fallthru
    _
  // Predicated region
  $region14: #{corner_exit_predictor_forward.1} parent=0 // pred_check
    _
  $region15: #{corner_exit_predictor_forward.1} parent=0 // pred_check_branch
    %38 = sbr.rel (0) target = $region17
  $region16: #{corner_exit_predictor_forward.1} parent=0 // pred_region
    _
  $region17: #{corner_exit_predictor_forward.1} parent=0 // pred_fallthru
    _
  // Predicated region
  $region18: #{corner_exit_predictor_forward.1} parent=0 // pred_check
    _
  $region19: #{corner_exit_predictor_forward.1} parent=0 // pred_check_branch
    %40 = sbr.rel (0) target = $region21
  $region20: #{corner_exit_predictor_forward.1} parent=0 // pred_region
    _
  $region21: #{corner_exit_predictor_forward.1} parent=0 // pred_fallthru
    _
  // Predicated region
  $region22: #{corner_exit_predictor_forward.1} parent=0 // pred_check
    _
  $region23: #{corner_exit_predictor_forward.1} parent=0 // pred_check_branch
    %42 = sbr.rel (0) target = $region25
  $region24: #{corner_exit_predictor_forward.1} parent=0 // pred_region
    _
  $region25: #{corner_exit_predictor_forward.1} parent=0 // pred_fallthru
    _
  // Predicated region
  $region26: #{corner_exit_predictor_forward.1} parent=0 // pred_check
    _
  $region27: #{corner_exit_predictor_forward.1} parent=0 // pred_check_branch
    %44 = sbr.rel (0) target = $region29
  $region28: #{corner_exit_predictor_forward.1} parent=0 // pred_region
    _
  $region29: #{corner_exit_predictor_forward.1} parent=0 // pred_fallthru
    _
  // Predicated region
  $region30: #{corner_exit_predictor_forward.1} parent=0 // pred_check
    _
  $region31: #{corner_exit_predictor_forward.1} parent=0 // pred_check_branch
    %46 = sbr.rel (0) target = $region33
  $region32: #{corner_exit_predictor_forward.1} parent=0 // pred_region
    _
  $region33: #{corner_exit_predictor_forward.1} parent=0 // pred_fallthru
    _
  // Predicated region
  $region34: #{corner_exit_predictor_forward.1} parent=0 // pred_check
    _
  $region35: #{corner_exit_predictor_forward.1} parent=0 // pred_check_branch
    %48 = sbr.rel (0) target = $region37
  $region36: #{corner_exit_predictor_forward.1} parent=0 // pred_region
    _
  $region37: #{corner_exit_predictor_forward.1} parent=0 // pred_fallthru
    _
  // Predicated region
  $region38: #{corner_exit_predictor_forward.1} parent=0 // pred_check
    _
  $region39: #{corner_exit_predictor_forward.1} parent=0 // pred_check_branch
    %50 = sbr.rel (0) target = $region41
  $region40: #{corner_exit_predictor_forward.1} parent=0 // pred_region
    _
  $region41: #{corner_exit_predictor_forward.1} parent=0 // pred_fallthru
    _
  // Predicated region
  $region42: #{corner_exit_predictor_forward.1} parent=0 // pred_check
    _
  $region43: #{corner_exit_predictor_forward.1} parent=0 // pred_check_branch
    %52 = sbr.rel (0) target = $region45
  $region44: #{corner_exit_predictor_forward.1} parent=0 // pred_region
    _
  $region45: #{corner_exit_predictor_forward.1} parent=0 // pred_fallthru
    _
  // Predicated region
  $region46: #{corner_exit_predictor_forward.1} parent=0 // pred_check
    _
  $region47: #{corner_exit_predictor_forward.1} parent=0 // pred_check_branch
    %54 = sbr.rel (0) target = $region49
  $region48: #{corner_exit_predictor_forward.1} parent=0 // pred_region
    _
  $region49: #{corner_exit_predictor_forward.1} parent=0 // pred_fallthru
    _
  // Predicated region
  $region50: #{corner_exit_predictor_forward.1} parent=0 // pred_check
    _
  $region51: #{corner_exit_predictor_forward.1} parent=0 // pred_check_branch
    %56 = sbr.rel (0) target = $region53
  $region52: #{corner_exit_predictor_forward.1} parent=0 // pred_region
    _
  $region53: #{corner_exit_predictor_forward.1} parent=0 // pred_fallthru
    _
  // Predicated region
  $region54: #{corner_exit_predictor_forward.1} parent=0 // pred_check
    _
  $region55: #{corner_exit_predictor_forward.1} parent=0 // pred_check_branch
    %58 = sbr.rel (0) target = $region57
  $region56: #{corner_exit_predictor_forward.1} parent=0 // pred_region
    _
  $region57: #{corner_exit_predictor_forward.1} parent=0 // pred_fallthru
    _
  // Predicated region
  $region58: #{corner_exit_predictor_forward.1} parent=0 // pred_check
    _
  $region59: #{corner_exit_predictor_forward.1} parent=0 // pred_check_branch
    %60 = sbr.rel (0) target = $region61
  $region60: #{corner_exit_predictor_forward.1} parent=0 // pred_region
    _
  $region61: #{corner_exit_predictor_forward.1} parent=0 // pred_fallthru
    _
  // Predicated region
  $region62: #{corner_exit_predictor_forward.1} parent=0 // pred_check
    _
  $region63: #{corner_exit_predictor_forward.1} parent=0 // pred_check_branch
    %62 = sbr.rel (0) target = $region65
  $region64: #{corner_exit_predictor_forward.1} parent=0 // pred_region
    _
  $region65: #{corner_exit_predictor_forward.1} parent=0 // pred_fallthru
    _
  // Predicated region
  $region66: #{corner_exit_predictor_forward.1} parent=0 // pred_check
    _
  $region67: #{corner_exit_predictor_forward.1} parent=0 // pred_check_branch
    %64 = sbr.rel (0) target = $region69
  $region68: #{corner_exit_predictor_forward.1} parent=0 // pred_region
    _
  $region69: #{corner_exit_predictor_forward.1} parent=0 // pred_fallthru
    _
  // Predicated region
  $region70: #{corner_exit_predictor_forward.1} parent=0 // pred_check
    _
  $region71: #{corner_exit_predictor_forward.1} parent=0 // pred_check_branch
    %66 = sbr.rel (0) target = $region73
  $region72: #{corner_exit_predictor_forward.1} parent=0 // pred_region
    _
  $region73: #{corner_exit_predictor_forward.1} parent=0 // pred_fallthru
    _
  // Predicated region
  $region74: #{corner_exit_predictor_forward.1} parent=0 // pred_check
    _
  $region75: #{corner_exit_predictor_forward.1} parent=0 // pred_check_branch
    %68 = sbr.rel (0) target = $region77
  $region76: #{corner_exit_predictor_forward.1} parent=0 // pred_region
    _
  $region77: #{corner_exit_predictor_forward.1} parent=0 // pred_fallthru
    _
  // Predicated region
  $region78: #{corner_exit_predictor_forward.1} parent=0 // pred_check
    _
  $region79: #{corner_exit_predictor_forward.1} parent=0 // pred_check_branch
    %70 = sbr.rel (0) target = $region81
  $region80: #{corner_exit_predictor_forward.1} parent=0 // pred_region
    _
  $region81: #{corner_exit_predictor_forward.1} parent=0 // pred_fallthru
    _
  // Predicated region
  $region82: #{corner_exit_predictor_forward.1} parent=0 // pred_check
    _
  $region83: #{corner_exit_predictor_forward.1} parent=0 // pred_check_branch
    %72 = sbr.rel (0) target = $region85
  $region84: #{corner_exit_predictor_forward.1} parent=0 // pred_region
    _
  $region85: #{corner_exit_predictor_forward.1} parent=0 // pred_fallthru
    _
  // Predicated region
  $region86: #{corner_exit_predictor_forward.1} parent=0 // pred_check
    _
  $region87: #{corner_exit_predictor_forward.1} parent=0 // pred_check_branch
    %74 = sbr.rel (0) target = $region89
  $region88: #{corner_exit_predictor_forward.1} parent=0 // pred_region
    _
  $region89: #{corner_exit_predictor_forward.1} parent=0 // pred_fallthru
    _
  // Predicated region
  $region90: #{corner_exit_predictor_forward.1} parent=0 // pred_check
    _
  $region91: #{corner_exit_predictor_forward.1} parent=0 // pred_check_branch
    %76 = sbr.rel (0) target = $region93
  $region92: #{corner_exit_predictor_forward.1} parent=0 // pred_region
    _
  $region93: #{corner_exit_predictor_forward.1} parent=0 // pred_fallthru
    _
  // Predicated region
  $region94: #{corner_exit_predictor_forward.1} parent=0 // pred_check
    _
  $region95: #{corner_exit_predictor_forward.1} parent=0 // pred_check_branch
    %78 = sbr.rel (0) target = $region97
  $region96: #{corner_exit_predictor_forward.1} parent=0 // pred_region
    _
  $region97: #{corner_exit_predictor_forward.1} parent=0 // pred_fallthru
    _
  %v80 = vld [vmem:[%s0] sm:$0xff]
  %v81 = vld [vmem:[%s0 + $0x8] sm:$0xff]
  %83 = vrot.lane.b32.xlu0 %v81, 64
  %v84 = vpop.permute.xlu0 %83
  %vm86 = vcmask 523264
  %v87 = vsel %vm86, %v80, %v84
  %88 = vrot.lane.b32.xlu0 %v87, 9
  %v89 = vpop.permute.xlu0 %88
  %v90 = vld [vmem:[%s1] sm:$0x1]
  %v92 = vlaneseq
  %v93 = vshrl.u32 %v92, 7
  %v94 = vsub.s32 0, %v93
  %v95 = vrot.slane %v90, %v94
  %v97 = vmul.f32 %v89, %v95
  %v98 = vld [vmem:[%s2] sm:$0xf]
  %v99 = vld [vmem:[%s2 + $0x4] sm:$0xf]
  %v100 = vld [vmem:[%s2 + $0x8] sm:$0xf]
  %v101 = vld [vmem:[%s2 + $0xc] sm:$0xf]
  %v102 = vpack.c.bf16 %v97, %v97
  %103 = vrot.lane.b32.xlu0 %v87, 8
  %v104 = vpop.permute.xlu0 %103
  %s105 = scalar_lea.vmem %s1, 1
  %v106 = vld [vmem:[%s105] sm:$0x1]
  %v108 = vlaneseq
  %v109 = vshrl.u32 %v108, 7
  %v110 = vsub.s32 0, %v109
  %v111 = vrot.slane %v106, %v110
  %v113 = vmul.f32 %v104, %v111
  %s114 = scalar_lea.vmem %s2, 16
  %v115 = vld [vmem:[%s114] sm:$0xf]
  %v116 = vld [vmem:[%s114 + $0x4] sm:$0xf]
  %v117 = vld [vmem:[%s114 + $0x8] sm:$0xf]
  %v118 = vld [vmem:[%s114 + $0xc] sm:$0xf]
  %v119 = vpack.c.bf16 %v113, %v113
  %v124 = vunpack.c.l.b16 %v115
  %v125 = vunpack.c.l.b16 %v116
  %v126 = vunpack.c.l.b16 %v117
  %v127 = vunpack.c.l.b16 %v118
  %v128 = vpack.c.b16 %v125, %v124
  %v129 = vpack.c.b16 %v127, %v126
  %vm130 = vcmask 64512
  %v132 = vsel %vm130, %v128, 0
  %v135 = vsel %vm130, %v129, 0
  %vm137 = vcmask 1043456
  %v139 = vsel %vm137, %v119, 0
  %141 = vmatprep.subr.bf16.mxu0 0
  %142 = vmatpush1.bf16.msra.mxu0 0
  %143 = vmatprep.subr.bf16.mxu0 0
  %144 = vmatpush1.bf16.msra.mxu0 0
  %145 = vmatprep.subr.bf16.mxu0 0
  %146 = vmatpush1.bf16.msra.mxu0 0
  %147 = vmatprep.subr.bf16.mxu0 0
  %148 = vmatpush1.bf16.msra.mxu0 0
  %149 = vmatprep.subr.bf16.mxu0 0
  %150 = vmatpush1.bf16.msra.mxu0 0
  %151 = vmatprep.subr.bf16.mxu0 0
  %152 = vmatpush1.bf16.msra.mxu0 0
  %153 = vmatprep.subr.bf16.mxu0 0
  %154 = vmatpush1.bf16.msra.mxu0 0
  %155 = vmatprep.subr.bf16.mxu0 0
  %156 = vmatpush1.bf16.msra.mxu0 %v139
  %157 = vmatprep.subr.bf16.mxu0 0
  %158 = vmatpush2.bf16.msra.mxu0 0
  %159 = vmatprep.subr.bf16.mxu0 0
  %160 = vmatpush2.bf16.msra.mxu0 0
  %161 = vmatprep.subr.bf16.mxu0 0
  %162 = vmatpush2.bf16.msra.mxu0 0
  %163 = vmatprep.subr.bf16.mxu0 0
  %164 = vmatpush2.bf16.msra.mxu0 0
  %165 = vmatprep.subr.bf16.mxu0 0
  %166 = vmatpush2.bf16.msra.mxu0 0
  %167 = vmatprep.subr.bf16.mxu0 0
  %168 = vmatpush2.bf16.msra.mxu0 0
  %169 = vmatprep.subr.bf16.mxu0 0
  %170 = vmatpush2.bf16.msra.mxu0 0
  %171 = vmatprep.subr.bf16.mxu0 0
  %172 = vmatpush2.bf16.msra.mxu0 0
  %173 = vmatprep.mubr.bf16.mxu0 0
  %174 = vmatmul.mubr.bf16.gmra.mxu0 %v132
  %v175 = vpop.f32.mrf.mxu0
  %v176 = vadd.f32 0.0, %v175
  %v177 = vpop.f32.mrf.mxu0
  %v178 = vpop.f32.mrf.mxu0
  %v179 = vadd.f32 0.0, %v178
  %v180 = vpop.f32.mrf.mxu0
  %181 = vmatprep.mubr.bf16.mxu0 0
  %182 = vmatmul.mubr.bf16.gmra.mxu0 %v135
  %v183 = vpop.f32.mrf.mxu0
  %v184 = vadd.f32 0.0, %v183
  %v185 = vpop.f32.mrf.mxu0
  %v186 = vpop.f32.mrf.mxu0
  %v187 = vadd.f32 0.0, %v186
  %v188 = vpop.f32.mrf.mxu0
  %189 = vdwg.mxu0
  %v194 = vunpack.c.l.b16 %v98
  %v195 = vunpack.c.l.b16 %v99
  %v196 = vunpack.c.l.b16 %v100
  %v197 = vunpack.c.l.b16 %v101
  %v198 = vpack.c.b16 %v195, %v194
  %v199 = vpack.c.b16 %v197, %v196
  %v201 = vsel %vm130, %v198, 0
  %v204 = vsel %vm130, %v199, 0
  %v207 = vsel %vm137, %v102, 0
  %209 = vmatprep.subr.bf16.mxu0 0
  %210 = vmatpush1.bf16.msra.mxu0 0
  %211 = vmatprep.subr.bf16.mxu0 0
  %212 = vmatpush1.bf16.msra.mxu0 0
  %213 = vmatprep.subr.bf16.mxu0 0
  %214 = vmatpush1.bf16.msra.mxu0 0
  %215 = vmatprep.subr.bf16.mxu0 0
  %216 = vmatpush1.bf16.msra.mxu0 0
  %217 = vmatprep.subr.bf16.mxu0 0
  %218 = vmatpush1.bf16.msra.mxu0 0
  %219 = vmatprep.subr.bf16.mxu0 0
  %220 = vmatpush1.bf16.msra.mxu0 0
  %221 = vmatprep.subr.bf16.mxu0 0
  %222 = vmatpush1.bf16.msra.mxu0 0
  %223 = vmatprep.subr.bf16.mxu0 0
  %224 = vmatpush1.bf16.msra.mxu0 %v207
  %225 = vmatprep.subr.bf16.mxu0 0
  %226 = vmatpush2.bf16.msra.mxu0 0
  %227 = vmatprep.subr.bf16.mxu0 0
  %228 = vmatpush2.bf16.msra.mxu0 0
  %229 = vmatprep.subr.bf16.mxu0 0
  %230 = vmatpush2.bf16.msra.mxu0 0
  %231 = vmatprep.subr.bf16.mxu0 0
  %232 = vmatpush2.bf16.msra.mxu0 0
  %233 = vmatprep.subr.bf16.mxu0 0
  %234 = vmatpush2.bf16.msra.mxu0 0
  %235 = vmatprep.subr.bf16.mxu0 0
  %236 = vmatpush2.bf16.msra.mxu0 0
  %237 = vmatprep.subr.bf16.mxu0 0
  %238 = vmatpush2.bf16.msra.mxu0 0
  %239 = vmatprep.subr.bf16.mxu0 0
  %240 = vmatpush2.bf16.msra.mxu0 0
  %241 = vmatprep.mubr.bf16.mxu0 0
  %242 = vmatmul.mubr.bf16.gmra.mxu0 %v201
  %v243 = vpop.f32.mrf.mxu0
  %v244 = vadd.f32 %v176, %v243
  %v245 = vpop.f32.mrf.mxu0
  %v246 = vpop.f32.mrf.mxu0
  %v247 = vadd.f32 %v179, %v246
  %v248 = vpop.f32.mrf.mxu0
  %249 = vmatprep.mubr.bf16.mxu0 0
  %250 = vmatmul.mubr.bf16.gmra.mxu0 %v204
  %v251 = vpop.f32.mrf.mxu0
  %v252 = vadd.f32 %v184, %v251
  %v253 = vpop.f32.mrf.mxu0
  %v254 = vpop.f32.mrf.mxu0
  %v255 = vadd.f32 %v187, %v254
  %v256 = vpop.f32.mrf.mxu0
  %257 = vdwg.mxu0
  %258 = vrot.lane.b32.xlu0 %v87, 7
  %v259 = vpop.permute.xlu0 %258
  %s260 = scalar_lea.vmem %s1, 2
  %v261 = vld [vmem:[%s260] sm:$0x1]
  %v263 = vlaneseq
  %v264 = vshrl.u32 %v263, 7
  %v265 = vsub.s32 0, %v264
  %v266 = vrot.slane %v261, %v265
  %v268 = vmul.f32 %v259, %v266
  %s269 = scalar_lea.vmem %s2, 32
  %v270 = vld [vmem:[%s269] sm:$0xf]
  %v271 = vld [vmem:[%s269 + $0x4] sm:$0xf]
  %v272 = vld [vmem:[%s269 + $0x8] sm:$0xf]
  %v273 = vld [vmem:[%s269 + $0xc] sm:$0xf]
  %v274 = vpack.c.bf16 %v268, %v268
  %v279 = vunpack.c.l.b16 %v270
  %v280 = vunpack.c.l.b16 %v271
  %v281 = vunpack.c.l.b16 %v272
  %v282 = vunpack.c.l.b16 %v273
  %v283 = vpack.c.b16 %v280, %v279
  %v284 = vpack.c.b16 %v282, %v281
  %v286 = vsel %vm130, %v283, 0
  %v289 = vsel %vm130, %v284, 0
  %v292 = vsel %vm137, %v274, 0
  %294 = vmatprep.subr.bf16.mxu0 0
  %295 = vmatpush1.bf16.msra.mxu0 0
  %296 = vmatprep.subr.bf16.mxu0 0
  %297 = vmatpush1.bf16.msra.mxu0 0
  %298 = vmatprep.subr.bf16.mxu0 0
  %299 = vmatpush1.bf16.msra.mxu0 0
  %300 = vmatprep.subr.bf16.mxu0 0
  %301 = vmatpush1.bf16.msra.mxu0 0
  %302 = vmatprep.subr.bf16.mxu0 0
  %303 = vmatpush1.bf16.msra.mxu0 0
  %304 = vmatprep.subr.bf16.mxu0 0
  %305 = vmatpush1.bf16.msra.mxu0 0
  %306 = vmatprep.subr.bf16.mxu0 0
  %307 = vmatpush1.bf16.msra.mxu0 0
  %308 = vmatprep.subr.bf16.mxu0 0
  %309 = vmatpush1.bf16.msra.mxu0 %v292
  %310 = vmatprep.subr.bf16.mxu0 0
  %311 = vmatpush2.bf16.msra.mxu0 0
  %312 = vmatprep.subr.bf16.mxu0 0
  %313 = vmatpush2.bf16.msra.mxu0 0
  %314 = vmatprep.subr.bf16.mxu0 0
  %315 = vmatpush2.bf16.msra.mxu0 0
  %316 = vmatprep.subr.bf16.mxu0 0
  %317 = vmatpush2.bf16.msra.mxu0 0
  %318 = vmatprep.subr.bf16.mxu0 0
  %319 = vmatpush2.bf16.msra.mxu0 0
  %320 = vmatprep.subr.bf16.mxu0 0
  %321 = vmatpush2.bf16.msra.mxu0 0
  %322 = vmatprep.subr.bf16.mxu0 0
  %323 = vmatpush2.bf16.msra.mxu0 0
  %324 = vmatprep.subr.bf16.mxu0 0
  %325 = vmatpush2.bf16.msra.mxu0 0
  %326 = vmatprep.mubr.bf16.mxu0 0
  %327 = vmatmul.mubr.bf16.gmra.mxu0 %v286
  %v328 = vpop.f32.mrf.mxu0
  %v329 = vadd.f32 0.0, %v328
  %v330 = vpop.f32.mrf.mxu0
  %v331 = vpop.f32.mrf.mxu0
  %v332 = vadd.f32 0.0, %v331
  %v333 = vpop.f32.mrf.mxu0
  %334 = vmatprep.mubr.bf16.mxu0 0
  %335 = vmatmul.mubr.bf16.gmra.mxu0 %v289
  %v336 = vpop.f32.mrf.mxu0
  %v337 = vadd.f32 0.0, %v336
  %v338 = vpop.f32.mrf.mxu0
  %v339 = vpop.f32.mrf.mxu0
  %v340 = vadd.f32 0.0, %v339
  %v341 = vpop.f32.mrf.mxu0
  %342 = vdwg.mxu0
  %v343 = vadd.f32 %v244, %v329
  %v344 = vadd.f32 %v247, %v332
  %v345 = vadd.f32 %v252, %v337
  %v346 = vadd.f32 %v255, %v340
  %347 = vrot.lane.b32.xlu0 %v87, 1
  %v348 = vpop.permute.xlu0 %347
  %s349 = scalar_lea.vmem %s1, 3
  %v350 = vld [vmem:[%s349] sm:$0x1]
  %v352 = vlaneseq
  %v353 = vshrl.u32 %v352, 7
  %v354 = vsub.s32 0, %v353
  %v355 = vrot.slane %v350, %v354
  %v357 = vmul.f32 %v348, %v355
  %s358 = scalar_lea.vmem %s2, 48
  %v359 = vld [vmem:[%s358] sm:$0xf]
  %v360 = vld [vmem:[%s358 + $0x4] sm:$0xf]
  %v361 = vld [vmem:[%s358 + $0x8] sm:$0xf]
  %v362 = vld [vmem:[%s358 + $0xc] sm:$0xf]
  %v363 = vpack.c.bf16 %v357, %v357
  %v368 = vunpack.c.l.b16 %v359
  %v369 = vunpack.c.l.b16 %v360
  %v370 = vunpack.c.l.b16 %v361
  %v371 = vunpack.c.l.b16 %v362
  %v372 = vpack.c.b16 %v369, %v368
  %v373 = vpack.c.b16 %v371, %v370
  %v375 = vsel %vm130, %v372, 0
  %v378 = vsel %vm130, %v373, 0
  %v381 = vsel %vm137, %v363, 0
  %383 = vmatprep.subr.bf16.mxu0 0
  %384 = vmatpush1.bf16.msra.mxu0 0
  %385 = vmatprep.subr.bf16.mxu0 0
  %386 = vmatpush1.bf16.msra.mxu0 0
  %387 = vmatprep.subr.bf16.mxu0 0
  %388 = vmatpush1.bf16.msra.mxu0 0
  %389 = vmatprep.subr.bf16.mxu0 0
  %390 = vmatpush1.bf16.msra.mxu0 0
  %391 = vmatprep.subr.bf16.mxu0 0
  %392 = vmatpush1.bf16.msra.mxu0 0
  %393 = vmatprep.subr.bf16.mxu0 0
  %394 = vmatpush1.bf16.msra.mxu0 0
  %395 = vmatprep.subr.bf16.mxu0 0
  %396 = vmatpush1.bf16.msra.mxu0 0
  %397 = vmatprep.subr.bf16.mxu0 0
  %398 = vmatpush1.bf16.msra.mxu0 %v381
  %399 = vmatprep.subr.bf16.mxu0 0
  %400 = vmatpush2.bf16.msra.mxu0 0
  %401 = vmatprep.subr.bf16.mxu0 0
  %402 = vmatpush2.bf16.msra.mxu0 0
  %403 = vmatprep.subr.bf16.mxu0 0
  %404 = vmatpush2.bf16.msra.mxu0 0
  %405 = vmatprep.subr.bf16.mxu0 0
  %406 = vmatpush2.bf16.msra.mxu0 0
  %407 = vmatprep.subr.bf16.mxu0 0
  %408 = vmatpush2.bf16.msra.mxu0 0
  %409 = vmatprep.subr.bf16.mxu0 0
  %410 = vmatpush2.bf16.msra.mxu0 0
  %411 = vmatprep.subr.bf16.mxu0 0
  %412 = vmatpush2.bf16.msra.mxu0 0
  %413 = vmatprep.subr.bf16.mxu0 0
  %414 = vmatpush2.bf16.msra.mxu0 0
  %415 = vmatprep.mubr.bf16.mxu0 0
  %416 = vmatmul.mubr.bf16.gmra.mxu0 %v375
  %v417 = vpop.f32.mrf.mxu0
  %v418 = vadd.f32 0.0, %v417
  %v419 = vpop.f32.mrf.mxu0
  %v420 = vpop.f32.mrf.mxu0
  %v421 = vadd.f32 0.0, %v420
  %v422 = vpop.f32.mrf.mxu0
  %423 = vmatprep.mubr.bf16.mxu0 0
  %424 = vmatmul.mubr.bf16.gmra.mxu0 %v378
  %v425 = vpop.f32.mrf.mxu0
  %v426 = vadd.f32 0.0, %v425
  %v427 = vpop.f32.mrf.mxu0
  %v428 = vpop.f32.mrf.mxu0
  %v429 = vadd.f32 0.0, %v428
  %v430 = vpop.f32.mrf.mxu0
  %431 = vdwg.mxu0
  %v432 = vadd.f32 %v343, %v418
  %v433 = vadd.f32 %v344, %v421
  %v434 = vadd.f32 %v345, %v426
  %v435 = vadd.f32 %v346, %v429
  %s436 = scalar_lea.vmem %s2, 64
  %v437 = vld [vmem:[%s436] sm:$0xf]
  %v438 = vld [vmem:[%s436 + $0x4] sm:$0xf]
  %v439 = vld [vmem:[%s436 + $0x8] sm:$0xf]
  %v440 = vld [vmem:[%s436 + $0xc] sm:$0xf]
  %v441 = vpack.c.bf16 %v87, %v87
  %v446 = vunpack.c.l.b16 %v437
  %v447 = vunpack.c.l.b16 %v438
  %v448 = vunpack.c.l.b16 %v439
  %v449 = vunpack.c.l.b16 %v440
  %v450 = vpack.c.b16 %v447, %v446
  %v451 = vpack.c.b16 %v449, %v448
  %v453 = vsel %vm130, %v450, 0
  %v456 = vsel %vm130, %v451, 0
  %v459 = vsel %vm137, %v441, 0
  %461 = vmatprep.subr.bf16.mxu0 0
  %462 = vmatpush1.bf16.msra.mxu0 0
  %463 = vmatprep.subr.bf16.mxu0 0
  %464 = vmatpush1.bf16.msra.mxu0 0
  %465 = vmatprep.subr.bf16.mxu0 0
  %466 = vmatpush1.bf16.msra.mxu0 0
  %467 = vmatprep.subr.bf16.mxu0 0
  %468 = vmatpush1.bf16.msra.mxu0 0
  %469 = vmatprep.subr.bf16.mxu0 0
  %470 = vmatpush1.bf16.msra.mxu0 0
  %471 = vmatprep.subr.bf16.mxu0 0
  %472 = vmatpush1.bf16.msra.mxu0 0
  %473 = vmatprep.subr.bf16.mxu0 0
  %474 = vmatpush1.bf16.msra.mxu0 0
  %475 = vmatprep.subr.bf16.mxu0 0
  %476 = vmatpush1.bf16.msra.mxu0 %v459
  %477 = vmatprep.subr.bf16.mxu0 0
  %478 = vmatpush2.bf16.msra.mxu0 0
  %479 = vmatprep.subr.bf16.mxu0 0
  %480 = vmatpush2.bf16.msra.mxu0 0
  %481 = vmatprep.subr.bf16.mxu0 0
  %482 = vmatpush2.bf16.msra.mxu0 0
  %483 = vmatprep.subr.bf16.mxu0 0
  %484 = vmatpush2.bf16.msra.mxu0 0
  %485 = vmatprep.subr.bf16.mxu0 0
  %486 = vmatpush2.bf16.msra.mxu0 0
  %487 = vmatprep.subr.bf16.mxu0 0
  %488 = vmatpush2.bf16.msra.mxu0 0
  %489 = vmatprep.subr.bf16.mxu0 0
  %490 = vmatpush2.bf16.msra.mxu0 0
  %491 = vmatprep.subr.bf16.mxu0 0
  %492 = vmatpush2.bf16.msra.mxu0 0
  %493 = vmatprep.mubr.bf16.mxu0 0
  %494 = vmatmul.mubr.bf16.gmra.mxu0 %v453
  %v495 = vpop.f32.mrf.mxu0
  %v496 = vadd.f32 0.0, %v495
  %v497 = vpop.f32.mrf.mxu0
  %v498 = vpop.f32.mrf.mxu0
  %v499 = vadd.f32 0.0, %v498
  %v500 = vpop.f32.mrf.mxu0
  %501 = vmatprep.mubr.bf16.mxu0 0
  %502 = vmatmul.mubr.bf16.gmra.mxu0 %v456
  %v503 = vpop.f32.mrf.mxu0
  %v504 = vadd.f32 0.0, %v503
  %v505 = vpop.f32.mrf.mxu0
  %v506 = vpop.f32.mrf.mxu0
  %v507 = vadd.f32 0.0, %v506
  %v508 = vpop.f32.mrf.mxu0
  %509 = vdwg.mxu0
  %v510 = vadd.f32 %v432, %v496
  %v511 = vadd.f32 %v433, %v499
  %v512 = vadd.f32 %v434, %v504
  %v513 = vadd.f32 %v435, %v507
  %514 = vrot.lane.b32.xlu0 %v87, 127
  %v515 = vpop.permute.xlu0 %514
  %s516 = scalar_lea.vmem %s1, 5
  %v517 = vld [vmem:[%s516] sm:$0x1]
  %v519 = vlaneseq
  %v520 = vshrl.u32 %v519, 7
  %v521 = vsub.s32 0, %v520
  %v522 = vrot.slane %v517, %v521
  %v524 = vmul.f32 %v515, %v522
  %s525 = scalar_lea.vmem %s2, 80
  %v526 = vld [vmem:[%s525] sm:$0xf]
  %v527 = vld [vmem:[%s525 + $0x4] sm:$0xf]
  %v528 = vld [vmem:[%s525 + $0x8] sm:$0xf]
  %v529 = vld [vmem:[%s525 + $0xc] sm:$0xf]
  %v530 = vpack.c.bf16 %v524, %v524
  %v535 = vunpack.c.l.b16 %v526
  %v536 = vunpack.c.l.b16 %v527
  %v537 = vunpack.c.l.b16 %v528
  %v538 = vunpack.c.l.b16 %v529
  %v539 = vpack.c.b16 %v536, %v535
  %v540 = vpack.c.b16 %v538, %v537
  %v542 = vsel %vm130, %v539, 0
  %v545 = vsel %vm130, %v540, 0
  %v548 = vsel %vm137, %v530, 0
  %550 = vmatprep.subr.bf16.mxu0 0
  %551 = vmatpush1.bf16.msra.mxu0 0
  %552 = vmatprep.subr.bf16.mxu0 0
  %553 = vmatpush1.bf16.msra.mxu0 0
  %554 = vmatprep.subr.bf16.mxu0 0
  %555 = vmatpush1.bf16.msra.mxu0 0
  %556 = vmatprep.subr.bf16.mxu0 0
  %557 = vmatpush1.bf16.msra.mxu0 0
  %558 = vmatprep.subr.bf16.mxu0 0
  %559 = vmatpush1.bf16.msra.mxu0 0
  %560 = vmatprep.subr.bf16.mxu0 0
  %561 = vmatpush1.bf16.msra.mxu0 0
  %562 = vmatprep.subr.bf16.mxu0 0
  %563 = vmatpush1.bf16.msra.mxu0 0
  %564 = vmatprep.subr.bf16.mxu0 0
  %565 = vmatpush1.bf16.msra.mxu0 %v548
  %566 = vmatprep.subr.bf16.mxu0 0
  %567 = vmatpush2.bf16.msra.mxu0 0
  %568 = vmatprep.subr.bf16.mxu0 0
  %569 = vmatpush2.bf16.msra.mxu0 0
  %570 = vmatprep.subr.bf16.mxu0 0
  %571 = vmatpush2.bf16.msra.mxu0 0
  %572 = vmatprep.subr.bf16.mxu0 0
  %573 = vmatpush2.bf16.msra.mxu0 0
  %574 = vmatprep.subr.bf16.mxu0 0
  %575 = vmatpush2.bf16.msra.mxu0 0
  %576 = vmatprep.subr.bf16.mxu0 0
  %577 = vmatpush2.bf16.msra.mxu0 0
  %578 = vmatprep.subr.bf16.mxu0 0
  %579 = vmatpush2.bf16.msra.mxu0 0
  %580 = vmatprep.subr.bf16.mxu0 0
  %581 = vmatpush2.bf16.msra.mxu0 0
  %582 = vmatprep.mubr.bf16.mxu0 0
  %583 = vmatmul.mubr.bf16.gmra.mxu0 %v542
  %v584 = vpop.f32.mrf.mxu0
  %v585 = vadd.f32 0.0, %v584
  %v586 = vpop.f32.mrf.mxu0
  %v587 = vpop.f32.mrf.mxu0
  %v588 = vadd.f32 0.0, %v587
  %v589 = vpop.f32.mrf.mxu0
  %590 = vmatprep.mubr.bf16.mxu0 0
  %591 = vmatmul.mubr.bf16.gmra.mxu0 %v545
  %v592 = vpop.f32.mrf.mxu0
  %v593 = vadd.f32 0.0, %v592
  %v594 = vpop.f32.mrf.mxu0
  %v595 = vpop.f32.mrf.mxu0
  %v596 = vadd.f32 0.0, %v595
  %v597 = vpop.f32.mrf.mxu0
  %598 = vdwg.mxu0
  %v599 = vadd.f32 %v510, %v585
  %v600 = vadd.f32 %v511, %v588
  %v601 = vadd.f32 %v512, %v593
  %v602 = vadd.f32 %v513, %v596
  %603 = vrot.lane.b32.xlu0 %v87, 121
  %v604 = vpop.permute.xlu0 %603
  %s605 = scalar_lea.vmem %s1, 6
  %v606 = vld [vmem:[%s605] sm:$0x1]
  %v608 = vlaneseq
  %v609 = vshrl.u32 %v608, 7
  %v610 = vsub.s32 0, %v609
  %v611 = vrot.slane %v606, %v610
  %v613 = vmul.f32 %v604, %v611
  %s614 = scalar_lea.vmem %s2, 96
  %v615 = vld [vmem:[%s614] sm:$0xf]
  %v616 = vld [vmem:[%s614 + $0x4] sm:$0xf]
  %v617 = vld [vmem:[%s614 + $0x8] sm:$0xf]
  %v618 = vld [vmem:[%s614 + $0xc] sm:$0xf]
  %v619 = vpack.c.bf16 %v613, %v613
  %v624 = vunpack.c.l.b16 %v615
  %v625 = vunpack.c.l.b16 %v616
  %v626 = vunpack.c.l.b16 %v617
  %v627 = vunpack.c.l.b16 %v618
  %v628 = vpack.c.b16 %v625, %v624
  %v629 = vpack.c.b16 %v627, %v626
  %v631 = vsel %vm130, %v628, 0
  %v634 = vsel %vm130, %v629, 0
  %v637 = vsel %vm137, %v619, 0
  %639 = vmatprep.subr.bf16.mxu0 0
  %640 = vmatpush1.bf16.msra.mxu0 0
  %641 = vmatprep.subr.bf16.mxu0 0
  %642 = vmatpush1.bf16.msra.mxu0 0
  %643 = vmatprep.subr.bf16.mxu0 0
  %644 = vmatpush1.bf16.msra.mxu0 0
  %645 = vmatprep.subr.bf16.mxu0 0
  %646 = vmatpush1.bf16.msra.mxu0 0
  %647 = vmatprep.subr.bf16.mxu0 0
  %648 = vmatpush1.bf16.msra.mxu0 0
  %649 = vmatprep.subr.bf16.mxu0 0
  %650 = vmatpush1.bf16.msra.mxu0 0
  %651 = vmatprep.subr.bf16.mxu0 0
  %652 = vmatpush1.bf16.msra.mxu0 0
  %653 = vmatprep.subr.bf16.mxu0 0
  %654 = vmatpush1.bf16.msra.mxu0 %v637
  %655 = vmatprep.subr.bf16.mxu0 0
  %656 = vmatpush2.bf16.msra.mxu0 0
  %657 = vmatprep.subr.bf16.mxu0 0
  %658 = vmatpush2.bf16.msra.mxu0 0
  %659 = vmatprep.subr.bf16.mxu0 0
  %660 = vmatpush2.bf16.msra.mxu0 0
  %661 = vmatprep.subr.bf16.mxu0 0
  %662 = vmatpush2.bf16.msra.mxu0 0
  %663 = vmatprep.subr.bf16.mxu0 0
  %664 = vmatpush2.bf16.msra.mxu0 0
  %665 = vmatprep.subr.bf16.mxu0 0
  %666 = vmatpush2.bf16.msra.mxu0 0
  %667 = vmatprep.subr.bf16.mxu0 0
  %668 = vmatpush2.bf16.msra.mxu0 0
  %669 = vmatprep.subr.bf16.mxu0 0
  %670 = vmatpush2.bf16.msra.mxu0 0
  %671 = vmatprep.mubr.bf16.mxu0 0
  %672 = vmatmul.mubr.bf16.gmra.mxu0 %v631
  %v673 = vpop.f32.mrf.mxu0
  %v674 = vadd.f32 0.0, %v673
  %v675 = vpop.f32.mrf.mxu0
  %v676 = vpop.f32.mrf.mxu0
  %v677 = vadd.f32 0.0, %v676
  %v678 = vpop.f32.mrf.mxu0
  %679 = vmatprep.mubr.bf16.mxu0 0
  %680 = vmatmul.mubr.bf16.gmra.mxu0 %v634
  %v681 = vpop.f32.mrf.mxu0
  %v682 = vadd.f32 0.0, %v681
  %v683 = vpop.f32.mrf.mxu0
  %v684 = vpop.f32.mrf.mxu0
  %v685 = vadd.f32 0.0, %v684
  %v686 = vpop.f32.mrf.mxu0
  %687 = vdwg.mxu0
  %v688 = vadd.f32 %v599, %v674
  %v689 = vadd.f32 %v600, %v677
  %v690 = vadd.f32 %v601, %v682
  %v691 = vadd.f32 %v602, %v685
  %692 = vrot.lane.b32.xlu0 %v87, 120
  %v693 = vpop.permute.xlu0 %692
  %s694 = scalar_lea.vmem %s1, 7
  %v695 = vld [vmem:[%s694] sm:$0x1]
  %v697 = vlaneseq
  %v698 = vshrl.u32 %v697, 7
  %v699 = vsub.s32 0, %v698
  %v700 = vrot.slane %v695, %v699
  %v702 = vmul.f32 %v693, %v700
  %s703 = scalar_lea.vmem %s2, 112
  %v704 = vld [vmem:[%s703] sm:$0xf]
  %v705 = vld [vmem:[%s703 + $0x4] sm:$0xf]
  %v706 = vld [vmem:[%s703 + $0x8] sm:$0xf]
  %v707 = vld [vmem:[%s703 + $0xc] sm:$0xf]
  %v708 = vpack.c.bf16 %v702, %v702
  %v713 = vunpack.c.l.b16 %v704
  %v714 = vunpack.c.l.b16 %v705
  %v715 = vunpack.c.l.b16 %v706
  %v716 = vunpack.c.l.b16 %v707
  %v717 = vpack.c.b16 %v714, %v713
  %v718 = vpack.c.b16 %v716, %v715
  %v720 = vsel %vm130, %v717, 0
  %v723 = vsel %vm130, %v718, 0
  %v726 = vsel %vm137, %v708, 0
  %728 = vmatprep.subr.bf16.mxu0 0
  %729 = vmatpush1.bf16.msra.mxu0 0
  %730 = vmatprep.subr.bf16.mxu0 0
  %731 = vmatpush1.bf16.msra.mxu0 0
  %732 = vmatprep.subr.bf16.mxu0 0
  %733 = vmatpush1.bf16.msra.mxu0 0
  %734 = vmatprep.subr.bf16.mxu0 0
  %735 = vmatpush1.bf16.msra.mxu0 0
  %736 = vmatprep.subr.bf16.mxu0 0
  %737 = vmatpush1.bf16.msra.mxu0 0
  %738 = vmatprep.subr.bf16.mxu0 0
  %739 = vmatpush1.bf16.msra.mxu0 0
  %740 = vmatprep.subr.bf16.mxu0 0
  %741 = vmatpush1.bf16.msra.mxu0 0
  %742 = vmatprep.subr.bf16.mxu0 0
  %743 = vmatpush1.bf16.msra.mxu0 %v726
  %744 = vmatprep.subr.bf16.mxu0 0
  %745 = vmatpush2.bf16.msra.mxu0 0
  %746 = vmatprep.subr.bf16.mxu0 0
  %747 = vmatpush2.bf16.msra.mxu0 0
  %748 = vmatprep.subr.bf16.mxu0 0
  %749 = vmatpush2.bf16.msra.mxu0 0
  %750 = vmatprep.subr.bf16.mxu0 0
  %751 = vmatpush2.bf16.msra.mxu0 0
  %752 = vmatprep.subr.bf16.mxu0 0
  %753 = vmatpush2.bf16.msra.mxu0 0
  %754 = vmatprep.subr.bf16.mxu0 0
  %755 = vmatpush2.bf16.msra.mxu0 0
  %756 = vmatprep.subr.bf16.mxu0 0
  %757 = vmatpush2.bf16.msra.mxu0 0
  %758 = vmatprep.subr.bf16.mxu0 0
  %759 = vmatpush2.bf16.msra.mxu0 0
  %760 = vmatprep.mubr.bf16.mxu0 0
  %761 = vmatmul.mubr.bf16.gmra.mxu0 %v720
  %v762 = vpop.f32.mrf.mxu0
  %v763 = vadd.f32 0.0, %v762
  %v764 = vpop.f32.mrf.mxu0
  %v765 = vpop.f32.mrf.mxu0
  %v766 = vadd.f32 0.0, %v765
  %v767 = vpop.f32.mrf.mxu0
  %768 = vmatprep.mubr.bf16.mxu0 0
  %769 = vmatmul.mubr.bf16.gmra.mxu0 %v723
  %v770 = vpop.f32.mrf.mxu0
  %v771 = vadd.f32 0.0, %v770
  %v772 = vpop.f32.mrf.mxu0
  %v773 = vpop.f32.mrf.mxu0
  %v774 = vadd.f32 0.0, %v773
  %v775 = vpop.f32.mrf.mxu0
  %776 = vdwg.mxu0
  %v777 = vadd.f32 %v688, %v763
  %v778 = vadd.f32 %v689, %v766
  %v779 = vadd.f32 %v690, %v771
  %v780 = vadd.f32 %v691, %v774
  %781 = vrot.lane.b32.xlu0 %v87, 119
  %v782 = vpop.permute.xlu0 %781
  %s783 = scalar_lea.vmem %s1, 8
  %v784 = vld [vmem:[%s783] sm:$0x1]
  %v786 = vlaneseq
  %v787 = vshrl.u32 %v786, 7
  %v788 = vsub.s32 0, %v787
  %v789 = vrot.slane %v784, %v788
  %v791 = vmul.f32 %v782, %v789
  %s792 = scalar_lea.vmem %s2, 128
  %v793 = vld [vmem:[%s792] sm:$0xf]
  %v794 = vld [vmem:[%s792 + $0x4] sm:$0xf]
  %v795 = vld [vmem:[%s792 + $0x8] sm:$0xf]
  %v796 = vld [vmem:[%s792 + $0xc] sm:$0xf]
  %v797 = vpack.c.bf16 %v791, %v791
  %v802 = vunpack.c.l.b16 %v793
  %v803 = vunpack.c.l.b16 %v794
  %v804 = vunpack.c.l.b16 %v795
  %v805 = vunpack.c.l.b16 %v796
  %v806 = vpack.c.b16 %v803, %v802
  %v807 = vpack.c.b16 %v805, %v804
  %v809 = vsel %vm130, %v806, 0
  %v812 = vsel %vm130, %v807, 0
  %v815 = vsel %vm137, %v797, 0
  %817 = vmatprep.subr.bf16.mxu0 0
  %818 = vmatpush1.bf16.msra.mxu0 0
  %819 = vmatprep.subr.bf16.mxu0 0
  %820 = vmatpush1.bf16.msra.mxu0 0
  %821 = vmatprep.subr.bf16.mxu0 0
  %822 = vmatpush1.bf16.msra.mxu0 0
  %823 = vmatprep.subr.bf16.mxu0 0
  %824 = vmatpush1.bf16.msra.mxu0 0
  %825 = vmatprep.subr.bf16.mxu0 0
  %826 = vmatpush1.bf16.msra.mxu0 0
  %827 = vmatprep.subr.bf16.mxu0 0
  %828 = vmatpush1.bf16.msra.mxu0 0
  %829 = vmatprep.subr.bf16.mxu0 0
  %830 = vmatpush1.bf16.msra.mxu0 0
  %831 = vmatprep.subr.bf16.mxu0 0
  %832 = vmatpush1.bf16.msra.mxu0 %v815
  %833 = vmatprep.subr.bf16.mxu0 0
  %834 = vmatpush2.bf16.msra.mxu0 0
  %835 = vmatprep.subr.bf16.mxu0 0
  %836 = vmatpush2.bf16.msra.mxu0 0
  %837 = vmatprep.subr.bf16.mxu0 0
  %838 = vmatpush2.bf16.msra.mxu0 0
  %839 = vmatprep.subr.bf16.mxu0 0
  %840 = vmatpush2.bf16.msra.mxu0 0
  %841 = vmatprep.subr.bf16.mxu0 0
  %842 = vmatpush2.bf16.msra.mxu0 0
  %843 = vmatprep.subr.bf16.mxu0 0
  %844 = vmatpush2.bf16.msra.mxu0 0
  %845 = vmatprep.subr.bf16.mxu0 0
  %846 = vmatpush2.bf16.msra.mxu0 0
  %847 = vmatprep.subr.bf16.mxu0 0
  %848 = vmatpush2.bf16.msra.mxu0 0
  %849 = vmatprep.mubr.bf16.mxu0 0
  %850 = vmatmul.mubr.bf16.gmra.mxu0 %v809
  %v851 = vpop.f32.mrf.mxu0
  %v852 = vadd.f32 0.0, %v851
  %v853 = vpop.f32.mrf.mxu0
  %v854 = vpop.f32.mrf.mxu0
  %v855 = vadd.f32 0.0, %v854
  %v856 = vpop.f32.mrf.mxu0
  %857 = vmatprep.mubr.bf16.mxu0 0
  %858 = vmatmul.mubr.bf16.gmra.mxu0 %v812
  %v859 = vpop.f32.mrf.mxu0
  %v860 = vadd.f32 0.0, %v859
  %v861 = vpop.f32.mrf.mxu0
  %v862 = vpop.f32.mrf.mxu0
  %v863 = vadd.f32 0.0, %v862
  %v864 = vpop.f32.mrf.mxu0
  %865 = vdwg.mxu0
  %v866 = vadd.f32 %v777, %v852
  %v867 = vadd.f32 %v778, %v855
  %v868 = vadd.f32 %v779, %v860
  %v869 = vadd.f32 %v780, %v863
  %v870 = vld [vmem:[%s3] sm:$0xff]
  %v871 = vld [vmem:[%s3 + $0x8] sm:$0xff]
  %v872 = vld [vmem:[%s3 + $0x10] sm:$0xff]
  %v873 = vld [vmem:[%s3 + $0x18] sm:$0xff]
  %875 = vset.pattern.permute.xlu0 0
  %876 = vperm.xlu0 %875, %v870
  %v877 = vpop.permute.xlu0 %876
  %880 = vset.pattern.permute.xlu0 0
  %881 = vperm.xlu0 %880, %v871
  %v882 = vpop.permute.xlu0 %881
  %885 = vset.pattern.permute.xlu0 0
  %886 = vperm.xlu0 %885, %v872
  %v887 = vpop.permute.xlu0 %886
  %890 = vset.pattern.permute.xlu0 0
  %891 = vperm.xlu0 %890, %v873
  %v892 = vpop.permute.xlu0 %891
  %v894 = vmul.f32 %v866, %v877
  %v895 = vmul.f32 %v867, %v882
  %v896 = vmul.f32 %v868, %v887
  %v897 = vmul.f32 %v869, %v892
  %v898 = vld [vmem:[%s4] sm:$0xff]
  %v899 = vld [vmem:[%s4 + $0x8] sm:$0xff]
  %v900 = vld [vmem:[%s4 + $0x10] sm:$0xff]
  %v901 = vld [vmem:[%s4 + $0x18] sm:$0xff]
  %903 = vset.pattern.permute.xlu0 0
  %904 = vperm.xlu0 %903, %v898
  %v905 = vpop.permute.xlu0 %904
  %908 = vset.pattern.permute.xlu0 0
  %909 = vperm.xlu0 %908, %v899
  %v910 = vpop.permute.xlu0 %909
  %913 = vset.pattern.permute.xlu0 0
  %914 = vperm.xlu0 %913, %v900
  %v915 = vpop.permute.xlu0 %914
  %918 = vset.pattern.permute.xlu0 0
  %919 = vperm.xlu0 %918, %v901
  %v920 = vpop.permute.xlu0 %919
  %v922 = vadd.f32 %v894, %v905
  %v923 = vadd.f32 %v895, %v910
  %v924 = vadd.f32 %v896, %v915
  %v925 = vadd.f32 %v897, %v920
  %v926 = vmax.f32 %v922, 0.0
  %v927 = vmax.f32 %v923, 0.0
  %v928 = vmax.f32 %v924, 0.0
  %v929 = vmax.f32 %v925, 0.0
  %930 = vrot.lane.b32.xlu0 %v926, 9
  %v931 = vpop.permute.xlu0 %930
  %932 = vrot.lane.b32.xlu0 %v927, 9
  %v933 = vpop.permute.xlu0 %932
  %934 = vrot.lane.b32.xlu0 %v928, 9
  %v935 = vpop.permute.xlu0 %934
  %936 = vrot.lane.b32.xlu0 %v929, 9
  %v937 = vpop.permute.xlu0 %936
  %v938 = vmul.f32 %v931, %v95
  %v939 = vmul.f32 %v933, %v95
  %v940 = vmul.f32 %v935, %v95
  %v941 = vmul.f32 %v937, %v95
  %v942 = vld [vmem:[%s5] sm:$0xf]
  %v943 = vld [vmem:[%s5 + $0x4] sm:$0xf]
  %v944 = vpack.c.bf16 %v939, %v938
  %v945 = vpack.c.bf16 %v941, %v940
  %946 = vrot.lane.b32.xlu0 %v926, 8
  %v947 = vpop.permute.xlu0 %946
  %948 = vrot.lane.b32.xlu0 %v927, 8
  %v949 = vpop.permute.xlu0 %948
  %950 = vrot.lane.b32.xlu0 %v928, 8
  %v951 = vpop.permute.xlu0 %950
  %952 = vrot.lane.b32.xlu0 %v929, 8
  %v953 = vpop.permute.xlu0 %952
  %v954 = vmul.f32 %v947, %v111
  %v955 = vmul.f32 %v949, %v111
  %v956 = vmul.f32 %v951, %v111
  %v957 = vmul.f32 %v953, %v111
  %s958 = scalar_lea.vmem %s5, 8
  %v959 = vld [vmem:[%s958] sm:$0xf]
  %v960 = vld [vmem:[%s958 + $0x4] sm:$0xf]
  %v961 = vpack.c.bf16 %v955, %v954
  %v962 = vpack.c.bf16 %v957, %v956
  %v965 = vunpack.c.l.b16 %v959
  %v966 = vunpack.c.l.b16 %v960
  %v967 = vpack.c.b16 %v966, %v965
  %vm968 = vcmask 261120
  %v970 = vsel %vm968, %v967, 0
  %972 = vmatprep.subr.bf16.mxu0 0
  %973 = vmatpush1.bf16.msra.mxu0 0
  %974 = vmatprep.subr.bf16.mxu0 0
  %975 = vmatpush1.bf16.msra.mxu0 0
  %976 = vmatprep.subr.bf16.mxu0 0
  %977 = vmatpush1.bf16.msra.mxu0 0
  %978 = vmatprep.subr.bf16.mxu0 0
  %979 = vmatpush1.bf16.msra.mxu0 0
  %980 = vmatprep.subr.bf16.mxu0 0
  %981 = vmatpush1.bf16.msra.mxu0 0
  %982 = vmatprep.subr.bf16.mxu0 0
  %983 = vmatpush1.bf16.msra.mxu0 0
  %984 = vmatprep.subr.bf16.mxu0 0
  %985 = vmatpush1.bf16.msra.mxu0 %v962
  %986 = vmatprep.subr.bf16.mxu0 0
  %987 = vmatpush1.bf16.msra.mxu0 %v961
  %988 = vmatprep.subr.bf16.mxu0 0
  %989 = vmatpush2.bf16.msra.mxu0 0
  %990 = vmatprep.subr.bf16.mxu0 0
  %991 = vmatpush2.bf16.msra.mxu0 0
  %992 = vmatprep.subr.bf16.mxu0 0
  %993 = vmatpush2.bf16.msra.mxu0 0
  %994 = vmatprep.subr.bf16.mxu0 0
  %995 = vmatpush2.bf16.msra.mxu0 0
  %996 = vmatprep.subr.bf16.mxu0 0
  %997 = vmatpush2.bf16.msra.mxu0 0
  %998 = vmatprep.subr.bf16.mxu0 0
  %999 = vmatpush2.bf16.msra.mxu0 0
  %1000 = vmatprep.subr.bf16.mxu0 0
  %1001 = vmatpush2.bf16.msra.mxu0 0
  %1002 = vmatprep.subr.bf16.mxu0 0
  %1003 = vmatpush2.bf16.msra.mxu0 0
  %1004 = vmatprep.mubr.bf16.mxu0 0
  %1005 = vmatmul.mubr.bf16.gmra.mxu0 %v970
  %v1006 = vpop.f32.mrf.mxu0
  %v1007 = vadd.f32 0.0, %v1006
  %v1008 = vpop.f32.mrf.mxu0
  %v1009 = vpop.f32.mrf.mxu0
  %v1010 = vadd.f32 0.0, %v1009
  %v1011 = vpop.f32.mrf.mxu0
  %1012 = vdwg.mxu0
  %v1015 = vunpack.c.l.b16 %v942
  %v1016 = vunpack.c.l.b16 %v943
  %v1017 = vpack.c.b16 %v1016, %v1015
  %v1019 = vsel %vm968, %v1017, 0
  %1021 = vmatprep.subr.bf16.mxu0 0
  %1022 = vmatpush1.bf16.msra.mxu0 0
  %1023 = vmatprep.subr.bf16.mxu0 0
  %1024 = vmatpush1.bf16.msra.mxu0 0
  %1025 = vmatprep.subr.bf16.mxu0 0
  %1026 = vmatpush1.bf16.msra.mxu0 0
  %1027 = vmatprep.subr.bf16.mxu0 0
  %1028 = vmatpush1.bf16.msra.mxu0 0
  %1029 = vmatprep.subr.bf16.mxu0 0
  %1030 = vmatpush1.bf16.msra.mxu0 0
  %1031 = vmatprep.subr.bf16.mxu0 0
  %1032 = vmatpush1.bf16.msra.mxu0 0
  %1033 = vmatprep.subr.bf16.mxu0 0
  %1034 = vmatpush1.bf16.msra.mxu0 %v945
  %1035 = vmatprep.subr.bf16.mxu0 0
  %1036 = vmatpush1.bf16.msra.mxu0 %v944
  %1037 = vmatprep.subr.bf16.mxu0 0
  %1038 = vmatpush2.bf16.msra.mxu0 0
  %1039 = vmatprep.subr.bf16.mxu0 0
  %1040 = vmatpush2.bf16.msra.mxu0 0
  %1041 = vmatprep.subr.bf16.mxu0 0
  %1042 = vmatpush2.bf16.msra.mxu0 0
  %1043 = vmatprep.subr.bf16.mxu0 0
  %1044 = vmatpush2.bf16.msra.mxu0 0
  %1045 = vmatprep.subr.bf16.mxu0 0
  %1046 = vmatpush2.bf16.msra.mxu0 0
  %1047 = vmatprep.subr.bf16.mxu0 0
  %1048 = vmatpush2.bf16.msra.mxu0 0
  %1049 = vmatprep.subr.bf16.mxu0 0
  %1050 = vmatpush2.bf16.msra.mxu0 0
  %1051 = vmatprep.subr.bf16.mxu0 0
  %1052 = vmatpush2.bf16.msra.mxu0 0
  %1053 = vmatprep.mubr.bf16.mxu0 0
  %1054 = vmatmul.mubr.bf16.gmra.mxu0 %v1019
  %v1055 = vpop.f32.mrf.mxu0
  %v1056 = vadd.f32 %v1007, %v1055
  %v1057 = vpop.f32.mrf.mxu0
  %v1058 = vpop.f32.mrf.mxu0
  %v1059 = vadd.f32 %v1010, %v1058
  %v1060 = vpop.f32.mrf.mxu0
  %1061 = vdwg.mxu0
  %1062 = vrot.lane.b32.xlu0 %v926, 7
  %v1063 = vpop.permute.xlu0 %1062
  %1064 = vrot.lane.b32.xlu0 %v927, 7
  %v1065 = vpop.permute.xlu0 %1064
  %1066 = vrot.lane.b32.xlu0 %v928, 7
  %v1067 = vpop.permute.xlu0 %1066
  %1068 = vrot.lane.b32.xlu0 %v929, 7
  %v1069 = vpop.permute.xlu0 %1068
  %v1070 = vmul.f32 %v1063, %v266
  %v1071 = vmul.f32 %v1065, %v266
  %v1072 = vmul.f32 %v1067, %v266
  %v1073 = vmul.f32 %v1069, %v266
  %s1074 = scalar_lea.vmem %s5, 16
  %v1075 = vld [vmem:[%s1074] sm:$0xf]
  %v1076 = vld [vmem:[%s1074 + $0x4] sm:$0xf]
  %v1077 = vpack.c.bf16 %v1071, %v1070
  %v1078 = vpack.c.bf16 %v1073, %v1072
  %v1081 = vunpack.c.l.b16 %v1075
  %v1082 = vunpack.c.l.b16 %v1076
  %v1083 = vpack.c.b16 %v1082, %v1081
  %v1085 = vsel %vm968, %v1083, 0
  %1087 = vmatprep.subr.bf16.mxu0 0
  %1088 = vmatpush1.bf16.msra.mxu0 0
  %1089 = vmatprep.subr.bf16.mxu0 0
  %1090 = vmatpush1.bf16.msra.mxu0 0
  %1091 = vmatprep.subr.bf16.mxu0 0
  %1092 = vmatpush1.bf16.msra.mxu0 0
  %1093 = vmatprep.subr.bf16.mxu0 0
  %1094 = vmatpush1.bf16.msra.mxu0 0
  %1095 = vmatprep.subr.bf16.mxu0 0
  %1096 = vmatpush1.bf16.msra.mxu0 0
  %1097 = vmatprep.subr.bf16.mxu0 0
  %1098 = vmatpush1.bf16.msra.mxu0 0
  %1099 = vmatprep.subr.bf16.mxu0 0
  %1100 = vmatpush1.bf16.msra.mxu0 %v1078
  %1101 = vmatprep.subr.bf16.mxu0 0
  %1102 = vmatpush1.bf16.msra.mxu0 %v1077
  %1103 = vmatprep.subr.bf16.mxu0 0
  %1104 = vmatpush2.bf16.msra.mxu0 0
  %1105 = vmatprep.subr.bf16.mxu0 0
  %1106 = vmatpush2.bf16.msra.mxu0 0
  %1107 = vmatprep.subr.bf16.mxu0 0
  %1108 = vmatpush2.bf16.msra.mxu0 0
  %1109 = vmatprep.subr.bf16.mxu0 0
  %1110 = vmatpush2.bf16.msra.mxu0 0
  %1111 = vmatprep.subr.bf16.mxu0 0
  %1112 = vmatpush2.bf16.msra.mxu0 0
  %1113 = vmatprep.subr.bf16.mxu0 0
  %1114 = vmatpush2.bf16.msra.mxu0 0
  %1115 = vmatprep.subr.bf16.mxu0 0
  %1116 = vmatpush2.bf16.msra.mxu0 0
  %1117 = vmatprep.subr.bf16.mxu0 0
  %1118 = vmatpush2.bf16.msra.mxu0 0
  %1119 = vmatprep.mubr.bf16.mxu0 0
  %1120 = vmatmul.mubr.bf16.gmra.mxu0 %v1085
  %v1121 = vpop.f32.mrf.mxu0
  %v1122 = vadd.f32 0.0, %v1121
  %v1123 = vpop.f32.mrf.mxu0
  %v1124 = vpop.f32.mrf.mxu0
  %v1125 = vadd.f32 0.0, %v1124
  %v1126 = vpop.f32.mrf.mxu0
  %1127 = vdwg.mxu0
  %v1128 = vadd.f32 %v1056, %v1122
  %v1129 = vadd.f32 %v1059, %v1125
  %1130 = vrot.lane.b32.xlu0 %v926, 1
  %v1131 = vpop.permute.xlu0 %1130
  %1132 = vrot.lane.b32.xlu0 %v927, 1
  %v1133 = vpop.permute.xlu0 %1132
  %1134 = vrot.lane.b32.xlu0 %v928, 1
  %v1135 = vpop.permute.xlu0 %1134
  %1136 = vrot.lane.b32.xlu0 %v929, 1
  %v1137 = vpop.permute.xlu0 %1136
  %v1138 = vmul.f32 %v1131, %v355
  %v1139 = vmul.f32 %v1133, %v355
  %v1140 = vmul.f32 %v1135, %v355
  %v1141 = vmul.f32 %v1137, %v355
  %s1142 = scalar_lea.vmem %s5, 24
  %v1143 = vld [vmem:[%s1142] sm:$0xf]
  %v1144 = vld [vmem:[%s1142 + $0x4] sm:$0xf]
  %v1145 = vpack.c.bf16 %v1139, %v1138
  %v1146 = vpack.c.bf16 %v1141, %v1140
  %v1149 = vunpack.c.l.b16 %v1143
  %v1150 = vunpack.c.l.b16 %v1144
  %v1151 = vpack.c.b16 %v1150, %v1149
  %v1153 = vsel %vm968, %v1151, 0
  %1155 = vmatprep.subr.bf16.mxu0 0
  %1156 = vmatpush1.bf16.msra.mxu0 0
  %1157 = vmatprep.subr.bf16.mxu0 0
  %1158 = vmatpush1.bf16.msra.mxu0 0
  %1159 = vmatprep.subr.bf16.mxu0 0
  %1160 = vmatpush1.bf16.msra.mxu0 0
  %1161 = vmatprep.subr.bf16.mxu0 0
  %1162 = vmatpush1.bf16.msra.mxu0 0
  %1163 = vmatprep.subr.bf16.mxu0 0
  %1164 = vmatpush1.bf16.msra.mxu0 0
  %1165 = vmatprep.subr.bf16.mxu0 0
  %1166 = vmatpush1.bf16.msra.mxu0 0
  %1167 = vmatprep.subr.bf16.mxu0 0
  %1168 = vmatpush1.bf16.msra.mxu0 %v1146
  %1169 = vmatprep.subr.bf16.mxu0 0
  %1170 = vmatpush1.bf16.msra.mxu0 %v1145
  %1171 = vmatprep.subr.bf16.mxu0 0
  %1172 = vmatpush2.bf16.msra.mxu0 0
  %1173 = vmatprep.subr.bf16.mxu0 0
  %1174 = vmatpush2.bf16.msra.mxu0 0
  %1175 = vmatprep.subr.bf16.mxu0 0
  %1176 = vmatpush2.bf16.msra.mxu0 0
  %1177 = vmatprep.subr.bf16.mxu0 0
  %1178 = vmatpush2.bf16.msra.mxu0 0
  %1179 = vmatprep.subr.bf16.mxu0 0
  %1180 = vmatpush2.bf16.msra.mxu0 0
  %1181 = vmatprep.subr.bf16.mxu0 0
  %1182 = vmatpush2.bf16.msra.mxu0 0
  %1183 = vmatprep.subr.bf16.mxu0 0
  %1184 = vmatpush2.bf16.msra.mxu0 0
  %1185 = vmatprep.subr.bf16.mxu0 0
  %1186 = vmatpush2.bf16.msra.mxu0 0
  %1187 = vmatprep.mubr.bf16.mxu0 0
  %1188 = vmatmul.mubr.bf16.gmra.mxu0 %v1153
  %v1189 = vpop.f32.mrf.mxu0
  %v1190 = vadd.f32 0.0, %v1189
  %v1191 = vpop.f32.mrf.mxu0
  %v1192 = vpop.f32.mrf.mxu0
  %v1193 = vadd.f32 0.0, %v1192
  %v1194 = vpop.f32.mrf.mxu0
  %1195 = vdwg.mxu0
  %v1196 = vadd.f32 %v1128, %v1190
  %v1197 = vadd.f32 %v1129, %v1193
  %s1198 = scalar_lea.vmem %s5, 32
  %v1199 = vld [vmem:[%s1198] sm:$0xf]
  %v1200 = vld [vmem:[%s1198 + $0x4] sm:$0xf]
  %v1201 = vpack.c.bf16 %v927, %v926
  %v1202 = vpack.c.bf16 %v929, %v928
  %v1205 = vunpack.c.l.b16 %v1199
  %v1206 = vunpack.c.l.b16 %v1200
  %v1207 = vpack.c.b16 %v1206, %v1205
  %v1209 = vsel %vm968, %v1207, 0
  %1211 = vmatprep.subr.bf16.mxu0 0
  %1212 = vmatpush1.bf16.msra.mxu0 0
  %1213 = vmatprep.subr.bf16.mxu0 0
  %1214 = vmatpush1.bf16.msra.mxu0 0
  %1215 = vmatprep.subr.bf16.mxu0 0
  %1216 = vmatpush1.bf16.msra.mxu0 0
  %1217 = vmatprep.subr.bf16.mxu0 0
  %1218 = vmatpush1.bf16.msra.mxu0 0
  %1219 = vmatprep.subr.bf16.mxu0 0
  %1220 = vmatpush1.bf16.msra.mxu0 0
  %1221 = vmatprep.subr.bf16.mxu0 0
  %1222 = vmatpush1.bf16.msra.mxu0 0
  %1223 = vmatprep.subr.bf16.mxu0 0
  %1224 = vmatpush1.bf16.msra.mxu0 %v1202
  %1225 = vmatprep.subr.bf16.mxu0 0
  %1226 = vmatpush1.bf16.msra.mxu0 %v1201
  %1227 = vmatprep.subr.bf16.mxu0 0
  %1228 = vmatpush2.bf16.msra.mxu0 0
  %1229 = vmatprep.subr.bf16.mxu0 0
  %1230 = vmatpush2.bf16.msra.mxu0 0
  %1231 = vmatprep.subr.bf16.mxu0 0
  %1232 = vmatpush2.bf16.msra.mxu0 0
  %1233 = vmatprep.subr.bf16.mxu0 0
  %1234 = vmatpush2.bf16.msra.mxu0 0
  %1235 = vmatprep.subr.bf16.mxu0 0
  %1236 = vmatpush2.bf16.msra.mxu0 0
  %1237 = vmatprep.subr.bf16.mxu0 0
  %1238 = vmatpush2.bf16.msra.mxu0 0
  %1239 = vmatprep.subr.bf16.mxu0 0
  %1240 = vmatpush2.bf16.msra.mxu0 0
  %1241 = vmatprep.subr.bf16.mxu0 0
  %1242 = vmatpush2.bf16.msra.mxu0 0
  %1243 = vmatprep.mubr.bf16.mxu0 0
  %1244 = vmatmul.mubr.bf16.gmra.mxu0 %v1209
  %v1245 = vpop.f32.mrf.mxu0
  %v1246 = vadd.f32 0.0, %v1245
  %v1247 = vpop.f32.mrf.mxu0
  %v1248 = vpop.f32.mrf.mxu0
  %v1249 = vadd.f32 0.0, %v1248
  %v1250 = vpop.f32.mrf.mxu0
  %1251 = vdwg.mxu0
  %v1252 = vadd.f32 %v1196, %v1246
  %v1253 = vadd.f32 %v1197, %v1249
  %1254 = vrot.lane.b32.xlu0 %v926, 127
  %v1255 = vpop.permute.xlu0 %1254
  %1256 = vrot.lane.b32.xlu0 %v927, 127
  %v1257 = vpop.permute.xlu0 %1256
  %1258 = vrot.lane.b32.xlu0 %v928, 127
  %v1259 = vpop.permute.xlu0 %1258
  %1260 = vrot.lane.b32.xlu0 %v929, 127
  %v1261 = vpop.permute.xlu0 %1260
  %v1262 = vmul.f32 %v1255, %v522
  %v1263 = vmul.f32 %v1257, %v522
  %v1264 = vmul.f32 %v1259, %v522
  %v1265 = vmul.f32 %v1261, %v522
  %s1266 = scalar_lea.vmem %s5, 40
  %v1267 = vld [vmem:[%s1266] sm:$0xf]
  %v1268 = vld [vmem:[%s1266 + $0x4] sm:$0xf]
  %v1269 = vpack.c.bf16 %v1263, %v1262
  %v1270 = vpack.c.bf16 %v1265, %v1264
  %v1273 = vunpack.c.l.b16 %v1267
  %v1274 = vunpack.c.l.b16 %v1268
  %v1275 = vpack.c.b16 %v1274, %v1273
  %v1277 = vsel %vm968, %v1275, 0
  %1279 = vmatprep.subr.bf16.mxu0 0
  %1280 = vmatpush1.bf16.msra.mxu0 0
  %1281 = vmatprep.subr.bf16.mxu0 0
  %1282 = vmatpush1.bf16.msra.mxu0 0
  %1283 = vmatprep.subr.bf16.mxu0 0
  %1284 = vmatpush1.bf16.msra.mxu0 0
  %1285 = vmatprep.subr.bf16.mxu0 0
  %1286 = vmatpush1.bf16.msra.mxu0 0
  %1287 = vmatprep.subr.bf16.mxu0 0
  %1288 = vmatpush1.bf16.msra.mxu0 0
  %1289 = vmatprep.subr.bf16.mxu0 0
  %1290 = vmatpush1.bf16.msra.mxu0 0
  %1291 = vmatprep.subr.bf16.mxu0 0
  %1292 = vmatpush1.bf16.msra.mxu0 %v1270
  %1293 = vmatprep.subr.bf16.mxu0 0
  %1294 = vmatpush1.bf16.msra.mxu0 %v1269
  %1295 = vmatprep.subr.bf16.mxu0 0
  %1296 = vmatpush2.bf16.msra.mxu0 0
  %1297 = vmatprep.subr.bf16.mxu0 0
  %1298 = vmatpush2.bf16.msra.mxu0 0
  %1299 = vmatprep.subr.bf16.mxu0 0
  %1300 = vmatpush2.bf16.msra.mxu0 0
  %1301 = vmatprep.subr.bf16.mxu0 0
  %1302 = vmatpush2.bf16.msra.mxu0 0
  %1303 = vmatprep.subr.bf16.mxu0 0
  %1304 = vmatpush2.bf16.msra.mxu0 0
  %1305 = vmatprep.subr.bf16.mxu0 0
  %1306 = vmatpush2.bf16.msra.mxu0 0
  %1307 = vmatprep.subr.bf16.mxu0 0
  %1308 = vmatpush2.bf16.msra.mxu0 0
  %1309 = vmatprep.subr.bf16.mxu0 0
  %1310 = vmatpush2.bf16.msra.mxu0 0
  %1311 = vmatprep.mubr.bf16.mxu0 0
  %1312 = vmatmul.mubr.bf16.gmra.mxu0 %v1277
  %v1313 = vpop.f32.mrf.mxu0
  %v1314 = vadd.f32 0.0, %v1313
  %v1315 = vpop.f32.mrf.mxu0
  %v1316 = vpop.f32.mrf.mxu0
  %v1317 = vadd.f32 0.0, %v1316
  %v1318 = vpop.f32.mrf.mxu0
  %1319 = vdwg.mxu0
  %v1320 = vadd.f32 %v1252, %v1314
  %v1321 = vadd.f32 %v1253, %v1317
  %1322 = vrot.lane.b32.xlu0 %v926, 121
  %v1323 = vpop.permute.xlu0 %1322
  %1324 = vrot.lane.b32.xlu0 %v927, 121
  %v1325 = vpop.permute.xlu0 %1324
  %1326 = vrot.lane.b32.xlu0 %v928, 121
  %v1327 = vpop.permute.xlu0 %1326
  %1328 = vrot.lane.b32.xlu0 %v929, 121
  %v1329 = vpop.permute.xlu0 %1328
  %v1330 = vmul.f32 %v1323, %v611
  %v1331 = vmul.f32 %v1325, %v611
  %v1332 = vmul.f32 %v1327, %v611
  %v1333 = vmul.f32 %v1329, %v611
  %s1334 = scalar_lea.vmem %s5, 48
  %v1335 = vld [vmem:[%s1334] sm:$0xf]
  %v1336 = vld [vmem:[%s1334 + $0x4] sm:$0xf]
  %v1337 = vpack.c.bf16 %v1331, %v1330
  %v1338 = vpack.c.bf16 %v1333, %v1332
  %v1341 = vunpack.c.l.b16 %v1335
  %v1342 = vunpack.c.l.b16 %v1336
  %v1343 = vpack.c.b16 %v1342, %v1341
  %v1345 = vsel %vm968, %v1343, 0
  %1347 = vmatprep.subr.bf16.mxu0 0
  %1348 = vmatpush1.bf16.msra.mxu0 0
  %1349 = vmatprep.subr.bf16.mxu0 0
  %1350 = vmatpush1.bf16.msra.mxu0 0
  %1351 = vmatprep.subr.bf16.mxu0 0
  %1352 = vmatpush1.bf16.msra.mxu0 0
  %1353 = vmatprep.subr.bf16.mxu0 0
  %1354 = vmatpush1.bf16.msra.mxu0 0
  %1355 = vmatprep.subr.bf16.mxu0 0
  %1356 = vmatpush1.bf16.msra.mxu0 0
  %1357 = vmatprep.subr.bf16.mxu0 0
  %1358 = vmatpush1.bf16.msra.mxu0 0
  %1359 = vmatprep.subr.bf16.mxu0 0
  %1360 = vmatpush1.bf16.msra.mxu0 %v1338
  %1361 = vmatprep.subr.bf16.mxu0 0
  %1362 = vmatpush1.bf16.msra.mxu0 %v1337
  %1363 = vmatprep.subr.bf16.mxu0 0
  %1364 = vmatpush2.bf16.msra.mxu0 0
  %1365 = vmatprep.subr.bf16.mxu0 0
  %1366 = vmatpush2.bf16.msra.mxu0 0
  %1367 = vmatprep.subr.bf16.mxu0 0
  %1368 = vmatpush2.bf16.msra.mxu0 0
  %1369 = vmatprep.subr.bf16.mxu0 0
  %1370 = vmatpush2.bf16.msra.mxu0 0
  %1371 = vmatprep.subr.bf16.mxu0 0
  %1372 = vmatpush2.bf16.msra.mxu0 0
  %1373 = vmatprep.subr.bf16.mxu0 0
  %1374 = vmatpush2.bf16.msra.mxu0 0
  %1375 = vmatprep.subr.bf16.mxu0 0
  %1376 = vmatpush2.bf16.msra.mxu0 0
  %1377 = vmatprep.subr.bf16.mxu0 0
  %1378 = vmatpush2.bf16.msra.mxu0 0
  %1379 = vmatprep.mubr.bf16.mxu0 0
  %1380 = vmatmul.mubr.bf16.gmra.mxu0 %v1345
  %v1381 = vpop.f32.mrf.mxu0
  %v1382 = vadd.f32 0.0, %v1381
  %v1383 = vpop.f32.mrf.mxu0
  %v1384 = vpop.f32.mrf.mxu0
  %v1385 = vadd.f32 0.0, %v1384
  %v1386 = vpop.f32.mrf.mxu0
  %1387 = vdwg.mxu0
  %v1388 = vadd.f32 %v1320, %v1382
  %v1389 = vadd.f32 %v1321, %v1385
  %1390 = vrot.lane.b32.xlu0 %v926, 120
  %v1391 = vpop.permute.xlu0 %1390
  %1392 = vrot.lane.b32.xlu0 %v927, 120
  %v1393 = vpop.permute.xlu0 %1392
  %1394 = vrot.lane.b32.xlu0 %v928, 120
  %v1395 = vpop.permute.xlu0 %1394
  %1396 = vrot.lane.b32.xlu0 %v929, 120
  %v1397 = vpop.permute.xlu0 %1396
  %v1398 = vmul.f32 %v1391, %v700
  %v1399 = vmul.f32 %v1393, %v700
  %v1400 = vmul.f32 %v1395, %v700
  %v1401 = vmul.f32 %v1397, %v700
  %s1402 = scalar_lea.vmem %s5, 56
  %v1403 = vld [vmem:[%s1402] sm:$0xf]
  %v1404 = vld [vmem:[%s1402 + $0x4] sm:$0xf]
  %v1405 = vpack.c.bf16 %v1399, %v1398
  %v1406 = vpack.c.bf16 %v1401, %v1400
  %v1409 = vunpack.c.l.b16 %v1403
  %v1410 = vunpack.c.l.b16 %v1404
  %v1411 = vpack.c.b16 %v1410, %v1409
  %v1413 = vsel %vm968, %v1411, 0
  %1415 = vmatprep.subr.bf16.mxu0 0
  %1416 = vmatpush1.bf16.msra.mxu0 0
  %1417 = vmatprep.subr.bf16.mxu0 0
  %1418 = vmatpush1.bf16.msra.mxu0 0
  %1419 = vmatprep.subr.bf16.mxu0 0
  %1420 = vmatpush1.bf16.msra.mxu0 0
  %1421 = vmatprep.subr.bf16.mxu0 0
  %1422 = vmatpush1.bf16.msra.mxu0 0
  %1423 = vmatprep.subr.bf16.mxu0 0
  %1424 = vmatpush1.bf16.msra.mxu0 0
  %1425 = vmatprep.subr.bf16.mxu0 0
  %1426 = vmatpush1.bf16.msra.mxu0 0
  %1427 = vmatprep.subr.bf16.mxu0 0
  %1428 = vmatpush1.bf16.msra.mxu0 %v1406
  %1429 = vmatprep.subr.bf16.mxu0 0
  %1430 = vmatpush1.bf16.msra.mxu0 %v1405
  %1431 = vmatprep.subr.bf16.mxu0 0
  %1432 = vmatpush2.bf16.msra.mxu0 0
  %1433 = vmatprep.subr.bf16.mxu0 0
  %1434 = vmatpush2.bf16.msra.mxu0 0
  %1435 = vmatprep.subr.bf16.mxu0 0
  %1436 = vmatpush2.bf16.msra.mxu0 0
  %1437 = vmatprep.subr.bf16.mxu0 0
  %1438 = vmatpush2.bf16.msra.mxu0 0
  %1439 = vmatprep.subr.bf16.mxu0 0
  %1440 = vmatpush2.bf16.msra.mxu0 0
  %1441 = vmatprep.subr.bf16.mxu0 0
  %1442 = vmatpush2.bf16.msra.mxu0 0
  %1443 = vmatprep.subr.bf16.mxu0 0
  %1444 = vmatpush2.bf16.msra.mxu0 0
  %1445 = vmatprep.subr.bf16.mxu0 0
  %1446 = vmatpush2.bf16.msra.mxu0 0
  %1447 = vmatprep.mubr.bf16.mxu0 0
  %1448 = vmatmul.mubr.bf16.gmra.mxu0 %v1413
  %v1449 = vpop.f32.mrf.mxu0
  %v1450 = vadd.f32 0.0, %v1449
  %v1451 = vpop.f32.mrf.mxu0
  %v1452 = vpop.f32.mrf.mxu0
  %v1453 = vadd.f32 0.0, %v1452
  %v1454 = vpop.f32.mrf.mxu0
  %1455 = vdwg.mxu0
  %v1456 = vadd.f32 %v1388, %v1450
  %v1457 = vadd.f32 %v1389, %v1453
  %1458 = vrot.lane.b32.xlu0 %v926, 119
  %v1459 = vpop.permute.xlu0 %1458
  %1460 = vrot.lane.b32.xlu0 %v927, 119
  %v1461 = vpop.permute.xlu0 %1460
  %1462 = vrot.lane.b32.xlu0 %v928, 119
  %v1463 = vpop.permute.xlu0 %1462
  %1464 = vrot.lane.b32.xlu0 %v929, 119
  %v1465 = vpop.permute.xlu0 %1464
  %v1466 = vmul.f32 %v1459, %v789
  %v1467 = vmul.f32 %v1461, %v789
  %v1468 = vmul.f32 %v1463, %v789
  %v1469 = vmul.f32 %v1465, %v789
  %s1470 = scalar_lea.vmem %s5, 64
  %v1471 = vld [vmem:[%s1470] sm:$0xf]
  %v1472 = vld [vmem:[%s1470 + $0x4] sm:$0xf]
  %v1473 = vpack.c.bf16 %v1467, %v1466
  %v1474 = vpack.c.bf16 %v1469, %v1468
  %v1477 = vunpack.c.l.b16 %v1471
  %v1478 = vunpack.c.l.b16 %v1472
  %v1479 = vpack.c.b16 %v1478, %v1477
  %v1481 = vsel %vm968, %v1479, 0
  %1483 = vmatprep.subr.bf16.mxu0 0
  %1484 = vmatpush1.bf16.msra.mxu0 0
  %1485 = vmatprep.subr.bf16.mxu0 0
  %1486 = vmatpush1.bf16.msra.mxu0 0
  %1487 = vmatprep.subr.bf16.mxu0 0
  %1488 = vmatpush1.bf16.msra.mxu0 0
  %1489 = vmatprep.subr.bf16.mxu0 0
  %1490 = vmatpush1.bf16.msra.mxu0 0
  %1491 = vmatprep.subr.bf16.mxu0 0
  %1492 = vmatpush1.bf16.msra.mxu0 0
  %1493 = vmatprep.subr.bf16.mxu0 0
  %1494 = vmatpush1.bf16.msra.mxu0 0
  %1495 = vmatprep.subr.bf16.mxu0 0
  %1496 = vmatpush1.bf16.msra.mxu0 %v1474
  %1497 = vmatprep.subr.bf16.mxu0 0
  %1498 = vmatpush1.bf16.msra.mxu0 %v1473
  %1499 = vmatprep.subr.bf16.mxu0 0
  %1500 = vmatpush2.bf16.msra.mxu0 0
  %1501 = vmatprep.subr.bf16.mxu0 0
  %1502 = vmatpush2.bf16.msra.mxu0 0
  %1503 = vmatprep.subr.bf16.mxu0 0
  %1504 = vmatpush2.bf16.msra.mxu0 0
  %1505 = vmatprep.subr.bf16.mxu0 0
  %1506 = vmatpush2.bf16.msra.mxu0 0
  %1507 = vmatprep.subr.bf16.mxu0 0
  %1508 = vmatpush2.bf16.msra.mxu0 0
  %1509 = vmatprep.subr.bf16.mxu0 0
  %1510 = vmatpush2.bf16.msra.mxu0 0
  %1511 = vmatprep.subr.bf16.mxu0 0
  %1512 = vmatpush2.bf16.msra.mxu0 0
  %1513 = vmatprep.subr.bf16.mxu0 0
  %1514 = vmatpush2.bf16.msra.mxu0 0
  %1515 = vmatprep.mubr.bf16.mxu0 0
  %1516 = vmatmul.mubr.bf16.gmra.mxu0 %v1481
  %v1517 = vpop.f32.mrf.mxu0
  %v1518 = vadd.f32 0.0, %v1517
  %v1519 = vpop.f32.mrf.mxu0
  %v1520 = vpop.f32.mrf.mxu0
  %v1521 = vadd.f32 0.0, %v1520
  %v1522 = vpop.f32.mrf.mxu0
  %1523 = vdwg.mxu0
  %v1524 = vadd.f32 %v1456, %v1518
  %v1525 = vadd.f32 %v1457, %v1521
  %v1526 = vld [vmem:[%s6] sm:$0xff]
  %v1527 = vld [vmem:[%s6 + $0x8] sm:$0xff]
  %1529 = vset.pattern.permute.xlu0 0
  %1530 = vperm.xlu0 %1529, %v1526
  %v1531 = vpop.permute.xlu0 %1530
  %1534 = vset.pattern.permute.xlu0 0
  %1535 = vperm.xlu0 %1534, %v1527
  %v1536 = vpop.permute.xlu0 %1535
  %v1538 = vmul.f32 %v1524, %v1531
  %v1539 = vmul.f32 %v1525, %v1536
  %v1540 = vld [vmem:[%s7] sm:$0xff]
  %v1541 = vld [vmem:[%s7 + $0x8] sm:$0xff]
  %1543 = vset.pattern.permute.xlu0 0
  %1544 = vperm.xlu0 %1543, %v1540
  %v1545 = vpop.permute.xlu0 %1544
  %1548 = vset.pattern.permute.xlu0 0
  %1549 = vperm.xlu0 %1548, %v1541
  %v1550 = vpop.permute.xlu0 %1549
  %v1552 = vadd.f32 %v1538, %v1545
  %v1553 = vadd.f32 %v1539, %v1550
  %v1554 = vmax.f32 %v1552, 0.0
  %v1555 = vmax.f32 %v1553, 0.0
  %1556 = vrot.lane.b32.xlu0 %v1554, 9
  %v1557 = vpop.permute.xlu0 %1556
  %1558 = vrot.lane.b32.xlu0 %v1555, 9
  %v1559 = vpop.permute.xlu0 %1558
  %v1560 = vmul.f32 %v1557, %v95
  %v1561 = vmul.f32 %v1559, %v95
  %v1562 = vld [vmem:[%s8] sm:$0xf]
  %v1563 = vpack.c.bf16 %v1561, %v1560
  %1564 = vrot.lane.b32.xlu0 %v1554, 8
  %v1565 = vpop.permute.xlu0 %1564
  %1566 = vrot.lane.b32.xlu0 %v1555, 8
  %v1567 = vpop.permute.xlu0 %1566
  %v1568 = vmul.f32 %v1565, %v111
  %v1569 = vmul.f32 %v1567, %v111
  %s1570 = scalar_lea.vmem %s8, 4
  %v1571 = vld [vmem:[%s1570] sm:$0xf]
  %v1572 = vpack.c.bf16 %v1569, %v1568
  %vm1573 = vcmask 130048
  %v1575 = vsel %vm1573, %v1571, 0
  %1577 = vmatprep.subr.bf16.mxu0 0
  %1578 = vmatpush1.bf16.msra.mxu0 0
  %1579 = vmatprep.subr.bf16.mxu0 0
  %1580 = vmatpush1.bf16.msra.mxu0 0
  %1581 = vmatprep.subr.bf16.mxu0 0
  %1582 = vmatpush1.bf16.msra.mxu0 0
  %1583 = vmatprep.subr.bf16.mxu0 0
  %1584 = vmatpush1.bf16.msra.mxu0 0
  %1585 = vmatprep.subr.bf16.mxu0 0
  %1586 = vmatpush1.bf16.msra.mxu0 0
  %1587 = vmatprep.subr.bf16.mxu0 0
  %1588 = vmatpush1.bf16.msra.mxu0 0
  %1589 = vmatprep.subr.bf16.mxu0 0
  %1590 = vmatpush1.bf16.msra.mxu0 0
  %1591 = vmatprep.subr.bf16.mxu0 0
  %1592 = vmatpush1.bf16.msra.mxu0 %v1572
  %1593 = vmatprep.subr.bf16.mxu0 0
  %1594 = vmatpush2.bf16.msra.mxu0 0
  %1595 = vmatprep.subr.bf16.mxu0 0
  %1596 = vmatpush2.bf16.msra.mxu0 0
  %1597 = vmatprep.subr.bf16.mxu0 0
  %1598 = vmatpush2.bf16.msra.mxu0 0
  %1599 = vmatprep.subr.bf16.mxu0 0
  %1600 = vmatpush2.bf16.msra.mxu0 0
  %1601 = vmatprep.subr.bf16.mxu0 0
  %1602 = vmatpush2.bf16.msra.mxu0 0
  %1603 = vmatprep.subr.bf16.mxu0 0
  %1604 = vmatpush2.bf16.msra.mxu0 0
  %1605 = vmatprep.subr.bf16.mxu0 0
  %1606 = vmatpush2.bf16.msra.mxu0 0
  %1607 = vmatprep.subr.bf16.mxu0 0
  %1608 = vmatpush2.bf16.msra.mxu0 0
  %1609 = vmatprep.mubr.bf16.mxu0 0
  %1610 = vmatmul.mubr.bf16.gmra.mxu0 %v1575
  %v1611 = vpop.f32.mrf.mxu0
  %v1612 = vadd.f32 0.0, %v1611
  %v1613 = vpop.f32.mrf.mxu0
  %v1614 = vpop.f32.mrf.mxu0
  %v1615 = vpop.f32.mrf.mxu0
  %1616 = vdwg.mxu0
  %v1618 = vsel %vm1573, %v1562, 0
  %1620 = vmatprep.subr.bf16.mxu0 0
  %1621 = vmatpush1.bf16.msra.mxu0 0
  %1622 = vmatprep.subr.bf16.mxu0 0
  %1623 = vmatpush1.bf16.msra.mxu0 0
  %1624 = vmatprep.subr.bf16.mxu0 0
  %1625 = vmatpush1.bf16.msra.mxu0 0
  %1626 = vmatprep.subr.bf16.mxu0 0
  %1627 = vmatpush1.bf16.msra.mxu0 0
  %1628 = vmatprep.subr.bf16.mxu0 0
  %1629 = vmatpush1.bf16.msra.mxu0 0
  %1630 = vmatprep.subr.bf16.mxu0 0
  %1631 = vmatpush1.bf16.msra.mxu0 0
  %1632 = vmatprep.subr.bf16.mxu0 0
  %1633 = vmatpush1.bf16.msra.mxu0 0
  %1634 = vmatprep.subr.bf16.mxu0 0
  %1635 = vmatpush1.bf16.msra.mxu0 %v1563
  %1636 = vmatprep.subr.bf16.mxu0 0
  %1637 = vmatpush2.bf16.msra.mxu0 0
  %1638 = vmatprep.subr.bf16.mxu0 0
  %1639 = vmatpush2.bf16.msra.mxu0 0
  %1640 = vmatprep.subr.bf16.mxu0 0
  %1641 = vmatpush2.bf16.msra.mxu0 0
  %1642 = vmatprep.subr.bf16.mxu0 0
  %1643 = vmatpush2.bf16.msra.mxu0 0
  %1644 = vmatprep.subr.bf16.mxu0 0
  %1645 = vmatpush2.bf16.msra.mxu0 0
  %1646 = vmatprep.subr.bf16.mxu0 0
  %1647 = vmatpush2.bf16.msra.mxu0 0
  %1648 = vmatprep.subr.bf16.mxu0 0
  %1649 = vmatpush2.bf16.msra.mxu0 0
  %1650 = vmatprep.subr.bf16.mxu0 0
  %1651 = vmatpush2.bf16.msra.mxu0 0
  %1652 = vmatprep.mubr.bf16.mxu0 0
  %1653 = vmatmul.mubr.bf16.gmra.mxu0 %v1618
  %v1654 = vpop.f32.mrf.mxu0
  %v1655 = vadd.f32 %v1612, %v1654
  %v1656 = vpop.f32.mrf.mxu0
  %v1657 = vpop.f32.mrf.mxu0
  %v1658 = vpop.f32.mrf.mxu0
  %1659 = vdwg.mxu0
  %1660 = vrot.lane.b32.xlu0 %v1554, 7
  %v1661 = vpop.permute.xlu0 %1660
  %1662 = vrot.lane.b32.xlu0 %v1555, 7
  %v1663 = vpop.permute.xlu0 %1662
  %v1664 = vmul.f32 %v1661, %v266
  %v1665 = vmul.f32 %v1663, %v266
  %s1666 = scalar_lea.vmem %s8, 8
  %v1667 = vld [vmem:[%s1666] sm:$0xf]
  %v1668 = vpack.c.bf16 %v1665, %v1664
  %v1670 = vsel %vm1573, %v1667, 0
  %1672 = vmatprep.subr.bf16.mxu0 0
  %1673 = vmatpush1.bf16.msra.mxu0 0
  %1674 = vmatprep.subr.bf16.mxu0 0
  %1675 = vmatpush1.bf16.msra.mxu0 0
  %1676 = vmatprep.subr.bf16.mxu0 0
  %1677 = vmatpush1.bf16.msra.mxu0 0
  %1678 = vmatprep.subr.bf16.mxu0 0
  %1679 = vmatpush1.bf16.msra.mxu0 0
  %1680 = vmatprep.subr.bf16.mxu0 0
  %1681 = vmatpush1.bf16.msra.mxu0 0
  %1682 = vmatprep.subr.bf16.mxu0 0
  %1683 = vmatpush1.bf16.msra.mxu0 0
  %1684 = vmatprep.subr.bf16.mxu0 0
  %1685 = vmatpush1.bf16.msra.mxu0 0
  %1686 = vmatprep.subr.bf16.mxu0 0
  %1687 = vmatpush1.bf16.msra.mxu0 %v1668
  %1688 = vmatprep.subr.bf16.mxu0 0
  %1689 = vmatpush2.bf16.msra.mxu0 0
  %1690 = vmatprep.subr.bf16.mxu0 0
  %1691 = vmatpush2.bf16.msra.mxu0 0
  %1692 = vmatprep.subr.bf16.mxu0 0
  %1693 = vmatpush2.bf16.msra.mxu0 0
  %1694 = vmatprep.subr.bf16.mxu0 0
  %1695 = vmatpush2.bf16.msra.mxu0 0
  %1696 = vmatprep.subr.bf16.mxu0 0
  %1697 = vmatpush2.bf16.msra.mxu0 0
  %1698 = vmatprep.subr.bf16.mxu0 0
  %1699 = vmatpush2.bf16.msra.mxu0 0
  %1700 = vmatprep.subr.bf16.mxu0 0
  %1701 = vmatpush2.bf16.msra.mxu0 0
  %1702 = vmatprep.subr.bf16.mxu0 0
  %1703 = vmatpush2.bf16.msra.mxu0 0
  %1704 = vmatprep.mubr.bf16.mxu0 0
  %1705 = vmatmul.mubr.bf16.gmra.mxu0 %v1670
  %v1706 = vpop.f32.mrf.mxu0
  %v1707 = vadd.f32 0.0, %v1706
  %v1708 = vpop.f32.mrf.mxu0
  %v1709 = vpop.f32.mrf.mxu0
  %v1710 = vpop.f32.mrf.mxu0
  %1711 = vdwg.mxu0
  %v1712 = vadd.f32 %v1655, %v1707
  %1713 = vrot.lane.b32.xlu0 %v1554, 1
  %v1714 = vpop.permute.xlu0 %1713
  %1715 = vrot.lane.b32.xlu0 %v1555, 1
  %v1716 = vpop.permute.xlu0 %1715
  %v1717 = vmul.f32 %v1714, %v355
  %v1718 = vmul.f32 %v1716, %v355
  %s1719 = scalar_lea.vmem %s8, 12
  %v1720 = vld [vmem:[%s1719] sm:$0xf]
  %v1721 = vpack.c.bf16 %v1718, %v1717
  %v1723 = vsel %vm1573, %v1720, 0
  %1725 = vmatprep.subr.bf16.mxu0 0
  %1726 = vmatpush1.bf16.msra.mxu0 0
  %1727 = vmatprep.subr.bf16.mxu0 0
  %1728 = vmatpush1.bf16.msra.mxu0 0
  %1729 = vmatprep.subr.bf16.mxu0 0
  %1730 = vmatpush1.bf16.msra.mxu0 0
  %1731 = vmatprep.subr.bf16.mxu0 0
  %1732 = vmatpush1.bf16.msra.mxu0 0
  %1733 = vmatprep.subr.bf16.mxu0 0
  %1734 = vmatpush1.bf16.msra.mxu0 0
  %1735 = vmatprep.subr.bf16.mxu0 0
  %1736 = vmatpush1.bf16.msra.mxu0 0
  %1737 = vmatprep.subr.bf16.mxu0 0
  %1738 = vmatpush1.bf16.msra.mxu0 0
  %1739 = vmatprep.subr.bf16.mxu0 0
  %1740 = vmatpush1.bf16.msra.mxu0 %v1721
  %1741 = vmatprep.subr.bf16.mxu0 0
  %1742 = vmatpush2.bf16.msra.mxu0 0
  %1743 = vmatprep.subr.bf16.mxu0 0
  %1744 = vmatpush2.bf16.msra.mxu0 0
  %1745 = vmatprep.subr.bf16.mxu0 0
  %1746 = vmatpush2.bf16.msra.mxu0 0
  %1747 = vmatprep.subr.bf16.mxu0 0
  %1748 = vmatpush2.bf16.msra.mxu0 0
  %1749 = vmatprep.subr.bf16.mxu0 0
  %1750 = vmatpush2.bf16.msra.mxu0 0
  %1751 = vmatprep.subr.bf16.mxu0 0
  %1752 = vmatpush2.bf16.msra.mxu0 0
  %1753 = vmatprep.subr.bf16.mxu0 0
  %1754 = vmatpush2.bf16.msra.mxu0 0
  %1755 = vmatprep.subr.bf16.mxu0 0
  %1756 = vmatpush2.bf16.msra.mxu0 0
  %1757 = vmatprep.mubr.bf16.mxu0 0
  %1758 = vmatmul.mubr.bf16.gmra.mxu0 %v1723
  %v1759 = vpop.f32.mrf.mxu0
  %v1760 = vadd.f32 0.0, %v1759
  %v1761 = vpop.f32.mrf.mxu0
  %v1762 = vpop.f32.mrf.mxu0
  %v1763 = vpop.f32.mrf.mxu0
  %1764 = vdwg.mxu0
  %v1765 = vadd.f32 %v1712, %v1760
  %s1766 = scalar_lea.vmem %s8, 16
  %v1767 = vld [vmem:[%s1766] sm:$0xf]
  %v1768 = vpack.c.bf16 %v1555, %v1554
  %v1770 = vsel %vm1573, %v1767, 0
  %1772 = vmatprep.subr.bf16.mxu0 0
  %1773 = vmatpush1.bf16.msra.mxu0 0
  %1774 = vmatprep.subr.bf16.mxu0 0
  %1775 = vmatpush1.bf16.msra.mxu0 0
  %1776 = vmatprep.subr.bf16.mxu0 0
  %1777 = vmatpush1.bf16.msra.mxu0 0
  %1778 = vmatprep.subr.bf16.mxu0 0
  %1779 = vmatpush1.bf16.msra.mxu0 0
  %1780 = vmatprep.subr.bf16.mxu0 0
  %1781 = vmatpush1.bf16.msra.mxu0 0
  %1782 = vmatprep.subr.bf16.mxu0 0
  %1783 = vmatpush1.bf16.msra.mxu0 0
  %1784 = vmatprep.subr.bf16.mxu0 0
  %1785 = vmatpush1.bf16.msra.mxu0 0
  %1786 = vmatprep.subr.bf16.mxu0 0
  %1787 = vmatpush1.bf16.msra.mxu0 %v1768
  %1788 = vmatprep.subr.bf16.mxu0 0
  %1789 = vmatpush2.bf16.msra.mxu0 0
  %1790 = vmatprep.subr.bf16.mxu0 0
  %1791 = vmatpush2.bf16.msra.mxu0 0
  %1792 = vmatprep.subr.bf16.mxu0 0
  %1793 = vmatpush2.bf16.msra.mxu0 0
  %1794 = vmatprep.subr.bf16.mxu0 0
  %1795 = vmatpush2.bf16.msra.mxu0 0
  %1796 = vmatprep.subr.bf16.mxu0 0
  %1797 = vmatpush2.bf16.msra.mxu0 0
  %1798 = vmatprep.subr.bf16.mxu0 0
  %1799 = vmatpush2.bf16.msra.mxu0 0
  %1800 = vmatprep.subr.bf16.mxu0 0
  %1801 = vmatpush2.bf16.msra.mxu0 0
  %1802 = vmatprep.subr.bf16.mxu0 0
  %1803 = vmatpush2.bf16.msra.mxu0 0
  %1804 = vmatprep.mubr.bf16.mxu0 0
  %1805 = vmatmul.mubr.bf16.gmra.mxu0 %v1770
  %v1806 = vpop.f32.mrf.mxu0
  %v1807 = vadd.f32 0.0, %v1806
  %v1808 = vpop.f32.mrf.mxu0
  %v1809 = vpop.f32.mrf.mxu0
  %v1810 = vpop.f32.mrf.mxu0
  %1811 = vdwg.mxu0
  %v1812 = vadd.f32 %v1765, %v1807
  %1813 = vrot.lane.b32.xlu0 %v1554, 127
  %v1814 = vpop.permute.xlu0 %1813
  %1815 = vrot.lane.b32.xlu0 %v1555, 127
  %v1816 = vpop.permute.xlu0 %1815
  %v1817 = vmul.f32 %v1814, %v522
  %v1818 = vmul.f32 %v1816, %v522
  %s1819 = scalar_lea.vmem %s8, 20
  %v1820 = vld [vmem:[%s1819] sm:$0xf]
  %v1821 = vpack.c.bf16 %v1818, %v1817
  %v1823 = vsel %vm1573, %v1820, 0
  %1825 = vmatprep.subr.bf16.mxu0 0
  %1826 = vmatpush1.bf16.msra.mxu0 0
  %1827 = vmatprep.subr.bf16.mxu0 0
  %1828 = vmatpush1.bf16.msra.mxu0 0
  %1829 = vmatprep.subr.bf16.mxu0 0
  %1830 = vmatpush1.bf16.msra.mxu0 0
  %1831 = vmatprep.subr.bf16.mxu0 0
  %1832 = vmatpush1.bf16.msra.mxu0 0
  %1833 = vmatprep.subr.bf16.mxu0 0
  %1834 = vmatpush1.bf16.msra.mxu0 0
  %1835 = vmatprep.subr.bf16.mxu0 0
  %1836 = vmatpush1.bf16.msra.mxu0 0
  %1837 = vmatprep.subr.bf16.mxu0 0
  %1838 = vmatpush1.bf16.msra.mxu0 0
  %1839 = vmatprep.subr.bf16.mxu0 0
  %1840 = vmatpush1.bf16.msra.mxu0 %v1821
  %1841 = vmatprep.subr.bf16.mxu0 0
  %1842 = vmatpush2.bf16.msra.mxu0 0
  %1843 = vmatprep.subr.bf16.mxu0 0
  %1844 = vmatpush2.bf16.msra.mxu0 0
  %1845 = vmatprep.subr.bf16.mxu0 0
  %1846 = vmatpush2.bf16.msra.mxu0 0
  %1847 = vmatprep.subr.bf16.mxu0 0
  %1848 = vmatpush2.bf16.msra.mxu0 0
  %1849 = vmatprep.subr.bf16.mxu0 0
  %1850 = vmatpush2.bf16.msra.mxu0 0
  %1851 = vmatprep.subr.bf16.mxu0 0
  %1852 = vmatpush2.bf16.msra.mxu0 0
  %1853 = vmatprep.subr.bf16.mxu0 0
  %1854 = vmatpush2.bf16.msra.mxu0 0
  %1855 = vmatprep.subr.bf16.mxu0 0
  %1856 = vmatpush2.bf16.msra.mxu0 0
  %1857 = vmatprep.mubr.bf16.mxu0 0
  %1858 = vmatmul.mubr.bf16.gmra.mxu0 %v1823
  %v1859 = vpop.f32.mrf.mxu0
  %v1860 = vadd.f32 0.0, %v1859
  %v1861 = vpop.f32.mrf.mxu0
  %v1862 = vpop.f32.mrf.mxu0
  %v1863 = vpop.f32.mrf.mxu0
  %1864 = vdwg.mxu0
  %v1865 = vadd.f32 %v1812, %v1860
  %1866 = vrot.lane.b32.xlu0 %v1554, 121
  %v1867 = vpop.permute.xlu0 %1866
  %1868 = vrot.lane.b32.xlu0 %v1555, 121
  %v1869 = vpop.permute.xlu0 %1868
  %v1870 = vmul.f32 %v1867, %v611
  %v1871 = vmul.f32 %v1869, %v611
  %s1872 = scalar_lea.vmem %s8, 24
  %v1873 = vld [vmem:[%s1872] sm:$0xf]
  %v1874 = vpack.c.bf16 %v1871, %v1870
  %v1876 = vsel %vm1573, %v1873, 0
  %1878 = vmatprep.subr.bf16.mxu0 0
  %1879 = vmatpush1.bf16.msra.mxu0 0
  %1880 = vmatprep.subr.bf16.mxu0 0
  %1881 = vmatpush1.bf16.msra.mxu0 0
  %1882 = vmatprep.subr.bf16.mxu0 0
  %1883 = vmatpush1.bf16.msra.mxu0 0
  %1884 = vmatprep.subr.bf16.mxu0 0
  %1885 = vmatpush1.bf16.msra.mxu0 0
  %1886 = vmatprep.subr.bf16.mxu0 0
  %1887 = vmatpush1.bf16.msra.mxu0 0
  %1888 = vmatprep.subr.bf16.mxu0 0
  %1889 = vmatpush1.bf16.msra.mxu0 0
  %1890 = vmatprep.subr.bf16.mxu0 0
  %1891 = vmatpush1.bf16.msra.mxu0 0
  %1892 = vmatprep.subr.bf16.mxu0 0
  %1893 = vmatpush1.bf16.msra.mxu0 %v1874
  %1894 = vmatprep.subr.bf16.mxu0 0
  %1895 = vmatpush2.bf16.msra.mxu0 0
  %1896 = vmatprep.subr.bf16.mxu0 0
  %1897 = vmatpush2.bf16.msra.mxu0 0
  %1898 = vmatprep.subr.bf16.mxu0 0
  %1899 = vmatpush2.bf16.msra.mxu0 0
  %1900 = vmatprep.subr.bf16.mxu0 0
  %1901 = vmatpush2.bf16.msra.mxu0 0
  %1902 = vmatprep.subr.bf16.mxu0 0
  %1903 = vmatpush2.bf16.msra.mxu0 0
  %1904 = vmatprep.subr.bf16.mxu0 0
  %1905 = vmatpush2.bf16.msra.mxu0 0
  %1906 = vmatprep.subr.bf16.mxu0 0
  %1907 = vmatpush2.bf16.msra.mxu0 0
  %1908 = vmatprep.subr.bf16.mxu0 0
  %1909 = vmatpush2.bf16.msra.mxu0 0
  %1910 = vmatprep.mubr.bf16.mxu0 0
  %1911 = vmatmul.mubr.bf16.gmra.mxu0 %v1876
  %v1912 = vpop.f32.mrf.mxu0
  %v1913 = vadd.f32 0.0, %v1912
  %v1914 = vpop.f32.mrf.mxu0
  %v1915 = vpop.f32.mrf.mxu0
  %v1916 = vpop.f32.mrf.mxu0
  %1917 = vdwg.mxu0
  %v1918 = vadd.f32 %v1865, %v1913
  %1919 = vrot.lane.b32.xlu0 %v1554, 120
  %v1920 = vpop.permute.xlu0 %1919
  %1921 = vrot.lane.b32.xlu0 %v1555, 120
  %v1922 = vpop.permute.xlu0 %1921
  %v1923 = vmul.f32 %v1920, %v700
  %v1924 = vmul.f32 %v1922, %v700
  %s1925 = scalar_lea.vmem %s8, 28
  %v1926 = vld [vmem:[%s1925] sm:$0xf]
  %v1927 = vpack.c.bf16 %v1924, %v1923
  %v1929 = vsel %vm1573, %v1926, 0
  %1931 = vmatprep.subr.bf16.mxu0 0
  %1932 = vmatpush1.bf16.msra.mxu0 0
  %1933 = vmatprep.subr.bf16.mxu0 0
  %1934 = vmatpush1.bf16.msra.mxu0 0
  %1935 = vmatprep.subr.bf16.mxu0 0
  %1936 = vmatpush1.bf16.msra.mxu0 0
  %1937 = vmatprep.subr.bf16.mxu0 0
  %1938 = vmatpush1.bf16.msra.mxu0 0
  %1939 = vmatprep.subr.bf16.mxu0 0
  %1940 = vmatpush1.bf16.msra.mxu0 0
  %1941 = vmatprep.subr.bf16.mxu0 0
  %1942 = vmatpush1.bf16.msra.mxu0 0
  %1943 = vmatprep.subr.bf16.mxu0 0
  %1944 = vmatpush1.bf16.msra.mxu0 0
  %1945 = vmatprep.subr.bf16.mxu0 0
  %1946 = vmatpush1.bf16.msra.mxu0 %v1927
  %1947 = vmatprep.subr.bf16.mxu0 0
  %1948 = vmatpush2.bf16.msra.mxu0 0
  %1949 = vmatprep.subr.bf16.mxu0 0
  %1950 = vmatpush2.bf16.msra.mxu0 0
  %1951 = vmatprep.subr.bf16.mxu0 0
  %1952 = vmatpush2.bf16.msra.mxu0 0
  %1953 = vmatprep.subr.bf16.mxu0 0
  %1954 = vmatpush2.bf16.msra.mxu0 0
  %1955 = vmatprep.subr.bf16.mxu0 0
  %1956 = vmatpush2.bf16.msra.mxu0 0
  %1957 = vmatprep.subr.bf16.mxu0 0
  %1958 = vmatpush2.bf16.msra.mxu0 0
  %1959 = vmatprep.subr.bf16.mxu0 0
  %1960 = vmatpush2.bf16.msra.mxu0 0
  %1961 = vmatprep.subr.bf16.mxu0 0
  %1962 = vmatpush2.bf16.msra.mxu0 0
  %1963 = vmatprep.mubr.bf16.mxu0 0
  %1964 = vmatmul.mubr.bf16.gmra.mxu0 %v1929
  %v1965 = vpop.f32.mrf.mxu0
  %v1966 = vadd.f32 0.0, %v1965
  %v1967 = vpop.f32.mrf.mxu0
  %v1968 = vpop.f32.mrf.mxu0
  %v1969 = vpop.f32.mrf.mxu0
  %1970 = vdwg.mxu0
  %v1971 = vadd.f32 %v1918, %v1966
  %1972 = vrot.lane.b32.xlu0 %v1554, 119
  %v1973 = vpop.permute.xlu0 %1972
  %1974 = vrot.lane.b32.xlu0 %v1555, 119
  %v1975 = vpop.permute.xlu0 %1974
  %v1976 = vmul.f32 %v1973, %v789
  %v1977 = vmul.f32 %v1975, %v789
  %s1978 = scalar_lea.vmem %s8, 32
  %v1979 = vld [vmem:[%s1978] sm:$0xf]
  %v1980 = vpack.c.bf16 %v1977, %v1976
  %v1982 = vsel %vm1573, %v1979, 0
  %1984 = vmatprep.subr.bf16.mxu0 0
  %1985 = vmatpush1.bf16.msra.mxu0 0
  %1986 = vmatprep.subr.bf16.mxu0 0
  %1987 = vmatpush1.bf16.msra.mxu0 0
  %1988 = vmatprep.subr.bf16.mxu0 0
  %1989 = vmatpush1.bf16.msra.mxu0 0
  %1990 = vmatprep.subr.bf16.mxu0 0
  %1991 = vmatpush1.bf16.msra.mxu0 0
  %1992 = vmatprep.subr.bf16.mxu0 0
  %1993 = vmatpush1.bf16.msra.mxu0 0
  %1994 = vmatprep.subr.bf16.mxu0 0
  %1995 = vmatpush1.bf16.msra.mxu0 0
  %1996 = vmatprep.subr.bf16.mxu0 0
  %1997 = vmatpush1.bf16.msra.mxu0 0
  %1998 = vmatprep.subr.bf16.mxu0 0
  %1999 = vmatpush1.bf16.msra.mxu0 %v1980
  %2000 = vmatprep.subr.bf16.mxu0 0
  %2001 = vmatpush2.bf16.msra.mxu0 0
  %2002 = vmatprep.subr.bf16.mxu0 0
  %2003 = vmatpush2.bf16.msra.mxu0 0
  %2004 = vmatprep.subr.bf16.mxu0 0
  %2005 = vmatpush2.bf16.msra.mxu0 0
  %2006 = vmatprep.subr.bf16.mxu0 0
  %2007 = vmatpush2.bf16.msra.mxu0 0
  %2008 = vmatprep.subr.bf16.mxu0 0
  %2009 = vmatpush2.bf16.msra.mxu0 0
  %2010 = vmatprep.subr.bf16.mxu0 0
  %2011 = vmatpush2.bf16.msra.mxu0 0
  %2012 = vmatprep.subr.bf16.mxu0 0
  %2013 = vmatpush2.bf16.msra.mxu0 0
  %2014 = vmatprep.subr.bf16.mxu0 0
  %2015 = vmatpush2.bf16.msra.mxu0 0
  %2016 = vmatprep.mubr.bf16.mxu0 0
  %2017 = vmatmul.mubr.bf16.gmra.mxu0 %v1982
  %v2018 = vpop.f32.mrf.mxu0
  %v2019 = vadd.f32 0.0, %v2018
  %v2020 = vpop.f32.mrf.mxu0
  %v2021 = vpop.f32.mrf.mxu0
  %v2022 = vpop.f32.mrf.mxu0
  %2023 = vdwg.mxu0
  %v2024 = vadd.f32 %v1971, %v2019
  %v2025 = vld [vmem:[%s9] sm:$0xff]
  %2027 = vset.pattern.permute.xlu0 0
  %2028 = vperm.xlu0 %2027, %v2025
  %v2029 = vpop.permute.xlu0 %2028
  %v2031 = vmul.f32 %v2024, %v2029
  %v2032 = vld [vmem:[%s10] sm:$0xff]
  %2034 = vset.pattern.permute.xlu0 0
  %2035 = vperm.xlu0 %2034, %v2032
  %v2036 = vpop.permute.xlu0 %2035
  %v2038 = vadd.f32 %v2031, %v2036
  %v2039 = vmax.f32 %v2038, 0.0
  %2040 = vrot.lane.b32.xlu0 %v2039, 9
  %v2041 = vpop.permute.xlu0 %2040
  %v2042 = vmul.f32 %v2041, %v95
  %v2043 = vld [vmem:[%s11] sm:$0x3]
  %v2044 = vpack.c.bf16 %v2042, %v2042
  %2045 = vrot.lane.b32.xlu0 %v2039, 8
  %v2046 = vpop.permute.xlu0 %2045
  %v2047 = vmul.f32 %v2046, %v111
  %s2048 = scalar_lea.vmem %s11, 2
  %v2049 = vld [vmem:[%s2048] sm:$0x3]
  %v2050 = vpack.c.bf16 %v2047, %v2047
  %v2052 = vsel %vm130, %v2049, 0
  %v2055 = vsel %vm137, %v2050, 0
  %2057 = vmatprep.subr.bf16.mxu0 0
  %2058 = vmatpush1.bf16.msra.mxu0 0
  %2059 = vmatprep.subr.bf16.mxu0 0
  %2060 = vmatpush1.bf16.msra.mxu0 0
  %2061 = vmatprep.subr.bf16.mxu0 0
  %2062 = vmatpush1.bf16.msra.mxu0 0
  %2063 = vmatprep.subr.bf16.mxu0 0
  %2064 = vmatpush1.bf16.msra.mxu0 0
  %2065 = vmatprep.subr.bf16.mxu0 0
  %2066 = vmatpush1.bf16.msra.mxu0 0
  %2067 = vmatprep.subr.bf16.mxu0 0
  %2068 = vmatpush1.bf16.msra.mxu0 0
  %2069 = vmatprep.subr.bf16.mxu0 0
  %2070 = vmatpush1.bf16.msra.mxu0 0
  %2071 = vmatprep.subr.bf16.mxu0 0
  %2072 = vmatpush1.bf16.msra.mxu0 %v2055
  %2073 = vmatprep.subr.bf16.mxu0 0
  %2074 = vmatpush2.bf16.msra.mxu0 0
  %2075 = vmatprep.subr.bf16.mxu0 0
  %2076 = vmatpush2.bf16.msra.mxu0 0
  %2077 = vmatprep.subr.bf16.mxu0 0
  %2078 = vmatpush2.bf16.msra.mxu0 0
  %2079 = vmatprep.subr.bf16.mxu0 0
  %2080 = vmatpush2.bf16.msra.mxu0 0
  %2081 = vmatprep.subr.bf16.mxu0 0
  %2082 = vmatpush2.bf16.msra.mxu0 0
  %2083 = vmatprep.subr.bf16.mxu0 0
  %2084 = vmatpush2.bf16.msra.mxu0 0
  %2085 = vmatprep.subr.bf16.mxu0 0
  %2086 = vmatpush2.bf16.msra.mxu0 0
  %2087 = vmatprep.subr.bf16.mxu0 0
  %2088 = vmatpush2.bf16.msra.mxu0 0
  %2089 = vmatprep.mubr.bf16.mxu0 0
  %2090 = vmatmul.mubr.bf16.gmra.mxu0 %v2052
  %v2091 = vpop.f32.mrf.mxu0
  %v2092 = vadd.f32 0.0, %v2091
  %v2093 = vpop.f32.mrf.mxu0
  %v2094 = vpop.f32.mrf.mxu0
  %v2095 = vpop.f32.mrf.mxu0
  %2096 = vdwg.mxu0
  %v2098 = vsel %vm130, %v2043, 0
  %v2101 = vsel %vm137, %v2044, 0
  %2103 = vmatprep.subr.bf16.mxu0 0
  %2104 = vmatpush1.bf16.msra.mxu0 0
  %2105 = vmatprep.subr.bf16.mxu0 0
  %2106 = vmatpush1.bf16.msra.mxu0 0
  %2107 = vmatprep.subr.bf16.mxu0 0
  %2108 = vmatpush1.bf16.msra.mxu0 0
  %2109 = vmatprep.subr.bf16.mxu0 0
  %2110 = vmatpush1.bf16.msra.mxu0 0
  %2111 = vmatprep.subr.bf16.mxu0 0
  %2112 = vmatpush1.bf16.msra.mxu0 0
  %2113 = vmatprep.subr.bf16.mxu0 0
  %2114 = vmatpush1.bf16.msra.mxu0 0
  %2115 = vmatprep.subr.bf16.mxu0 0
  %2116 = vmatpush1.bf16.msra.mxu0 0
  %2117 = vmatprep.subr.bf16.mxu0 0
  %2118 = vmatpush1.bf16.msra.mxu0 %v2101
  %2119 = vmatprep.subr.bf16.mxu0 0
  %2120 = vmatpush2.bf16.msra.mxu0 0
  %2121 = vmatprep.subr.bf16.mxu0 0
  %2122 = vmatpush2.bf16.msra.mxu0 0
  %2123 = vmatprep.subr.bf16.mxu0 0
  %2124 = vmatpush2.bf16.msra.mxu0 0
  %2125 = vmatprep.subr.bf16.mxu0 0
  %2126 = vmatpush2.bf16.msra.mxu0 0
  %2127 = vmatprep.subr.bf16.mxu0 0
  %2128 = vmatpush2.bf16.msra.mxu0 0
  %2129 = vmatprep.subr.bf16.mxu0 0
  %2130 = vmatpush2.bf16.msra.mxu0 0
  %2131 = vmatprep.subr.bf16.mxu0 0
  %2132 = vmatpush2.bf16.msra.mxu0 0
  %2133 = vmatprep.subr.bf16.mxu0 0
  %2134 = vmatpush2.bf16.msra.mxu0 0
  %2135 = vmatprep.mubr.bf16.mxu0 0
  %2136 = vmatmul.mubr.bf16.gmra.mxu0 %v2098
  %v2137 = vpop.f32.mrf.mxu0
  %v2138 = vadd.f32 %v2092, %v2137
  %v2139 = vpop.f32.mrf.mxu0
  %v2140 = vpop.f32.mrf.mxu0
  %v2141 = vpop.f32.mrf.mxu0
  %2142 = vdwg.mxu0
  %2143 = vrot.lane.b32.xlu0 %v2039, 7
  %v2144 = vpop.permute.xlu0 %2143
  %v2145 = vmul.f32 %v2144, %v266
  %s2146 = scalar_lea.vmem %s11, 4
  %v2147 = vld [vmem:[%s2146] sm:$0x3]
  %v2148 = vpack.c.bf16 %v2145, %v2145
  %v2150 = vsel %vm130, %v2147, 0
  %v2153 = vsel %vm137, %v2148, 0
  %2155 = vmatprep.subr.bf16.mxu0 0
  %2156 = vmatpush1.bf16.msra.mxu0 0
  %2157 = vmatprep.subr.bf16.mxu0 0
  %2158 = vmatpush1.bf16.msra.mxu0 0
  %2159 = vmatprep.subr.bf16.mxu0 0
  %2160 = vmatpush1.bf16.msra.mxu0 0
  %2161 = vmatprep.subr.bf16.mxu0 0
  %2162 = vmatpush1.bf16.msra.mxu0 0
  %2163 = vmatprep.subr.bf16.mxu0 0
  %2164 = vmatpush1.bf16.msra.mxu0 0
  %2165 = vmatprep.subr.bf16.mxu0 0
  %2166 = vmatpush1.bf16.msra.mxu0 0
  %2167 = vmatprep.subr.bf16.mxu0 0
  %2168 = vmatpush1.bf16.msra.mxu0 0
  %2169 = vmatprep.subr.bf16.mxu0 0
  %2170 = vmatpush1.bf16.msra.mxu0 %v2153
  %2171 = vmatprep.subr.bf16.mxu0 0
  %2172 = vmatpush2.bf16.msra.mxu0 0
  %2173 = vmatprep.subr.bf16.mxu0 0
  %2174 = vmatpush2.bf16.msra.mxu0 0
  %2175 = vmatprep.subr.bf16.mxu0 0
  %2176 = vmatpush2.bf16.msra.mxu0 0
  %2177 = vmatprep.subr.bf16.mxu0 0
  %2178 = vmatpush2.bf16.msra.mxu0 0
  %2179 = vmatprep.subr.bf16.mxu0 0
  %2180 = vmatpush2.bf16.msra.mxu0 0
  %2181 = vmatprep.subr.bf16.mxu0 0
  %2182 = vmatpush2.bf16.msra.mxu0 0
  %2183 = vmatprep.subr.bf16.mxu0 0
  %2184 = vmatpush2.bf16.msra.mxu0 0
  %2185 = vmatprep.subr.bf16.mxu0 0
  %2186 = vmatpush2.bf16.msra.mxu0 0
  %2187 = vmatprep.mubr.bf16.mxu0 0
  %2188 = vmatmul.mubr.bf16.gmra.mxu0 %v2150
  %v2189 = vpop.f32.mrf.mxu0
  %v2190 = vadd.f32 0.0, %v2189
  %v2191 = vpop.f32.mrf.mxu0
  %v2192 = vpop.f32.mrf.mxu0
  %v2193 = vpop.f32.mrf.mxu0
  %2194 = vdwg.mxu0
  %v2195 = vadd.f32 %v2138, %v2190
  %2196 = vrot.lane.b32.xlu0 %v2039, 1
  %v2197 = vpop.permute.xlu0 %2196
  %v2198 = vmul.f32 %v2197, %v355
  %s2199 = scalar_lea.vmem %s11, 6
  %v2200 = vld [vmem:[%s2199] sm:$0x3]
  %v2201 = vpack.c.bf16 %v2198, %v2198
  %v2203 = vsel %vm130, %v2200, 0
  %v2206 = vsel %vm137, %v2201, 0
  %2208 = vmatprep.subr.bf16.mxu0 0
  %2209 = vmatpush1.bf16.msra.mxu0 0
  %2210 = vmatprep.subr.bf16.mxu0 0
  %2211 = vmatpush1.bf16.msra.mxu0 0
  %2212 = vmatprep.subr.bf16.mxu0 0
  %2213 = vmatpush1.bf16.msra.mxu0 0
  %2214 = vmatprep.subr.bf16.mxu0 0
  %2215 = vmatpush1.bf16.msra.mxu0 0
  %2216 = vmatprep.subr.bf16.mxu0 0
  %2217 = vmatpush1.bf16.msra.mxu0 0
  %2218 = vmatprep.subr.bf16.mxu0 0
  %2219 = vmatpush1.bf16.msra.mxu0 0
  %2220 = vmatprep.subr.bf16.mxu0 0
  %2221 = vmatpush1.bf16.msra.mxu0 0
  %2222 = vmatprep.subr.bf16.mxu0 0
  %2223 = vmatpush1.bf16.msra.mxu0 %v2206
  %2224 = vmatprep.subr.bf16.mxu0 0
  %2225 = vmatpush2.bf16.msra.mxu0 0
  %2226 = vmatprep.subr.bf16.mxu0 0
  %2227 = vmatpush2.bf16.msra.mxu0 0
  %2228 = vmatprep.subr.bf16.mxu0 0
  %2229 = vmatpush2.bf16.msra.mxu0 0
  %2230 = vmatprep.subr.bf16.mxu0 0
  %2231 = vmatpush2.bf16.msra.mxu0 0
  %2232 = vmatprep.subr.bf16.mxu0 0
  %2233 = vmatpush2.bf16.msra.mxu0 0
  %2234 = vmatprep.subr.bf16.mxu0 0
  %2235 = vmatpush2.bf16.msra.mxu0 0
  %2236 = vmatprep.subr.bf16.mxu0 0
  %2237 = vmatpush2.bf16.msra.mxu0 0
  %2238 = vmatprep.subr.bf16.mxu0 0
  %2239 = vmatpush2.bf16.msra.mxu0 0
  %2240 = vmatprep.mubr.bf16.mxu0 0
  %2241 = vmatmul.mubr.bf16.gmra.mxu0 %v2203
  %v2242 = vpop.f32.mrf.mxu0
  %v2243 = vadd.f32 0.0, %v2242
  %v2244 = vpop.f32.mrf.mxu0
  %v2245 = vpop.f32.mrf.mxu0
  %v2246 = vpop.f32.mrf.mxu0
  %2247 = vdwg.mxu0
  %v2248 = vadd.f32 %v2195, %v2243
  %s2249 = scalar_lea.vmem %s11, 8
  %v2250 = vld [vmem:[%s2249] sm:$0x3]
  %v2251 = vpack.c.bf16 %v2039, %v2039
  %v2253 = vsel %vm130, %v2250, 0
  %v2256 = vsel %vm137, %v2251, 0
  %2258 = vmatprep.subr.bf16.mxu0 0
  %2259 = vmatpush1.bf16.msra.mxu0 0
  %2260 = vmatprep.subr.bf16.mxu0 0
  %2261 = vmatpush1.bf16.msra.mxu0 0
  %2262 = vmatprep.subr.bf16.mxu0 0
  %2263 = vmatpush1.bf16.msra.mxu0 0
  %2264 = vmatprep.subr.bf16.mxu0 0
  %2265 = vmatpush1.bf16.msra.mxu0 0
  %2266 = vmatprep.subr.bf16.mxu0 0
  %2267 = vmatpush1.bf16.msra.mxu0 0
  %2268 = vmatprep.subr.bf16.mxu0 0
  %2269 = vmatpush1.bf16.msra.mxu0 0
  %2270 = vmatprep.subr.bf16.mxu0 0
  %2271 = vmatpush1.bf16.msra.mxu0 0
  %2272 = vmatprep.subr.bf16.mxu0 0
  %2273 = vmatpush1.bf16.msra.mxu0 %v2256
  %2274 = vmatprep.subr.bf16.mxu0 0
  %2275 = vmatpush2.bf16.msra.mxu0 0
  %2276 = vmatprep.subr.bf16.mxu0 0
  %2277 = vmatpush2.bf16.msra.mxu0 0
  %2278 = vmatprep.subr.bf16.mxu0 0
  %2279 = vmatpush2.bf16.msra.mxu0 0
  %2280 = vmatprep.subr.bf16.mxu0 0
  %2281 = vmatpush2.bf16.msra.mxu0 0
  %2282 = vmatprep.subr.bf16.mxu0 0
  %2283 = vmatpush2.bf16.msra.mxu0 0
  %2284 = vmatprep.subr.bf16.mxu0 0
  %2285 = vmatpush2.bf16.msra.mxu0 0
  %2286 = vmatprep.subr.bf16.mxu0 0
  %2287 = vmatpush2.bf16.msra.mxu0 0
  %2288 = vmatprep.subr.bf16.mxu0 0
  %2289 = vmatpush2.bf16.msra.mxu0 0
  %2290 = vmatprep.mubr.bf16.mxu0 0
  %2291 = vmatmul.mubr.bf16.gmra.mxu0 %v2253
  %v2292 = vpop.f32.mrf.mxu0
  %v2293 = vadd.f32 0.0, %v2292
  %v2294 = vpop.f32.mrf.mxu0
  %v2295 = vpop.f32.mrf.mxu0
  %v2296 = vpop.f32.mrf.mxu0
  %2297 = vdwg.mxu0
  %v2298 = vadd.f32 %v2248, %v2293
  %2299 = vrot.lane.b32.xlu0 %v2039, 127
  %v2300 = vpop.permute.xlu0 %2299
  %v2301 = vmul.f32 %v2300, %v522
  %s2302 = scalar_lea.vmem %s11, 10
  %v2303 = vld [vmem:[%s2302] sm:$0x3]
  %v2304 = vpack.c.bf16 %v2301, %v2301
  %v2306 = vsel %vm130, %v2303, 0
  %v2309 = vsel %vm137, %v2304, 0
  %2311 = vmatprep.subr.bf16.mxu0 0
  %2312 = vmatpush1.bf16.msra.mxu0 0
  %2313 = vmatprep.subr.bf16.mxu0 0
  %2314 = vmatpush1.bf16.msra.mxu0 0
  %2315 = vmatprep.subr.bf16.mxu0 0
  %2316 = vmatpush1.bf16.msra.mxu0 0
  %2317 = vmatprep.subr.bf16.mxu0 0
  %2318 = vmatpush1.bf16.msra.mxu0 0
  %2319 = vmatprep.subr.bf16.mxu0 0
  %2320 = vmatpush1.bf16.msra.mxu0 0
  %2321 = vmatprep.subr.bf16.mxu0 0
  %2322 = vmatpush1.bf16.msra.mxu0 0
  %2323 = vmatprep.subr.bf16.mxu0 0
  %2324 = vmatpush1.bf16.msra.mxu0 0
  %2325 = vmatprep.subr.bf16.mxu0 0
  %2326 = vmatpush1.bf16.msra.mxu0 %v2309
  %2327 = vmatprep.subr.bf16.mxu0 0
  %2328 = vmatpush2.bf16.msra.mxu0 0
  %2329 = vmatprep.subr.bf16.mxu0 0
  %2330 = vmatpush2.bf16.msra.mxu0 0
  %2331 = vmatprep.subr.bf16.mxu0 0
  %2332 = vmatpush2.bf16.msra.mxu0 0
  %2333 = vmatprep.subr.bf16.mxu0 0
  %2334 = vmatpush2.bf16.msra.mxu0 0
  %2335 = vmatprep.subr.bf16.mxu0 0
  %2336 = vmatpush2.bf16.msra.mxu0 0
  %2337 = vmatprep.subr.bf16.mxu0 0
  %2338 = vmatpush2.bf16.msra.mxu0 0
  %2339 = vmatprep.subr.bf16.mxu0 0
  %2340 = vmatpush2.bf16.msra.mxu0 0
  %2341 = vmatprep.subr.bf16.mxu0 0
  %2342 = vmatpush2.bf16.msra.mxu0 0
  %2343 = vmatprep.mubr.bf16.mxu0 0
  %2344 = vmatmul.mubr.bf16.gmra.mxu0 %v2306
  %v2345 = vpop.f32.mrf.mxu0
  %v2346 = vadd.f32 0.0, %v2345
  %v2347 = vpop.f32.mrf.mxu0
  %v2348 = vpop.f32.mrf.mxu0
  %v2349 = vpop.f32.mrf.mxu0
  %2350 = vdwg.mxu0
  %v2351 = vadd.f32 %v2298, %v2346
  %2352 = vrot.lane.b32.xlu0 %v2039, 121
  %v2353 = vpop.permute.xlu0 %2352
  %v2354 = vmul.f32 %v2353, %v611
  %s2355 = scalar_lea.vmem %s11, 12
  %v2356 = vld [vmem:[%s2355] sm:$0x3]
  %v2357 = vpack.c.bf16 %v2354, %v2354
  %v2359 = vsel %vm130, %v2356, 0
  %v2362 = vsel %vm137, %v2357, 0
  %2364 = vmatprep.subr.bf16.mxu0 0
  %2365 = vmatpush1.bf16.msra.mxu0 0
  %2366 = vmatprep.subr.bf16.mxu0 0
  %2367 = vmatpush1.bf16.msra.mxu0 0
  %2368 = vmatprep.subr.bf16.mxu0 0
  %2369 = vmatpush1.bf16.msra.mxu0 0
  %2370 = vmatprep.subr.bf16.mxu0 0
  %2371 = vmatpush1.bf16.msra.mxu0 0
  %2372 = vmatprep.subr.bf16.mxu0 0
  %2373 = vmatpush1.bf16.msra.mxu0 0
  %2374 = vmatprep.subr.bf16.mxu0 0
  %2375 = vmatpush1.bf16.msra.mxu0 0
  %2376 = vmatprep.subr.bf16.mxu0 0
  %2377 = vmatpush1.bf16.msra.mxu0 0
  %2378 = vmatprep.subr.bf16.mxu0 0
  %2379 = vmatpush1.bf16.msra.mxu0 %v2362
  %2380 = vmatprep.subr.bf16.mxu0 0
  %2381 = vmatpush2.bf16.msra.mxu0 0
  %2382 = vmatprep.subr.bf16.mxu0 0
  %2383 = vmatpush2.bf16.msra.mxu0 0
  %2384 = vmatprep.subr.bf16.mxu0 0
  %2385 = vmatpush2.bf16.msra.mxu0 0
  %2386 = vmatprep.subr.bf16.mxu0 0
  %2387 = vmatpush2.bf16.msra.mxu0 0
  %2388 = vmatprep.subr.bf16.mxu0 0
  %2389 = vmatpush2.bf16.msra.mxu0 0
  %2390 = vmatprep.subr.bf16.mxu0 0
  %2391 = vmatpush2.bf16.msra.mxu0 0
  %2392 = vmatprep.subr.bf16.mxu0 0
  %2393 = vmatpush2.bf16.msra.mxu0 0
  %2394 = vmatprep.subr.bf16.mxu0 0
  %2395 = vmatpush2.bf16.msra.mxu0 0
  %2396 = vmatprep.mubr.bf16.mxu0 0
  %2397 = vmatmul.mubr.bf16.gmra.mxu0 %v2359
  %v2398 = vpop.f32.mrf.mxu0
  %v2399 = vadd.f32 0.0, %v2398
  %v2400 = vpop.f32.mrf.mxu0
  %v2401 = vpop.f32.mrf.mxu0
  %v2402 = vpop.f32.mrf.mxu0
  %2403 = vdwg.mxu0
  %v2404 = vadd.f32 %v2351, %v2399
  %2405 = vrot.lane.b32.xlu0 %v2039, 120
  %v2406 = vpop.permute.xlu0 %2405
  %v2407 = vmul.f32 %v2406, %v700
  %s2408 = scalar_lea.vmem %s11, 14
  %v2409 = vld [vmem:[%s2408] sm:$0x3]
  %v2410 = vpack.c.bf16 %v2407, %v2407
  %v2412 = vsel %vm130, %v2409, 0
  %v2415 = vsel %vm137, %v2410, 0
  %2417 = vmatprep.subr.bf16.mxu0 0
  %2418 = vmatpush1.bf16.msra.mxu0 0
  %2419 = vmatprep.subr.bf16.mxu0 0
  %2420 = vmatpush1.bf16.msra.mxu0 0
  %2421 = vmatprep.subr.bf16.mxu0 0
  %2422 = vmatpush1.bf16.msra.mxu0 0
  %2423 = vmatprep.subr.bf16.mxu0 0
  %2424 = vmatpush1.bf16.msra.mxu0 0
  %2425 = vmatprep.subr.bf16.mxu0 0
  %2426 = vmatpush1.bf16.msra.mxu0 0
  %2427 = vmatprep.subr.bf16.mxu0 0
  %2428 = vmatpush1.bf16.msra.mxu0 0
  %2429 = vmatprep.subr.bf16.mxu0 0
  %2430 = vmatpush1.bf16.msra.mxu0 0
  %2431 = vmatprep.subr.bf16.mxu0 0
  %2432 = vmatpush1.bf16.msra.mxu0 %v2415
  %2433 = vmatprep.subr.bf16.mxu0 0
  %2434 = vmatpush2.bf16.msra.mxu0 0
  %2435 = vmatprep.subr.bf16.mxu0 0
  %2436 = vmatpush2.bf16.msra.mxu0 0
  %2437 = vmatprep.subr.bf16.mxu0 0
  %2438 = vmatpush2.bf16.msra.mxu0 0
  %2439 = vmatprep.subr.bf16.mxu0 0
  %2440 = vmatpush2.bf16.msra.mxu0 0
  %2441 = vmatprep.subr.bf16.mxu0 0
  %2442 = vmatpush2.bf16.msra.mxu0 0
  %2443 = vmatprep.subr.bf16.mxu0 0
  %2444 = vmatpush2.bf16.msra.mxu0 0
  %2445 = vmatprep.subr.bf16.mxu0 0
  %2446 = vmatpush2.bf16.msra.mxu0 0
  %2447 = vmatprep.subr.bf16.mxu0 0
  %2448 = vmatpush2.bf16.msra.mxu0 0
  %2449 = vmatprep.mubr.bf16.mxu0 0
  %2450 = vmatmul.mubr.bf16.gmra.mxu0 %v2412
  %v2451 = vpop.f32.mrf.mxu0
  %v2452 = vadd.f32 0.0, %v2451
  %v2453 = vpop.f32.mrf.mxu0
  %v2454 = vpop.f32.mrf.mxu0
  %v2455 = vpop.f32.mrf.mxu0
  %2456 = vdwg.mxu0
  %v2457 = vadd.f32 %v2404, %v2452
  %2458 = vrot.lane.b32.xlu0 %v2039, 119
  %v2459 = vpop.permute.xlu0 %2458
  %v2460 = vmul.f32 %v2459, %v789
  %s2461 = scalar_lea.vmem %s11, 16
  %v2462 = vld [vmem:[%s2461] sm:$0x3]
  %v2463 = vpack.c.bf16 %v2460, %v2460
  %v2465 = vsel %vm130, %v2462, 0
  %v2468 = vsel %vm137, %v2463, 0
  %2470 = vmatprep.subr.bf16.mxu0 0
  %2471 = vmatpush1.bf16.msra.mxu0 0
  %2472 = vmatprep.subr.bf16.mxu0 0
  %2473 = vmatpush1.bf16.msra.mxu0 0
  %2474 = vmatprep.subr.bf16.mxu0 0
  %2475 = vmatpush1.bf16.msra.mxu0 0
  %2476 = vmatprep.subr.bf16.mxu0 0
  %2477 = vmatpush1.bf16.msra.mxu0 0
  %2478 = vmatprep.subr.bf16.mxu0 0
  %2479 = vmatpush1.bf16.msra.mxu0 0
  %2480 = vmatprep.subr.bf16.mxu0 0
  %2481 = vmatpush1.bf16.msra.mxu0 0
  %2482 = vmatprep.subr.bf16.mxu0 0
  %2483 = vmatpush1.bf16.msra.mxu0 0
  %2484 = vmatprep.subr.bf16.mxu0 0
  %2485 = vmatpush1.bf16.msra.mxu0 %v2468
  %2486 = vmatprep.subr.bf16.mxu0 0
  %2487 = vmatpush2.bf16.msra.mxu0 0
  %2488 = vmatprep.subr.bf16.mxu0 0
  %2489 = vmatpush2.bf16.msra.mxu0 0
  %2490 = vmatprep.subr.bf16.mxu0 0
  %2491 = vmatpush2.bf16.msra.mxu0 0
  %2492 = vmatprep.subr.bf16.mxu0 0
  %2493 = vmatpush2.bf16.msra.mxu0 0
  %2494 = vmatprep.subr.bf16.mxu0 0
  %2495 = vmatpush2.bf16.msra.mxu0 0
  %2496 = vmatprep.subr.bf16.mxu0 0
  %2497 = vmatpush2.bf16.msra.mxu0 0
  %2498 = vmatprep.subr.bf16.mxu0 0
  %2499 = vmatpush2.bf16.msra.mxu0 0
  %2500 = vmatprep.subr.bf16.mxu0 0
  %2501 = vmatpush2.bf16.msra.mxu0 0
  %2502 = vmatprep.mubr.bf16.mxu0 0
  %2503 = vmatmul.mubr.bf16.gmra.mxu0 %v2465
  %v2504 = vpop.f32.mrf.mxu0
  %v2505 = vadd.f32 0.0, %v2504
  %v2506 = vpop.f32.mrf.mxu0
  %v2507 = vpop.f32.mrf.mxu0
  %v2508 = vpop.f32.mrf.mxu0
  %2509 = vdwg.mxu0
  %v2510 = vadd.f32 %v2457, %v2505
  %v2511 = vld [vmem:[%s12] sm:$0xf]
  %2513 = vset.pattern.permute.xlu0 0
  %2514 = vperm.xlu0 %2513, %v2511
  %v2515 = vpop.permute.xlu0 %2514
  %v2517 = vmul.f32 %v2510, %v2515
  %v2518 = vld [vmem:[%s13] sm:$0xf]
  %2520 = vset.pattern.permute.xlu0 0
  %2521 = vperm.xlu0 %2520, %v2518
  %v2522 = vpop.permute.xlu0 %2521
  %v2524 = vadd.f32 %v2517, %v2522
  %v2525 = vmax.f32 %v2524, 0.0
  %v2526 = vld [vmem:[%s14] sm:$0xf]
  %2528 = vset.pattern.permute.xlu0 0
  %2529 = vperm.xlu0 %2528, %v2526
  %v2530 = vpop.permute.xlu0 %2529
  %v2532 = vmul.f32 %v2525, %v2530
  %v2533 = vsel %vm137, %v2532, 0.0
  %v2534 = vrot.slane %v2533, 4
  %v2535 = vadd.f32 %v2533, %v2534
  %v2536 = vrot.slane %v2535, 2
  %v2537 = vadd.f32 %v2535, %v2536
  %v2538 = vrot.slane %v2537, 1
  %v2539 = vadd.f32 %v2537, %v2538
  %v2540 = vld [vmem:[%s15] sm:$0x1]
  %2542 = vset.pattern.permute.xlu0 0
  %2543 = vperm.xlu0 %2542, %v2540
  %v2544 = vpop.permute.xlu0 %2543
  %v2546 = vlaneseq
  %v2547 = vshrl.u32 %v2546, 7
  %v2548 = vsub.s32 0, %v2547
  %v2549 = vrot.slane %v2544, %v2548
  %v2550 = vadd.f32 %v2539, %v2549
  %2552 = vrot.lane.b32.xlu0 %v2550, 64
  %v2553 = vpop.permute.xlu0 %2552
  %vm2555 = vcmask 1040384
  %v2556 = vsel %vm2555, %v2550, %v2553
  %vm2557 = vcmask 517120
  %v2558 = vsel %vm2557, %v2556, -inf
  %2559 = vmax.xlane.f32.xlu0 %v2558
  %v2560 = vpop.xlane.xlu0 %2559
  %v2561 = vsub.f32 %v2556, %v2560
  %v2562 = vmul.f32 %v2561, 1.442695
  %v2563 = vpow.pop %v2562
  %v2564 = vsel %vm2557, %v2563, 0.0
  %2565 = vadd.xlane.f32.xlu0 %v2564
  %v2566 = vpop.xlane.xlu0 %2565
  %v2567 = vrcp.pop %v2566
  %v2568 = vmul.f32 %v2563, %v2567
  %v2569 = vld [vmem:[%s16] sm:$0x3]
  %v2570 = vmul.f32 %v2569, %v2568
  %v2571 = vsel %vm2557, %v2570, 0.0
  %2572 = vadd.xlane.f32.xlu0 %v2571
  %v2573 = vpop.xlane.xlu0 %2572
  %v2574 = vld [vmem:[%s17] sm:$0x3]
  %v2575 = vmul.f32 %v2574, %v2568
  %v2576 = vsel %vm2557, %v2575, 0.0
  %2577 = vadd.xlane.f32.xlu0 %v2576
  %v2578 = vpop.xlane.xlu0 %2577
  %vm2579 = vcmask 7168
  %v2580 = vsel %vm2579, %v2573, %v2578
  %v2581 = vmul.f32 %v2580, 0.0078125
  %v2582 = vld [vmem:[%s18] sm:$0xff]
  %v2583 = vld [vmem:[%s18 + $0x8] sm:$0xff]
  %v2584 = vld [vmem:[%s18 + $0x10] sm:$0xff]
  %v2585 = vld [vmem:[%s18 + $0x18] sm:$0xff]
  %v2586 = vld [vmem:[%s18 + $0x20] sm:$0xff]
  %v2587 = vld [vmem:[%s18 + $0x28] sm:$0xff]
  %v2588 = vld [vmem:[%s18 + $0x30] sm:$0xff]
  %v2589 = vld [vmem:[%s18 + $0x38] sm:$0xff]
  %v2590 = vld [vmem:[%s19] sm:$0x1]
  %v2592 = vlaneseq
  %v2593 = vshrl.u32 %v2592, 7
  %v2594 = vsub.s32 0, %v2593
  %v2595 = vrot.slane %v2590, %v2594
  %v2598 = vsel %vm86, %v2556, 0
  %2600 = vmatprep.subr.mxu0 0.0
  %2601 = vmatpush1.msra.mxu0 0.0
  %2602 = vmatprep.subr.mxu0 0.0
  %2603 = vmatpush1.msra.mxu0 0.0
  %2604 = vmatprep.subr.mxu0 0.0
  %2605 = vmatpush1.msra.mxu0 0.0
  %2606 = vmatprep.subr.mxu0 0.0
  %2607 = vmatpush1.msra.mxu0 0.0
  %2608 = vmatprep.subr.mxu0 0.0
  %2609 = vmatpush1.msra.mxu0 0.0
  %2610 = vmatprep.subr.mxu0 0.0
  %2611 = vmatpush1.msra.mxu0 0.0
  %2612 = vmatprep.subr.mxu0 0.0
  %2613 = vmatpush1.msra.mxu0 0.0
  %2614 = vmatprep.subr.mxu0 0.0
  %2615 = vmatpush1.msra.mxu0 0.0
  %2616 = vmatprep.subr.mxu0 0.0
  %2617 = vmatpush1.msra.mxu0 %v2589
  %2618 = vmatprep.subr.mxu0 0.0
  %2619 = vmatpush1.msra.mxu0 %v2588
  %2620 = vmatprep.subr.mxu0 0.0
  %2621 = vmatpush1.msra.mxu0 %v2587
  %2622 = vmatprep.subr.mxu0 0.0
  %2623 = vmatpush1.msra.mxu0 %v2586
  %2624 = vmatprep.subr.mxu0 0.0
  %2625 = vmatpush1.msra.mxu0 %v2585
  %2626 = vmatprep.subr.mxu0 0.0
  %2627 = vmatpush1.msra.mxu0 %v2584
  %2628 = vmatprep.subr.mxu0 0.0
  %2629 = vmatpush1.msra.mxu0 %v2583
  %2630 = vmatprep.subr.mxu0 0.0
  %2631 = vmatpush1.msra.mxu0 %v2582
  %2632 = vmatprep.subr.mxu0 0.0
  %2633 = vmatpush2.msra.mxu0 0.0
  %2634 = vmatprep.subr.mxu0 0.0
  %2635 = vmatpush2.msra.mxu0 0.0
  %2636 = vmatprep.subr.mxu0 0.0
  %2637 = vmatpush2.msra.mxu0 0.0
  %2638 = vmatprep.subr.mxu0 0.0
  %2639 = vmatpush2.msra.mxu0 0.0
  %2640 = vmatprep.subr.mxu0 0.0
  %2641 = vmatpush2.msra.mxu0 0.0
  %2642 = vmatprep.subr.mxu0 0.0
  %2643 = vmatpush2.msra.mxu0 0.0
  %2644 = vmatprep.subr.mxu0 0.0
  %2645 = vmatpush2.msra.mxu0 0.0
  %2646 = vmatprep.subr.mxu0 0.0
  %2647 = vmatpush2.msra.mxu0 0.0
  %2648 = vmatprep.subr.mxu0 0.0
  %2649 = vmatpush2.msra.mxu0 0.0
  %2650 = vmatprep.subr.mxu0 0.0
  %2651 = vmatpush2.msra.mxu0 0.0
  %2652 = vmatprep.subr.mxu0 0.0
  %2653 = vmatpush2.msra.mxu0 0.0
  %2654 = vmatprep.subr.mxu0 0.0
  %2655 = vmatpush2.msra.mxu0 0.0
  %2656 = vmatprep.subr.mxu0 0.0
  %2657 = vmatpush2.msra.mxu0 0.0
  %2658 = vmatprep.subr.mxu0 0.0
  %2659 = vmatpush2.msra.mxu0 0.0
  %2660 = vmatprep.subr.mxu0 0.0
  %2661 = vmatpush2.msra.mxu0 0.0
  %2662 = vmatprep.subr.mxu0 0.0
  %2663 = vmatpush2.msra.mxu0 0.0
  %2664 = vmatprep.mubr.f32.mxu0 0.0
  %2665 = vmatmul.mubr.f32.gmra.mxu0 %v2598
  %v2666 = vpop.f32.mrf.mxu0
  %v2667 = vadd.f32 %v2595, %v2666
  %v2668 = vpop.f32.mrf.mxu0
  %2669 = vdwg.mxu0
  %v2670 = vmax.f32 %v2667, 0.0
  %v2671 = vld [vmem:[%s20] sm:$0xff]
  %v2672 = vld [vmem:[%s21] sm:$0x1]
  %v2674 = vlaneseq
  %v2675 = vshrl.u32 %v2674, 7
  %v2676 = vsub.s32 0, %v2675
  %v2677 = vrot.slane %v2672, %v2676
  %v2680 = vsel %vm130, %v2670, 0
  %2682 = vmatprep.subr.mxu0 0.0
  %2683 = vmatpush1.msra.mxu0 0.0
  %2684 = vmatprep.subr.mxu0 0.0
  %2685 = vmatpush1.msra.mxu0 0.0
  %2686 = vmatprep.subr.mxu0 0.0
  %2687 = vmatpush1.msra.mxu0 0.0
  %2688 = vmatprep.subr.mxu0 0.0
  %2689 = vmatpush1.msra.mxu0 0.0
  %2690 = vmatprep.subr.mxu0 0.0
  %2691 = vmatpush1.msra.mxu0 0.0
  %2692 = vmatprep.subr.mxu0 0.0
  %2693 = vmatpush1.msra.mxu0 0.0
  %2694 = vmatprep.subr.mxu0 0.0
  %2695 = vmatpush1.msra.mxu0 0.0
  %2696 = vmatprep.subr.mxu0 0.0
  %2697 = vmatpush1.msra.mxu0 0.0
  %2698 = vmatprep.subr.mxu0 0.0
  %2699 = vmatpush1.msra.mxu0 0.0
  %2700 = vmatprep.subr.mxu0 0.0
  %2701 = vmatpush1.msra.mxu0 0.0
  %2702 = vmatprep.subr.mxu0 0.0
  %2703 = vmatpush1.msra.mxu0 0.0
  %2704 = vmatprep.subr.mxu0 0.0
  %2705 = vmatpush1.msra.mxu0 0.0
  %2706 = vmatprep.subr.mxu0 0.0
  %2707 = vmatpush1.msra.mxu0 0.0
  %2708 = vmatprep.subr.mxu0 0.0
  %2709 = vmatpush1.msra.mxu0 0.0
  %2710 = vmatprep.subr.mxu0 0.0
  %2711 = vmatpush1.msra.mxu0 0.0
  %2712 = vmatprep.subr.mxu0 0.0
  %2713 = vmatpush1.msra.mxu0 %v2671
  %2714 = vmatprep.subr.mxu0 0.0
  %2715 = vmatpush2.msra.mxu0 0.0
  %2716 = vmatprep.subr.mxu0 0.0
  %2717 = vmatpush2.msra.mxu0 0.0
  %2718 = vmatprep.subr.mxu0 0.0
  %2719 = vmatpush2.msra.mxu0 0.0
  %2720 = vmatprep.subr.mxu0 0.0
  %2721 = vmatpush2.msra.mxu0 0.0
  %2722 = vmatprep.subr.mxu0 0.0
  %2723 = vmatpush2.msra.mxu0 0.0
  %2724 = vmatprep.subr.mxu0 0.0
  %2725 = vmatpush2.msra.mxu0 0.0
  %2726 = vmatprep.subr.mxu0 0.0
  %2727 = vmatpush2.msra.mxu0 0.0
  %2728 = vmatprep.subr.mxu0 0.0
  %2729 = vmatpush2.msra.mxu0 0.0
  %2730 = vmatprep.subr.mxu0 0.0
  %2731 = vmatpush2.msra.mxu0 0.0
  %2732 = vmatprep.subr.mxu0 0.0
  %2733 = vmatpush2.msra.mxu0 0.0
  %2734 = vmatprep.subr.mxu0 0.0
  %2735 = vmatpush2.msra.mxu0 0.0
  %2736 = vmatprep.subr.mxu0 0.0
  %2737 = vmatpush2.msra.mxu0 0.0
  %2738 = vmatprep.subr.mxu0 0.0
  %2739 = vmatpush2.msra.mxu0 0.0
  %2740 = vmatprep.subr.mxu0 0.0
  %2741 = vmatpush2.msra.mxu0 0.0
  %2742 = vmatprep.subr.mxu0 0.0
  %2743 = vmatpush2.msra.mxu0 0.0
  %2744 = vmatprep.subr.mxu0 0.0
  %2745 = vmatpush2.msra.mxu0 0.0
  %2746 = vmatprep.mubr.f32.mxu0 0.0
  %2747 = vmatmul.mubr.f32.gmra.mxu0 %v2680
  %v2748 = vpop.f32.mrf.mxu0
  %v2749 = vadd.f32 %v2677, %v2748
  %v2750 = vpop.f32.mrf.mxu0
  %2751 = vdwg.mxu0
  %v2752 = vmax.f32 %v2749, 0.0
  %v2753 = vld [vmem:[%s22] sm:$0xff]
  %v2754 = vld [vmem:[#allocation2] sm:$0x1]
  %v2756 = vlaneseq
  %v2757 = vshrl.u32 %v2756, 7
  %v2758 = vsub.s32 0, %v2757
  %v2759 = vrot.slane %v2754, %v2758
  %v2762 = vsel %vm130, %v2752, 0
  %2764 = vmatprep.subr.mxu0 0.0
  %2765 = vmatpush1.msra.mxu0 0.0
  %2766 = vmatprep.subr.mxu0 0.0
  %2767 = vmatpush1.msra.mxu0 0.0
  %2768 = vmatprep.subr.mxu0 0.0
  %2769 = vmatpush1.msra.mxu0 0.0
  %2770 = vmatprep.subr.mxu0 0.0
  %2771 = vmatpush1.msra.mxu0 0.0
  %2772 = vmatprep.subr.mxu0 0.0
  %2773 = vmatpush1.msra.mxu0 0.0
  %2774 = vmatprep.subr.mxu0 0.0
  %2775 = vmatpush1.msra.mxu0 0.0
  %2776 = vmatprep.subr.mxu0 0.0
  %2777 = vmatpush1.msra.mxu0 0.0
  %2778 = vmatprep.subr.mxu0 0.0
  %2779 = vmatpush1.msra.mxu0 0.0
  %2780 = vmatprep.subr.mxu0 0.0
  %2781 = vmatpush1.msra.mxu0 0.0
  %2782 = vmatprep.subr.mxu0 0.0
  %2783 = vmatpush1.msra.mxu0 0.0
  %2784 = vmatprep.subr.mxu0 0.0
  %2785 = vmatpush1.msra.mxu0 0.0
  %2786 = vmatprep.subr.mxu0 0.0
  %2787 = vmatpush1.msra.mxu0 0.0
  %2788 = vmatprep.subr.mxu0 0.0
  %2789 = vmatpush1.msra.mxu0 0.0
  %2790 = vmatprep.subr.mxu0 0.0
  %2791 = vmatpush1.msra.mxu0 0.0
  %2792 = vmatprep.subr.mxu0 0.0
  %2793 = vmatpush1.msra.mxu0 0.0
  %2794 = vmatprep.subr.mxu0 0.0
  %2795 = vmatpush1.msra.mxu0 %v2753
  %2796 = vmatprep.subr.mxu0 0.0
  %2797 = vmatpush2.msra.mxu0 0.0
  %2798 = vmatprep.subr.mxu0 0.0
  %2799 = vmatpush2.msra.mxu0 0.0
  %2800 = vmatprep.subr.mxu0 0.0
  %2801 = vmatpush2.msra.mxu0 0.0
  %2802 = vmatprep.subr.mxu0 0.0
  %2803 = vmatpush2.msra.mxu0 0.0
  %2804 = vmatprep.subr.mxu0 0.0
  %2805 = vmatpush2.msra.mxu0 0.0
  %2806 = vmatprep.subr.mxu0 0.0
  %2807 = vmatpush2.msra.mxu0 0.0
  %2808 = vmatprep.subr.mxu0 0.0
  %2809 = vmatpush2.msra.mxu0 0.0
  %2810 = vmatprep.subr.mxu0 0.0
  %2811 = vmatpush2.msra.mxu0 0.0
  %2812 = vmatprep.subr.mxu0 0.0
  %2813 = vmatpush2.msra.mxu0 0.0
  %2814 = vmatprep.subr.mxu0 0.0
  %2815 = vmatpush2.msra.mxu0 0.0
  %2816 = vmatprep.subr.mxu0 0.0
  %2817 = vmatpush2.msra.mxu0 0.0
  %2818 = vmatprep.subr.mxu0 0.0
  %2819 = vmatpush2.msra.mxu0 0.0
  %2820 = vmatprep.subr.mxu0 0.0
  %2821 = vmatpush2.msra.mxu0 0.0
  %2822 = vmatprep.subr.mxu0 0.0
  %2823 = vmatpush2.msra.mxu0 0.0
  %2824 = vmatprep.subr.mxu0 0.0
  %2825 = vmatpush2.msra.mxu0 0.0
  %2826 = vmatprep.subr.mxu0 0.0
  %2827 = vmatpush2.msra.mxu0 0.0
  %2828 = vmatprep.mubr.f32.mxu0 0.0
  %2829 = vmatmul.mubr.f32.gmra.mxu0 %v2762
  %v2830 = vpop.f32.mrf.mxu0
  %v2831 = vadd.f32 %v2759, %v2830
  %v2832 = vpop.f32.mrf.mxu0
  %2833 = vdwg.mxu0
  %2835 = vrot.lane.b32.xlu0 %v2831, 2
  %v2836 = vpop.permute.xlu0 %2835
  %vm2838 = vcmask 15360
  %v2839 = vsel %vm2838, %v2581, %v2836
  %vm2840 = vcmask 23552
  %v2841 = vsel %vm2840, %v2839, 0.0
  %2842 = vst [vmem:[%s24] sm:$0x3] %v2841
  %v2843 = vld [vmem:[%s1] sm:$0x1]
  %v2845 = vlaneseq
  %v2846 = vshrl.u32 %v2845, 7
  %v2847 = vsub.s32 0, %v2846
  %v2848 = vrot.slane %v2843, %v2847
  %v2850 = vmul.f32 %v89, %v2848
  %s2851 = scalar_lea.vmem %s2, 144
  %v2852 = vld [vmem:[%s2851] sm:$0xf]
  %v2853 = vld [vmem:[%s2851 + $0x4] sm:$0xf]
  %v2854 = vld [vmem:[%s2851 + $0x8] sm:$0xf]
  %v2855 = vld [vmem:[%s2851 + $0xc] sm:$0xf]
  %v2856 = vpack.c.bf16 %v2850, %v2850
  %v2857 = vld [vmem:[%s105] sm:$0x1]
  %v2859 = vlaneseq
  %v2860 = vshrl.u32 %v2859, 7
  %v2861 = vsub.s32 0, %v2860
  %v2862 = vrot.slane %v2857, %v2861
  %v2864 = vmul.f32 %v104, %v2862
  %s2865 = scalar_lea.vmem %s2, 160
  %v2866 = vld [vmem:[%s2865] sm:$0xf]
  %v2867 = vld [vmem:[%s2865 + $0x4] sm:$0xf]
  %v2868 = vld [vmem:[%s2865 + $0x8] sm:$0xf]
  %v2869 = vld [vmem:[%s2865 + $0xc] sm:$0xf]
  %v2870 = vpack.c.bf16 %v2864, %v2864
  %v2875 = vunpack.c.l.b16 %v2866
  %v2876 = vunpack.c.l.b16 %v2867
  %v2877 = vunpack.c.l.b16 %v2868
  %v2878 = vunpack.c.l.b16 %v2869
  %v2879 = vpack.c.b16 %v2876, %v2875
  %v2880 = vpack.c.b16 %v2878, %v2877
  %v2882 = vsel %vm130, %v2879, 0
  %v2885 = vsel %vm130, %v2880, 0
  %v2888 = vsel %vm137, %v2870, 0
  %2890 = vmatprep.subr.bf16.mxu0 0
  %2891 = vmatpush1.bf16.msra.mxu0 0
  %2892 = vmatprep.subr.bf16.mxu0 0
  %2893 = vmatpush1.bf16.msra.mxu0 0
  %2894 = vmatprep.subr.bf16.mxu0 0
  %2895 = vmatpush1.bf16.msra.mxu0 0
  %2896 = vmatprep.subr.bf16.mxu0 0
  %2897 = vmatpush1.bf16.msra.mxu0 0
  %2898 = vmatprep.subr.bf16.mxu0 0
  %2899 = vmatpush1.bf16.msra.mxu0 0
  %2900 = vmatprep.subr.bf16.mxu0 0
  %2901 = vmatpush1.bf16.msra.mxu0 0
  %2902 = vmatprep.subr.bf16.mxu0 0
  %2903 = vmatpush1.bf16.msra.mxu0 0
  %2904 = vmatprep.subr.bf16.mxu0 0
  %2905 = vmatpush1.bf16.msra.mxu0 %v2888
  %2906 = vmatprep.subr.bf16.mxu0 0
  %2907 = vmatpush2.bf16.msra.mxu0 0
  %2908 = vmatprep.subr.bf16.mxu0 0
  %2909 = vmatpush2.bf16.msra.mxu0 0
  %2910 = vmatprep.subr.bf16.mxu0 0
  %2911 = vmatpush2.bf16.msra.mxu0 0
  %2912 = vmatprep.subr.bf16.mxu0 0
  %2913 = vmatpush2.bf16.msra.mxu0 0
  %2914 = vmatprep.subr.bf16.mxu0 0
  %2915 = vmatpush2.bf16.msra.mxu0 0
  %2916 = vmatprep.subr.bf16.mxu0 0
  %2917 = vmatpush2.bf16.msra.mxu0 0
  %2918 = vmatprep.subr.bf16.mxu0 0
  %2919 = vmatpush2.bf16.msra.mxu0 0
  %2920 = vmatprep.subr.bf16.mxu0 0
  %2921 = vmatpush2.bf16.msra.mxu0 0
  %2922 = vmatprep.mubr.bf16.mxu0 0
  %2923 = vmatmul.mubr.bf16.gmra.mxu0 %v2882
  %v2924 = vpop.f32.mrf.mxu0
  %v2925 = vadd.f32 0.0, %v2924
  %v2926 = vpop.f32.mrf.mxu0
  %v2927 = vpop.f32.mrf.mxu0
  %v2928 = vadd.f32 0.0, %v2927
  %v2929 = vpop.f32.mrf.mxu0
  %2930 = vmatprep.mubr.bf16.mxu0 0
  %2931 = vmatmul.mubr.bf16.gmra.mxu0 %v2885
  %v2932 = vpop.f32.mrf.mxu0
  %v2933 = vadd.f32 0.0, %v2932
  %v2934 = vpop.f32.mrf.mxu0
  %v2935 = vpop.f32.mrf.mxu0
  %v2936 = vadd.f32 0.0, %v2935
  %v2937 = vpop.f32.mrf.mxu0
  %2938 = vdwg.mxu0
  %v2943 = vunpack.c.l.b16 %v2852
  %v2944 = vunpack.c.l.b16 %v2853
  %v2945 = vunpack.c.l.b16 %v2854
  %v2946 = vunpack.c.l.b16 %v2855
  %v2947 = vpack.c.b16 %v2944, %v2943
  %v2948 = vpack.c.b16 %v2946, %v2945
  %v2950 = vsel %vm130, %v2947, 0
  %v2953 = vsel %vm130, %v2948, 0
  %v2956 = vsel %vm137, %v2856, 0
  %2958 = vmatprep.subr.bf16.mxu0 0
  %2959 = vmatpush1.bf16.msra.mxu0 0
  %2960 = vmatprep.subr.bf16.mxu0 0
  %2961 = vmatpush1.bf16.msra.mxu0 0
  %2962 = vmatprep.subr.bf16.mxu0 0
  %2963 = vmatpush1.bf16.msra.mxu0 0
  %2964 = vmatprep.subr.bf16.mxu0 0
  %2965 = vmatpush1.bf16.msra.mxu0 0
  %2966 = vmatprep.subr.bf16.mxu0 0
  %2967 = vmatpush1.bf16.msra.mxu0 0
  %2968 = vmatprep.subr.bf16.mxu0 0
  %2969 = vmatpush1.bf16.msra.mxu0 0
  %2970 = vmatprep.subr.bf16.mxu0 0
  %2971 = vmatpush1.bf16.msra.mxu0 0
  %2972 = vmatprep.subr.bf16.mxu0 0
  %2973 = vmatpush1.bf16.msra.mxu0 %v2956
  %2974 = vmatprep.subr.bf16.mxu0 0
  %2975 = vmatpush2.bf16.msra.mxu0 0
  %2976 = vmatprep.subr.bf16.mxu0 0
  %2977 = vmatpush2.bf16.msra.mxu0 0
  %2978 = vmatprep.subr.bf16.mxu0 0
  %2979 = vmatpush2.bf16.msra.mxu0 0
  %2980 = vmatprep.subr.bf16.mxu0 0
  %2981 = vmatpush2.bf16.msra.mxu0 0
  %2982 = vmatprep.subr.bf16.mxu0 0
  %2983 = vmatpush2.bf16.msra.mxu0 0
  %2984 = vmatprep.subr.bf16.mxu0 0
  %2985 = vmatpush2.bf16.msra.mxu0 0
  %2986 = vmatprep.subr.bf16.mxu0 0
  %2987 = vmatpush2.bf16.msra.mxu0 0
  %2988 = vmatprep.subr.bf16.mxu0 0
  %2989 = vmatpush2.bf16.msra.mxu0 0
  %2990 = vmatprep.mubr.bf16.mxu0 0
  %2991 = vmatmul.mubr.bf16.gmra.mxu0 %v2950
  %v2992 = vpop.f32.mrf.mxu0
  %v2993 = vadd.f32 %v2925, %v2992
  %v2994 = vpop.f32.mrf.mxu0
  %v2995 = vpop.f32.mrf.mxu0
  %v2996 = vadd.f32 %v2928, %v2995
  %v2997 = vpop.f32.mrf.mxu0
  %2998 = vmatprep.mubr.bf16.mxu0 0
  %2999 = vmatmul.mubr.bf16.gmra.mxu0 %v2953
  %v3000 = vpop.f32.mrf.mxu0
  %v3001 = vadd.f32 %v2933, %v3000
  %v3002 = vpop.f32.mrf.mxu0
  %v3003 = vpop.f32.mrf.mxu0
  %v3004 = vadd.f32 %v2936, %v3003
  %v3005 = vpop.f32.mrf.mxu0
  %3006 = vdwg.mxu0
  %v3007 = vld [vmem:[%s260] sm:$0x1]
  %v3009 = vlaneseq
  %v3010 = vshrl.u32 %v3009, 7
  %v3011 = vsub.s32 0, %v3010
  %v3012 = vrot.slane %v3007, %v3011
  %v3014 = vmul.f32 %v259, %v3012
  %s3015 = scalar_lea.vmem %s2, 176
  %v3016 = vld [vmem:[%s3015] sm:$0xf]
  %v3017 = vld [vmem:[%s3015 + $0x4] sm:$0xf]
  %v3018 = vld [vmem:[%s3015 + $0x8] sm:$0xf]
  %v3019 = vld [vmem:[%s3015 + $0xc] sm:$0xf]
  %v3020 = vpack.c.bf16 %v3014, %v3014
  %v3025 = vunpack.c.l.b16 %v3016
  %v3026 = vunpack.c.l.b16 %v3017
  %v3027 = vunpack.c.l.b16 %v3018
  %v3028 = vunpack.c.l.b16 %v3019
  %v3029 = vpack.c.b16 %v3026, %v3025
  %v3030 = vpack.c.b16 %v3028, %v3027
  %v3032 = vsel %vm130, %v3029, 0
  %v3035 = vsel %vm130, %v3030, 0
  %v3038 = vsel %vm137, %v3020, 0
  %3040 = vmatprep.subr.bf16.mxu0 0
  %3041 = vmatpush1.bf16.msra.mxu0 0
  %3042 = vmatprep.subr.bf16.mxu0 0
  %3043 = vmatpush1.bf16.msra.mxu0 0
  %3044 = vmatprep.subr.bf16.mxu0 0
  %3045 = vmatpush1.bf16.msra.mxu0 0
  %3046 = vmatprep.subr.bf16.mxu0 0
  %3047 = vmatpush1.bf16.msra.mxu0 0
  %3048 = vmatprep.subr.bf16.mxu0 0
  %3049 = vmatpush1.bf16.msra.mxu0 0
  %3050 = vmatprep.subr.bf16.mxu0 0
  %3051 = vmatpush1.bf16.msra.mxu0 0
  %3052 = vmatprep.subr.bf16.mxu0 0
  %3053 = vmatpush1.bf16.msra.mxu0 0
  %3054 = vmatprep.subr.bf16.mxu0 0
  %3055 = vmatpush1.bf16.msra.mxu0 %v3038
  %3056 = vmatprep.subr.bf16.mxu0 0
  %3057 = vmatpush2.bf16.msra.mxu0 0
  %3058 = vmatprep.subr.bf16.mxu0 0
  %3059 = vmatpush2.bf16.msra.mxu0 0
  %3060 = vmatprep.subr.bf16.mxu0 0
  %3061 = vmatpush2.bf16.msra.mxu0 0
  %3062 = vmatprep.subr.bf16.mxu0 0
  %3063 = vmatpush2.bf16.msra.mxu0 0
  %3064 = vmatprep.subr.bf16.mxu0 0
  %3065 = vmatpush2.bf16.msra.mxu0 0
  %3066 = vmatprep.subr.bf16.mxu0 0
  %3067 = vmatpush2.bf16.msra.mxu0 0
  %3068 = vmatprep.subr.bf16.mxu0 0
  %3069 = vmatpush2.bf16.msra.mxu0 0
  %3070 = vmatprep.subr.bf16.mxu0 0
  %3071 = vmatpush2.bf16.msra.mxu0 0
  %3072 = vmatprep.mubr.bf16.mxu0 0
  %3073 = vmatmul.mubr.bf16.gmra.mxu0 %v3032
  %v3074 = vpop.f32.mrf.mxu0
  %v3075 = vadd.f32 0.0, %v3074
  %v3076 = vpop.f32.mrf.mxu0
  %v3077 = vpop.f32.mrf.mxu0
  %v3078 = vadd.f32 0.0, %v3077
  %v3079 = vpop.f32.mrf.mxu0
  %3080 = vmatprep.mubr.bf16.mxu0 0
  %3081 = vmatmul.mubr.bf16.gmra.mxu0 %v3035
  %v3082 = vpop.f32.mrf.mxu0
  %v3083 = vadd.f32 0.0, %v3082
  %v3084 = vpop.f32.mrf.mxu0
  %v3085 = vpop.f32.mrf.mxu0
  %v3086 = vadd.f32 0.0, %v3085
  %v3087 = vpop.f32.mrf.mxu0
  %3088 = vdwg.mxu0
  %v3089 = vadd.f32 %v2993, %v3075
  %v3090 = vadd.f32 %v2996, %v3078
  %v3091 = vadd.f32 %v3001, %v3083
  %v3092 = vadd.f32 %v3004, %v3086
  %v3093 = vld [vmem:[%s349] sm:$0x1]
  %v3095 = vlaneseq
  %v3096 = vshrl.u32 %v3095, 7
  %v3097 = vsub.s32 0, %v3096
  %v3098 = vrot.slane %v3093, %v3097
  %v3100 = vmul.f32 %v348, %v3098
  %s3101 = scalar_lea.vmem %s2, 192
  %v3102 = vld [vmem:[%s3101] sm:$0xf]
  %v3103 = vld [vmem:[%s3101 + $0x4] sm:$0xf]
  %v3104 = vld [vmem:[%s3101 + $0x8] sm:$0xf]
  %v3105 = vld [vmem:[%s3101 + $0xc] sm:$0xf]
  %v3106 = vpack.c.bf16 %v3100, %v3100
  %v3111 = vunpack.c.l.b16 %v3102
  %v3112 = vunpack.c.l.b16 %v3103
  %v3113 = vunpack.c.l.b16 %v3104
  %v3114 = vunpack.c.l.b16 %v3105
  %v3115 = vpack.c.b16 %v3112, %v3111
  %v3116 = vpack.c.b16 %v3114, %v3113
  %v3118 = vsel %vm130, %v3115, 0
  %v3121 = vsel %vm130, %v3116, 0
  %v3124 = vsel %vm137, %v3106, 0
  %3126 = vmatprep.subr.bf16.mxu0 0
  %3127 = vmatpush1.bf16.msra.mxu0 0
  %3128 = vmatprep.subr.bf16.mxu0 0
  %3129 = vmatpush1.bf16.msra.mxu0 0
  %3130 = vmatprep.subr.bf16.mxu0 0
  %3131 = vmatpush1.bf16.msra.mxu0 0
  %3132 = vmatprep.subr.bf16.mxu0 0
  %3133 = vmatpush1.bf16.msra.mxu0 0
  %3134 = vmatprep.subr.bf16.mxu0 0
  %3135 = vmatpush1.bf16.msra.mxu0 0
  %3136 = vmatprep.subr.bf16.mxu0 0
  %3137 = vmatpush1.bf16.msra.mxu0 0
  %3138 = vmatprep.subr.bf16.mxu0 0
  %3139 = vmatpush1.bf16.msra.mxu0 0
  %3140 = vmatprep.subr.bf16.mxu0 0
  %3141 = vmatpush1.bf16.msra.mxu0 %v3124
  %3142 = vmatprep.subr.bf16.mxu0 0
  %3143 = vmatpush2.bf16.msra.mxu0 0
  %3144 = vmatprep.subr.bf16.mxu0 0
  %3145 = vmatpush2.bf16.msra.mxu0 0
  %3146 = vmatprep.subr.bf16.mxu0 0
  %3147 = vmatpush2.bf16.msra.mxu0 0
  %3148 = vmatprep.subr.bf16.mxu0 0
  %3149 = vmatpush2.bf16.msra.mxu0 0
  %3150 = vmatprep.subr.bf16.mxu0 0
  %3151 = vmatpush2.bf16.msra.mxu0 0
  %3152 = vmatprep.subr.bf16.mxu0 0
  %3153 = vmatpush2.bf16.msra.mxu0 0
  %3154 = vmatprep.subr.bf16.mxu0 0
  %3155 = vmatpush2.bf16.msra.mxu0 0
  %3156 = vmatprep.subr.bf16.mxu0 0
  %3157 = vmatpush2.bf16.msra.mxu0 0
  %3158 = vmatprep.mubr.bf16.mxu0 0
  %3159 = vmatmul.mubr.bf16.gmra.mxu0 %v3118
  %v3160 = vpop.f32.mrf.mxu0
  %v3161 = vadd.f32 0.0, %v3160
  %v3162 = vpop.f32.mrf.mxu0
  %v3163 = vpop.f32.mrf.mxu0
  %v3164 = vadd.f32 0.0, %v3163
  %v3165 = vpop.f32.mrf.mxu0
  %3166 = vmatprep.mubr.bf16.mxu0 0
  %3167 = vmatmul.mubr.bf16.gmra.mxu0 %v3121
  %v3168 = vpop.f32.mrf.mxu0
  %v3169 = vadd.f32 0.0, %v3168
  %v3170 = vpop.f32.mrf.mxu0
  %v3171 = vpop.f32.mrf.mxu0
  %v3172 = vadd.f32 0.0, %v3171
  %v3173 = vpop.f32.mrf.mxu0
  %3174 = vdwg.mxu0
  %v3175 = vadd.f32 %v3089, %v3161
  %v3176 = vadd.f32 %v3090, %v3164
  %v3177 = vadd.f32 %v3091, %v3169
  %v3178 = vadd.f32 %v3092, %v3172
  %s3179 = scalar_lea.vmem %s2, 208
  %v3180 = vld [vmem:[%s3179] sm:$0xf]
  %v3181 = vld [vmem:[%s3179 + $0x4] sm:$0xf]
  %v3182 = vld [vmem:[%s3179 + $0x8] sm:$0xf]
  %v3183 = vld [vmem:[%s3179 + $0xc] sm:$0xf]
  %v3188 = vunpack.c.l.b16 %v3180
  %v3189 = vunpack.c.l.b16 %v3181
  %v3190 = vunpack.c.l.b16 %v3182
  %v3191 = vunpack.c.l.b16 %v3183
  %v3192 = vpack.c.b16 %v3189, %v3188
  %v3193 = vpack.c.b16 %v3191, %v3190
  %v3195 = vsel %vm130, %v3192, 0
  %v3198 = vsel %vm130, %v3193, 0
  %3200 = vmatprep.subr.bf16.mxu0 0
  %3201 = vmatpush1.bf16.msra.mxu0 0
  %3202 = vmatprep.subr.bf16.mxu0 0
  %3203 = vmatpush1.bf16.msra.mxu0 0
  %3204 = vmatprep.subr.bf16.mxu0 0
  %3205 = vmatpush1.bf16.msra.mxu0 0
  %3206 = vmatprep.subr.bf16.mxu0 0
  %3207 = vmatpush1.bf16.msra.mxu0 0
  %3208 = vmatprep.subr.bf16.mxu0 0
  %3209 = vmatpush1.bf16.msra.mxu0 0
  %3210 = vmatprep.subr.bf16.mxu0 0
  %3211 = vmatpush1.bf16.msra.mxu0 0
  %3212 = vmatprep.subr.bf16.mxu0 0
  %3213 = vmatpush1.bf16.msra.mxu0 0
  %3214 = vmatprep.subr.bf16.mxu0 0
  %3215 = vmatpush1.bf16.msra.mxu0 %v459
  %3216 = vmatprep.subr.bf16.mxu0 0
  %3217 = vmatpush2.bf16.msra.mxu0 0
  %3218 = vmatprep.subr.bf16.mxu0 0
  %3219 = vmatpush2.bf16.msra.mxu0 0
  %3220 = vmatprep.subr.bf16.mxu0 0
  %3221 = vmatpush2.bf16.msra.mxu0 0
  %3222 = vmatprep.subr.bf16.mxu0 0
  %3223 = vmatpush2.bf16.msra.mxu0 0
  %3224 = vmatprep.subr.bf16.mxu0 0
  %3225 = vmatpush2.bf16.msra.mxu0 0
  %3226 = vmatprep.subr.bf16.mxu0 0
  %3227 = vmatpush2.bf16.msra.mxu0 0
  %3228 = vmatprep.subr.bf16.mxu0 0
  %3229 = vmatpush2.bf16.msra.mxu0 0
  %3230 = vmatprep.subr.bf16.mxu0 0
  %3231 = vmatpush2.bf16.msra.mxu0 0
  %3232 = vmatprep.mubr.bf16.mxu0 0
  %3233 = vmatmul.mubr.bf16.gmra.mxu0 %v3195
  %v3234 = vpop.f32.mrf.mxu0
  %v3235 = vadd.f32 0.0, %v3234
  %v3236 = vpop.f32.mrf.mxu0
  %v3237 = vpop.f32.mrf.mxu0
  %v3238 = vadd.f32 0.0, %v3237
  %v3239 = vpop.f32.mrf.mxu0
  %3240 = vmatprep.mubr.bf16.mxu0 0
  %3241 = vmatmul.mubr.bf16.gmra.mxu0 %v3198
  %v3242 = vpop.f32.mrf.mxu0
  %v3243 = vadd.f32 0.0, %v3242
  %v3244 = vpop.f32.mrf.mxu0
  %v3245 = vpop.f32.mrf.mxu0
  %v3246 = vadd.f32 0.0, %v3245
  %v3247 = vpop.f32.mrf.mxu0
  %3248 = vdwg.mxu0
  %v3249 = vadd.f32 %v3175, %v3235
  %v3250 = vadd.f32 %v3176, %v3238
  %v3251 = vadd.f32 %v3177, %v3243
  %v3252 = vadd.f32 %v3178, %v3246
  %v3253 = vld [vmem:[%s516] sm:$0x1]
  %v3255 = vlaneseq
  %v3256 = vshrl.u32 %v3255, 7
  %v3257 = vsub.s32 0, %v3256
  %v3258 = vrot.slane %v3253, %v3257
  %v3260 = vmul.f32 %v515, %v3258
  %s3261 = scalar_lea.vmem %s2, 224
  %v3262 = vld [vmem:[%s3261] sm:$0xf]
  %v3263 = vld [vmem:[%s3261 + $0x4] sm:$0xf]
  %v3264 = vld [vmem:[%s3261 + $0x8] sm:$0xf]
  %v3265 = vld [vmem:[%s3261 + $0xc] sm:$0xf]
  %v3266 = vpack.c.bf16 %v3260, %v3260
  %v3271 = vunpack.c.l.b16 %v3262
  %v3272 = vunpack.c.l.b16 %v3263
  %v3273 = vunpack.c.l.b16 %v3264
  %v3274 = vunpack.c.l.b16 %v3265
  %v3275 = vpack.c.b16 %v3272, %v3271
  %v3276 = vpack.c.b16 %v3274, %v3273
  %v3278 = vsel %vm130, %v3275, 0
  %v3281 = vsel %vm130, %v3276, 0
  %v3284 = vsel %vm137, %v3266, 0
  %3286 = vmatprep.subr.bf16.mxu0 0
  %3287 = vmatpush1.bf16.msra.mxu0 0
  %3288 = vmatprep.subr.bf16.mxu0 0
  %3289 = vmatpush1.bf16.msra.mxu0 0
  %3290 = vmatprep.subr.bf16.mxu0 0
  %3291 = vmatpush1.bf16.msra.mxu0 0
  %3292 = vmatprep.subr.bf16.mxu0 0
  %3293 = vmatpush1.bf16.msra.mxu0 0
  %3294 = vmatprep.subr.bf16.mxu0 0
  %3295 = vmatpush1.bf16.msra.mxu0 0
  %3296 = vmatprep.subr.bf16.mxu0 0
  %3297 = vmatpush1.bf16.msra.mxu0 0
  %3298 = vmatprep.subr.bf16.mxu0 0
  %3299 = vmatpush1.bf16.msra.mxu0 0
  %3300 = vmatprep.subr.bf16.mxu0 0
  %3301 = vmatpush1.bf16.msra.mxu0 %v3284
  %3302 = vmatprep.subr.bf16.mxu0 0
  %3303 = vmatpush2.bf16.msra.mxu0 0
  %3304 = vmatprep.subr.bf16.mxu0 0
  %3305 = vmatpush2.bf16.msra.mxu0 0
  %3306 = vmatprep.subr.bf16.mxu0 0
  %3307 = vmatpush2.bf16.msra.mxu0 0
  %3308 = vmatprep.subr.bf16.mxu0 0
  %3309 = vmatpush2.bf16.msra.mxu0 0
  %3310 = vmatprep.subr.bf16.mxu0 0
  %3311 = vmatpush2.bf16.msra.mxu0 0
  %3312 = vmatprep.subr.bf16.mxu0 0
  %3313 = vmatpush2.bf16.msra.mxu0 0
  %3314 = vmatprep.subr.bf16.mxu0 0
  %3315 = vmatpush2.bf16.msra.mxu0 0
  %3316 = vmatprep.subr.bf16.mxu0 0
  %3317 = vmatpush2.bf16.msra.mxu0 0
  %3318 = vmatprep.mubr.bf16.mxu0 0
  %3319 = vmatmul.mubr.bf16.gmra.mxu0 %v3278
  %v3320 = vpop.f32.mrf.mxu0
  %v3321 = vadd.f32 0.0, %v3320
  %v3322 = vpop.f32.mrf.mxu0
  %v3323 = vpop.f32.mrf.mxu0
  %v3324 = vadd.f32 0.0, %v3323
  %v3325 = vpop.f32.mrf.mxu0
  %3326 = vmatprep.mubr.bf16.mxu0 0
  %3327 = vmatmul.mubr.bf16.gmra.mxu0 %v3281
  %v3328 = vpop.f32.mrf.mxu0
  %v3329 = vadd.f32 0.0, %v3328
  %v3330 = vpop.f32.mrf.mxu0
  %v3331 = vpop.f32.mrf.mxu0
  %v3332 = vadd.f32 0.0, %v3331
  %v3333 = vpop.f32.mrf.mxu0
  %3334 = vdwg.mxu0
  %v3335 = vadd.f32 %v3249, %v3321
  %v3336 = vadd.f32 %v3250, %v3324
  %v3337 = vadd.f32 %v3251, %v3329
  %v3338 = vadd.f32 %v3252, %v3332
  %v3339 = vld [vmem:[%s605] sm:$0x1]
  %v3341 = vlaneseq
  %v3342 = vshrl.u32 %v3341, 7
  %v3343 = vsub.s32 0, %v3342
  %v3344 = vrot.slane %v3339, %v3343
  %v3346 = vmul.f32 %v604, %v3344
  %s3347 = scalar_lea.vmem %s2, 240
  %v3348 = vld [vmem:[%s3347] sm:$0xf]
  %v3349 = vld [vmem:[%s3347 + $0x4] sm:$0xf]
  %v3350 = vld [vmem:[%s3347 + $0x8] sm:$0xf]
  %v3351 = vld [vmem:[%s3347 + $0xc] sm:$0xf]
  %v3352 = vpack.c.bf16 %v3346, %v3346
  %v3357 = vunpack.c.l.b16 %v3348
  %v3358 = vunpack.c.l.b16 %v3349
  %v3359 = vunpack.c.l.b16 %v3350
  %v3360 = vunpack.c.l.b16 %v3351
  %v3361 = vpack.c.b16 %v3358, %v3357
  %v3362 = vpack.c.b16 %v3360, %v3359
  %v3364 = vsel %vm130, %v3361, 0
  %v3367 = vsel %vm130, %v3362, 0
  %v3370 = vsel %vm137, %v3352, 0
  %3372 = vmatprep.subr.bf16.mxu0 0
  %3373 = vmatpush1.bf16.msra.mxu0 0
  %3374 = vmatprep.subr.bf16.mxu0 0
  %3375 = vmatpush1.bf16.msra.mxu0 0
  %3376 = vmatprep.subr.bf16.mxu0 0
  %3377 = vmatpush1.bf16.msra.mxu0 0
  %3378 = vmatprep.subr.bf16.mxu0 0
  %3379 = vmatpush1.bf16.msra.mxu0 0
  %3380 = vmatprep.subr.bf16.mxu0 0
  %3381 = vmatpush1.bf16.msra.mxu0 0
  %3382 = vmatprep.subr.bf16.mxu0 0
  %3383 = vmatpush1.bf16.msra.mxu0 0
  %3384 = vmatprep.subr.bf16.mxu0 0
  %3385 = vmatpush1.bf16.msra.mxu0 0
  %3386 = vmatprep.subr.bf16.mxu0 0
  %3387 = vmatpush1.bf16.msra.mxu0 %v3370
  %3388 = vmatprep.subr.bf16.mxu0 0
  %3389 = vmatpush2.bf16.msra.mxu0 0
  %3390 = vmatprep.subr.bf16.mxu0 0
  %3391 = vmatpush2.bf16.msra.mxu0 0
  %3392 = vmatprep.subr.bf16.mxu0 0
  %3393 = vmatpush2.bf16.msra.mxu0 0
  %3394 = vmatprep.subr.bf16.mxu0 0
  %3395 = vmatpush2.bf16.msra.mxu0 0
  %3396 = vmatprep.subr.bf16.mxu0 0
  %3397 = vmatpush2.bf16.msra.mxu0 0
  %3398 = vmatprep.subr.bf16.mxu0 0
  %3399 = vmatpush2.bf16.msra.mxu0 0
  %3400 = vmatprep.subr.bf16.mxu0 0
  %3401 = vmatpush2.bf16.msra.mxu0 0
  %3402 = vmatprep.subr.bf16.mxu0 0
  %3403 = vmatpush2.bf16.msra.mxu0 0
  %3404 = vmatprep.mubr.bf16.mxu0 0
  %3405 = vmatmul.mubr.bf16.gmra.mxu0 %v3364
  %v3406 = vpop.f32.mrf.mxu0
  %v3407 = vadd.f32 0.0, %v3406
  %v3408 = vpop.f32.mrf.mxu0
  %v3409 = vpop.f32.mrf.mxu0
  %v3410 = vadd.f32 0.0, %v3409
  %v3411 = vpop.f32.mrf.mxu0
  %3412 = vmatprep.mubr.bf16.mxu0 0
  %3413 = vmatmul.mubr.bf16.gmra.mxu0 %v3367
  %v3414 = vpop.f32.mrf.mxu0
  %v3415 = vadd.f32 0.0, %v3414
  %v3416 = vpop.f32.mrf.mxu0
  %v3417 = vpop.f32.mrf.mxu0
  %v3418 = vadd.f32 0.0, %v3417
  %v3419 = vpop.f32.mrf.mxu0
  %3420 = vdwg.mxu0
  %v3421 = vadd.f32 %v3335, %v3407
  %v3422 = vadd.f32 %v3336, %v3410
  %v3423 = vadd.f32 %v3337, %v3415
  %v3424 = vadd.f32 %v3338, %v3418
  %v3425 = vld [vmem:[%s694] sm:$0x1]
  %v3427 = vlaneseq
  %v3428 = vshrl.u32 %v3427, 7
  %v3429 = vsub.s32 0, %v3428
  %v3430 = vrot.slane %v3425, %v3429
  %v3432 = vmul.f32 %v693, %v3430
  %s3433 = scalar_lea.vmem %s2, 256
  %v3434 = vld [vmem:[%s3433] sm:$0xf]
  %v3435 = vld [vmem:[%s3433 + $0x4] sm:$0xf]
  %v3436 = vld [vmem:[%s3433 + $0x8] sm:$0xf]
  %v3437 = vld [vmem:[%s3433 + $0xc] sm:$0xf]
  %v3438 = vpack.c.bf16 %v3432, %v3432
  %v3443 = vunpack.c.l.b16 %v3434
  %v3444 = vunpack.c.l.b16 %v3435
  %v3445 = vunpack.c.l.b16 %v3436
  %v3446 = vunpack.c.l.b16 %v3437
  %v3447 = vpack.c.b16 %v3444, %v3443
  %v3448 = vpack.c.b16 %v3446, %v3445
  %v3450 = vsel %vm130, %v3447, 0
  %v3453 = vsel %vm130, %v3448, 0
  %v3456 = vsel %vm137, %v3438, 0
  %3458 = vmatprep.subr.bf16.mxu0 0
  %3459 = vmatpush1.bf16.msra.mxu0 0
  %3460 = vmatprep.subr.bf16.mxu0 0
  %3461 = vmatpush1.bf16.msra.mxu0 0
  %3462 = vmatprep.subr.bf16.mxu0 0
  %3463 = vmatpush1.bf16.msra.mxu0 0
  %3464 = vmatprep.subr.bf16.mxu0 0
  %3465 = vmatpush1.bf16.msra.mxu0 0
  %3466 = vmatprep.subr.bf16.mxu0 0
  %3467 = vmatpush1.bf16.msra.mxu0 0
  %3468 = vmatprep.subr.bf16.mxu0 0
  %3469 = vmatpush1.bf16.msra.mxu0 0
  %3470 = vmatprep.subr.bf16.mxu0 0
  %3471 = vmatpush1.bf16.msra.mxu0 0
  %3472 = vmatprep.subr.bf16.mxu0 0
  %3473 = vmatpush1.bf16.msra.mxu0 %v3456
  %3474 = vmatprep.subr.bf16.mxu0 0
  %3475 = vmatpush2.bf16.msra.mxu0 0
  %3476 = vmatprep.subr.bf16.mxu0 0
  %3477 = vmatpush2.bf16.msra.mxu0 0
  %3478 = vmatprep.subr.bf16.mxu0 0
  %3479 = vmatpush2.bf16.msra.mxu0 0
  %3480 = vmatprep.subr.bf16.mxu0 0
  %3481 = vmatpush2.bf16.msra.mxu0 0
  %3482 = vmatprep.subr.bf16.mxu0 0
  %3483 = vmatpush2.bf16.msra.mxu0 0
  %3484 = vmatprep.subr.bf16.mxu0 0
  %3485 = vmatpush2.bf16.msra.mxu0 0
  %3486 = vmatprep.subr.bf16.mxu0 0
  %3487 = vmatpush2.bf16.msra.mxu0 0
  %3488 = vmatprep.subr.bf16.mxu0 0
  %3489 = vmatpush2.bf16.msra.mxu0 0
  %3490 = vmatprep.mubr.bf16.mxu0 0
  %3491 = vmatmul.mubr.bf16.gmra.mxu0 %v3450
  %v3492 = vpop.f32.mrf.mxu0
  %v3493 = vadd.f32 0.0, %v3492
  %v3494 = vpop.f32.mrf.mxu0
  %v3495 = vpop.f32.mrf.mxu0
  %v3496 = vadd.f32 0.0, %v3495
  %v3497 = vpop.f32.mrf.mxu0
  %3498 = vmatprep.mubr.bf16.mxu0 0
  %3499 = vmatmul.mubr.bf16.gmra.mxu0 %v3453
  %v3500 = vpop.f32.mrf.mxu0
  %v3501 = vadd.f32 0.0, %v3500
  %v3502 = vpop.f32.mrf.mxu0
  %v3503 = vpop.f32.mrf.mxu0
  %v3504 = vadd.f32 0.0, %v3503
  %v3505 = vpop.f32.mrf.mxu0
  %3506 = vdwg.mxu0
  %v3507 = vadd.f32 %v3421, %v3493
  %v3508 = vadd.f32 %v3422, %v3496
  %v3509 = vadd.f32 %v3423, %v3501
  %v3510 = vadd.f32 %v3424, %v3504
  %v3511 = vld [vmem:[%s783] sm:$0x1]
  %v3513 = vlaneseq
  %v3514 = vshrl.u32 %v3513, 7
  %v3515 = vsub.s32 0, %v3514
  %v3516 = vrot.slane %v3511, %v3515
  %v3518 = vmul.f32 %v782, %v3516
  %s3519 = scalar_lea.vmem %s2, 272
  %v3520 = vld [vmem:[%s3519] sm:$0xf]
  %v3521 = vld [vmem:[%s3519 + $0x4] sm:$0xf]
  %v3522 = vld [vmem:[%s3519 + $0x8] sm:$0xf]
  %v3523 = vld [vmem:[%s3519 + $0xc] sm:$0xf]
  %v3524 = vpack.c.bf16 %v3518, %v3518
  %v3529 = vunpack.c.l.b16 %v3520
  %v3530 = vunpack.c.l.b16 %v3521
  %v3531 = vunpack.c.l.b16 %v3522
  %v3532 = vunpack.c.l.b16 %v3523
  %v3533 = vpack.c.b16 %v3530, %v3529
  %v3534 = vpack.c.b16 %v3532, %v3531
  %v3536 = vsel %vm130, %v3533, 0
  %v3539 = vsel %vm130, %v3534, 0
  %v3542 = vsel %vm137, %v3524, 0
  %3544 = vmatprep.subr.bf16.mxu0 0
  %3545 = vmatpush1.bf16.msra.mxu0 0
  %3546 = vmatprep.subr.bf16.mxu0 0
  %3547 = vmatpush1.bf16.msra.mxu0 0
  %3548 = vmatprep.subr.bf16.mxu0 0
  %3549 = vmatpush1.bf16.msra.mxu0 0
  %3550 = vmatprep.subr.bf16.mxu0 0
  %3551 = vmatpush1.bf16.msra.mxu0 0
  %3552 = vmatprep.subr.bf16.mxu0 0
  %3553 = vmatpush1.bf16.msra.mxu0 0
  %3554 = vmatprep.subr.bf16.mxu0 0
  %3555 = vmatpush1.bf16.msra.mxu0 0
  %3556 = vmatprep.subr.bf16.mxu0 0
  %3557 = vmatpush1.bf16.msra.mxu0 0
  %3558 = vmatprep.subr.bf16.mxu0 0
  %3559 = vmatpush1.bf16.msra.mxu0 %v3542
  %3560 = vmatprep.subr.bf16.mxu0 0
  %3561 = vmatpush2.bf16.msra.mxu0 0
  %3562 = vmatprep.subr.bf16.mxu0 0
  %3563 = vmatpush2.bf16.msra.mxu0 0
  %3564 = vmatprep.subr.bf16.mxu0 0
  %3565 = vmatpush2.bf16.msra.mxu0 0
  %3566 = vmatprep.subr.bf16.mxu0 0
  %3567 = vmatpush2.bf16.msra.mxu0 0
  %3568 = vmatprep.subr.bf16.mxu0 0
  %3569 = vmatpush2.bf16.msra.mxu0 0
  %3570 = vmatprep.subr.bf16.mxu0 0
  %3571 = vmatpush2.bf16.msra.mxu0 0
  %3572 = vmatprep.subr.bf16.mxu0 0
  %3573 = vmatpush2.bf16.msra.mxu0 0
  %3574 = vmatprep.subr.bf16.mxu0 0
  %3575 = vmatpush2.bf16.msra.mxu0 0
  %3576 = vmatprep.mubr.bf16.mxu0 0
  %3577 = vmatmul.mubr.bf16.gmra.mxu0 %v3536
  %v3578 = vpop.f32.mrf.mxu0
  %v3579 = vadd.f32 0.0, %v3578
  %v3580 = vpop.f32.mrf.mxu0
  %v3581 = vpop.f32.mrf.mxu0
  %v3582 = vadd.f32 0.0, %v3581
  %v3583 = vpop.f32.mrf.mxu0
  %3584 = vmatprep.mubr.bf16.mxu0 0
  %3585 = vmatmul.mubr.bf16.gmra.mxu0 %v3539
  %v3586 = vpop.f32.mrf.mxu0
  %v3587 = vadd.f32 0.0, %v3586
  %v3588 = vpop.f32.mrf.mxu0
  %v3589 = vpop.f32.mrf.mxu0
  %v3590 = vadd.f32 0.0, %v3589
  %v3591 = vpop.f32.mrf.mxu0
  %3592 = vdwg.mxu0
  %v3593 = vadd.f32 %v3507, %v3579
  %v3594 = vadd.f32 %v3508, %v3582
  %v3595 = vadd.f32 %v3509, %v3587
  %v3596 = vadd.f32 %v3510, %v3590
  %s3597 = scalar_lea.vmem %s3, 32
  %v3598 = vld [vmem:[%s3597] sm:$0xff]
  %v3599 = vld [vmem:[%s3597 + $0x8] sm:$0xff]
  %v3600 = vld [vmem:[%s3597 + $0x10] sm:$0xff]
  %v3601 = vld [vmem:[%s3597 + $0x18] sm:$0xff]
  %3603 = vset.pattern.permute.xlu0 0
  %3604 = vperm.xlu0 %3603, %v3598
  %v3605 = vpop.permute.xlu0 %3604
  %3608 = vset.pattern.permute.xlu0 0
  %3609 = vperm.xlu0 %3608, %v3599
  %v3610 = vpop.permute.xlu0 %3609
  %3613 = vset.pattern.permute.xlu0 0
  %3614 = vperm.xlu0 %3613, %v3600
  %v3615 = vpop.permute.xlu0 %3614
  %3618 = vset.pattern.permute.xlu0 0
  %3619 = vperm.xlu0 %3618, %v3601
  %v3620 = vpop.permute.xlu0 %3619
  %v3622 = vmul.f32 %v3593, %v3605
  %v3623 = vmul.f32 %v3594, %v3610
  %v3624 = vmul.f32 %v3595, %v3615
  %v3625 = vmul.f32 %v3596, %v3620
  %s3626 = scalar_lea.vmem %s4, 32
  %v3627 = vld [vmem:[%s3626] sm:$0xff]
  %v3628 = vld [vmem:[%s3626 + $0x8] sm:$0xff]
  %v3629 = vld [vmem:[%s3626 + $0x10] sm:$0xff]
  %v3630 = vld [vmem:[%s3626 + $0x18] sm:$0xff]
  %3632 = vset.pattern.permute.xlu0 0
  %3633 = vperm.xlu0 %3632, %v3627
  %v3634 = vpop.permute.xlu0 %3633
  %3637 = vset.pattern.permute.xlu0 0
  %3638 = vperm.xlu0 %3637, %v3628
  %v3639 = vpop.permute.xlu0 %3638
  %3642 = vset.pattern.permute.xlu0 0
  %3643 = vperm.xlu0 %3642, %v3629
  %v3644 = vpop.permute.xlu0 %3643
  %3647 = vset.pattern.permute.xlu0 0
  %3648 = vperm.xlu0 %3647, %v3630
  %v3649 = vpop.permute.xlu0 %3648
  %v3651 = vadd.f32 %v3622, %v3634
  %v3652 = vadd.f32 %v3623, %v3639
  %v3653 = vadd.f32 %v3624, %v3644
  %v3654 = vadd.f32 %v3625, %v3649
  %v3655 = vmax.f32 %v3651, 0.0
  %v3656 = vmax.f32 %v3652, 0.0
  %v3657 = vmax.f32 %v3653, 0.0
  %v3658 = vmax.f32 %v3654, 0.0
  %3659 = vrot.lane.b32.xlu0 %v3655, 9
  %v3660 = vpop.permute.xlu0 %3659
  %3661 = vrot.lane.b32.xlu0 %v3656, 9
  %v3662 = vpop.permute.xlu0 %3661
  %3663 = vrot.lane.b32.xlu0 %v3657, 9
  %v3664 = vpop.permute.xlu0 %3663
  %3665 = vrot.lane.b32.xlu0 %v3658, 9
  %v3666 = vpop.permute.xlu0 %3665
  %v3667 = vmul.f32 %v3660, %v2848
  %v3668 = vmul.f32 %v3662, %v2848
  %v3669 = vmul.f32 %v3664, %v2848
  %v3670 = vmul.f32 %v3666, %v2848
  %s3671 = scalar_lea.vmem %s5, 72
  %v3672 = vld [vmem:[%s3671] sm:$0xf]
  %v3673 = vld [vmem:[%s3671 + $0x4] sm:$0xf]
  %v3674 = vpack.c.bf16 %v3668, %v3667
  %v3675 = vpack.c.bf16 %v3670, %v3669
  %3676 = vrot.lane.b32.xlu0 %v3655, 8
  %v3677 = vpop.permute.xlu0 %3676
  %3678 = vrot.lane.b32.xlu0 %v3656, 8
  %v3679 = vpop.permute.xlu0 %3678
  %3680 = vrot.lane.b32.xlu0 %v3657, 8
  %v3681 = vpop.permute.xlu0 %3680
  %3682 = vrot.lane.b32.xlu0 %v3658, 8
  %v3683 = vpop.permute.xlu0 %3682
  %v3684 = vmul.f32 %v3677, %v2862
  %v3685 = vmul.f32 %v3679, %v2862
  %v3686 = vmul.f32 %v3681, %v2862
  %v3687 = vmul.f32 %v3683, %v2862
  %s3688 = scalar_lea.vmem %s5, 80
  %v3689 = vld [vmem:[%s3688] sm:$0xf]
  %v3690 = vld [vmem:[%s3688 + $0x4] sm:$0xf]
  %v3691 = vpack.c.bf16 %v3685, %v3684
  %v3692 = vpack.c.bf16 %v3687, %v3686
  %v3695 = vunpack.c.l.b16 %v3689
  %v3696 = vunpack.c.l.b16 %v3690
  %v3697 = vpack.c.b16 %v3696, %v3695
  %v3699 = vsel %vm968, %v3697, 0
  %3701 = vmatprep.subr.bf16.mxu0 0
  %3702 = vmatpush1.bf16.msra.mxu0 0
  %3703 = vmatprep.subr.bf16.mxu0 0
  %3704 = vmatpush1.bf16.msra.mxu0 0
  %3705 = vmatprep.subr.bf16.mxu0 0
  %3706 = vmatpush1.bf16.msra.mxu0 0
  %3707 = vmatprep.subr.bf16.mxu0 0
  %3708 = vmatpush1.bf16.msra.mxu0 0
  %3709 = vmatprep.subr.bf16.mxu0 0
  %3710 = vmatpush1.bf16.msra.mxu0 0
  %3711 = vmatprep.subr.bf16.mxu0 0
  %3712 = vmatpush1.bf16.msra.mxu0 0
  %3713 = vmatprep.subr.bf16.mxu0 0
  %3714 = vmatpush1.bf16.msra.mxu0 %v3692
  %3715 = vmatprep.subr.bf16.mxu0 0
  %3716 = vmatpush1.bf16.msra.mxu0 %v3691
  %3717 = vmatprep.subr.bf16.mxu0 0
  %3718 = vmatpush2.bf16.msra.mxu0 0
  %3719 = vmatprep.subr.bf16.mxu0 0
  %3720 = vmatpush2.bf16.msra.mxu0 0
  %3721 = vmatprep.subr.bf16.mxu0 0
  %3722 = vmatpush2.bf16.msra.mxu0 0
  %3723 = vmatprep.subr.bf16.mxu0 0
  %3724 = vmatpush2.bf16.msra.mxu0 0
  %3725 = vmatprep.subr.bf16.mxu0 0
  %3726 = vmatpush2.bf16.msra.mxu0 0
  %3727 = vmatprep.subr.bf16.mxu0 0
  %3728 = vmatpush2.bf16.msra.mxu0 0
  %3729 = vmatprep.subr.bf16.mxu0 0
  %3730 = vmatpush2.bf16.msra.mxu0 0
  %3731 = vmatprep.subr.bf16.mxu0 0
  %3732 = vmatpush2.bf16.msra.mxu0 0
  %3733 = vmatprep.mubr.bf16.mxu0 0
  %3734 = vmatmul.mubr.bf16.gmra.mxu0 %v3699
  %v3735 = vpop.f32.mrf.mxu0
  %v3736 = vadd.f32 0.0, %v3735
  %v3737 = vpop.f32.mrf.mxu0
  %v3738 = vpop.f32.mrf.mxu0
  %v3739 = vadd.f32 0.0, %v3738
  %v3740 = vpop.f32.mrf.mxu0
  %3741 = vdwg.mxu0
  %v3744 = vunpack.c.l.b16 %v3672
  %v3745 = vunpack.c.l.b16 %v3673
  %v3746 = vpack.c.b16 %v3745, %v3744
  %v3748 = vsel %vm968, %v3746, 0
  %3750 = vmatprep.subr.bf16.mxu0 0
  %3751 = vmatpush1.bf16.msra.mxu0 0
  %3752 = vmatprep.subr.bf16.mxu0 0
  %3753 = vmatpush1.bf16.msra.mxu0 0
  %3754 = vmatprep.subr.bf16.mxu0 0
  %3755 = vmatpush1.bf16.msra.mxu0 0
  %3756 = vmatprep.subr.bf16.mxu0 0
  %3757 = vmatpush1.bf16.msra.mxu0 0
  %3758 = vmatprep.subr.bf16.mxu0 0
  %3759 = vmatpush1.bf16.msra.mxu0 0
  %3760 = vmatprep.subr.bf16.mxu0 0
  %3761 = vmatpush1.bf16.msra.mxu0 0
  %3762 = vmatprep.subr.bf16.mxu0 0
  %3763 = vmatpush1.bf16.msra.mxu0 %v3675
  %3764 = vmatprep.subr.bf16.mxu0 0
  %3765 = vmatpush1.bf16.msra.mxu0 %v3674
  %3766 = vmatprep.subr.bf16.mxu0 0
  %3767 = vmatpush2.bf16.msra.mxu0 0
  %3768 = vmatprep.subr.bf16.mxu0 0
  %3769 = vmatpush2.bf16.msra.mxu0 0
  %3770 = vmatprep.subr.bf16.mxu0 0
  %3771 = vmatpush2.bf16.msra.mxu0 0
  %3772 = vmatprep.subr.bf16.mxu0 0
  %3773 = vmatpush2.bf16.msra.mxu0 0
  %3774 = vmatprep.subr.bf16.mxu0 0
  %3775 = vmatpush2.bf16.msra.mxu0 0
  %3776 = vmatprep.subr.bf16.mxu0 0
  %3777 = vmatpush2.bf16.msra.mxu0 0
  %3778 = vmatprep.subr.bf16.mxu0 0
  %3779 = vmatpush2.bf16.msra.mxu0 0
  %3780 = vmatprep.subr.bf16.mxu0 0
  %3781 = vmatpush2.bf16.msra.mxu0 0
  %3782 = vmatprep.mubr.bf16.mxu0 0
  %3783 = vmatmul.mubr.bf16.gmra.mxu0 %v3748
  %v3784 = vpop.f32.mrf.mxu0
  %v3785 = vadd.f32 %v3736, %v3784
  %v3786 = vpop.f32.mrf.mxu0
  %v3787 = vpop.f32.mrf.mxu0
  %v3788 = vadd.f32 %v3739, %v3787
  %v3789 = vpop.f32.mrf.mxu0
  %3790 = vdwg.mxu0
  %3791 = vrot.lane.b32.xlu0 %v3655, 7
  %v3792 = vpop.permute.xlu0 %3791
  %3793 = vrot.lane.b32.xlu0 %v3656, 7
  %v3794 = vpop.permute.xlu0 %3793
  %3795 = vrot.lane.b32.xlu0 %v3657, 7
  %v3796 = vpop.permute.xlu0 %3795
  %3797 = vrot.lane.b32.xlu0 %v3658, 7
  %v3798 = vpop.permute.xlu0 %3797
  %v3799 = vmul.f32 %v3792, %v3012
  %v3800 = vmul.f32 %v3794, %v3012
  %v3801 = vmul.f32 %v3796, %v3012
  %v3802 = vmul.f32 %v3798, %v3012
  %s3803 = scalar_lea.vmem %s5, 88
  %v3804 = vld [vmem:[%s3803] sm:$0xf]
  %v3805 = vld [vmem:[%s3803 + $0x4] sm:$0xf]
  %v3806 = vpack.c.bf16 %v3800, %v3799
  %v3807 = vpack.c.bf16 %v3802, %v3801
  %v3810 = vunpack.c.l.b16 %v3804
  %v3811 = vunpack.c.l.b16 %v3805
  %v3812 = vpack.c.b16 %v3811, %v3810
  %v3814 = vsel %vm968, %v3812, 0
  %3816 = vmatprep.subr.bf16.mxu0 0
  %3817 = vmatpush1.bf16.msra.mxu0 0
  %3818 = vmatprep.subr.bf16.mxu0 0
  %3819 = vmatpush1.bf16.msra.mxu0 0
  %3820 = vmatprep.subr.bf16.mxu0 0
  %3821 = vmatpush1.bf16.msra.mxu0 0
  %3822 = vmatprep.subr.bf16.mxu0 0
  %3823 = vmatpush1.bf16.msra.mxu0 0
  %3824 = vmatprep.subr.bf16.mxu0 0
  %3825 = vmatpush1.bf16.msra.mxu0 0
  %3826 = vmatprep.subr.bf16.mxu0 0
  %3827 = vmatpush1.bf16.msra.mxu0 0
  %3828 = vmatprep.subr.bf16.mxu0 0
  %3829 = vmatpush1.bf16.msra.mxu0 %v3807
  %3830 = vmatprep.subr.bf16.mxu0 0
  %3831 = vmatpush1.bf16.msra.mxu0 %v3806
  %3832 = vmatprep.subr.bf16.mxu0 0
  %3833 = vmatpush2.bf16.msra.mxu0 0
  %3834 = vmatprep.subr.bf16.mxu0 0
  %3835 = vmatpush2.bf16.msra.mxu0 0
  %3836 = vmatprep.subr.bf16.mxu0 0
  %3837 = vmatpush2.bf16.msra.mxu0 0
  %3838 = vmatprep.subr.bf16.mxu0 0
  %3839 = vmatpush2.bf16.msra.mxu0 0
  %3840 = vmatprep.subr.bf16.mxu0 0
  %3841 = vmatpush2.bf16.msra.mxu0 0
  %3842 = vmatprep.subr.bf16.mxu0 0
  %3843 = vmatpush2.bf16.msra.mxu0 0
  %3844 = vmatprep.subr.bf16.mxu0 0
  %3845 = vmatpush2.bf16.msra.mxu0 0
  %3846 = vmatprep.subr.bf16.mxu0 0
  %3847 = vmatpush2.bf16.msra.mxu0 0
  %3848 = vmatprep.mubr.bf16.mxu0 0
  %3849 = vmatmul.mubr.bf16.gmra.mxu0 %v3814
  %v3850 = vpop.f32.mrf.mxu0
  %v3851 = vadd.f32 0.0, %v3850
  %v3852 = vpop.f32.mrf.mxu0
  %v3853 = vpop.f32.mrf.mxu0
  %v3854 = vadd.f32 0.0, %v3853
  %v3855 = vpop.f32.mrf.mxu0
  %3856 = vdwg.mxu0
  %v3857 = vadd.f32 %v3785, %v3851
  %v3858 = vadd.f32 %v3788, %v3854
  %3859 = vrot.lane.b32.xlu0 %v3655, 1
  %v3860 = vpop.permute.xlu0 %3859
  %3861 = vrot.lane.b32.xlu0 %v3656, 1
  %v3862 = vpop.permute.xlu0 %3861
  %3863 = vrot.lane.b32.xlu0 %v3657, 1
  %v3864 = vpop.permute.xlu0 %3863
  %3865 = vrot.lane.b32.xlu0 %v3658, 1
  %v3866 = vpop.permute.xlu0 %3865
  %v3867 = vmul.f32 %v3860, %v3098
  %v3868 = vmul.f32 %v3862, %v3098
  %v3869 = vmul.f32 %v3864, %v3098
  %v3870 = vmul.f32 %v3866, %v3098
  %s3871 = scalar_lea.vmem %s5, 96
  %v3872 = vld [vmem:[%s3871] sm:$0xf]
  %v3873 = vld [vmem:[%s3871 + $0x4] sm:$0xf]
  %v3874 = vpack.c.bf16 %v3868, %v3867
  %v3875 = vpack.c.bf16 %v3870, %v3869
  %v3878 = vunpack.c.l.b16 %v3872
  %v3879 = vunpack.c.l.b16 %v3873
  %v3880 = vpack.c.b16 %v3879, %v3878
  %v3882 = vsel %vm968, %v3880, 0
  %3884 = vmatprep.subr.bf16.mxu0 0
  %3885 = vmatpush1.bf16.msra.mxu0 0
  %3886 = vmatprep.subr.bf16.mxu0 0
  %3887 = vmatpush1.bf16.msra.mxu0 0
  %3888 = vmatprep.subr.bf16.mxu0 0
  %3889 = vmatpush1.bf16.msra.mxu0 0
  %3890 = vmatprep.subr.bf16.mxu0 0
  %3891 = vmatpush1.bf16.msra.mxu0 0
  %3892 = vmatprep.subr.bf16.mxu0 0
  %3893 = vmatpush1.bf16.msra.mxu0 0
  %3894 = vmatprep.subr.bf16.mxu0 0
  %3895 = vmatpush1.bf16.msra.mxu0 0
  %3896 = vmatprep.subr.bf16.mxu0 0
  %3897 = vmatpush1.bf16.msra.mxu0 %v3875
  %3898 = vmatprep.subr.bf16.mxu0 0
  %3899 = vmatpush1.bf16.msra.mxu0 %v3874
  %3900 = vmatprep.subr.bf16.mxu0 0
  %3901 = vmatpush2.bf16.msra.mxu0 0
  %3902 = vmatprep.subr.bf16.mxu0 0
  %3903 = vmatpush2.bf16.msra.mxu0 0
  %3904 = vmatprep.subr.bf16.mxu0 0
  %3905 = vmatpush2.bf16.msra.mxu0 0
  %3906 = vmatprep.subr.bf16.mxu0 0
  %3907 = vmatpush2.bf16.msra.mxu0 0
  %3908 = vmatprep.subr.bf16.mxu0 0
  %3909 = vmatpush2.bf16.msra.mxu0 0
  %3910 = vmatprep.subr.bf16.mxu0 0
  %3911 = vmatpush2.bf16.msra.mxu0 0
  %3912 = vmatprep.subr.bf16.mxu0 0
  %3913 = vmatpush2.bf16.msra.mxu0 0
  %3914 = vmatprep.subr.bf16.mxu0 0
  %3915 = vmatpush2.bf16.msra.mxu0 0
  %3916 = vmatprep.mubr.bf16.mxu0 0
  %3917 = vmatmul.mubr.bf16.gmra.mxu0 %v3882
  %v3918 = vpop.f32.mrf.mxu0
  %v3919 = vadd.f32 0.0, %v3918
  %v3920 = vpop.f32.mrf.mxu0
  %v3921 = vpop.f32.mrf.mxu0
  %v3922 = vadd.f32 0.0, %v3921
  %v3923 = vpop.f32.mrf.mxu0
  %3924 = vdwg.mxu0
  %v3925 = vadd.f32 %v3857, %v3919
  %v3926 = vadd.f32 %v3858, %v3922
  %s3927 = scalar_lea.vmem %s5, 104
  %v3928 = vld [vmem:[%s3927] sm:$0xf]
  %v3929 = vld [vmem:[%s3927 + $0x4] sm:$0xf]
  %v3930 = vpack.c.bf16 %v3656, %v3655
  %v3931 = vpack.c.bf16 %v3658, %v3657
  %v3934 = vunpack.c.l.b16 %v3928
  %v3935 = vunpack.c.l.b16 %v3929
  %v3936 = vpack.c.b16 %v3935, %v3934
  %v3938 = vsel %vm968, %v3936, 0
  %3940 = vmatprep.subr.bf16.mxu0 0
  %3941 = vmatpush1.bf16.msra.mxu0 0
  %3942 = vmatprep.subr.bf16.mxu0 0
  %3943 = vmatpush1.bf16.msra.mxu0 0
  %3944 = vmatprep.subr.bf16.mxu0 0
  %3945 = vmatpush1.bf16.msra.mxu0 0
  %3946 = vmatprep.subr.bf16.mxu0 0
  %3947 = vmatpush1.bf16.msra.mxu0 0
  %3948 = vmatprep.subr.bf16.mxu0 0
  %3949 = vmatpush1.bf16.msra.mxu0 0
  %3950 = vmatprep.subr.bf16.mxu0 0
  %3951 = vmatpush1.bf16.msra.mxu0 0
  %3952 = vmatprep.subr.bf16.mxu0 0
  %3953 = vmatpush1.bf16.msra.mxu0 %v3931
  %3954 = vmatprep.subr.bf16.mxu0 0
  %3955 = vmatpush1.bf16.msra.mxu0 %v3930
  %3956 = vmatprep.subr.bf16.mxu0 0
  %3957 = vmatpush2.bf16.msra.mxu0 0
  %3958 = vmatprep.subr.bf16.mxu0 0
  %3959 = vmatpush2.bf16.msra.mxu0 0
  %3960 = vmatprep.subr.bf16.mxu0 0
  %3961 = vmatpush2.bf16.msra.mxu0 0
  %3962 = vmatprep.subr.bf16.mxu0 0
  %3963 = vmatpush2.bf16.msra.mxu0 0
  %3964 = vmatprep.subr.bf16.mxu0 0
  %3965 = vmatpush2.bf16.msra.mxu0 0
  %3966 = vmatprep.subr.bf16.mxu0 0
  %3967 = vmatpush2.bf16.msra.mxu0 0
  %3968 = vmatprep.subr.bf16.mxu0 0
  %3969 = vmatpush2.bf16.msra.mxu0 0
  %3970 = vmatprep.subr.bf16.mxu0 0
  %3971 = vmatpush2.bf16.msra.mxu0 0
  %3972 = vmatprep.mubr.bf16.mxu0 0
  %3973 = vmatmul.mubr.bf16.gmra.mxu0 %v3938
  %v3974 = vpop.f32.mrf.mxu0
  %v3975 = vadd.f32 0.0, %v3974
  %v3976 = vpop.f32.mrf.mxu0
  %v3977 = vpop.f32.mrf.mxu0
  %v3978 = vadd.f32 0.0, %v3977
  %v3979 = vpop.f32.mrf.mxu0
  %3980 = vdwg.mxu0
  %v3981 = vadd.f32 %v3925, %v3975
  %v3982 = vadd.f32 %v3926, %v3978
  %3983 = vrot.lane.b32.xlu0 %v3655, 127
  %v3984 = vpop.permute.xlu0 %3983
  %3985 = vrot.lane.b32.xlu0 %v3656, 127
  %v3986 = vpop.permute.xlu0 %3985
  %3987 = vrot.lane.b32.xlu0 %v3657, 127
  %v3988 = vpop.permute.xlu0 %3987
  %3989 = vrot.lane.b32.xlu0 %v3658, 127
  %v3990 = vpop.permute.xlu0 %3989
  %v3991 = vmul.f32 %v3984, %v3258
  %v3992 = vmul.f32 %v3986, %v3258
  %v3993 = vmul.f32 %v3988, %v3258
  %v3994 = vmul.f32 %v3990, %v3258
  %s3995 = scalar_lea.vmem %s5, 112
  %v3996 = vld [vmem:[%s3995] sm:$0xf]
  %v3997 = vld [vmem:[%s3995 + $0x4] sm:$0xf]
  %v3998 = vpack.c.bf16 %v3992, %v3991
  %v3999 = vpack.c.bf16 %v3994, %v3993
  %v4002 = vunpack.c.l.b16 %v3996
  %v4003 = vunpack.c.l.b16 %v3997
  %v4004 = vpack.c.b16 %v4003, %v4002
  %v4006 = vsel %vm968, %v4004, 0
  %4008 = vmatprep.subr.bf16.mxu0 0
  %4009 = vmatpush1.bf16.msra.mxu0 0
  %4010 = vmatprep.subr.bf16.mxu0 0
  %4011 = vmatpush1.bf16.msra.mxu0 0
  %4012 = vmatprep.subr.bf16.mxu0 0
  %4013 = vmatpush1.bf16.msra.mxu0 0
  %4014 = vmatprep.subr.bf16.mxu0 0
  %4015 = vmatpush1.bf16.msra.mxu0 0
  %4016 = vmatprep.subr.bf16.mxu0 0
  %4017 = vmatpush1.bf16.msra.mxu0 0
  %4018 = vmatprep.subr.bf16.mxu0 0
  %4019 = vmatpush1.bf16.msra.mxu0 0
  %4020 = vmatprep.subr.bf16.mxu0 0
  %4021 = vmatpush1.bf16.msra.mxu0 %v3999
  %4022 = vmatprep.subr.bf16.mxu0 0
  %4023 = vmatpush1.bf16.msra.mxu0 %v3998
  %4024 = vmatprep.subr.bf16.mxu0 0
  %4025 = vmatpush2.bf16.msra.mxu0 0
  %4026 = vmatprep.subr.bf16.mxu0 0
  %4027 = vmatpush2.bf16.msra.mxu0 0
  %4028 = vmatprep.subr.bf16.mxu0 0
  %4029 = vmatpush2.bf16.msra.mxu0 0
  %4030 = vmatprep.subr.bf16.mxu0 0
  %4031 = vmatpush2.bf16.msra.mxu0 0
  %4032 = vmatprep.subr.bf16.mxu0 0
  %4033 = vmatpush2.bf16.msra.mxu0 0
  %4034 = vmatprep.subr.bf16.mxu0 0
  %4035 = vmatpush2.bf16.msra.mxu0 0
  %4036 = vmatprep.subr.bf16.mxu0 0
  %4037 = vmatpush2.bf16.msra.mxu0 0
  %4038 = vmatprep.subr.bf16.mxu0 0
  %4039 = vmatpush2.bf16.msra.mxu0 0
  %4040 = vmatprep.mubr.bf16.mxu0 0
  %4041 = vmatmul.mubr.bf16.gmra.mxu0 %v4006
  %v4042 = vpop.f32.mrf.mxu0
  %v4043 = vadd.f32 0.0, %v4042
  %v4044 = vpop.f32.mrf.mxu0
  %v4045 = vpop.f32.mrf.mxu0
  %v4046 = vadd.f32 0.0, %v4045
  %v4047 = vpop.f32.mrf.mxu0
  %4048 = vdwg.mxu0
  %v4049 = vadd.f32 %v3981, %v4043
  %v4050 = vadd.f32 %v3982, %v4046
  %4051 = vrot.lane.b32.xlu0 %v3655, 121
  %v4052 = vpop.permute.xlu0 %4051
  %4053 = vrot.lane.b32.xlu0 %v3656, 121
  %v4054 = vpop.permute.xlu0 %4053
  %4055 = vrot.lane.b32.xlu0 %v3657, 121
  %v4056 = vpop.permute.xlu0 %4055
  %4057 = vrot.lane.b32.xlu0 %v3658, 121
  %v4058 = vpop.permute.xlu0 %4057
  %v4059 = vmul.f32 %v4052, %v3344
  %v4060 = vmul.f32 %v4054, %v3344
  %v4061 = vmul.f32 %v4056, %v3344
  %v4062 = vmul.f32 %v4058, %v3344
  %s4063 = scalar_lea.vmem %s5, 120
  %v4064 = vld [vmem:[%s4063] sm:$0xf]
  %v4065 = vld [vmem:[%s4063 + $0x4] sm:$0xf]
  %v4066 = vpack.c.bf16 %v4060, %v4059
  %v4067 = vpack.c.bf16 %v4062, %v4061
  %v4070 = vunpack.c.l.b16 %v4064
  %v4071 = vunpack.c.l.b16 %v4065
  %v4072 = vpack.c.b16 %v4071, %v4070
  %v4074 = vsel %vm968, %v4072, 0
  %4076 = vmatprep.subr.bf16.mxu0 0
  %4077 = vmatpush1.bf16.msra.mxu0 0
  %4078 = vmatprep.subr.bf16.mxu0 0
  %4079 = vmatpush1.bf16.msra.mxu0 0
  %4080 = vmatprep.subr.bf16.mxu0 0
  %4081 = vmatpush1.bf16.msra.mxu0 0
  %4082 = vmatprep.subr.bf16.mxu0 0
  %4083 = vmatpush1.bf16.msra.mxu0 0
  %4084 = vmatprep.subr.bf16.mxu0 0
  %4085 = vmatpush1.bf16.msra.mxu0 0
  %4086 = vmatprep.subr.bf16.mxu0 0
  %4087 = vmatpush1.bf16.msra.mxu0 0
  %4088 = vmatprep.subr.bf16.mxu0 0
  %4089 = vmatpush1.bf16.msra.mxu0 %v4067
  %4090 = vmatprep.subr.bf16.mxu0 0
  %4091 = vmatpush1.bf16.msra.mxu0 %v4066
  %4092 = vmatprep.subr.bf16.mxu0 0
  %4093 = vmatpush2.bf16.msra.mxu0 0
  %4094 = vmatprep.subr.bf16.mxu0 0
  %4095 = vmatpush2.bf16.msra.mxu0 0
  %4096 = vmatprep.subr.bf16.mxu0 0
  %4097 = vmatpush2.bf16.msra.mxu0 0
  %4098 = vmatprep.subr.bf16.mxu0 0
  %4099 = vmatpush2.bf16.msra.mxu0 0
  %4100 = vmatprep.subr.bf16.mxu0 0
  %4101 = vmatpush2.bf16.msra.mxu0 0
  %4102 = vmatprep.subr.bf16.mxu0 0
  %4103 = vmatpush2.bf16.msra.mxu0 0
  %4104 = vmatprep.subr.bf16.mxu0 0
  %4105 = vmatpush2.bf16.msra.mxu0 0
  %4106 = vmatprep.subr.bf16.mxu0 0
  %4107 = vmatpush2.bf16.msra.mxu0 0
  %4108 = vmatprep.mubr.bf16.mxu0 0
  %4109 = vmatmul.mubr.bf16.gmra.mxu0 %v4074
  %v4110 = vpop.f32.mrf.mxu0
  %v4111 = vadd.f32 0.0, %v4110
  %v4112 = vpop.f32.mrf.mxu0
  %v4113 = vpop.f32.mrf.mxu0
  %v4114 = vadd.f32 0.0, %v4113
  %v4115 = vpop.f32.mrf.mxu0
  %4116 = vdwg.mxu0
  %v4117 = vadd.f32 %v4049, %v4111
  %v4118 = vadd.f32 %v4050, %v4114
  %4119 = vrot.lane.b32.xlu0 %v3655, 120
  %v4120 = vpop.permute.xlu0 %4119
  %4121 = vrot.lane.b32.xlu0 %v3656, 120
  %v4122 = vpop.permute.xlu0 %4121
  %4123 = vrot.lane.b32.xlu0 %v3657, 120
  %v4124 = vpop.permute.xlu0 %4123
  %4125 = vrot.lane.b32.xlu0 %v3658, 120
  %v4126 = vpop.permute.xlu0 %4125
  %v4127 = vmul.f32 %v4120, %v3430
  %v4128 = vmul.f32 %v4122, %v3430
  %v4129 = vmul.f32 %v4124, %v3430
  %v4130 = vmul.f32 %v4126, %v3430
  %s4131 = scalar_lea.vmem %s5, 128
  %v4132 = vld [vmem:[%s4131] sm:$0xf]
  %v4133 = vld [vmem:[%s4131 + $0x4] sm:$0xf]
  %v4134 = vpack.c.bf16 %v4128, %v4127
  %v4135 = vpack.c.bf16 %v4130, %v4129
  %v4138 = vunpack.c.l.b16 %v4132
  %v4139 = vunpack.c.l.b16 %v4133
  %v4140 = vpack.c.b16 %v4139, %v4138
  %v4142 = vsel %vm968, %v4140, 0
  %4144 = vmatprep.subr.bf16.mxu0 0
  %4145 = vmatpush1.bf16.msra.mxu0 0
  %4146 = vmatprep.subr.bf16.mxu0 0
  %4147 = vmatpush1.bf16.msra.mxu0 0
  %4148 = vmatprep.subr.bf16.mxu0 0
  %4149 = vmatpush1.bf16.msra.mxu0 0
  %4150 = vmatprep.subr.bf16.mxu0 0
  %4151 = vmatpush1.bf16.msra.mxu0 0
  %4152 = vmatprep.subr.bf16.mxu0 0
  %4153 = vmatpush1.bf16.msra.mxu0 0
  %4154 = vmatprep.subr.bf16.mxu0 0
  %4155 = vmatpush1.bf16.msra.mxu0 0
  %4156 = vmatprep.subr.bf16.mxu0 0
  %4157 = vmatpush1.bf16.msra.mxu0 %v4135
  %4158 = vmatprep.subr.bf16.mxu0 0
  %4159 = vmatpush1.bf16.msra.mxu0 %v4134
  %4160 = vmatprep.subr.bf16.mxu0 0
  %4161 = vmatpush2.bf16.msra.mxu0 0
  %4162 = vmatprep.subr.bf16.mxu0 0
  %4163 = vmatpush2.bf16.msra.mxu0 0
  %4164 = vmatprep.subr.bf16.mxu0 0
  %4165 = vmatpush2.bf16.msra.mxu0 0
  %4166 = vmatprep.subr.bf16.mxu0 0
  %4167 = vmatpush2.bf16.msra.mxu0 0
  %4168 = vmatprep.subr.bf16.mxu0 0
  %4169 = vmatpush2.bf16.msra.mxu0 0
  %4170 = vmatprep.subr.bf16.mxu0 0
  %4171 = vmatpush2.bf16.msra.mxu0 0
  %4172 = vmatprep.subr.bf16.mxu0 0
  %4173 = vmatpush2.bf16.msra.mxu0 0
  %4174 = vmatprep.subr.bf16.mxu0 0
  %4175 = vmatpush2.bf16.msra.mxu0 0
  %4176 = vmatprep.mubr.bf16.mxu0 0
  %4177 = vmatmul.mubr.bf16.gmra.mxu0 %v4142
  %v4178 = vpop.f32.mrf.mxu0
  %v4179 = vadd.f32 0.0, %v4178
  %v4180 = vpop.f32.mrf.mxu0
  %v4181 = vpop.f32.mrf.mxu0
  %v4182 = vadd.f32 0.0, %v4181
  %v4183 = vpop.f32.mrf.mxu0
  %4184 = vdwg.mxu0
  %v4185 = vadd.f32 %v4117, %v4179
  %v4186 = vadd.f32 %v4118, %v4182
  %4187 = vrot.lane.b32.xlu0 %v3655, 119
  %v4188 = vpop.permute.xlu0 %4187
  %4189 = vrot.lane.b32.xlu0 %v3656, 119
  %v4190 = vpop.permute.xlu0 %4189
  %4191 = vrot.lane.b32.xlu0 %v3657, 119
  %v4192 = vpop.permute.xlu0 %4191
  %4193 = vrot.lane.b32.xlu0 %v3658, 119
  %v4194 = vpop.permute.xlu0 %4193
  %v4195 = vmul.f32 %v4188, %v3516
  %v4196 = vmul.f32 %v4190, %v3516
  %v4197 = vmul.f32 %v4192, %v3516
  %v4198 = vmul.f32 %v4194, %v3516
  %s4199 = scalar_lea.vmem %s5, 136
  %v4200 = vld [vmem:[%s4199] sm:$0xf]
  %v4201 = vld [vmem:[%s4199 + $0x4] sm:$0xf]
  %v4202 = vpack.c.bf16 %v4196, %v4195
  %v4203 = vpack.c.bf16 %v4198, %v4197
  %v4206 = vunpack.c.l.b16 %v4200
  %v4207 = vunpack.c.l.b16 %v4201
  %v4208 = vpack.c.b16 %v4207, %v4206
  %v4210 = vsel %vm968, %v4208, 0
  %4212 = vmatprep.subr.bf16.mxu0 0
  %4213 = vmatpush1.bf16.msra.mxu0 0
  %4214 = vmatprep.subr.bf16.mxu0 0
  %4215 = vmatpush1.bf16.msra.mxu0 0
  %4216 = vmatprep.subr.bf16.mxu0 0
  %4217 = vmatpush1.bf16.msra.mxu0 0
  %4218 = vmatprep.subr.bf16.mxu0 0
  %4219 = vmatpush1.bf16.msra.mxu0 0
  %4220 = vmatprep.subr.bf16.mxu0 0
  %4221 = vmatpush1.bf16.msra.mxu0 0
  %4222 = vmatprep.subr.bf16.mxu0 0
  %4223 = vmatpush1.bf16.msra.mxu0 0
  %4224 = vmatprep.subr.bf16.mxu0 0
  %4225 = vmatpush1.bf16.msra.mxu0 %v4203
  %4226 = vmatprep.subr.bf16.mxu0 0
  %4227 = vmatpush1.bf16.msra.mxu0 %v4202
  %4228 = vmatprep.subr.bf16.mxu0 0
  %4229 = vmatpush2.bf16.msra.mxu0 0
  %4230 = vmatprep.subr.bf16.mxu0 0
  %4231 = vmatpush2.bf16.msra.mxu0 0
  %4232 = vmatprep.subr.bf16.mxu0 0
  %4233 = vmatpush2.bf16.msra.mxu0 0
  %4234 = vmatprep.subr.bf16.mxu0 0
  %4235 = vmatpush2.bf16.msra.mxu0 0
  %4236 = vmatprep.subr.bf16.mxu0 0
  %4237 = vmatpush2.bf16.msra.mxu0 0
  %4238 = vmatprep.subr.bf16.mxu0 0
  %4239 = vmatpush2.bf16.msra.mxu0 0
  %4240 = vmatprep.subr.bf16.mxu0 0
  %4241 = vmatpush2.bf16.msra.mxu0 0
  %4242 = vmatprep.subr.bf16.mxu0 0
  %4243 = vmatpush2.bf16.msra.mxu0 0
  %4244 = vmatprep.mubr.bf16.mxu0 0
  %4245 = vmatmul.mubr.bf16.gmra.mxu0 %v4210
  %v4246 = vpop.f32.mrf.mxu0
  %v4247 = vadd.f32 0.0, %v4246
  %v4248 = vpop.f32.mrf.mxu0
  %v4249 = vpop.f32.mrf.mxu0
  %v4250 = vadd.f32 0.0, %v4249
  %v4251 = vpop.f32.mrf.mxu0
  %4252 = vdwg.mxu0
  %v4253 = vadd.f32 %v4185, %v4247
  %v4254 = vadd.f32 %v4186, %v4250
  %s4255 = scalar_lea.vmem %s6, 16
  %v4256 = vld [vmem:[%s4255] sm:$0xff]
  %v4257 = vld [vmem:[%s4255 + $0x8] sm:$0xff]
  %4259 = vset.pattern.permute.xlu0 0
  %4260 = vperm.xlu0 %4259, %v4256
  %v4261 = vpop.permute.xlu0 %4260
  %4264 = vset.pattern.permute.xlu0 0
  %4265 = vperm.xlu0 %4264, %v4257
  %v4266 = vpop.permute.xlu0 %4265
  %v4268 = vmul.f32 %v4253, %v4261
  %v4269 = vmul.f32 %v4254, %v4266
  %s4270 = scalar_lea.vmem %s7, 16
  %v4271 = vld [vmem:[%s4270] sm:$0xff]
  %v4272 = vld [vmem:[%s4270 + $0x8] sm:$0xff]
  %4274 = vset.pattern.permute.xlu0 0
  %4275 = vperm.xlu0 %4274, %v4271
  %v4276 = vpop.permute.xlu0 %4275
  %4279 = vset.pattern.permute.xlu0 0
  %4280 = vperm.xlu0 %4279, %v4272
  %v4281 = vpop.permute.xlu0 %4280
  %v4283 = vadd.f32 %v4268, %v4276
  %v4284 = vadd.f32 %v4269, %v4281
  %v4285 = vmax.f32 %v4283, 0.0
  %v4286 = vmax.f32 %v4284, 0.0
  %4287 = vrot.lane.b32.xlu0 %v4285, 9
  %v4288 = vpop.permute.xlu0 %4287
  %4289 = vrot.lane.b32.xlu0 %v4286, 9
  %v4290 = vpop.permute.xlu0 %4289
  %v4291 = vmul.f32 %v4288, %v2848
  %v4292 = vmul.f32 %v4290, %v2848
  %s4293 = scalar_lea.vmem %s8, 36
  %v4294 = vld [vmem:[%s4293] sm:$0xf]
  %v4295 = vpack.c.bf16 %v4292, %v4291
  %4296 = vrot.lane.b32.xlu0 %v4285, 8
  %v4297 = vpop.permute.xlu0 %4296
  %4298 = vrot.lane.b32.xlu0 %v4286, 8
  %v4299 = vpop.permute.xlu0 %4298
  %v4300 = vmul.f32 %v4297, %v2862
  %v4301 = vmul.f32 %v4299, %v2862
  %s4302 = scalar_lea.vmem %s8, 40
  %v4303 = vld [vmem:[%s4302] sm:$0xf]
  %v4304 = vpack.c.bf16 %v4301, %v4300
  %v4306 = vsel %vm1573, %v4303, 0
  %4308 = vmatprep.subr.bf16.mxu0 0
  %4309 = vmatpush1.bf16.msra.mxu0 0
  %4310 = vmatprep.subr.bf16.mxu0 0
  %4311 = vmatpush1.bf16.msra.mxu0 0
  %4312 = vmatprep.subr.bf16.mxu0 0
  %4313 = vmatpush1.bf16.msra.mxu0 0
  %4314 = vmatprep.subr.bf16.mxu0 0
  %4315 = vmatpush1.bf16.msra.mxu0 0
  %4316 = vmatprep.subr.bf16.mxu0 0
  %4317 = vmatpush1.bf16.msra.mxu0 0
  %4318 = vmatprep.subr.bf16.mxu0 0
  %4319 = vmatpush1.bf16.msra.mxu0 0
  %4320 = vmatprep.subr.bf16.mxu0 0
  %4321 = vmatpush1.bf16.msra.mxu0 0
  %4322 = vmatprep.subr.bf16.mxu0 0
  %4323 = vmatpush1.bf16.msra.mxu0 %v4304
  %4324 = vmatprep.subr.bf16.mxu0 0
  %4325 = vmatpush2.bf16.msra.mxu0 0
  %4326 = vmatprep.subr.bf16.mxu0 0
  %4327 = vmatpush2.bf16.msra.mxu0 0
  %4328 = vmatprep.subr.bf16.mxu0 0
  %4329 = vmatpush2.bf16.msra.mxu0 0
  %4330 = vmatprep.subr.bf16.mxu0 0
  %4331 = vmatpush2.bf16.msra.mxu0 0
  %4332 = vmatprep.subr.bf16.mxu0 0
  %4333 = vmatpush2.bf16.msra.mxu0 0
  %4334 = vmatprep.subr.bf16.mxu0 0
  %4335 = vmatpush2.bf16.msra.mxu0 0
  %4336 = vmatprep.subr.bf16.mxu0 0
  %4337 = vmatpush2.bf16.msra.mxu0 0
  %4338 = vmatprep.subr.bf16.mxu0 0
  %4339 = vmatpush2.bf16.msra.mxu0 0
  %4340 = vmatprep.mubr.bf16.mxu0 0
  %4341 = vmatmul.mubr.bf16.gmra.mxu0 %v4306
  %v4342 = vpop.f32.mrf.mxu0
  %v4343 = vadd.f32 0.0, %v4342
  %v4344 = vpop.f32.mrf.mxu0
  %v4345 = vpop.f32.mrf.mxu0
  %v4346 = vpop.f32.mrf.mxu0
  %4347 = vdwg.mxu0
  %v4349 = vsel %vm1573, %v4294, 0
  %4351 = vmatprep.subr.bf16.mxu0 0
  %4352 = vmatpush1.bf16.msra.mxu0 0
  %4353 = vmatprep.subr.bf16.mxu0 0
  %4354 = vmatpush1.bf16.msra.mxu0 0
  %4355 = vmatprep.subr.bf16.mxu0 0
  %4356 = vmatpush1.bf16.msra.mxu0 0
  %4357 = vmatprep.subr.bf16.mxu0 0
  %4358 = vmatpush1.bf16.msra.mxu0 0
  %4359 = vmatprep.subr.bf16.mxu0 0
  %4360 = vmatpush1.bf16.msra.mxu0 0
  %4361 = vmatprep.subr.bf16.mxu0 0
  %4362 = vmatpush1.bf16.msra.mxu0 0
  %4363 = vmatprep.subr.bf16.mxu0 0
  %4364 = vmatpush1.bf16.msra.mxu0 0
  %4365 = vmatprep.subr.bf16.mxu0 0
  %4366 = vmatpush1.bf16.msra.mxu0 %v4295
  %4367 = vmatprep.subr.bf16.mxu0 0
  %4368 = vmatpush2.bf16.msra.mxu0 0
  %4369 = vmatprep.subr.bf16.mxu0 0
  %4370 = vmatpush2.bf16.msra.mxu0 0
  %4371 = vmatprep.subr.bf16.mxu0 0
  %4372 = vmatpush2.bf16.msra.mxu0 0
  %4373 = vmatprep.subr.bf16.mxu0 0
  %4374 = vmatpush2.bf16.msra.mxu0 0
  %4375 = vmatprep.subr.bf16.mxu0 0
  %4376 = vmatpush2.bf16.msra.mxu0 0
  %4377 = vmatprep.subr.bf16.mxu0 0
  %4378 = vmatpush2.bf16.msra.mxu0 0
  %4379 = vmatprep.subr.bf16.mxu0 0
  %4380 = vmatpush2.bf16.msra.mxu0 0
  %4381 = vmatprep.subr.bf16.mxu0 0
  %4382 = vmatpush2.bf16.msra.mxu0 0
  %4383 = vmatprep.mubr.bf16.mxu0 0
  %4384 = vmatmul.mubr.bf16.gmra.mxu0 %v4349
  %v4385 = vpop.f32.mrf.mxu0
  %v4386 = vadd.f32 %v4343, %v4385
  %v4387 = vpop.f32.mrf.mxu0
  %v4388 = vpop.f32.mrf.mxu0
  %v4389 = vpop.f32.mrf.mxu0
  %4390 = vdwg.mxu0
  %4391 = vrot.lane.b32.xlu0 %v4285, 7
  %v4392 = vpop.permute.xlu0 %4391
  %4393 = vrot.lane.b32.xlu0 %v4286, 7
  %v4394 = vpop.permute.xlu0 %4393
  %v4395 = vmul.f32 %v4392, %v3012
  %v4396 = vmul.f32 %v4394, %v3012
  %s4397 = scalar_lea.vmem %s8, 44
  %v4398 = vld [vmem:[%s4397] sm:$0xf]
  %v4399 = vpack.c.bf16 %v4396, %v4395
  %v4401 = vsel %vm1573, %v4398, 0
  %4403 = vmatprep.subr.bf16.mxu0 0
  %4404 = vmatpush1.bf16.msra.mxu0 0
  %4405 = vmatprep.subr.bf16.mxu0 0
  %4406 = vmatpush1.bf16.msra.mxu0 0
  %4407 = vmatprep.subr.bf16.mxu0 0
  %4408 = vmatpush1.bf16.msra.mxu0 0
  %4409 = vmatprep.subr.bf16.mxu0 0
  %4410 = vmatpush1.bf16.msra.mxu0 0
  %4411 = vmatprep.subr.bf16.mxu0 0
  %4412 = vmatpush1.bf16.msra.mxu0 0
  %4413 = vmatprep.subr.bf16.mxu0 0
  %4414 = vmatpush1.bf16.msra.mxu0 0
  %4415 = vmatprep.subr.bf16.mxu0 0
  %4416 = vmatpush1.bf16.msra.mxu0 0
  %4417 = vmatprep.subr.bf16.mxu0 0
  %4418 = vmatpush1.bf16.msra.mxu0 %v4399
  %4419 = vmatprep.subr.bf16.mxu0 0
  %4420 = vmatpush2.bf16.msra.mxu0 0
  %4421 = vmatprep.subr.bf16.mxu0 0
  %4422 = vmatpush2.bf16.msra.mxu0 0
  %4423 = vmatprep.subr.bf16.mxu0 0
  %4424 = vmatpush2.bf16.msra.mxu0 0
  %4425 = vmatprep.subr.bf16.mxu0 0
  %4426 = vmatpush2.bf16.msra.mxu0 0
  %4427 = vmatprep.subr.bf16.mxu0 0
  %4428 = vmatpush2.bf16.msra.mxu0 0
  %4429 = vmatprep.subr.bf16.mxu0 0
  %4430 = vmatpush2.bf16.msra.mxu0 0
  %4431 = vmatprep.subr.bf16.mxu0 0
  %4432 = vmatpush2.bf16.msra.mxu0 0
  %4433 = vmatprep.subr.bf16.mxu0 0
  %4434 = vmatpush2.bf16.msra.mxu0 0
  %4435 = vmatprep.mubr.bf16.mxu0 0
  %4436 = vmatmul.mubr.bf16.gmra.mxu0 %v4401
  %v4437 = vpop.f32.mrf.mxu0
  %v4438 = vadd.f32 0.0, %v4437
  %v4439 = vpop.f32.mrf.mxu0
  %v4440 = vpop.f32.mrf.mxu0
  %v4441 = vpop.f32.mrf.mxu0
  %4442 = vdwg.mxu0
  %v4443 = vadd.f32 %v4386, %v4438
  %4444 = vrot.lane.b32.xlu0 %v4285, 1
  %v4445 = vpop.permute.xlu0 %4444
  %4446 = vrot.lane.b32.xlu0 %v4286, 1
  %v4447 = vpop.permute.xlu0 %4446
  %v4448 = vmul.f32 %v4445, %v3098
  %v4449 = vmul.f32 %v4447, %v3098
  %s4450 = scalar_lea.vmem %s8, 48
  %v4451 = vld [vmem:[%s4450] sm:$0xf]
  %v4452 = vpack.c.bf16 %v4449, %v4448
  %v4454 = vsel %vm1573, %v4451, 0
  %4456 = vmatprep.subr.bf16.mxu0 0
  %4457 = vmatpush1.bf16.msra.mxu0 0
  %4458 = vmatprep.subr.bf16.mxu0 0
  %4459 = vmatpush1.bf16.msra.mxu0 0
  %4460 = vmatprep.subr.bf16.mxu0 0
  %4461 = vmatpush1.bf16.msra.mxu0 0
  %4462 = vmatprep.subr.bf16.mxu0 0
  %4463 = vmatpush1.bf16.msra.mxu0 0
  %4464 = vmatprep.subr.bf16.mxu0 0
  %4465 = vmatpush1.bf16.msra.mxu0 0
  %4466 = vmatprep.subr.bf16.mxu0 0
  %4467 = vmatpush1.bf16.msra.mxu0 0
  %4468 = vmatprep.subr.bf16.mxu0 0
  %4469 = vmatpush1.bf16.msra.mxu0 0
  %4470 = vmatprep.subr.bf16.mxu0 0
  %4471 = vmatpush1.bf16.msra.mxu0 %v4452
  %4472 = vmatprep.subr.bf16.mxu0 0
  %4473 = vmatpush2.bf16.msra.mxu0 0
  %4474 = vmatprep.subr.bf16.mxu0 0
  %4475 = vmatpush2.bf16.msra.mxu0 0
  %4476 = vmatprep.subr.bf16.mxu0 0
  %4477 = vmatpush2.bf16.msra.mxu0 0
  %4478 = vmatprep.subr.bf16.mxu0 0
  %4479 = vmatpush2.bf16.msra.mxu0 0
  %4480 = vmatprep.subr.bf16.mxu0 0
  %4481 = vmatpush2.bf16.msra.mxu0 0
  %4482 = vmatprep.subr.bf16.mxu0 0
  %4483 = vmatpush2.bf16.msra.mxu0 0
  %4484 = vmatprep.subr.bf16.mxu0 0
  %4485 = vmatpush2.bf16.msra.mxu0 0
  %4486 = vmatprep.subr.bf16.mxu0 0
  %4487 = vmatpush2.bf16.msra.mxu0 0
  %4488 = vmatprep.mubr.bf16.mxu0 0
  %4489 = vmatmul.mubr.bf16.gmra.mxu0 %v4454
  %v4490 = vpop.f32.mrf.mxu0
  %v4491 = vadd.f32 0.0, %v4490
  %v4492 = vpop.f32.mrf.mxu0
  %v4493 = vpop.f32.mrf.mxu0
  %v4494 = vpop.f32.mrf.mxu0
  %4495 = vdwg.mxu0
  %v4496 = vadd.f32 %v4443, %v4491
  %s4497 = scalar_lea.vmem %s8, 52
  %v4498 = vld [vmem:[%s4497] sm:$0xf]
  %v4499 = vpack.c.bf16 %v4286, %v4285
  %v4501 = vsel %vm1573, %v4498, 0
  %4503 = vmatprep.subr.bf16.mxu0 0
  %4504 = vmatpush1.bf16.msra.mxu0 0
  %4505 = vmatprep.subr.bf16.mxu0 0
  %4506 = vmatpush1.bf16.msra.mxu0 0
  %4507 = vmatprep.subr.bf16.mxu0 0
  %4508 = vmatpush1.bf16.msra.mxu0 0
  %4509 = vmatprep.subr.bf16.mxu0 0
  %4510 = vmatpush1.bf16.msra.mxu0 0
  %4511 = vmatprep.subr.bf16.mxu0 0
  %4512 = vmatpush1.bf16.msra.mxu0 0
  %4513 = vmatprep.subr.bf16.mxu0 0
  %4514 = vmatpush1.bf16.msra.mxu0 0
  %4515 = vmatprep.subr.bf16.mxu0 0
  %4516 = vmatpush1.bf16.msra.mxu0 0
  %4517 = vmatprep.subr.bf16.mxu0 0
  %4518 = vmatpush1.bf16.msra.mxu0 %v4499
  %4519 = vmatprep.subr.bf16.mxu0 0
  %4520 = vmatpush2.bf16.msra.mxu0 0
  %4521 = vmatprep.subr.bf16.mxu0 0
  %4522 = vmatpush2.bf16.msra.mxu0 0
  %4523 = vmatprep.subr.bf16.mxu0 0
  %4524 = vmatpush2.bf16.msra.mxu0 0
  %4525 = vmatprep.subr.bf16.mxu0 0
  %4526 = vmatpush2.bf16.msra.mxu0 0
  %4527 = vmatprep.subr.bf16.mxu0 0
  %4528 = vmatpush2.bf16.msra.mxu0 0
  %4529 = vmatprep.subr.bf16.mxu0 0
  %4530 = vmatpush2.bf16.msra.mxu0 0
  %4531 = vmatprep.subr.bf16.mxu0 0
  %4532 = vmatpush2.bf16.msra.mxu0 0
  %4533 = vmatprep.subr.bf16.mxu0 0
  %4534 = vmatpush2.bf16.msra.mxu0 0
  %4535 = vmatprep.mubr.bf16.mxu0 0
  %4536 = vmatmul.mubr.bf16.gmra.mxu0 %v4501
  %v4537 = vpop.f32.mrf.mxu0
  %v4538 = vadd.f32 0.0, %v4537
  %v4539 = vpop.f32.mrf.mxu0
  %v4540 = vpop.f32.mrf.mxu0
  %v4541 = vpop.f32.mrf.mxu0
  %4542 = vdwg.mxu0
  %v4543 = vadd.f32 %v4496, %v4538
  %4544 = vrot.lane.b32.xlu0 %v4285, 127
  %v4545 = vpop.permute.xlu0 %4544
  %4546 = vrot.lane.b32.xlu0 %v4286, 127
  %v4547 = vpop.permute.xlu0 %4546
  %v4548 = vmul.f32 %v4545, %v3258
  %v4549 = vmul.f32 %v4547, %v3258
  %s4550 = scalar_lea.vmem %s8, 56
  %v4551 = vld [vmem:[%s4550] sm:$0xf]
  %v4552 = vpack.c.bf16 %v4549, %v4548
  %v4554 = vsel %vm1573, %v4551, 0
  %4556 = vmatprep.subr.bf16.mxu0 0
  %4557 = vmatpush1.bf16.msra.mxu0 0
  %4558 = vmatprep.subr.bf16.mxu0 0
  %4559 = vmatpush1.bf16.msra.mxu0 0
  %4560 = vmatprep.subr.bf16.mxu0 0
  %4561 = vmatpush1.bf16.msra.mxu0 0
  %4562 = vmatprep.subr.bf16.mxu0 0
  %4563 = vmatpush1.bf16.msra.mxu0 0
  %4564 = vmatprep.subr.bf16.mxu0 0
  %4565 = vmatpush1.bf16.msra.mxu0 0
  %4566 = vmatprep.subr.bf16.mxu0 0
  %4567 = vmatpush1.bf16.msra.mxu0 0
  %4568 = vmatprep.subr.bf16.mxu0 0
  %4569 = vmatpush1.bf16.msra.mxu0 0
  %4570 = vmatprep.subr.bf16.mxu0 0
  %4571 = vmatpush1.bf16.msra.mxu0 %v4552
  %4572 = vmatprep.subr.bf16.mxu0 0
  %4573 = vmatpush2.bf16.msra.mxu0 0
  %4574 = vmatprep.subr.bf16.mxu0 0
  %4575 = vmatpush2.bf16.msra.mxu0 0
  %4576 = vmatprep.subr.bf16.mxu0 0
  %4577 = vmatpush2.bf16.msra.mxu0 0
  %4578 = vmatprep.subr.bf16.mxu0 0
  %4579 = vmatpush2.bf16.msra.mxu0 0
  %4580 = vmatprep.subr.bf16.mxu0 0
  %4581 = vmatpush2.bf16.msra.mxu0 0
  %4582 = vmatprep.subr.bf16.mxu0 0
  %4583 = vmatpush2.bf16.msra.mxu0 0
  %4584 = vmatprep.subr.bf16.mxu0 0
  %4585 = vmatpush2.bf16.msra.mxu0 0
  %4586 = vmatprep.subr.bf16.mxu0 0
  %4587 = vmatpush2.bf16.msra.mxu0 0
  %4588 = vmatprep.mubr.bf16.mxu0 0
  %4589 = vmatmul.mubr.bf16.gmra.mxu0 %v4554
  %v4590 = vpop.f32.mrf.mxu0
  %v4591 = vadd.f32 0.0, %v4590
  %v4592 = vpop.f32.mrf.mxu0
  %v4593 = vpop.f32.mrf.mxu0
  %v4594 = vpop.f32.mrf.mxu0
  %4595 = vdwg.mxu0
  %v4596 = vadd.f32 %v4543, %v4591
  %4597 = vrot.lane.b32.xlu0 %v4285, 121
  %v4598 = vpop.permute.xlu0 %4597
  %4599 = vrot.lane.b32.xlu0 %v4286, 121
  %v4600 = vpop.permute.xlu0 %4599
  %v4601 = vmul.f32 %v4598, %v3344
  %v4602 = vmul.f32 %v4600, %v3344
  %s4603 = scalar_lea.vmem %s8, 60
  %v4604 = vld [vmem:[%s4603] sm:$0xf]
  %v4605 = vpack.c.bf16 %v4602, %v4601
  %v4607 = vsel %vm1573, %v4604, 0
  %4609 = vmatprep.subr.bf16.mxu0 0
  %4610 = vmatpush1.bf16.msra.mxu0 0
  %4611 = vmatprep.subr.bf16.mxu0 0
  %4612 = vmatpush1.bf16.msra.mxu0 0
  %4613 = vmatprep.subr.bf16.mxu0 0
  %4614 = vmatpush1.bf16.msra.mxu0 0
  %4615 = vmatprep.subr.bf16.mxu0 0
  %4616 = vmatpush1.bf16.msra.mxu0 0
  %4617 = vmatprep.subr.bf16.mxu0 0
  %4618 = vmatpush1.bf16.msra.mxu0 0
  %4619 = vmatprep.subr.bf16.mxu0 0
  %4620 = vmatpush1.bf16.msra.mxu0 0
  %4621 = vmatprep.subr.bf16.mxu0 0
  %4622 = vmatpush1.bf16.msra.mxu0 0
  %4623 = vmatprep.subr.bf16.mxu0 0
  %4624 = vmatpush1.bf16.msra.mxu0 %v4605
  %4625 = vmatprep.subr.bf16.mxu0 0
  %4626 = vmatpush2.bf16.msra.mxu0 0
  %4627 = vmatprep.subr.bf16.mxu0 0
  %4628 = vmatpush2.bf16.msra.mxu0 0
  %4629 = vmatprep.subr.bf16.mxu0 0
  %4630 = vmatpush2.bf16.msra.mxu0 0
  %4631 = vmatprep.subr.bf16.mxu0 0
  %4632 = vmatpush2.bf16.msra.mxu0 0
  %4633 = vmatprep.subr.bf16.mxu0 0
  %4634 = vmatpush2.bf16.msra.mxu0 0
  %4635 = vmatprep.subr.bf16.mxu0 0
  %4636 = vmatpush2.bf16.msra.mxu0 0
  %4637 = vmatprep.subr.bf16.mxu0 0
  %4638 = vmatpush2.bf16.msra.mxu0 0
  %4639 = vmatprep.subr.bf16.mxu0 0
  %4640 = vmatpush2.bf16.msra.mxu0 0
  %4641 = vmatprep.mubr.bf16.mxu0 0
  %4642 = vmatmul.mubr.bf16.gmra.mxu0 %v4607
  %v4643 = vpop.f32.mrf.mxu0
  %v4644 = vadd.f32 0.0, %v4643
  %v4645 = vpop.f32.mrf.mxu0
  %v4646 = vpop.f32.mrf.mxu0
  %v4647 = vpop.f32.mrf.mxu0
  %4648 = vdwg.mxu0
  %v4649 = vadd.f32 %v4596, %v4644
  %4650 = vrot.lane.b32.xlu0 %v4285, 120
  %v4651 = vpop.permute.xlu0 %4650
  %4652 = vrot.lane.b32.xlu0 %v4286, 120
  %v4653 = vpop.permute.xlu0 %4652
  %v4654 = vmul.f32 %v4651, %v3430
  %v4655 = vmul.f32 %v4653, %v3430
  %s4656 = scalar_lea.vmem %s8, 64
  %v4657 = vld [vmem:[%s4656] sm:$0xf]
  %v4658 = vpack.c.bf16 %v4655, %v4654
  %v4660 = vsel %vm1573, %v4657, 0
  %4662 = vmatprep.subr.bf16.mxu0 0
  %4663 = vmatpush1.bf16.msra.mxu0 0
  %4664 = vmatprep.subr.bf16.mxu0 0
  %4665 = vmatpush1.bf16.msra.mxu0 0
  %4666 = vmatprep.subr.bf16.mxu0 0
  %4667 = vmatpush1.bf16.msra.mxu0 0
  %4668 = vmatprep.subr.bf16.mxu0 0
  %4669 = vmatpush1.bf16.msra.mxu0 0
  %4670 = vmatprep.subr.bf16.mxu0 0
  %4671 = vmatpush1.bf16.msra.mxu0 0
  %4672 = vmatprep.subr.bf16.mxu0 0
  %4673 = vmatpush1.bf16.msra.mxu0 0
  %4674 = vmatprep.subr.bf16.mxu0 0
  %4675 = vmatpush1.bf16.msra.mxu0 0
  %4676 = vmatprep.subr.bf16.mxu0 0
  %4677 = vmatpush1.bf16.msra.mxu0 %v4658
  %4678 = vmatprep.subr.bf16.mxu0 0
  %4679 = vmatpush2.bf16.msra.mxu0 0
  %4680 = vmatprep.subr.bf16.mxu0 0
  %4681 = vmatpush2.bf16.msra.mxu0 0
  %4682 = vmatprep.subr.bf16.mxu0 0
  %4683 = vmatpush2.bf16.msra.mxu0 0
  %4684 = vmatprep.subr.bf16.mxu0 0
  %4685 = vmatpush2.bf16.msra.mxu0 0
  %4686 = vmatprep.subr.bf16.mxu0 0
  %4687 = vmatpush2.bf16.msra.mxu0 0
  %4688 = vmatprep.subr.bf16.mxu0 0
  %4689 = vmatpush2.bf16.msra.mxu0 0
  %4690 = vmatprep.subr.bf16.mxu0 0
  %4691 = vmatpush2.bf16.msra.mxu0 0
  %4692 = vmatprep.subr.bf16.mxu0 0
  %4693 = vmatpush2.bf16.msra.mxu0 0
  %4694 = vmatprep.mubr.bf16.mxu0 0
  %4695 = vmatmul.mubr.bf16.gmra.mxu0 %v4660
  %v4696 = vpop.f32.mrf.mxu0
  %v4697 = vadd.f32 0.0, %v4696
  %v4698 = vpop.f32.mrf.mxu0
  %v4699 = vpop.f32.mrf.mxu0
  %v4700 = vpop.f32.mrf.mxu0
  %4701 = vdwg.mxu0
  %v4702 = vadd.f32 %v4649, %v4697
  %4703 = vrot.lane.b32.xlu0 %v4285, 119
  %v4704 = vpop.permute.xlu0 %4703
  %4705 = vrot.lane.b32.xlu0 %v4286, 119
  %v4706 = vpop.permute.xlu0 %4705
  %v4707 = vmul.f32 %v4704, %v3516
  %v4708 = vmul.f32 %v4706, %v3516
  %s4709 = scalar_lea.vmem %s8, 68
  %v4710 = vld [vmem:[%s4709] sm:$0xf]
  %v4711 = vpack.c.bf16 %v4708, %v4707
  %v4713 = vsel %vm1573, %v4710, 0
  %4715 = vmatprep.subr.bf16.mxu0 0
  %4716 = vmatpush1.bf16.msra.mxu0 0
  %4717 = vmatprep.subr.bf16.mxu0 0
  %4718 = vmatpush1.bf16.msra.mxu0 0
  %4719 = vmatprep.subr.bf16.mxu0 0
  %4720 = vmatpush1.bf16.msra.mxu0 0
  %4721 = vmatprep.subr.bf16.mxu0 0
  %4722 = vmatpush1.bf16.msra.mxu0 0
  %4723 = vmatprep.subr.bf16.mxu0 0
  %4724 = vmatpush1.bf16.msra.mxu0 0
  %4725 = vmatprep.subr.bf16.mxu0 0
  %4726 = vmatpush1.bf16.msra.mxu0 0
  %4727 = vmatprep.subr.bf16.mxu0 0
  %4728 = vmatpush1.bf16.msra.mxu0 0
  %4729 = vmatprep.subr.bf16.mxu0 0
  %4730 = vmatpush1.bf16.msra.mxu0 %v4711
  %4731 = vmatprep.subr.bf16.mxu0 0
  %4732 = vmatpush2.bf16.msra.mxu0 0
  %4733 = vmatprep.subr.bf16.mxu0 0
  %4734 = vmatpush2.bf16.msra.mxu0 0
  %4735 = vmatprep.subr.bf16.mxu0 0
  %4736 = vmatpush2.bf16.msra.mxu0 0
  %4737 = vmatprep.subr.bf16.mxu0 0
  %4738 = vmatpush2.bf16.msra.mxu0 0
  %4739 = vmatprep.subr.bf16.mxu0 0
  %4740 = vmatpush2.bf16.msra.mxu0 0
  %4741 = vmatprep.subr.bf16.mxu0 0
  %4742 = vmatpush2.bf16.msra.mxu0 0
  %4743 = vmatprep.subr.bf16.mxu0 0
  %4744 = vmatpush2.bf16.msra.mxu0 0
  %4745 = vmatprep.subr.bf16.mxu0 0
  %4746 = vmatpush2.bf16.msra.mxu0 0
  %4747 = vmatprep.mubr.bf16.mxu0 0
  %4748 = vmatmul.mubr.bf16.gmra.mxu0 %v4713
  %v4749 = vpop.f32.mrf.mxu0
  %v4750 = vadd.f32 0.0, %v4749
  %v4751 = vpop.f32.mrf.mxu0
  %v4752 = vpop.f32.mrf.mxu0
  %v4753 = vpop.f32.mrf.mxu0
  %4754 = vdwg.mxu0
  %v4755 = vadd.f32 %v4702, %v4750
  %s4756 = scalar_lea.vmem %s9, 8
  %v4757 = vld [vmem:[%s4756] sm:$0xff]
  %4759 = vset.pattern.permute.xlu0 0
  %4760 = vperm.xlu0 %4759, %v4757
  %v4761 = vpop.permute.xlu0 %4760
  %v4763 = vmul.f32 %v4755, %v4761
  %s4764 = scalar_lea.vmem %s10, 8
  %v4765 = vld [vmem:[%s4764] sm:$0xff]
  %4767 = vset.pattern.permute.xlu0 0
  %4768 = vperm.xlu0 %4767, %v4765
  %v4769 = vpop.permute.xlu0 %4768
  %v4771 = vadd.f32 %v4763, %v4769
  %v4772 = vmax.f32 %v4771, 0.0
  %4773 = vrot.lane.b32.xlu0 %v4772, 9
  %v4774 = vpop.permute.xlu0 %4773
  %v4775 = vmul.f32 %v4774, %v2848
  %s4776 = scalar_lea.vmem %s11, 18
  %v4777 = vld [vmem:[%s4776] sm:$0x3]
  %v4778 = vpack.c.bf16 %v4775, %v4775
  %4779 = vrot.lane.b32.xlu0 %v4772, 8
  %v4780 = vpop.permute.xlu0 %4779
  %v4781 = vmul.f32 %v4780, %v2862
  %s4782 = scalar_lea.vmem %s11, 20
  %v4783 = vld [vmem:[%s4782] sm:$0x3]
  %v4784 = vpack.c.bf16 %v4781, %v4781
  %v4786 = vsel %vm130, %v4783, 0
  %v4789 = vsel %vm137, %v4784, 0
  %4791 = vmatprep.subr.bf16.mxu0 0
  %4792 = vmatpush1.bf16.msra.mxu0 0
  %4793 = vmatprep.subr.bf16.mxu0 0
  %4794 = vmatpush1.bf16.msra.mxu0 0
  %4795 = vmatprep.subr.bf16.mxu0 0
  %4796 = vmatpush1.bf16.msra.mxu0 0
  %4797 = vmatprep.subr.bf16.mxu0 0
  %4798 = vmatpush1.bf16.msra.mxu0 0
  %4799 = vmatprep.subr.bf16.mxu0 0
  %4800 = vmatpush1.bf16.msra.mxu0 0
  %4801 = vmatprep.subr.bf16.mxu0 0
  %4802 = vmatpush1.bf16.msra.mxu0 0
  %4803 = vmatprep.subr.bf16.mxu0 0
  %4804 = vmatpush1.bf16.msra.mxu0 0
  %4805 = vmatprep.subr.bf16.mxu0 0
  %4806 = vmatpush1.bf16.msra.mxu0 %v4789
  %4807 = vmatprep.subr.bf16.mxu0 0
  %4808 = vmatpush2.bf16.msra.mxu0 0
  %4809 = vmatprep.subr.bf16.mxu0 0
  %4810 = vmatpush2.bf16.msra.mxu0 0
  %4811 = vmatprep.subr.bf16.mxu0 0
  %4812 = vmatpush2.bf16.msra.mxu0 0
  %4813 = vmatprep.subr.bf16.mxu0 0
  %4814 = vmatpush2.bf16.msra.mxu0 0
  %4815 = vmatprep.subr.bf16.mxu0 0
  %4816 = vmatpush2.bf16.msra.mxu0 0
  %4817 = vmatprep.subr.bf16.mxu0 0
  %4818 = vmatpush2.bf16.msra.mxu0 0
  %4819 = vmatprep.subr.bf16.mxu0 0
  %4820 = vmatpush2.bf16.msra.mxu0 0
  %4821 = vmatprep.subr.bf16.mxu0 0
  %4822 = vmatpush2.bf16.msra.mxu0 0
  %4823 = vmatprep.mubr.bf16.mxu0 0
  %4824 = vmatmul.mubr.bf16.gmra.mxu0 %v4786
  %v4825 = vpop.f32.mrf.mxu0
  %v4826 = vadd.f32 0.0, %v4825
  %v4827 = vpop.f32.mrf.mxu0
  %v4828 = vpop.f32.mrf.mxu0
  %v4829 = vpop.f32.mrf.mxu0
  %4830 = vdwg.mxu0
  %v4832 = vsel %vm130, %v4777, 0
  %v4835 = vsel %vm137, %v4778, 0
  %4837 = vmatprep.subr.bf16.mxu0 0
  %4838 = vmatpush1.bf16.msra.mxu0 0
  %4839 = vmatprep.subr.bf16.mxu0 0
  %4840 = vmatpush1.bf16.msra.mxu0 0
  %4841 = vmatprep.subr.bf16.mxu0 0
  %4842 = vmatpush1.bf16.msra.mxu0 0
  %4843 = vmatprep.subr.bf16.mxu0 0
  %4844 = vmatpush1.bf16.msra.mxu0 0
  %4845 = vmatprep.subr.bf16.mxu0 0
  %4846 = vmatpush1.bf16.msra.mxu0 0
  %4847 = vmatprep.subr.bf16.mxu0 0
  %4848 = vmatpush1.bf16.msra.mxu0 0
  %4849 = vmatprep.subr.bf16.mxu0 0
  %4850 = vmatpush1.bf16.msra.mxu0 0
  %4851 = vmatprep.subr.bf16.mxu0 0
  %4852 = vmatpush1.bf16.msra.mxu0 %v4835
  %4853 = vmatprep.subr.bf16.mxu0 0
  %4854 = vmatpush2.bf16.msra.mxu0 0
  %4855 = vmatprep.subr.bf16.mxu0 0
  %4856 = vmatpush2.bf16.msra.mxu0 0
  %4857 = vmatprep.subr.bf16.mxu0 0
  %4858 = vmatpush2.bf16.msra.mxu0 0
  %4859 = vmatprep.subr.bf16.mxu0 0
  %4860 = vmatpush2.bf16.msra.mxu0 0
  %4861 = vmatprep.subr.bf16.mxu0 0
  %4862 = vmatpush2.bf16.msra.mxu0 0
  %4863 = vmatprep.subr.bf16.mxu0 0
  %4864 = vmatpush2.bf16.msra.mxu0 0
  %4865 = vmatprep.subr.bf16.mxu0 0
  %4866 = vmatpush2.bf16.msra.mxu0 0
  %4867 = vmatprep.subr.bf16.mxu0 0
  %4868 = vmatpush2.bf16.msra.mxu0 0
  %4869 = vmatprep.mubr.bf16.mxu0 0
  %4870 = vmatmul.mubr.bf16.gmra.mxu0 %v4832
  %v4871 = vpop.f32.mrf.mxu0
  %v4872 = vadd.f32 %v4826, %v4871
  %v4873 = vpop.f32.mrf.mxu0
  %v4874 = vpop.f32.mrf.mxu0
  %v4875 = vpop.f32.mrf.mxu0
  %4876 = vdwg.mxu0
  %4877 = vrot.lane.b32.xlu0 %v4772, 7
  %v4878 = vpop.permute.xlu0 %4877
  %v4879 = vmul.f32 %v4878, %v3012
  %s4880 = scalar_lea.vmem %s11, 22
  %v4881 = vld [vmem:[%s4880] sm:$0x3]
  %v4882 = vpack.c.bf16 %v4879, %v4879
  %v4884 = vsel %vm130, %v4881, 0
  %v4887 = vsel %vm137, %v4882, 0
  %4889 = vmatprep.subr.bf16.mxu0 0
  %4890 = vmatpush1.bf16.msra.mxu0 0
  %4891 = vmatprep.subr.bf16.mxu0 0
  %4892 = vmatpush1.bf16.msra.mxu0 0
  %4893 = vmatprep.subr.bf16.mxu0 0
  %4894 = vmatpush1.bf16.msra.mxu0 0
  %4895 = vmatprep.subr.bf16.mxu0 0
  %4896 = vmatpush1.bf16.msra.mxu0 0
  %4897 = vmatprep.subr.bf16.mxu0 0
  %4898 = vmatpush1.bf16.msra.mxu0 0
  %4899 = vmatprep.subr.bf16.mxu0 0
  %4900 = vmatpush1.bf16.msra.mxu0 0
  %4901 = vmatprep.subr.bf16.mxu0 0
  %4902 = vmatpush1.bf16.msra.mxu0 0
  %4903 = vmatprep.subr.bf16.mxu0 0
  %4904 = vmatpush1.bf16.msra.mxu0 %v4887
  %4905 = vmatprep.subr.bf16.mxu0 0
  %4906 = vmatpush2.bf16.msra.mxu0 0
  %4907 = vmatprep.subr.bf16.mxu0 0
  %4908 = vmatpush2.bf16.msra.mxu0 0
  %4909 = vmatprep.subr.bf16.mxu0 0
  %4910 = vmatpush2.bf16.msra.mxu0 0
  %4911 = vmatprep.subr.bf16.mxu0 0
  %4912 = vmatpush2.bf16.msra.mxu0 0
  %4913 = vmatprep.subr.bf16.mxu0 0
  %4914 = vmatpush2.bf16.msra.mxu0 0
  %4915 = vmatprep.subr.bf16.mxu0 0
  %4916 = vmatpush2.bf16.msra.mxu0 0
  %4917 = vmatprep.subr.bf16.mxu0 0
  %4918 = vmatpush2.bf16.msra.mxu0 0
  %4919 = vmatprep.subr.bf16.mxu0 0
  %4920 = vmatpush2.bf16.msra.mxu0 0
  %4921 = vmatprep.mubr.bf16.mxu0 0
  %4922 = vmatmul.mubr.bf16.gmra.mxu0 %v4884
  %v4923 = vpop.f32.mrf.mxu0
  %v4924 = vadd.f32 0.0, %v4923
  %v4925 = vpop.f32.mrf.mxu0
  %v4926 = vpop.f32.mrf.mxu0
  %v4927 = vpop.f32.mrf.mxu0
  %4928 = vdwg.mxu0
  %v4929 = vadd.f32 %v4872, %v4924
  %4930 = vrot.lane.b32.xlu0 %v4772, 1
  %v4931 = vpop.permute.xlu0 %4930
  %v4932 = vmul.f32 %v4931, %v3098
  %s4933 = scalar_lea.vmem %s11, 24
  %v4934 = vld [vmem:[%s4933] sm:$0x3]
  %v4935 = vpack.c.bf16 %v4932, %v4932
  %v4937 = vsel %vm130, %v4934, 0
  %v4940 = vsel %vm137, %v4935, 0
  %4942 = vmatprep.subr.bf16.mxu0 0
  %4943 = vmatpush1.bf16.msra.mxu0 0
  %4944 = vmatprep.subr.bf16.mxu0 0
  %4945 = vmatpush1.bf16.msra.mxu0 0
  %4946 = vmatprep.subr.bf16.mxu0 0
  %4947 = vmatpush1.bf16.msra.mxu0 0
  %4948 = vmatprep.subr.bf16.mxu0 0
  %4949 = vmatpush1.bf16.msra.mxu0 0
  %4950 = vmatprep.subr.bf16.mxu0 0
  %4951 = vmatpush1.bf16.msra.mxu0 0
  %4952 = vmatprep.subr.bf16.mxu0 0
  %4953 = vmatpush1.bf16.msra.mxu0 0
  %4954 = vmatprep.subr.bf16.mxu0 0
  %4955 = vmatpush1.bf16.msra.mxu0 0
  %4956 = vmatprep.subr.bf16.mxu0 0
  %4957 = vmatpush1.bf16.msra.mxu0 %v4940
  %4958 = vmatprep.subr.bf16.mxu0 0
  %4959 = vmatpush2.bf16.msra.mxu0 0
  %4960 = vmatprep.subr.bf16.mxu0 0
  %4961 = vmatpush2.bf16.msra.mxu0 0
  %4962 = vmatprep.subr.bf16.mxu0 0
  %4963 = vmatpush2.bf16.msra.mxu0 0
  %4964 = vmatprep.subr.bf16.mxu0 0
  %4965 = vmatpush2.bf16.msra.mxu0 0
  %4966 = vmatprep.subr.bf16.mxu0 0
  %4967 = vmatpush2.bf16.msra.mxu0 0
  %4968 = vmatprep.subr.bf16.mxu0 0
  %4969 = vmatpush2.bf16.msra.mxu0 0
  %4970 = vmatprep.subr.bf16.mxu0 0
  %4971 = vmatpush2.bf16.msra.mxu0 0
  %4972 = vmatprep.subr.bf16.mxu0 0
  %4973 = vmatpush2.bf16.msra.mxu0 0
  %4974 = vmatprep.mubr.bf16.mxu0 0
  %4975 = vmatmul.mubr.bf16.gmra.mxu0 %v4937
  %v4976 = vpop.f32.mrf.mxu0
  %v4977 = vadd.f32 0.0, %v4976
  %v4978 = vpop.f32.mrf.mxu0
  %v4979 = vpop.f32.mrf.mxu0
  %v4980 = vpop.f32.mrf.mxu0
  %4981 = vdwg.mxu0
  %v4982 = vadd.f32 %v4929, %v4977
  %s4983 = scalar_lea.vmem %s11, 26
  %v4984 = vld [vmem:[%s4983] sm:$0x3]
  %v4985 = vpack.c.bf16 %v4772, %v4772
  %v4987 = vsel %vm130, %v4984, 0
  %v4990 = vsel %vm137, %v4985, 0
  %4992 = vmatprep.subr.bf16.mxu0 0
  %4993 = vmatpush1.bf16.msra.mxu0 0
  %4994 = vmatprep.subr.bf16.mxu0 0
  %4995 = vmatpush1.bf16.msra.mxu0 0
  %4996 = vmatprep.subr.bf16.mxu0 0
  %4997 = vmatpush1.bf16.msra.mxu0 0
  %4998 = vmatprep.subr.bf16.mxu0 0
  %4999 = vmatpush1.bf16.msra.mxu0 0
  %5000 = vmatprep.subr.bf16.mxu0 0
  %5001 = vmatpush1.bf16.msra.mxu0 0
  %5002 = vmatprep.subr.bf16.mxu0 0
  %5003 = vmatpush1.bf16.msra.mxu0 0
  %5004 = vmatprep.subr.bf16.mxu0 0
  %5005 = vmatpush1.bf16.msra.mxu0 0
  %5006 = vmatprep.subr.bf16.mxu0 0
  %5007 = vmatpush1.bf16.msra.mxu0 %v4990
  %5008 = vmatprep.subr.bf16.mxu0 0
  %5009 = vmatpush2.bf16.msra.mxu0 0
  %5010 = vmatprep.subr.bf16.mxu0 0
  %5011 = vmatpush2.bf16.msra.mxu0 0
  %5012 = vmatprep.subr.bf16.mxu0 0
  %5013 = vmatpush2.bf16.msra.mxu0 0
  %5014 = vmatprep.subr.bf16.mxu0 0
  %5015 = vmatpush2.bf16.msra.mxu0 0
  %5016 = vmatprep.subr.bf16.mxu0 0
  %5017 = vmatpush2.bf16.msra.mxu0 0
  %5018 = vmatprep.subr.bf16.mxu0 0
  %5019 = vmatpush2.bf16.msra.mxu0 0
  %5020 = vmatprep.subr.bf16.mxu0 0
  %5021 = vmatpush2.bf16.msra.mxu0 0
  %5022 = vmatprep.subr.bf16.mxu0 0
  %5023 = vmatpush2.bf16.msra.mxu0 0
  %5024 = vmatprep.mubr.bf16.mxu0 0
  %5025 = vmatmul.mubr.bf16.gmra.mxu0 %v4987
  %v5026 = vpop.f32.mrf.mxu0
  %v5027 = vadd.f32 0.0, %v5026
  %v5028 = vpop.f32.mrf.mxu0
  %v5029 = vpop.f32.mrf.mxu0
  %v5030 = vpop.f32.mrf.mxu0
  %5031 = vdwg.mxu0
  %v5032 = vadd.f32 %v4982, %v5027
  %5033 = vrot.lane.b32.xlu0 %v4772, 127
  %v5034 = vpop.permute.xlu0 %5033
  %v5035 = vmul.f32 %v5034, %v3258
  %s5036 = scalar_lea.vmem %s11, 28
  %v5037 = vld [vmem:[%s5036] sm:$0x3]
  %v5038 = vpack.c.bf16 %v5035, %v5035
  %v5040 = vsel %vm130, %v5037, 0
  %v5043 = vsel %vm137, %v5038, 0
  %5045 = vmatprep.subr.bf16.mxu0 0
  %5046 = vmatpush1.bf16.msra.mxu0 0
  %5047 = vmatprep.subr.bf16.mxu0 0
  %5048 = vmatpush1.bf16.msra.mxu0 0
  %5049 = vmatprep.subr.bf16.mxu0 0
  %5050 = vmatpush1.bf16.msra.mxu0 0
  %5051 = vmatprep.subr.bf16.mxu0 0
  %5052 = vmatpush1.bf16.msra.mxu0 0
  %5053 = vmatprep.subr.bf16.mxu0 0
  %5054 = vmatpush1.bf16.msra.mxu0 0
  %5055 = vmatprep.subr.bf16.mxu0 0
  %5056 = vmatpush1.bf16.msra.mxu0 0
  %5057 = vmatprep.subr.bf16.mxu0 0
  %5058 = vmatpush1.bf16.msra.mxu0 0
  %5059 = vmatprep.subr.bf16.mxu0 0
  %5060 = vmatpush1.bf16.msra.mxu0 %v5043
  %5061 = vmatprep.subr.bf16.mxu0 0
  %5062 = vmatpush2.bf16.msra.mxu0 0
  %5063 = vmatprep.subr.bf16.mxu0 0
  %5064 = vmatpush2.bf16.msra.mxu0 0
  %5065 = vmatprep.subr.bf16.mxu0 0
  %5066 = vmatpush2.bf16.msra.mxu0 0
  %5067 = vmatprep.subr.bf16.mxu0 0
  %5068 = vmatpush2.bf16.msra.mxu0 0
  %5069 = vmatprep.subr.bf16.mxu0 0
  %5070 = vmatpush2.bf16.msra.mxu0 0
  %5071 = vmatprep.subr.bf16.mxu0 0
  %5072 = vmatpush2.bf16.msra.mxu0 0
  %5073 = vmatprep.subr.bf16.mxu0 0
  %5074 = vmatpush2.bf16.msra.mxu0 0
  %5075 = vmatprep.subr.bf16.mxu0 0
  %5076 = vmatpush2.bf16.msra.mxu0 0
  %5077 = vmatprep.mubr.bf16.mxu0 0
  %5078 = vmatmul.mubr.bf16.gmra.mxu0 %v5040
  %v5079 = vpop.f32.mrf.mxu0
  %v5080 = vadd.f32 0.0, %v5079
  %v5081 = vpop.f32.mrf.mxu0
  %v5082 = vpop.f32.mrf.mxu0
  %v5083 = vpop.f32.mrf.mxu0
  %5084 = vdwg.mxu0
  %v5085 = vadd.f32 %v5032, %v5080
  %5086 = vrot.lane.b32.xlu0 %v4772, 121
  %v5087 = vpop.permute.xlu0 %5086
  %v5088 = vmul.f32 %v5087, %v3344
  %s5089 = scalar_lea.vmem %s11, 30
  %v5090 = vld [vmem:[%s5089] sm:$0x3]
  %v5091 = vpack.c.bf16 %v5088, %v5088
  %v5093 = vsel %vm130, %v5090, 0
  %v5096 = vsel %vm137, %v5091, 0
  %5098 = vmatprep.subr.bf16.mxu0 0
  %5099 = vmatpush1.bf16.msra.mxu0 0
  %5100 = vmatprep.subr.bf16.mxu0 0
  %5101 = vmatpush1.bf16.msra.mxu0 0
  %5102 = vmatprep.subr.bf16.mxu0 0
  %5103 = vmatpush1.bf16.msra.mxu0 0
  %5104 = vmatprep.subr.bf16.mxu0 0
  %5105 = vmatpush1.bf16.msra.mxu0 0
  %5106 = vmatprep.subr.bf16.mxu0 0
  %5107 = vmatpush1.bf16.msra.mxu0 0
  %5108 = vmatprep.subr.bf16.mxu0 0
  %5109 = vmatpush1.bf16.msra.mxu0 0
  %5110 = vmatprep.subr.bf16.mxu0 0
  %5111 = vmatpush1.bf16.msra.mxu0 0
  %5112 = vmatprep.subr.bf16.mxu0 0
  %5113 = vmatpush1.bf16.msra.mxu0 %v5096
  %5114 = vmatprep.subr.bf16.mxu0 0
  %5115 = vmatpush2.bf16.msra.mxu0 0
  %5116 = vmatprep.subr.bf16.mxu0 0
  %5117 = vmatpush2.bf16.msra.mxu0 0
  %5118 = vmatprep.subr.bf16.mxu0 0
  %5119 = vmatpush2.bf16.msra.mxu0 0
  %5120 = vmatprep.subr.bf16.mxu0 0
  %5121 = vmatpush2.bf16.msra.mxu0 0
  %5122 = vmatprep.subr.bf16.mxu0 0
  %5123 = vmatpush2.bf16.msra.mxu0 0
  %5124 = vmatprep.subr.bf16.mxu0 0
  %5125 = vmatpush2.bf16.msra.mxu0 0
  %5126 = vmatprep.subr.bf16.mxu0 0
  %5127 = vmatpush2.bf16.msra.mxu0 0
  %5128 = vmatprep.subr.bf16.mxu0 0
  %5129 = vmatpush2.bf16.msra.mxu0 0
  %5130 = vmatprep.mubr.bf16.mxu0 0
  %5131 = vmatmul.mubr.bf16.gmra.mxu0 %v5093
  %v5132 = vpop.f32.mrf.mxu0
  %v5133 = vadd.f32 0.0, %v5132
  %v5134 = vpop.f32.mrf.mxu0
  %v5135 = vpop.f32.mrf.mxu0
  %v5136 = vpop.f32.mrf.mxu0
  %5137 = vdwg.mxu0
  %v5138 = vadd.f32 %v5085, %v5133
  %5139 = vrot.lane.b32.xlu0 %v4772, 120
  %v5140 = vpop.permute.xlu0 %5139
  %v5141 = vmul.f32 %v5140, %v3430
  %s5142 = scalar_lea.vmem %s11, 32
  %v5143 = vld [vmem:[%s5142] sm:$0x3]
  %v5144 = vpack.c.bf16 %v5141, %v5141
  %v5146 = vsel %vm130, %v5143, 0
  %v5149 = vsel %vm137, %v5144, 0
  %5151 = vmatprep.subr.bf16.mxu0 0
  %5152 = vmatpush1.bf16.msra.mxu0 0
  %5153 = vmatprep.subr.bf16.mxu0 0
  %5154 = vmatpush1.bf16.msra.mxu0 0
  %5155 = vmatprep.subr.bf16.mxu0 0
  %5156 = vmatpush1.bf16.msra.mxu0 0
  %5157 = vmatprep.subr.bf16.mxu0 0
  %5158 = vmatpush1.bf16.msra.mxu0 0
  %5159 = vmatprep.subr.bf16.mxu0 0
  %5160 = vmatpush1.bf16.msra.mxu0 0
  %5161 = vmatprep.subr.bf16.mxu0 0
  %5162 = vmatpush1.bf16.msra.mxu0 0
  %5163 = vmatprep.subr.bf16.mxu0 0
  %5164 = vmatpush1.bf16.msra.mxu0 0
  %5165 = vmatprep.subr.bf16.mxu0 0
  %5166 = vmatpush1.bf16.msra.mxu0 %v5149
  %5167 = vmatprep.subr.bf16.mxu0 0
  %5168 = vmatpush2.bf16.msra.mxu0 0
  %5169 = vmatprep.subr.bf16.mxu0 0
  %5170 = vmatpush2.bf16.msra.mxu0 0
  %5171 = vmatprep.subr.bf16.mxu0 0
  %5172 = vmatpush2.bf16.msra.mxu0 0
  %5173 = vmatprep.subr.bf16.mxu0 0
  %5174 = vmatpush2.bf16.msra.mxu0 0
  %5175 = vmatprep.subr.bf16.mxu0 0
  %5176 = vmatpush2.bf16.msra.mxu0 0
  %5177 = vmatprep.subr.bf16.mxu0 0
  %5178 = vmatpush2.bf16.msra.mxu0 0
  %5179 = vmatprep.subr.bf16.mxu0 0
  %5180 = vmatpush2.bf16.msra.mxu0 0
  %5181 = vmatprep.subr.bf16.mxu0 0
  %5182 = vmatpush2.bf16.msra.mxu0 0
  %5183 = vmatprep.mubr.bf16.mxu0 0
  %5184 = vmatmul.mubr.bf16.gmra.mxu0 %v5146
  %v5185 = vpop.f32.mrf.mxu0
  %v5186 = vadd.f32 0.0, %v5185
  %v5187 = vpop.f32.mrf.mxu0
  %v5188 = vpop.f32.mrf.mxu0
  %v5189 = vpop.f32.mrf.mxu0
  %5190 = vdwg.mxu0
  %v5191 = vadd.f32 %v5138, %v5186
  %5192 = vrot.lane.b32.xlu0 %v4772, 119
  %v5193 = vpop.permute.xlu0 %5192
  %v5194 = vmul.f32 %v5193, %v3516
  %s5195 = scalar_lea.vmem %s11, 34
  %v5196 = vld [vmem:[%s5195] sm:$0x3]
  %v5197 = vpack.c.bf16 %v5194, %v5194
  %v5199 = vsel %vm130, %v5196, 0
  %v5202 = vsel %vm137, %v5197, 0
  %5204 = vmatprep.subr.bf16.mxu0 0
  %5205 = vmatpush1.bf16.msra.mxu0 0
  %5206 = vmatprep.subr.bf16.mxu0 0
  %5207 = vmatpush1.bf16.msra.mxu0 0
  %5208 = vmatprep.subr.bf16.mxu0 0
  %5209 = vmatpush1.bf16.msra.mxu0 0
  %5210 = vmatprep.subr.bf16.mxu0 0
  %5211 = vmatpush1.bf16.msra.mxu0 0
  %5212 = vmatprep.subr.bf16.mxu0 0
  %5213 = vmatpush1.bf16.msra.mxu0 0
  %5214 = vmatprep.subr.bf16.mxu0 0
  %5215 = vmatpush1.bf16.msra.mxu0 0
  %5216 = vmatprep.subr.bf16.mxu0 0
  %5217 = vmatpush1.bf16.msra.mxu0 0
  %5218 = vmatprep.subr.bf16.mxu0 0
  %5219 = vmatpush1.bf16.msra.mxu0 %v5202
  %5220 = vmatprep.subr.bf16.mxu0 0
  %5221 = vmatpush2.bf16.msra.mxu0 0
  %5222 = vmatprep.subr.bf16.mxu0 0
  %5223 = vmatpush2.bf16.msra.mxu0 0
  %5224 = vmatprep.subr.bf16.mxu0 0
  %5225 = vmatpush2.bf16.msra.mxu0 0
  %5226 = vmatprep.subr.bf16.mxu0 0
  %5227 = vmatpush2.bf16.msra.mxu0 0
  %5228 = vmatprep.subr.bf16.mxu0 0
  %5229 = vmatpush2.bf16.msra.mxu0 0
  %5230 = vmatprep.subr.bf16.mxu0 0
  %5231 = vmatpush2.bf16.msra.mxu0 0
  %5232 = vmatprep.subr.bf16.mxu0 0
  %5233 = vmatpush2.bf16.msra.mxu0 0
  %5234 = vmatprep.subr.bf16.mxu0 0
  %5235 = vmatpush2.bf16.msra.mxu0 0
  %5236 = vmatprep.mubr.bf16.mxu0 0
  %5237 = vmatmul.mubr.bf16.gmra.mxu0 %v5199
  %v5238 = vpop.f32.mrf.mxu0
  %v5239 = vadd.f32 0.0, %v5238
  %v5240 = vpop.f32.mrf.mxu0
  %v5241 = vpop.f32.mrf.mxu0
  %v5242 = vpop.f32.mrf.mxu0
  %5243 = vdwg.mxu0
  %v5244 = vadd.f32 %v5191, %v5239
  %s5245 = scalar_lea.vmem %s12, 4
  %v5246 = vld [vmem:[%s5245] sm:$0xf]
  %5248 = vset.pattern.permute.xlu0 0
  %5249 = vperm.xlu0 %5248, %v5246
  %v5250 = vpop.permute.xlu0 %5249
  %v5252 = vmul.f32 %v5244, %v5250
  %s5253 = scalar_lea.vmem %s13, 4
  %v5254 = vld [vmem:[%s5253] sm:$0xf]
  %5256 = vset.pattern.permute.xlu0 0
  %5257 = vperm.xlu0 %5256, %v5254
  %v5258 = vpop.permute.xlu0 %5257
  %v5260 = vadd.f32 %v5252, %v5258
  %v5261 = vmax.f32 %v5260, 0.0
  %s5262 = scalar_lea.vmem %s14, 4
  %v5263 = vld [vmem:[%s5262] sm:$0xf]
  %5265 = vset.pattern.permute.xlu0 0
  %5266 = vperm.xlu0 %5265, %v5263
  %v5267 = vpop.permute.xlu0 %5266
  %v5269 = vmul.f32 %v5261, %v5267
  %v5270 = vsel %vm137, %v5269, 0.0
  %v5271 = vrot.slane %v5270, 4
  %v5272 = vadd.f32 %v5270, %v5271
  %v5273 = vrot.slane %v5272, 2
  %v5274 = vadd.f32 %v5272, %v5273
  %v5275 = vrot.slane %v5274, 1
  %v5276 = vadd.f32 %v5274, %v5275
  %s5277 = scalar_lea.vmem %s15, 1
  %v5278 = vld [vmem:[%s5277] sm:$0x1]
  %5280 = vset.pattern.permute.xlu0 0
  %5281 = vperm.xlu0 %5280, %v5278
  %v5282 = vpop.permute.xlu0 %5281
  %v5284 = vlaneseq
  %v5285 = vshrl.u32 %v5284, 7
  %v5286 = vsub.s32 0, %v5285
  %v5287 = vrot.slane %v5282, %v5286
  %v5288 = vadd.f32 %v5276, %v5287
  %5290 = vrot.lane.b32.xlu0 %v5288, 64
  %v5291 = vpop.permute.xlu0 %5290
  %v5293 = vsel %vm2555, %v5288, %v5291
  %v5294 = vsel %vm2557, %v5293, -inf
  %5295 = vmax.xlane.f32.xlu0 %v5294
  %v5296 = vpop.xlane.xlu0 %5295
  %v5297 = vsub.f32 %v5293, %v5296
  %v5298 = vmul.f32 %v5297, 1.442695
  %v5299 = vpow.pop %v5298
  %v5300 = vsel %vm2557, %v5299, 0.0
  %5301 = vadd.xlane.f32.xlu0 %v5300
  %v5302 = vpop.xlane.xlu0 %5301
  %v5303 = vrcp.pop %v5302
  %v5304 = vmul.f32 %v5299, %v5303
  %s5305 = scalar_lea.vmem %s16, 2
  %v5306 = vld [vmem:[%s5305] sm:$0x3]
  %v5307 = vmul.f32 %v5306, %v5304
  %v5308 = vsel %vm2557, %v5307, 0.0
  %5309 = vadd.xlane.f32.xlu0 %v5308
  %v5310 = vpop.xlane.xlu0 %5309
  %s5311 = scalar_lea.vmem %s17, 2
  %v5312 = vld [vmem:[%s5311] sm:$0x3]
  %v5313 = vmul.f32 %v5312, %v5304
  %v5314 = vsel %vm2557, %v5313, 0.0
  %5315 = vadd.xlane.f32.xlu0 %v5314
  %v5316 = vpop.xlane.xlu0 %5315
  %v5317 = vsel %vm2579, %v5310, %v5316
  %v5318 = vmul.f32 %v5317, 0.0078125
  %v5319 = vld [vmem:[%s18] sm:$0xff]
  %v5320 = vld [vmem:[%s18 + $0x8] sm:$0xff]
  %v5321 = vld [vmem:[%s18 + $0x10] sm:$0xff]
  %v5322 = vld [vmem:[%s18 + $0x18] sm:$0xff]
  %v5323 = vld [vmem:[%s18 + $0x20] sm:$0xff]
  %v5324 = vld [vmem:[%s18 + $0x28] sm:$0xff]
  %v5325 = vld [vmem:[%s18 + $0x30] sm:$0xff]
  %v5326 = vld [vmem:[%s18 + $0x38] sm:$0xff]
  %v5327 = vld [vmem:[%s19] sm:$0x1]
  %v5329 = vlaneseq
  %v5330 = vshrl.u32 %v5329, 7
  %v5331 = vsub.s32 0, %v5330
  %v5332 = vrot.slane %v5327, %v5331
  %v5335 = vsel %vm86, %v5293, 0
  %5337 = vmatprep.subr.mxu0 0.0
  %5338 = vmatpush1.msra.mxu0 0.0
  %5339 = vmatprep.subr.mxu0 0.0
  %5340 = vmatpush1.msra.mxu0 0.0
  %5341 = vmatprep.subr.mxu0 0.0
  %5342 = vmatpush1.msra.mxu0 0.0
  %5343 = vmatprep.subr.mxu0 0.0
  %5344 = vmatpush1.msra.mxu0 0.0
  %5345 = vmatprep.subr.mxu0 0.0
  %5346 = vmatpush1.msra.mxu0 0.0
  %5347 = vmatprep.subr.mxu0 0.0
  %5348 = vmatpush1.msra.mxu0 0.0
  %5349 = vmatprep.subr.mxu0 0.0
  %5350 = vmatpush1.msra.mxu0 0.0
  %5351 = vmatprep.subr.mxu0 0.0
  %5352 = vmatpush1.msra.mxu0 0.0
  %5353 = vmatprep.subr.mxu0 0.0
  %5354 = vmatpush1.msra.mxu0 %v5326
  %5355 = vmatprep.subr.mxu0 0.0
  %5356 = vmatpush1.msra.mxu0 %v5325
  %5357 = vmatprep.subr.mxu0 0.0
  %5358 = vmatpush1.msra.mxu0 %v5324
  %5359 = vmatprep.subr.mxu0 0.0
  %5360 = vmatpush1.msra.mxu0 %v5323
  %5361 = vmatprep.subr.mxu0 0.0
  %5362 = vmatpush1.msra.mxu0 %v5322
  %5363 = vmatprep.subr.mxu0 0.0
  %5364 = vmatpush1.msra.mxu0 %v5321
  %5365 = vmatprep.subr.mxu0 0.0
  %5366 = vmatpush1.msra.mxu0 %v5320
  %5367 = vmatprep.subr.mxu0 0.0
  %5368 = vmatpush1.msra.mxu0 %v5319
  %5369 = vmatprep.subr.mxu0 0.0
  %5370 = vmatpush2.msra.mxu0 0.0
  %5371 = vmatprep.subr.mxu0 0.0
  %5372 = vmatpush2.msra.mxu0 0.0
  %5373 = vmatprep.subr.mxu0 0.0
  %5374 = vmatpush2.msra.mxu0 0.0
  %5375 = vmatprep.subr.mxu0 0.0
  %5376 = vmatpush2.msra.mxu0 0.0
  %5377 = vmatprep.subr.mxu0 0.0
  %5378 = vmatpush2.msra.mxu0 0.0
  %5379 = vmatprep.subr.mxu0 0.0
  %5380 = vmatpush2.msra.mxu0 0.0
  %5381 = vmatprep.subr.mxu0 0.0
  %5382 = vmatpush2.msra.mxu0 0.0
  %5383 = vmatprep.subr.mxu0 0.0
  %5384 = vmatpush2.msra.mxu0 0.0
  %5385 = vmatprep.subr.mxu0 0.0
  %5386 = vmatpush2.msra.mxu0 0.0
  %5387 = vmatprep.subr.mxu0 0.0
  %5388 = vmatpush2.msra.mxu0 0.0
  %5389 = vmatprep.subr.mxu0 0.0
  %5390 = vmatpush2.msra.mxu0 0.0
  %5391 = vmatprep.subr.mxu0 0.0
  %5392 = vmatpush2.msra.mxu0 0.0
  %5393 = vmatprep.subr.mxu0 0.0
  %5394 = vmatpush2.msra.mxu0 0.0
  %5395 = vmatprep.subr.mxu0 0.0
  %5396 = vmatpush2.msra.mxu0 0.0
  %5397 = vmatprep.subr.mxu0 0.0
  %5398 = vmatpush2.msra.mxu0 0.0
  %5399 = vmatprep.subr.mxu0 0.0
  %5400 = vmatpush2.msra.mxu0 0.0
  %5401 = vmatprep.mubr.f32.mxu0 0.0
  %5402 = vmatmul.mubr.f32.gmra.mxu0 %v5335
  %v5403 = vpop.f32.mrf.mxu0
  %v5404 = vadd.f32 %v5332, %v5403
  %v5405 = vpop.f32.mrf.mxu0
  %5406 = vdwg.mxu0
  %v5407 = vmax.f32 %v5404, 0.0
  %v5408 = vld [vmem:[%s20] sm:$0xff]
  %v5409 = vld [vmem:[%s21] sm:$0x1]
  %v5411 = vlaneseq
  %v5412 = vshrl.u32 %v5411, 7
  %v5413 = vsub.s32 0, %v5412
  %v5414 = vrot.slane %v5409, %v5413
  %v5417 = vsel %vm130, %v5407, 0
  %5419 = vmatprep.subr.mxu0 0.0
  %5420 = vmatpush1.msra.mxu0 0.0
  %5421 = vmatprep.subr.mxu0 0.0
  %5422 = vmatpush1.msra.mxu0 0.0
  %5423 = vmatprep.subr.mxu0 0.0
  %5424 = vmatpush1.msra.mxu0 0.0
  %5425 = vmatprep.subr.mxu0 0.0
  %5426 = vmatpush1.msra.mxu0 0.0
  %5427 = vmatprep.subr.mxu0 0.0
  %5428 = vmatpush1.msra.mxu0 0.0
  %5429 = vmatprep.subr.mxu0 0.0
  %5430 = vmatpush1.msra.mxu0 0.0
  %5431 = vmatprep.subr.mxu0 0.0
  %5432 = vmatpush1.msra.mxu0 0.0
  %5433 = vmatprep.subr.mxu0 0.0
  %5434 = vmatpush1.msra.mxu0 0.0
  %5435 = vmatprep.subr.mxu0 0.0
  %5436 = vmatpush1.msra.mxu0 0.0
  %5437 = vmatprep.subr.mxu0 0.0
  %5438 = vmatpush1.msra.mxu0 0.0
  %5439 = vmatprep.subr.mxu0 0.0
  %5440 = vmatpush1.msra.mxu0 0.0
  %5441 = vmatprep.subr.mxu0 0.0
  %5442 = vmatpush1.msra.mxu0 0.0
  %5443 = vmatprep.subr.mxu0 0.0
  %5444 = vmatpush1.msra.mxu0 0.0
  %5445 = vmatprep.subr.mxu0 0.0
  %5446 = vmatpush1.msra.mxu0 0.0
  %5447 = vmatprep.subr.mxu0 0.0
  %5448 = vmatpush1.msra.mxu0 0.0
  %5449 = vmatprep.subr.mxu0 0.0
  %5450 = vmatpush1.msra.mxu0 %v5408
  %5451 = vmatprep.subr.mxu0 0.0
  %5452 = vmatpush2.msra.mxu0 0.0
  %5453 = vmatprep.subr.mxu0 0.0
  %5454 = vmatpush2.msra.mxu0 0.0
  %5455 = vmatprep.subr.mxu0 0.0
  %5456 = vmatpush2.msra.mxu0 0.0
  %5457 = vmatprep.subr.mxu0 0.0
  %5458 = vmatpush2.msra.mxu0 0.0
  %5459 = vmatprep.subr.mxu0 0.0
  %5460 = vmatpush2.msra.mxu0 0.0
  %5461 = vmatprep.subr.mxu0 0.0
  %5462 = vmatpush2.msra.mxu0 0.0
  %5463 = vmatprep.subr.mxu0 0.0
  %5464 = vmatpush2.msra.mxu0 0.0
  %5465 = vmatprep.subr.mxu0 0.0
  %5466 = vmatpush2.msra.mxu0 0.0
  %5467 = vmatprep.subr.mxu0 0.0
  %5468 = vmatpush2.msra.mxu0 0.0
  %5469 = vmatprep.subr.mxu0 0.0
  %5470 = vmatpush2.msra.mxu0 0.0
  %5471 = vmatprep.subr.mxu0 0.0
  %5472 = vmatpush2.msra.mxu0 0.0
  %5473 = vmatprep.subr.mxu0 0.0
  %5474 = vmatpush2.msra.mxu0 0.0
  %5475 = vmatprep.subr.mxu0 0.0
  %5476 = vmatpush2.msra.mxu0 0.0
  %5477 = vmatprep.subr.mxu0 0.0
  %5478 = vmatpush2.msra.mxu0 0.0
  %5479 = vmatprep.subr.mxu0 0.0
  %5480 = vmatpush2.msra.mxu0 0.0
  %5481 = vmatprep.subr.mxu0 0.0
  %5482 = vmatpush2.msra.mxu0 0.0
  %5483 = vmatprep.mubr.f32.mxu0 0.0
  %5484 = vmatmul.mubr.f32.gmra.mxu0 %v5417
  %v5485 = vpop.f32.mrf.mxu0
  %v5486 = vadd.f32 %v5414, %v5485
  %v5487 = vpop.f32.mrf.mxu0
  %5488 = vdwg.mxu0
  %v5489 = vmax.f32 %v5486, 0.0
  %v5490 = vld [vmem:[%s22] sm:$0xff]
  %v5491 = vld [vmem:[#allocation2] sm:$0x1]
  %v5493 = vlaneseq
  %v5494 = vshrl.u32 %v5493, 7
  %v5495 = vsub.s32 0, %v5494
  %v5496 = vrot.slane %v5491, %v5495
  %v5499 = vsel %vm130, %v5489, 0
  %5501 = vmatprep.subr.mxu0 0.0
  %5502 = vmatpush1.msra.mxu0 0.0
  %5503 = vmatprep.subr.mxu0 0.0
  %5504 = vmatpush1.msra.mxu0 0.0
  %5505 = vmatprep.subr.mxu0 0.0
  %5506 = vmatpush1.msra.mxu0 0.0
  %5507 = vmatprep.subr.mxu0 0.0
  %5508 = vmatpush1.msra.mxu0 0.0
  %5509 = vmatprep.subr.mxu0 0.0
  %5510 = vmatpush1.msra.mxu0 0.0
  %5511 = vmatprep.subr.mxu0 0.0
  %5512 = vmatpush1.msra.mxu0 0.0
  %5513 = vmatprep.subr.mxu0 0.0
  %5514 = vmatpush1.msra.mxu0 0.0
  %5515 = vmatprep.subr.mxu0 0.0
  %5516 = vmatpush1.msra.mxu0 0.0
  %5517 = vmatprep.subr.mxu0 0.0
  %5518 = vmatpush1.msra.mxu0 0.0
  %5519 = vmatprep.subr.mxu0 0.0
  %5520 = vmatpush1.msra.mxu0 0.0
  %5521 = vmatprep.subr.mxu0 0.0
  %5522 = vmatpush1.msra.mxu0 0.0
  %5523 = vmatprep.subr.mxu0 0.0
  %5524 = vmatpush1.msra.mxu0 0.0
  %5525 = vmatprep.subr.mxu0 0.0
  %5526 = vmatpush1.msra.mxu0 0.0
  %5527 = vmatprep.subr.mxu0 0.0
  %5528 = vmatpush1.msra.mxu0 0.0
  %5529 = vmatprep.subr.mxu0 0.0
  %5530 = vmatpush1.msra.mxu0 0.0
  %5531 = vmatprep.subr.mxu0 0.0
  %5532 = vmatpush1.msra.mxu0 %v5490
  %5533 = vmatprep.subr.mxu0 0.0
  %5534 = vmatpush2.msra.mxu0 0.0
  %5535 = vmatprep.subr.mxu0 0.0
  %5536 = vmatpush2.msra.mxu0 0.0
  %5537 = vmatprep.subr.mxu0 0.0
  %5538 = vmatpush2.msra.mxu0 0.0
  %5539 = vmatprep.subr.mxu0 0.0
  %5540 = vmatpush2.msra.mxu0 0.0
  %5541 = vmatprep.subr.mxu0 0.0
  %5542 = vmatpush2.msra.mxu0 0.0
  %5543 = vmatprep.subr.mxu0 0.0
  %5544 = vmatpush2.msra.mxu0 0.0
  %5545 = vmatprep.subr.mxu0 0.0
  %5546 = vmatpush2.msra.mxu0 0.0
  %5547 = vmatprep.subr.mxu0 0.0
  %5548 = vmatpush2.msra.mxu0 0.0
  %5549 = vmatprep.subr.mxu0 0.0
  %5550 = vmatpush2.msra.mxu0 0.0
  %5551 = vmatprep.subr.mxu0 0.0
  %5552 = vmatpush2.msra.mxu0 0.0
  %5553 = vmatprep.subr.mxu0 0.0
  %5554 = vmatpush2.msra.mxu0 0.0
  %5555 = vmatprep.subr.mxu0 0.0
  %5556 = vmatpush2.msra.mxu0 0.0
  %5557 = vmatprep.subr.mxu0 0.0
  %5558 = vmatpush2.msra.mxu0 0.0
  %5559 = vmatprep.subr.mxu0 0.0
  %5560 = vmatpush2.msra.mxu0 0.0
  %5561 = vmatprep.subr.mxu0 0.0
  %5562 = vmatpush2.msra.mxu0 0.0
  %5563 = vmatprep.subr.mxu0 0.0
  %5564 = vmatpush2.msra.mxu0 0.0
  %5565 = vmatprep.mubr.f32.mxu0 0.0
  %5566 = vmatmul.mubr.f32.gmra.mxu0 %v5499
  %v5567 = vpop.f32.mrf.mxu0
  %v5568 = vadd.f32 %v5496, %v5567
  %v5569 = vpop.f32.mrf.mxu0
  %5570 = vdwg.mxu0
  %5572 = vrot.lane.b32.xlu0 %v5568, 2
  %v5573 = vpop.permute.xlu0 %5572
  %v5575 = vsel %vm2838, %v5318, %v5573
  %v5576 = vsel %vm2840, %v5575, 0.0
  %s5577 = scalar_lea.vmem %s24, 2
  %5578 = vst [vmem:[%s5577] sm:$0x3] %v5576
  // Predicated region
  $region98: #{corner_exit_predictor_forward.1} parent=0 // pred_check
    _
  $region99: #{corner_exit_predictor_forward.1} parent=0 // pred_check_branch
    %5580 = sbr.rel (0) target = $region101
  $region100: #{corner_exit_predictor_forward.1} parent=0 // pred_region
    _
  $region101: #{corner_exit_predictor_forward.1} parent=0 // pred_fallthru
    _
  // Predicated region
  $region102: #{corner_exit_predictor_forward.1} parent=0 // pred_check
    _
  $region103: #{corner_exit_predictor_forward.1} parent=0 // pred_check_branch
    %5582 = sbr.rel (0) target = $region105
  $region104: #{corner_exit_predictor_forward.1} parent=0 // pred_region
    _
  $region105: #{corner_exit_predictor_forward.1} parent=0 // pred_fallthru
    _

</llo_original>
